<compile_context>
chip_gen: v6e
topology: v6e:2x2x1
jax: 0.10.0
libtpu: 0.0.40
codegen_flags: <defaults>
</compile_context>

<pallas_src>
import functools

import jax
import jax.numpy as jnp
from jax.experimental import pallas as pl
from jax.experimental.pallas import tpu as pltpu


# ----------------------------------------------------------------------------
# Pallas kernels
# ----------------------------------------------------------------------------

def _matmul_bias_kernel(a_ref, b_ref, bias_ref, o_ref, *, activation):
    acc = jnp.dot(a_ref[...], b_ref[...], preferred_element_type=jnp.float32)
    acc = acc + bias_ref[...]
    if activation == "leaky_relu":
        acc = jnp.where(acc >= 0.0, acc, 0.1 * acc)
    o_ref[...] = acc.astype(o_ref.dtype)


def pallas_matmul_bias(a, b, bias, activation=None, out_dtype=jnp.bfloat16):
    """(M, K) @ (K, N) + bias[N], optional fused LeakyReLU(0.1).

    a/b are expected in bf16; accumulation is f32; output dtype is
    `out_dtype` (bf16 for intermediate activations).  Tiles: a single grid
    step when the problem is tiny, a 2-way "parallel" M split for the two
    GEMMs with meaningful M (megacore sharding on v7x).  N is always a
    full-dim block (N <= 128 here), so no padded HBM copies are needed.
    """
    M, K = a.shape
    K2, N = b.shape
    assert K == K2

    if M >= 512 and M % 16 == 0:
        bm = M // 2          # one block per TensorCore on v7x; noise elsewhere
    else:
        bm = M               # single-step grid: avoid per-step pipeline overhead
    bn = N                   # full-dim block; all N here are <= 128

    bias_f = bias.astype(jnp.float32).reshape(1, N)

    return pl.pallas_call(
        functools.partial(_matmul_bias_kernel, activation=activation),
        out_shape=jax.ShapeDtypeStruct((M, N), out_dtype),
        grid=(M // bm, N // bn),
        in_specs=[
            pl.BlockSpec((bm, K), lambda i, j: (i, 0)),
            pl.BlockSpec((K, bn), lambda i, j: (0, j)),
            pl.BlockSpec((1, bn), lambda i, j: (0, j)),
        ],
        out_specs=pl.BlockSpec((bm, bn), lambda i, j: (i, j)),
        compiler_params=pltpu.CompilerParams(
            dimension_semantics=("parallel", "parallel")),
    )(a, b, bias_f)


def _self_attention_kernel(x_ref, wq_ref, wk_ref, wv_ref,
                           bq_ref, bk_ref, bv_ref, gamma_ref,
                           attn_ref, out_ref):
    """Fused SAGAN self-attention block for one batch element.

    x: (N, C) bf16 spatial-major.  Computes q/k/v (1x1 convs) in VMEM,
    the attention map (== row-softmax of K @ Q^T, matching PyTorch's
    softmax(dim=-2) of Q@K^T followed by the permute), o = attn @ V, and the
    residual x + gamma * o.  q/k/v never hit HBM.
    """
    x = x_ref[0]                                               # (N, C) bf16

    # q/k/v projections: bf16 MXU matmuls, f32 accumulation + bias.
    q = jnp.dot(x, wq_ref[...], preferred_element_type=jnp.float32) + bq_ref[...]
    k = jnp.dot(x, wk_ref[...], preferred_element_type=jnp.float32) + bk_ref[...]
    v = jnp.dot(x, wv_ref[...], preferred_element_type=jnp.float32) + bv_ref[...]

    # Scores S_T[i, j] = k_i . q_j  (== PyTorch S[j, i]).  The NT contraction
    # transposes a single-vreg-sized q tile on the XLU; negligible at N<=64.
    s = jax.lax.dot_general(
        k.astype(jnp.bfloat16), q.astype(jnp.bfloat16),
        (((1,), (1,)), ((), ())), preferred_element_type=jnp.float32)   # (N, N)

    # attention_map (PyTorch return value) = row-softmax of S_T.
    s = s - jnp.max(s, axis=-1, keepdims=True)
    e = jnp.exp(s)
    a = e / jnp.sum(e, axis=-1, keepdims=True)     # exact division: rows sum to 1
    attn_ref[0] = a

    # o[n, c] = sum_i attn[n, i] * v[i, c];  fused residual x + gamma * o.
    o = jnp.dot(a.astype(jnp.bfloat16), v.astype(jnp.bfloat16),
                preferred_element_type=jnp.float32)                     # (N, C)
    gamma = gamma_ref[0, 0]
    out_ref[0] = (x.astype(jnp.float32) + gamma * o).astype(out_ref.dtype)


def pallas_self_attention_block(x, wq, wk, wv, bq, bk, bv, gamma,
                                out_dtype=jnp.bfloat16):
    """x: (B, N, C) bf16.  Returns (out (B,N,C) bf16, attn (B,N,N) f32)."""
    B, N, C = x.shape
    C8 = wq.shape[1]
    attn, out = pl.pallas_call(
        _self_attention_kernel,
        out_shape=(jax.ShapeDtypeStruct((B, N, N), jnp.float32),
                   jax.ShapeDtypeStruct((B, N, C), out_dtype)),
        grid=(B,),
        in_specs=[
            pl.BlockSpec((1, N, C), lambda b: (b, 0, 0)),   # x (per-batch tile)
            pl.BlockSpec((C, C8), lambda b: (0, 0)),        # wq
            pl.BlockSpec((C, C8), lambda b: (0, 0)),        # wk
            pl.BlockSpec((C, C), lambda b: (0, 0)),         # wv
            pl.BlockSpec((1, C8), lambda b: (0, 0)),        # bq
            pl.BlockSpec((1, C8), lambda b: (0, 0)),        # bk
            pl.BlockSpec((1, C), lambda b: (0, 0)),         # bv
            pl.BlockSpec((1, 1), lambda b: (0, 0)),         # gamma
        ],
        out_specs=(pl.BlockSpec((1, N, N), lambda b: (b, 0, 0)),
                   pl.BlockSpec((1, N, C), lambda b: (b, 0, 0))),
        compiler_params=pltpu.CompilerParams(
            dimension_semantics=("parallel",)),   # batch axis -> both v7x cores
    )(x, wq, wk, wv, bq, bk, bv, gamma)
    return out, attn


# ----------------------------------------------------------------------------
# Module pieces (glue + Pallas calls)
# ----------------------------------------------------------------------------

def conv2d_nhwc(x, w, b, stride, padding, activation=None,
                out_dtype=jnp.bfloat16):
    """Conv2d, NHWC in/out.  w: PyTorch layout (Cout, Cin, kh, kw).

    im2col patch extraction is JAX glue; the GEMM (+ bias + fused LeakyReLU)
    runs in the Pallas matmul kernel with bf16 operands / f32 accumulation.
    """
    B, H, W, Cin = x.shape
    Cout, _, kh, kw = w.shape
    xp = jnp.pad(x, ((0, 0), (padding, padding), (padding, padding), (0, 0)))
    Hout = (H + 2 * padding - kh) // stride + 1
    Wout = (W + 2 * padding - kw) // stride + 1
    patches = []
    for i in range(kh):
        for j in range(kw):
            patches.append(
                xp[:, i:i + stride * (Hout - 1) + 1:stride,
                   j:j + stride * (Wout - 1) + 1:stride, :])
    patches = jnp.concatenate(patches, axis=-1)          # (B, Hout, Wout, kh*kw*Cin)
    w_mat = (jnp.transpose(w, (2, 3, 1, 0))
             .reshape(kh * kw * Cin, Cout).astype(jnp.bfloat16))
    a = patches.reshape(B * Hout * Wout, kh * kw * Cin)  # already bf16
    out = pallas_matmul_bias(a, w_mat, b, activation=activation,
                             out_dtype=out_dtype)
    return out.reshape(B, Hout, Wout, Cout)


def self_attention_nhwc(x, p):
    B, H, W, C = x.shape
    N = H * W
    xf = x.reshape(B, N, C)
    out, attn = pallas_self_attention_block(
        xf,
        p["wq"].astype(jnp.bfloat16),
        p["wk"].astype(jnp.bfloat16),
        p["wv"].astype(jnp.bfloat16),
        p["bq"].astype(jnp.float32).reshape(1, -1),
        p["bk"].astype(jnp.float32).reshape(1, -1),
        p["bv"].astype(jnp.float32).reshape(1, -1),
        p["gamma"].astype(jnp.float32).reshape(1, 1),
    )
    return out.reshape(B, H, W, C), attn


def last_conv_plain(x, w, b):
    """Final Conv2d(k=4, s=1, p=0) on a 4x4 input.

    Degenerate GEMM (M=B, K=4*4*Cin, N=1) — fully masked stores in Pallas, so
    per perf feedback it is a plain XLA dot in the wrapper.
    """
    B, H, W, Cin = x.shape
    Cout, _, kh, kw = w.shape
    assert H == kh and W == kw
    a = x.reshape(B, H * W * Cin).astype(jnp.float32)                # NHWC order
    w_vec = jnp.transpose(w, (2, 3, 1, 0)).reshape(kh * kw * Cin, Cout)
    out = a @ w_vec + b.astype(jnp.float32)                          # (B, Cout)
    return out.reshape(B, Cout, 1, 1)                                # NCHW


# ----------------------------------------------------------------------------
# Parameters (deterministic, synthetic)
# ----------------------------------------------------------------------------

def spectral_normalize(w, key, n_iter=3, eps=1e-12):
    # PyTorch spectral_norm uses dim=0 (out_channels) for Conv2d.
    # TODO(synk): PyTorch runs one power-iteration per forward with a persistent
    # u buffer; here we run a fixed number of deterministic iterations at init.
    w_mat = w.reshape(w.shape[0], -1)
    u = jax.random.normal(key, (w_mat.shape[0],), dtype=jnp.float32)
    u = u / (jnp.linalg.norm(u) + eps)
    v = w_mat.T @ u
    for _ in range(n_iter):
        v = w_mat.T @ u
        v = v / (jnp.linalg.norm(v) + eps)
        u = w_mat @ v
        u = u / (jnp.linalg.norm(u) + eps)
    sigma = u @ (w_mat @ v)
    return w / sigma


def init_params(key, image_size=16):
    c1, c2, c3, c4 = image_size, image_size * 2, image_size * 4, image_size * 8
    keys = jax.random.split(key, 40)
    ki = iter(keys)

    def nrm(shape, scale=0.05):
        return scale * jax.random.normal(next(ki), shape, dtype=jnp.float32)

    def conv_layer(cin, cout, spectral=True):
        w = nrm((cout, cin, 4, 4))
        if spectral:
            w = spectral_normalize(w, next(ki))
        return {"w": w, "b": nrm((cout,))}

    def attn_layer(c):
        c8 = c // 8
        return {"wq": nrm((c, c8)), "bq": nrm((c8,)),
                "wk": nrm((c, c8)), "bk": nrm((c8,)),
                "wv": nrm((c, c)), "bv": nrm((c,)),
                "gamma": jnp.zeros((), jnp.float32)}

    return {
        "l1": conv_layer(1, c1),
        "l2": conv_layer(c1, c2),
        "l3": conv_layer(c2, c3),
        "attn1": attn_layer(c3),
        "l4": conv_layer(c3, c4),
        "attn2": attn_layer(c4),
        "last": conv_layer(c4, 1, spectral=False),
    }


# ----------------------------------------------------------------------------
# Discriminator forward
# ----------------------------------------------------------------------------

def discriminator_forward(x_nchw, params):
    # NCHW -> NHWC; activations flow through the network in bf16 (f32 accumulate
    # inside every Pallas kernel); attention maps are returned in f32.
    x = jnp.transpose(x_nchw, (0, 2, 3, 1)).astype(jnp.bfloat16)
    # layer1..layer4: spectral-norm Conv(k=4, s=2, p=1) + LeakyReLU(0.1) fused in GEMM
    x = conv2d_nhwc(x, params["l1"]["w"], params["l1"]["b"], 2, 1, "leaky_relu")   # 64->32
    x = conv2d_nhwc(x, params["l2"]["w"], params["l2"]["b"], 2, 1, "leaky_relu")   # 32->16
    x = conv2d_nhwc(x, params["l3"]["w"], params["l3"]["b"], 2, 1, "leaky_relu")   # 16->8
    x, attn1 = self_attention_nhwc(x, params["attn1"])                             # N = 64
    x = conv2d_nhwc(x, params["l4"]["w"], params["l4"]["b"], 2, 1, "leaky_relu")   # 8->4
    x, attn2 = self_attention_nhwc(x, params["attn2"])                             # N = 16
    # last: Conv(k=4, s=1, p=0), no activation — degenerate GEMM, plain XLA dot  # 4->1
    out = last_conv_plain(x, params["last"]["w"], params["last"]["b"])             # NCHW
    return out, attn1, attn2


if __name__ == "__main__":
    key = jax.random.PRNGKey(0)
    pkey, xkey = jax.random.split(key)
    batch, image_size = 2, 16          # small channel base; spatial 64->32->16->8->4->1
    params = init_params(pkey, image_size=image_size)
    x = jax.random.normal(xkey, (batch, 1, 64, 64), dtype=jnp.float32)

    fwd = jax.jit(discriminator_forward)
    out, attn1, attn2 = fwd(x, params)
    jax.block_until_ready((out, attn1, attn2))

    assert out.shape == (batch, 1, 1, 1)
    assert attn1.shape == (batch, 8 * 8, 8 * 8)
    assert attn2.shape == (batch, 4 * 4, 4 * 4)
    assert bool(jnp.all(jnp.isfinite(out)))
    assert bool(jnp.all(jnp.isfinite(attn1)))
    assert bool(jnp.all(jnp.isfinite(attn2)))
    # Attention-map rows are probability distributions (exact softmax division).
    assert bool(jnp.allclose(jnp.sum(attn1, axis=-1), 1.0, atol=1e-3))
    assert bool(jnp.allclose(jnp.sum(attn2, axis=-1), 1.0, atol=1e-3))
    print("KERNEL_OK")
</pallas_src>

<mosaic_0001>
module attributes {stable_mosaic.version = 11 : i64} {
  func.func @_matmul_bias_kernel(%arg0: i32, %arg1: i32, %arg2: memref<1024x16xbf16, #tpu.memory_space<vmem>>, %arg3: memref<16x16xbf16, #tpu.memory_space<vmem>>, %arg4: memref<1x16xf32, #tpu.memory_space<vmem>>, %arg5: memref<1024x16xbf16, #tpu.memory_space<vmem>>) attributes {dimension_semantics = [#tpu.dimension_semantics<parallel>, #tpu.dimension_semantics<parallel>], iteration_bounds = array<i64: 2, 1>, scalar_prefetch = 0 : i64, scratch_operands = 0 : i64, tpu.core_type = #tpu.core_type<tc>, window_params = [{transform_indices = @transform_0, window_bounds = array<i64: 1024, 16>}, {transform_indices = @transform_1, window_bounds = array<i64: 16, 16>}, {transform_indices = @transform_2, window_bounds = array<i64: 1, 16>}, {transform_indices = @transform_3, window_bounds = array<i64: 1024, 16>}]} {
    %c0 = arith.constant 0 : index
    %c0_0 = arith.constant 0 : index
    %0 = vector.load %arg2[%c0, %c0_0] : memref<1024x16xbf16, #tpu.memory_space<vmem>>, vector<1024x16xbf16>
    %c0_1 = arith.constant 0 : index
    %c0_2 = arith.constant 0 : index
    %1 = vector.load %arg3[%c0_1, %c0_2] : memref<16x16xbf16, #tpu.memory_space<vmem>>, vector<16x16xbf16>
    %cst = arith.constant dense<0.000000e+00> : vector<1024x16xf32>
    %2 = tpu.matmul %0, %1, %cst {dimension_numbers = #tpu.dot_dimension_numbers<[1], [0], [0], [1], [0, 0, 1, 1], [], []>} : vector<1024x16xbf16>, vector<16x16xbf16>, vector<1024x16xf32> -> vector<1024x16xf32>
    %c0_3 = arith.constant 0 : index
    %c0_4 = arith.constant 0 : index
    %3 = vector.load %arg4[%c0_3, %c0_4] : memref<1x16xf32, #tpu.memory_space<vmem>>, vector<1x16xf32>
    %4 = vector.broadcast %3 : vector<1x16xf32> to vector<1024x16xf32>
    %5 = arith.addf %2, %4 : vector<1024x16xf32>
    %cst_5 = arith.constant 0.000000e+00 : f32
    %6 = vector.broadcast %cst_5 : f32 to vector<1024x16xf32>
    %7 = arith.cmpf oge, %5, %6 : vector<1024x16xf32>
    %cst_6 = arith.constant 1.000000e-01 : f32
    %8 = vector.broadcast %cst_6 : f32 to vector<1024x16xf32>
    %9 = arith.mulf %8, %5 : vector<1024x16xf32>
    %10 = arith.select %7, %5, %9 : vector<1024x16xi1>, vector<1024x16xf32>
    %11 = arith.truncf %10 : vector<1024x16xf32> to vector<1024x16xbf16>
    %c0_7 = arith.constant 0 : index
    %c0_8 = arith.constant 0 : index
    %12 = vector.load %arg5[%c0_7, %c0_8] : memref<1024x16xbf16, #tpu.memory_space<vmem>>, vector<1024x16xbf16>
    tpu.vector_store %arg5[%c0_7, %c0_8], %11 {strides = array<i32>} : memref<1024x16xbf16, #tpu.memory_space<vmem>>, vector<1024x16xbf16>,
    return
  }
  func.func @transform_0(%arg0: i32, %arg1: i32) -> (i32, i32) {
    %c0_i32 = arith.constant 0 : i32
    %c0_i32_0 = arith.constant 0 : i32
    return %arg0, %c0_i32 : i32, i32
  }
  func.func @transform_1(%arg0: i32, %arg1: i32) -> (i32, i32) {
    %c0_i32 = arith.constant 0 : i32
    %c0_i32_0 = arith.constant 0 : i32
    return %c0_i32, %arg1 : i32, i32
  }
  func.func @transform_2(%arg0: i32, %arg1: i32) -> (i32, i32) {
    %c0_i32 = arith.constant 0 : i32
    %c0_i32_0 = arith.constant 0 : i32
    return %c0_i32, %arg1 : i32, i32
  }
  func.func @transform_3(%arg0: i32, %arg1: i32) -> (i32, i32) {
    %c0_i32 = arith.constant 0 : i32
    return %arg0, %arg1 : i32, i32
  }
}

module attributes {stable_mosaic.version = 11 : i64} {
  func.func @_matmul_bias_kernel(%arg0: i32, %arg1: i32, %arg2: memref<256x256xbf16, #tpu.memory_space<vmem>>, %arg3: memref<256x32xbf16, #tpu.memory_space<vmem>>, %arg4: memref<1x32xf32, #tpu.memory_space<vmem>>, %arg5: memref<256x32xbf16, #tpu.memory_space<vmem>>) attributes {dimension_semantics = [#tpu.dimension_semantics<parallel>, #tpu.dimension_semantics<parallel>], iteration_bounds = array<i64: 2, 1>, scalar_prefetch = 0 : i64, scratch_operands = 0 : i64, tpu.core_type = #tpu.core_type<tc>, window_params = [{transform_indices = @transform_0, window_bounds = array<i64: 256, 256>}, {transform_indices = @transform_1, window_bounds = array<i64: 256, 32>}, {transform_indices = @transform_2, window_bounds = array<i64: 1, 32>}, {transform_indices = @transform_3, window_bounds = array<i64: 256, 32>}]} {
    %c0 = arith.constant 0 : index
    %c0_0 = arith.constant 0 : index
    %0 = vector.load %arg2[%c0, %c0_0] : memref<256x256xbf16, #tpu.memory_space<vmem>>, vector<256x256xbf16>
    %c0_1 = arith.constant 0 : index
    %c0_2 = arith.constant 0 : index
    %1 = vector.load %arg3[%c0_1, %c0_2] : memref<256x32xbf16, #tpu.memory_space<vmem>>, vector<256x32xbf16>
    %cst = arith.constant dense<0.000000e+00> : vector<256x32xf32>
    %2 = tpu.matmul %0, %1, %cst {dimension_numbers = #tpu.dot_dimension_numbers<[1], [0], [0], [1], [0, 0, 1, 1], [], []>} : vector<256x256xbf16>, vector<256x32xbf16>, vector<256x32xf32> -> vector<256x32xf32>
    %c0_3 = arith.constant 0 : index
    %c0_4 = arith.constant 0 : index
    %3 = vector.load %arg4[%c0_3, %c0_4] : memref<1x32xf32, #tpu.memory_space<vmem>>, vector<1x32xf32>
    %4 = vector.broadcast %3 : vector<1x32xf32> to vector<256x32xf32>
    %5 = arith.addf %2, %4 : vector<256x32xf32>
    %cst_5 = arith.constant 0.000000e+00 : f32
    %6 = vector.broadcast %cst_5 : f32 to vector<256x32xf32>
    %7 = arith.cmpf oge, %5, %6 : vector<256x32xf32>
    %cst_6 = arith.constant 1.000000e-01 : f32
    %8 = vector.broadcast %cst_6 : f32 to vector<256x32xf32>
    %9 = arith.mulf %8, %5 : vector<256x32xf32>
    %10 = arith.select %7, %5, %9 : vector<256x32xi1>, vector<256x32xf32>
    %11 = arith.truncf %10 : vector<256x32xf32> to vector<256x32xbf16>
    %c0_7 = arith.constant 0 : index
    %c0_8 = arith.constant 0 : index
    %12 = vector.load %arg5[%c0_7, %c0_8] : memref<256x32xbf16, #tpu.memory_space<vmem>>, vector<256x32xbf16>
    tpu.vector_store %arg5[%c0_7, %c0_8], %11 {strides = array<i32>} : memref<256x32xbf16, #tpu.memory_space<vmem>>, vector<256x32xbf16>,
    return
  }
  func.func @transform_0(%arg0: i32, %arg1: i32) -> (i32, i32) {
    %c0_i32 = arith.constant 0 : i32
    %c0_i32_0 = arith.constant 0 : i32
    return %arg0, %c0_i32 : i32, i32
  }
  func.func @transform_1(%arg0: i32, %arg1: i32) -> (i32, i32) {
    %c0_i32 = arith.constant 0 : i32
    %c0_i32_0 = arith.constant 0 : i32
    return %c0_i32, %arg1 : i32, i32
  }
  func.func @transform_2(%arg0: i32, %arg1: i32) -> (i32, i32) {
    %c0_i32 = arith.constant 0 : i32
    %c0_i32_0 = arith.constant 0 : i32
    return %c0_i32, %arg1 : i32, i32
  }
  func.func @transform_3(%arg0: i32, %arg1: i32) -> (i32, i32) {
    %c0_i32 = arith.constant 0 : i32
    return %arg0, %arg1 : i32, i32
  }
}

module attributes {stable_mosaic.version = 11 : i64} {
  func.func @_matmul_bias_kernel(%arg0: i32, %arg1: i32, %arg2: memref<128x512xbf16, #tpu.memory_space<vmem>>, %arg3: memref<512x64xbf16, #tpu.memory_space<vmem>>, %arg4: memref<1x64xf32, #tpu.memory_space<vmem>>, %arg5: memref<128x64xbf16, #tpu.memory_space<vmem>>) attributes {dimension_semantics = [#tpu.dimension_semantics<parallel>, #tpu.dimension_semantics<parallel>], iteration_bounds = array<i64: 1, 1>, scalar_prefetch = 0 : i64, scratch_operands = 0 : i64, tpu.core_type = #tpu.core_type<tc>, window_params = [{transform_indices = @transform_0, window_bounds = array<i64: 128, 512>}, {transform_indices = @transform_1, window_bounds = array<i64: 512, 64>}, {transform_indices = @transform_2, window_bounds = array<i64: 1, 64>}, {transform_indices = @transform_3, window_bounds = array<i64: 128, 64>}]} {
    %c0 = arith.constant 0 : index
    %c0_0 = arith.constant 0 : index
    %0 = vector.load %arg2[%c0, %c0_0] : memref<128x512xbf16, #tpu.memory_space<vmem>>, vector<128x512xbf16>
    %c0_1 = arith.constant 0 : index
    %c0_2 = arith.constant 0 : index
    %1 = vector.load %arg3[%c0_1, %c0_2] : memref<512x64xbf16, #tpu.memory_space<vmem>>, vector<512x64xbf16>
    %cst = arith.constant dense<0.000000e+00> : vector<128x64xf32>
    %2 = tpu.matmul %0, %1, %cst {dimension_numbers = #tpu.dot_dimension_numbers<[1], [0], [0], [1], [0, 0, 1, 1], [], []>} : vector<128x512xbf16>, vector<512x64xbf16>, vector<128x64xf32> -> vector<128x64xf32>
    %c0_3 = arith.constant 0 : index
    %c0_4 = arith.constant 0 : index
    %3 = vector.load %arg4[%c0_3, %c0_4] : memref<1x64xf32, #tpu.memory_space<vmem>>, vector<1x64xf32>
    %4 = vector.broadcast %3 : vector<1x64xf32> to vector<128x64xf32>
    %5 = arith.addf %2, %4 : vector<128x64xf32>
    %cst_5 = arith.constant 0.000000e+00 : f32
    %6 = vector.broadcast %cst_5 : f32 to vector<128x64xf32>
    %7 = arith.cmpf oge, %5, %6 : vector<128x64xf32>
    %cst_6 = arith.constant 1.000000e-01 : f32
    %8 = vector.broadcast %cst_6 : f32 to vector<128x64xf32>
    %9 = arith.mulf %8, %5 : vector<128x64xf32>
    %10 = arith.select %7, %5, %9 : vector<128x64xi1>, vector<128x64xf32>
    %11 = arith.truncf %10 : vector<128x64xf32> to vector<128x64xbf16>
    %c0_7 = arith.constant 0 : index
    %c0_8 = arith.constant 0 : index
    %12 = vector.load %arg5[%c0_7, %c0_8] : memref<128x64xbf16, #tpu.memory_space<vmem>>, vector<128x64xbf16>
    tpu.vector_store %arg5[%c0_7, %c0_8], %11 {strides = array<i32>} : memref<128x64xbf16, #tpu.memory_space<vmem>>, vector<128x64xbf16>,
    return
  }
  func.func @transform_0(%arg0: i32, %arg1: i32) -> (i32, i32) {
    %c0_i32 = arith.constant 0 : i32
    %c0_i32_0 = arith.constant 0 : i32
    return %arg0, %c0_i32 : i32, i32
  }
  func.func @transform_1(%arg0: i32, %arg1: i32) -> (i32, i32) {
    %c0_i32 = arith.constant 0 : i32
    %c0_i32_0 = arith.constant 0 : i32
    return %c0_i32, %arg1 : i32, i32
  }
  func.func @transform_2(%arg0: i32, %arg1: i32) -> (i32, i32) {
    %c0_i32 = arith.constant 0 : i32
    %c0_i32_0 = arith.constant 0 : i32
    return %c0_i32, %arg1 : i32, i32
  }
  func.func @transform_3(%arg0: i32, %arg1: i32) -> (i32, i32) {
    %c0_i32 = arith.constant 0 : i32
    return %arg0, %arg1 : i32, i32
  }
}

module attributes {stable_mosaic.version = 11 : i64} {
  func.func @_self_attention_kernel(%arg0: i32, %arg1: memref<1x64x64xbf16, #tpu.memory_space<vmem>>, %arg2: memref<64x8xbf16, #tpu.memory_space<vmem>>, %arg3: memref<64x8xbf16, #tpu.memory_space<vmem>>, %arg4: memref<64x64xbf16, #tpu.memory_space<vmem>>, %arg5: memref<1x8xf32, #tpu.memory_space<vmem>>, %arg6: memref<1x8xf32, #tpu.memory_space<vmem>>, %arg7: memref<1x64xf32, #tpu.memory_space<vmem>>, %arg8: memref<1x1xf32, #tpu.memory_space<vmem>>, %arg9: memref<1x64x64xf32, #tpu.memory_space<vmem>>, %arg10: memref<1x64x64xbf16, #tpu.memory_space<vmem>>) attributes {dimension_semantics = [#tpu.dimension_semantics<parallel>], iteration_bounds = array<i64: 2>, scalar_prefetch = 0 : i64, scratch_operands = 0 : i64, tpu.core_type = #tpu.core_type<tc>, window_params = [{transform_indices = @transform_0, window_bounds = array<i64: 1, 64, 64>}, {pipeline_mode = #tpu.pipeline_mode<synchronous>, transform_indices = @transform_1, window_bounds = array<i64: 64, 8>}, {pipeline_mode = #tpu.pipeline_mode<synchronous>, transform_indices = @transform_2, window_bounds = array<i64: 64, 8>}, {pipeline_mode = #tpu.pipeline_mode<synchronous>, transform_indices = @transform_3, window_bounds = array<i64: 64, 64>}, {pipeline_mode = #tpu.pipeline_mode<synchronous>, transform_indices = @transform_4, window_bounds = array<i64: 1, 8>}, {pipeline_mode = #tpu.pipeline_mode<synchronous>, transform_indices = @transform_5, window_bounds = array<i64: 1, 8>}, {pipeline_mode = #tpu.pipeline_mode<synchronous>, transform_indices = @transform_6, window_bounds = array<i64: 1, 64>}, {pipeline_mode = #tpu.pipeline_mode<synchronous>, transform_indices = @transform_7, window_bounds = array<i64: 1, 1>}, {transform_indices = @transform_8, window_bounds = array<i64: 1, 64, 64>}, {transform_indices = @transform_9, window_bounds = array<i64: 1, 64, 64>}]} {
    %c0 = arith.constant 0 : index
    %c0_0 = arith.constant 0 : index
    %c0_1 = arith.constant 0 : index
    %0 = vector.load %arg1[%c0, %c0_0, %c0_1] : memref<1x64x64xbf16, #tpu.memory_space<vmem>>, vector<1x64x64xbf16>
    %1 = vector.shape_cast %0 : vector<1x64x64xbf16> to vector<64x64xbf16>
    %c0_2 = arith.constant 0 : index
    %c0_3 = arith.constant 0 : index
    %2 = vector.load %arg2[%c0_2, %c0_3] : memref<64x8xbf16, #tpu.memory_space<vmem>>, vector<64x8xbf16>
    %cst = arith.constant dense<0.000000e+00> : vector<64x8xf32>
    %3 = tpu.matmul %1, %2, %cst {dimension_numbers = #tpu.dot_dimension_numbers<[1], [0], [0], [1], [0, 0, 1, 1], [], []>} : vector<64x64xbf16>, vector<64x8xbf16>, vector<64x8xf32> -> vector<64x8xf32>
    %c0_4 = arith.constant 0 : index
    %c0_5 = arith.constant 0 : index
    %4 = vector.load %arg5[%c0_4, %c0_5] : memref<1x8xf32, #tpu.memory_space<vmem>>, vector<1x8xf32>
    %5 = vector.broadcast %4 : vector<1x8xf32> to vector<64x8xf32>
    %6 = arith.addf %3, %5 : vector<64x8xf32>
    %c0_6 = arith.constant 0 : index
    %c0_7 = arith.constant 0 : index
    %7 = vector.load %arg3[%c0_6, %c0_7] : memref<64x8xbf16, #tpu.memory_space<vmem>>, vector<64x8xbf16>
    %cst_8 = arith.constant dense<0.000000e+00> : vector<64x8xf32>
    %8 = tpu.matmul %1, %7, %cst_8 {dimension_numbers = #tpu.dot_dimension_numbers<[1], [0], [0], [1], [0, 0, 1, 1], [], []>} : vector<64x64xbf16>, vector<64x8xbf16>, vector<64x8xf32> -> vector<64x8xf32>
    %c0_9 = arith.constant 0 : index
    %c0_10 = arith.constant 0 : index
    %9 = vector.load %arg6[%c0_9, %c0_10] : memref<1x8xf32, #tpu.memory_space<vmem>>, vector<1x8xf32>
    %10 = vector.broadcast %9 : vector<1x8xf32> to vector<64x8xf32>
    %11 = arith.addf %8, %10 : vector<64x8xf32>
    %c0_11 = arith.constant 0 : index
    %c0_12 = arith.constant 0 : index
    %12 = vector.load %arg4[%c0_11, %c0_12] : memref<64x64xbf16, #tpu.memory_space<vmem>>, vector<64x64xbf16>
    %cst_13 = arith.constant dense<0.000000e+00> : vector<64x64xf32>
    %13 = tpu.matmul %1, %12, %cst_13 {dimension_numbers = #tpu.dot_dimension_numbers<[1], [0], [0], [1], [0, 0, 1, 1], [], []>} : vector<64x64xbf16>, vector<64x64xbf16>, vector<64x64xf32> -> vector<64x64xf32>
    %c0_14 = arith.constant 0 : index
    %c0_15 = arith.constant 0 : index
    %14 = vector.load %arg7[%c0_14, %c0_15] : memref<1x64xf32, #tpu.memory_space<vmem>>, vector<1x64xf32>
    %15 = vector.broadcast %14 : vector<1x64xf32> to vector<64x64xf32>
    %16 = arith.addf %13, %15 : vector<64x64xf32>
    %17 = arith.truncf %11 : vector<64x8xf32> to vector<64x8xbf16>
    %18 = arith.truncf %6 : vector<64x8xf32> to vector<64x8xbf16>
    %cst_16 = arith.constant dense<0.000000e+00> : vector<64x64xf32>
    %19 = tpu.matmul %17, %18, %cst_16 {dimension_numbers = #tpu.dot_dimension_numbers<[1], [1], [0], [0], [0, 0, 1, 0], [], []>} : vector<64x8xbf16>, vector<64x8xbf16>, vector<64x64xf32> -> vector<64x64xf32>
    %cst_17 = arith.constant dense<0xFF800000> : vector<64xf32>
    %20 = vector.multi_reduction <maximumf>, %19, %cst_17 [1] : vector<64x64xf32> to vector<64xf32>
    %21 = vector.shape_cast %20 : vector<64xf32> to vector<64x1xf32>
    %22 = vector.broadcast %21 : vector<64x1xf32> to vector<64x64xf32>
    %23 = arith.subf %19, %22 : vector<64x64xf32>
    %24 = math.exp %23 : vector<64x64xf32>
    %cst_18 = arith.constant dense<0.000000e+00> : vector<64xf32>
    %25 = vector.multi_reduction <add>, %24, %cst_18 [1] : vector<64x64xf32> to vector<64xf32>
    %26 = vector.shape_cast %25 : vector<64xf32> to vector<64x1xf32>
    %27 = vector.broadcast %26 : vector<64x1xf32> to vector<64x64xf32>
    %28 = arith.divf %24, %27 : vector<64x64xf32>
    %c0_19 = arith.constant 0 : index
    %c0_20 = arith.constant 0 : index
    %c0_21 = arith.constant 0 : index
    %29 = vector.load %arg9[%c0_19, %c0_20, %c0_21] : memref<1x64x64xf32, #tpu.memory_space<vmem>>, vector<1x64x64xf32>
    %30 = vector.shape_cast %29 : vector<1x64x64xf32> to vector<64x64xf32>
    %31 = vector.shape_cast %28 : vector<64x64xf32> to vector<1x64x64xf32>
    tpu.vector_store %arg9[%c0_19, %c0_20, %c0_21], %31 {strides = array<i32>} : memref<1x64x64xf32, #tpu.memory_space<vmem>>, vector<1x64x64xf32>,
    %32 = arith.truncf %28 : vector<64x64xf32> to vector<64x64xbf16>
    %33 = arith.truncf %16 : vector<64x64xf32> to vector<64x64xbf16>
    %cst_22 = arith.constant dense<0.000000e+00> : vector<64x64xf32>
    %34 = tpu.matmul %32, %33, %cst_22 {dimension_numbers = #tpu.dot_dimension_numbers<[1], [0], [0], [1], [0, 0, 1, 1], [], []>} : vector<64x64xbf16>, vector<64x64xbf16>, vector<64x64xf32> -> vector<64x64xf32>
    %c0_23 = arith.constant 0 : index
    %c0_24 = arith.constant 0 : index
    %35 = vector.load %arg8[%c0_23, %c0_24] : memref<1x1xf32, #tpu.memory_space<vmem>>, vector<1x1xf32>
    %36 = vector.extract %35[0, 0] : f32 from vector<1x1xf32>
    %37 = arith.extf %1 : vector<64x64xbf16> to vector<64x64xf32>
    %38 = vector.broadcast %36 : f32 to vector<64x64xf32>
    %39 = arith.mulf %38, %34 : vector<64x64xf32>
    %40 = arith.addf %37, %39 : vector<64x64xf32>
    %41 = arith.truncf %40 : vector<64x64xf32> to vector<64x64xbf16>
    %c0_25 = arith.constant 0 : index
    %c0_26 = arith.constant 0 : index
    %c0_27 = arith.constant 0 : index
    %42 = vector.load %arg10[%c0_25, %c0_26, %c0_27] : memref<1x64x64xbf16, #tpu.memory_space<vmem>>, vector<1x64x64xbf16>
    %43 = vector.shape_cast %42 : vector<1x64x64xbf16> to vector<64x64xbf16>
    %44 = vector.shape_cast %41 : vector<64x64xbf16> to vector<1x64x64xbf16>
    tpu.vector_store %arg10[%c0_25, %c0_26, %c0_27], %44 {strides = array<i32>} : memref<1x64x64xbf16, #tpu.memory_space<vmem>>, vector<1x64x64xbf16>,
    return
  }
  func.func @transform_0(%arg0: i32) -> (i32, i32, i32) {
    %c0_i32 = arith.constant 0 : i32
    %c0_i32_0 = arith.constant 0 : i32
    %c0_i32_1 = arith.constant 0 : i32
    return %arg0, %c0_i32, %c0_i32_0 : i32, i32, i32
  }
  func.func @transform_1(%arg0: i32) -> (i32, i32) {
    %c0_i32 = arith.constant 0 : i32
    %c0_i32_0 = arith.constant 0 : i32
    %c0_i32_1 = arith.constant 0 : i32
    return %c0_i32, %c0_i32_0 : i32, i32
  }
  func.func @transform_2(%arg0: i32) -> (i32, i32) {
    %c0_i32 = arith.constant 0 : i32
    %c0_i32_0 = arith.constant 0 : i32
    %c0_i32_1 = arith.constant 0 : i32
    return %c0_i32, %c0_i32_0 : i32, i32
  }
  func.func @transform_3(%arg0: i32) -> (i32, i32) {
    %c0_i32 = arith.constant 0 : i32
    %c0_i32_0 = arith.constant 0 : i32
    %c0_i32_1 = arith.constant 0 : i32
    return %c0_i32, %c0_i32_0 : i32, i32
  }
  func.func @transform_4(%arg0: i32) -> (i32, i32) {
    %c0_i32 = arith.constant 0 : i32
    %c0_i32_0 = arith.constant 0 : i32
    %c0_i32_1 = arith.constant 0 : i32
    return %c0_i32, %c0_i32_0 : i32, i32
  }
  func.func @transform_5(%arg0: i32) -> (i32, i32) {
    %c0_i32 = arith.constant 0 : i32
    %c0_i32_0 = arith.constant 0 : i32
    %c0_i32_1 = arith.constant 0 : i32
    return %c0_i32, %c0_i32_0 : i32, i32
  }
  func.func @transform_6(%arg0: i32) -> (i32, i32) {
    %c0_i32 = arith.constant 0 : i32
    %c0_i32_0 = arith.constant 0 : i32
    %c0_i32_1 = arith.constant 0 : i32
    return %c0_i32, %c0_i32_0 : i32, i32
  }
  func.func @transform_7(%arg0: i32) -> (i32, i32) {
    %c0_i32 = arith.constant 0 : i32
    %c0_i32_0 = arith.constant 0 : i32
    %c0_i32_1 = arith.constant 0 : i32
    return %c0_i32, %c0_i32_0 : i32, i32
  }
  func.func @transform_8(%arg0: i32) -> (i32, i32, i32) {
    %c0_i32 = arith.constant 0 : i32
    %c0_i32_0 = arith.constant 0 : i32
    %c0_i32_1 = arith.constant 0 : i32
    return %arg0, %c0_i32, %c0_i32_0 : i32, i32, i32
  }
  func.func @transform_9(%arg0: i32) -> (i32, i32, i32) {
    %c0_i32 = arith.constant 0 : i32
    %c0_i32_0 = arith.constant 0 : i32
    %c0_i32_1 = arith.constant 0 : i32
    return %arg0, %c0_i32, %c0_i32_0 : i32, i32, i32
  }
}

module attributes {stable_mosaic.version = 11 : i64} {
  func.func @_matmul_bias_kernel(%arg0: i32, %arg1: i32, %arg2: memref<32x1024xbf16, #tpu.memory_space<vmem>>, %arg3: memref<1024x128xbf16, #tpu.memory_space<vmem>>, %arg4: memref<1x128xf32, #tpu.memory_space<vmem>>, %arg5: memref<32x128xbf16, #tpu.memory_space<vmem>>) attributes {dimension_semantics = [#tpu.dimension_semantics<parallel>, #tpu.dimension_semantics<parallel>], iteration_bounds = array<i64: 1, 1>, scalar_prefetch = 0 : i64, scratch_operands = 0 : i64, tpu.core_type = #tpu.core_type<tc>, window_params = [{transform_indices = @transform_0, window_bounds = array<i64: 32, 1024>}, {transform_indices = @transform_1, window_bounds = array<i64: 1024, 128>}, {transform_indices = @transform_2, window_bounds = array<i64: 1, 128>}, {transform_indices = @transform_3, window_bounds = array<i64: 32, 128>}]} {
    %c0 = arith.constant 0 : index
    %c0_0 = arith.constant 0 : index
    %0 = vector.load %arg2[%c0, %c0_0] : memref<32x1024xbf16, #tpu.memory_space<vmem>>, vector<32x1024xbf16>
    %c0_1 = arith.constant 0 : index
    %c0_2 = arith.constant 0 : index
    %1 = vector.load %arg3[%c0_1, %c0_2] : memref<1024x128xbf16, #tpu.memory_space<vmem>>, vector<1024x128xbf16>
    %cst = arith.constant dense<0.000000e+00> : vector<32x128xf32>
    %2 = tpu.matmul %0, %1, %cst {dimension_numbers = #tpu.dot_dimension_numbers<[1], [0], [0], [1], [0, 0, 1, 1], [], []>} : vector<32x1024xbf16>, vector<1024x128xbf16>, vector<32x128xf32> -> vector<32x128xf32>
    %c0_3 = arith.constant 0 : index
    %c0_4 = arith.constant 0 : index
    %3 = vector.load %arg4[%c0_3, %c0_4] : memref<1x128xf32, #tpu.memory_space<vmem>>, vector<1x128xf32>
    %4 = vector.broadcast %3 : vector<1x128xf32> to vector<32x128xf32>
    %5 = arith.addf %2, %4 : vector<32x128xf32>
    %cst_5 = arith.constant 0.000000e+00 : f32
    %6 = vector.broadcast %cst_5 : f32 to vector<32x128xf32>
    %7 = arith.cmpf oge, %5, %6 : vector<32x128xf32>
    %cst_6 = arith.constant 1.000000e-01 : f32
    %8 = vector.broadcast %cst_6 : f32 to vector<32x128xf32>
    %9 = arith.mulf %8, %5 : vector<32x128xf32>
    %10 = arith.select %7, %5, %9 : vector<32x128xi1>, vector<32x128xf32>
    %11 = arith.truncf %10 : vector<32x128xf32> to vector<32x128xbf16>
    %c0_7 = arith.constant 0 : index
    %c0_8 = arith.constant 0 : index
    %12 = vector.load %arg5[%c0_7, %c0_8] : memref<32x128xbf16, #tpu.memory_space<vmem>>, vector<32x128xbf16>
    tpu.vector_store %arg5[%c0_7, %c0_8], %11 {strides = array<i32>} : memref<32x128xbf16, #tpu.memory_space<vmem>>, vector<32x128xbf16>,
    return
  }
  func.func @transform_0(%arg0: i32, %arg1: i32) -> (i32, i32) {
    %c0_i32 = arith.constant 0 : i32
    %c0_i32_0 = arith.constant 0 : i32
    return %arg0, %c0_i32 : i32, i32
  }
  func.func @transform_1(%arg0: i32, %arg1: i32) -> (i32, i32) {
    %c0_i32 = arith.constant 0 : i32
    %c0_i32_0 = arith.constant 0 : i32
    return %c0_i32, %arg1 : i32, i32
  }
  func.func @transform_2(%arg0: i32, %arg1: i32) -> (i32, i32) {
    %c0_i32 = arith.constant 0 : i32
    %c0_i32_0 = arith.constant 0 : i32
    return %c0_i32, %arg1 : i32, i32
  }
  func.func @transform_3(%arg0: i32, %arg1: i32) -> (i32, i32) {
    %c0_i32 = arith.constant 0 : i32
    return %arg0, %arg1 : i32, i32
  }
}

module attributes {stable_mosaic.version = 11 : i64} {
  func.func @_self_attention_kernel(%arg0: i32, %arg1: memref<1x16x128xbf16, #tpu.memory_space<vmem>>, %arg2: memref<128x16xbf16, #tpu.memory_space<vmem>>, %arg3: memref<128x16xbf16, #tpu.memory_space<vmem>>, %arg4: memref<128x128xbf16, #tpu.memory_space<vmem>>, %arg5: memref<1x16xf32, #tpu.memory_space<vmem>>, %arg6: memref<1x16xf32, #tpu.memory_space<vmem>>, %arg7: memref<1x128xf32, #tpu.memory_space<vmem>>, %arg8: memref<1x1xf32, #tpu.memory_space<vmem>>, %arg9: memref<1x16x16xf32, #tpu.memory_space<vmem>>, %arg10: memref<1x16x128xbf16, #tpu.memory_space<vmem>>) attributes {dimension_semantics = [#tpu.dimension_semantics<parallel>], iteration_bounds = array<i64: 2>, scalar_prefetch = 0 : i64, scratch_operands = 0 : i64, tpu.core_type = #tpu.core_type<tc>, window_params = [{transform_indices = @transform_0, window_bounds = array<i64: 1, 16, 128>}, {pipeline_mode = #tpu.pipeline_mode<synchronous>, transform_indices = @transform_1, window_bounds = array<i64: 128, 16>}, {pipeline_mode = #tpu.pipeline_mode<synchronous>, transform_indices = @transform_2, window_bounds = array<i64: 128, 16>}, {pipeline_mode = #tpu.pipeline_mode<synchronous>, transform_indices = @transform_3, window_bounds = array<i64: 128, 128>}, {pipeline_mode = #tpu.pipeline_mode<synchronous>, transform_indices = @transform_4, window_bounds = array<i64: 1, 16>}, {pipeline_mode = #tpu.pipeline_mode<synchronous>, transform_indices = @transform_5, window_bounds = array<i64: 1, 16>}, {pipeline_mode = #tpu.pipeline_mode<synchronous>, transform_indices = @transform_6, window_bounds = array<i64: 1, 128>}, {pipeline_mode = #tpu.pipeline_mode<synchronous>, transform_indices = @transform_7, window_bounds = array<i64: 1, 1>}, {transform_indices = @transform_8, window_bounds = array<i64: 1, 16, 16>}, {transform_indices = @transform_9, window_bounds = array<i64: 1, 16, 128>}]} {
    %c0 = arith.constant 0 : index
    %c0_0 = arith.constant 0 : index
    %c0_1 = arith.constant 0 : index
    %0 = vector.load %arg1[%c0, %c0_0, %c0_1] : memref<1x16x128xbf16, #tpu.memory_space<vmem>>, vector<1x16x128xbf16>
    %1 = vector.shape_cast %0 : vector<1x16x128xbf16> to vector<16x128xbf16>
    %c0_2 = arith.constant 0 : index
    %c0_3 = arith.constant 0 : index
    %2 = vector.load %arg2[%c0_2, %c0_3] : memref<128x16xbf16, #tpu.memory_space<vmem>>, vector<128x16xbf16>
    %cst = arith.constant dense<0.000000e+00> : vector<16x16xf32>
    %3 = tpu.matmul %1, %2, %cst {dimension_numbers = #tpu.dot_dimension_numbers<[1], [0], [0], [1], [0, 0, 1, 1], [], []>} : vector<16x128xbf16>, vector<128x16xbf16>, vector<16x16xf32> -> vector<16x16xf32>
    %c0_4 = arith.constant 0 : index
    %c0_5 = arith.constant 0 : index
    %4 = vector.load %arg5[%c0_4, %c0_5] : memref<1x16xf32, #tpu.memory_space<vmem>>, vector<1x16xf32>
    %5 = vector.broadcast %4 : vector<1x16xf32> to vector<16x16xf32>
    %6 = arith.addf %3, %5 : vector<16x16xf32>
    %c0_6 = arith.constant 0 : index
    %c0_7 = arith.constant 0 : index
    %7 = vector.load %arg3[%c0_6, %c0_7] : memref<128x16xbf16, #tpu.memory_space<vmem>>, vector<128x16xbf16>
    %cst_8 = arith.constant dense<0.000000e+00> : vector<16x16xf32>
    %8 = tpu.matmul %1, %7, %cst_8 {dimension_numbers = #tpu.dot_dimension_numbers<[1], [0], [0], [1], [0, 0, 1, 1], [], []>} : vector<16x128xbf16>, vector<128x16xbf16>, vector<16x16xf32> -> vector<16x16xf32>
    %c0_9 = arith.constant 0 : index
    %c0_10 = arith.constant 0 : index
    %9 = vector.load %arg6[%c0_9, %c0_10] : memref<1x16xf32, #tpu.memory_space<vmem>>, vector<1x16xf32>
    %10 = vector.broadcast %9 : vector<1x16xf32> to vector<16x16xf32>
    %11 = arith.addf %8, %10 : vector<16x16xf32>
    %c0_11 = arith.constant 0 : index
    %c0_12 = arith.constant 0 : index
    %12 = vector.load %arg4[%c0_11, %c0_12] : memref<128x128xbf16, #tpu.memory_space<vmem>>, vector<128x128xbf16>
    %cst_13 = arith.constant dense<0.000000e+00> : vector<16x128xf32>
    %13 = tpu.matmul %1, %12, %cst_13 {dimension_numbers = #tpu.dot_dimension_numbers<[1], [0], [0], [1], [0, 0, 1, 1], [], []>} : vector<16x128xbf16>, vector<128x128xbf16>, vector<16x128xf32> -> vector<16x128xf32>
    %c0_14 = arith.constant 0 : index
    %c0_15 = arith.constant 0 : index
    %14 = vector.load %arg7[%c0_14, %c0_15] : memref<1x128xf32, #tpu.memory_space<vmem>>, vector<1x128xf32>
    %15 = vector.broadcast %14 : vector<1x128xf32> to vector<16x128xf32>
    %16 = arith.addf %13, %15 : vector<16x128xf32>
    %17 = arith.truncf %11 : vector<16x16xf32> to vector<16x16xbf16>
    %18 = arith.truncf %6 : vector<16x16xf32> to vector<16x16xbf16>
    %cst_16 = arith.constant dense<0.000000e+00> : vector<16x16xf32>
    %19 = tpu.matmul %17, %18, %cst_16 {dimension_numbers = #tpu.dot_dimension_numbers<[1], [1], [0], [0], [0, 0, 1, 0], [], []>} : vector<16x16xbf16>, vector<16x16xbf16>, vector<16x16xf32> -> vector<16x16xf32>
    %cst_17 = arith.constant dense<0xFF800000> : vector<16xf32>
    %20 = vector.multi_reduction <maximumf>, %19, %cst_17 [1] : vector<16x16xf32> to vector<16xf32>
    %21 = vector.shape_cast %20 : vector<16xf32> to vector<16x1xf32>
    %22 = vector.broadcast %21 : vector<16x1xf32> to vector<16x16xf32>
    %23 = arith.subf %19, %22 : vector<16x16xf32>
    %24 = math.exp %23 : vector<16x16xf32>
    %cst_18 = arith.constant dense<0.000000e+00> : vector<16xf32>
    %25 = vector.multi_reduction <add>, %24, %cst_18 [1] : vector<16x16xf32> to vector<16xf32>
    %26 = vector.shape_cast %25 : vector<16xf32> to vector<16x1xf32>
    %27 = vector.broadcast %26 : vector<16x1xf32> to vector<16x16xf32>
    %28 = arith.divf %24, %27 : vector<16x16xf32>
    %c0_19 = arith.constant 0 : index
    %c0_20 = arith.constant 0 : index
    %c0_21 = arith.constant 0 : index
    %29 = vector.load %arg9[%c0_19, %c0_20, %c0_21] : memref<1x16x16xf32, #tpu.memory_space<vmem>>, vector<1x16x16xf32>
    %30 = vector.shape_cast %29 : vector<1x16x16xf32> to vector<16x16xf32>
    %31 = vector.shape_cast %28 : vector<16x16xf32> to vector<1x16x16xf32>
    tpu.vector_store %arg9[%c0_19, %c0_20, %c0_21], %31 {strides = array<i32>} : memref<1x16x16xf32, #tpu.memory_space<vmem>>, vector<1x16x16xf32>,
    %32 = arith.truncf %28 : vector<16x16xf32> to vector<16x16xbf16>
    %33 = arith.truncf %16 : vector<16x128xf32> to vector<16x128xbf16>
    %cst_22 = arith.constant dense<0.000000e+00> : vector<16x128xf32>
    %34 = tpu.matmul %32, %33, %cst_22 {dimension_numbers = #tpu.dot_dimension_numbers<[1], [0], [0], [1], [0, 0, 1, 1], [], []>} : vector<16x16xbf16>, vector<16x128xbf16>, vector<16x128xf32> -> vector<16x128xf32>
    %c0_23 = arith.constant 0 : index
    %c0_24 = arith.constant 0 : index
    %35 = vector.load %arg8[%c0_23, %c0_24] : memref<1x1xf32, #tpu.memory_space<vmem>>, vector<1x1xf32>
    %36 = vector.extract %35[0, 0] : f32 from vector<1x1xf32>
    %37 = arith.extf %1 : vector<16x128xbf16> to vector<16x128xf32>
    %38 = vector.broadcast %36 : f32 to vector<16x128xf32>
    %39 = arith.mulf %38, %34 : vector<16x128xf32>
    %40 = arith.addf %37, %39 : vector<16x128xf32>
    %41 = arith.truncf %40 : vector<16x128xf32> to vector<16x128xbf16>
    %c0_25 = arith.constant 0 : index
    %c0_26 = arith.constant 0 : index
    %c0_27 = arith.constant 0 : index
    %42 = vector.load %arg10[%c0_25, %c0_26, %c0_27] : memref<1x16x128xbf16, #tpu.memory_space<vmem>>, vector<1x16x128xbf16>
    %43 = vector.shape_cast %42 : vector<1x16x128xbf16> to vector<16x128xbf16>
    %44 = vector.shape_cast %41 : vector<16x128xbf16> to vector<1x16x128xbf16>
    tpu.vector_store %arg10[%c0_25, %c0_26, %c0_27], %44 {strides = array<i32>} : memref<1x16x128xbf16, #tpu.memory_space<vmem>>, vector<1x16x128xbf16>,
    return
  }
  func.func @transform_0(%arg0: i32) -> (i32, i32, i32) {
    %c0_i32 = arith.constant 0 : i32
    %c0_i32_0 = arith.constant 0 : i32
    %c0_i32_1 = arith.constant 0 : i32
    return %arg0, %c0_i32, %c0_i32_0 : i32, i32, i32
  }
  func.func @transform_1(%arg0: i32) -> (i32, i32) {
    %c0_i32 = arith.constant 0 : i32
    %c0_i32_0 = arith.constant 0 : i32
    %c0_i32_1 = arith.constant 0 : i32
    return %c0_i32, %c0_i32_0 : i32, i32
  }
  func.func @transform_2(%arg0: i32) -> (i32, i32) {
    %c0_i32 = arith.constant 0 : i32
    %c0_i32_0 = arith.constant 0 : i32
    %c0_i32_1 = arith.constant 0 : i32
    return %c0_i32, %c0_i32_0 : i32, i32
  }
  func.func @transform_3(%arg0: i32) -> (i32, i32) {
    %c0_i32 = arith.constant 0 : i32
    %c0_i32_0 = arith.constant 0 : i32
    %c0_i32_1 = arith.constant 0 : i32
    return %c0_i32, %c0_i32_0 : i32, i32
  }
  func.func @transform_4(%arg0: i32) -> (i32, i32) {
    %c0_i32 = arith.constant 0 : i32
    %c0_i32_0 = arith.constant 0 : i32
    %c0_i32_1 = arith.constant 0 : i32
    return %c0_i32, %c0_i32_0 : i32, i32
  }
  func.func @transform_5(%arg0: i32) -> (i32, i32) {
    %c0_i32 = arith.constant 0 : i32
    %c0_i32_0 = arith.constant 0 : i32
    %c0_i32_1 = arith.constant 0 : i32
    return %c0_i32, %c0_i32_0 : i32, i32
  }
  func.func @transform_6(%arg0: i32) -> (i32, i32) {
    %c0_i32 = arith.constant 0 : i32
    %c0_i32_0 = arith.constant 0 : i32
    %c0_i32_1 = arith.constant 0 : i32
    return %c0_i32, %c0_i32_0 : i32, i32
  }
  func.func @transform_7(%arg0: i32) -> (i32, i32) {
    %c0_i32 = arith.constant 0 : i32
    %c0_i32_0 = arith.constant 0 : i32
    %c0_i32_1 = arith.constant 0 : i32
    return %c0_i32, %c0_i32_0 : i32, i32
  }
  func.func @transform_8(%arg0: i32) -> (i32, i32, i32) {
    %c0_i32 = arith.constant 0 : i32
    %c0_i32_0 = arith.constant 0 : i32
    %c0_i32_1 = arith.constant 0 : i32
    return %arg0, %c0_i32, %c0_i32_0 : i32, i32, i32
  }
  func.func @transform_9(%arg0: i32) -> (i32, i32, i32) {
    %c0_i32 = arith.constant 0 : i32
    %c0_i32_0 = arith.constant 0 : i32
    %c0_i32_1 = arith.constant 0 : i32
    return %arg0, %c0_i32, %c0_i32_0 : i32, i32, i32
  }
}

</mosaic_0001>

<llo_original>
// kernel: discriminator_forward.6
$region0: #{discriminator_forward.6}
  #allocation0 [shape = 'u32[]', space=smem, size = 0x4, offset = 0x4, fixed_abs, tag = 'smem constant byte address 0x4 - core index']
  #allocation1 [shape = 'u32[144,128]{1,0:T(1,128)}', space=vmem, size = 0x12000, scoped, tag = 'internal scratch']
  %s0 = inlined_call_operand.vmem [shape: bf16[2048,16], index: 0, kind: input, shape index: {}]
  %s1 = inlined_call_operand.vmem [shape: bf16[16,16], index: 1, kind: input, shape index: {}]
  %s2 = inlined_call_operand.vmem [shape: f32[1,16], index: 2, kind: input, shape index: {}]
  %s3 = inlined_call_operand.vmem [shape: bf16[2048,16], index: 3, kind: output, shape index: {}]
  %s4 = sld [smem:[#allocation0]]
  $region45: #{discriminator_forward.6} parent=0
    _
  %s6 = ssub.s32 1, %s4
  %s7 = scalar_select 0, %s6, %s4
  loop: start=0, step=1, limit=4
  $region2: #{discriminator_forward.6} parent=0 // loop_pre_header
    _
  $region3: #{discriminator_forward.6} parent=0 // loop_header
    %s9 = sphi 0, %s13
    %p10 = scmp.ge.s32.totalorder %s9, 4
    %s16 = sphi 0, %s28
    %s17 = sphi 0, %s24
    %s18 = sphi 0, %s16
    %s19 = sphi 0, %s17
    %s20 = sphi 0, %s18
    %s21 = sphi 0, %s19
    %s31 = sphi 0, %s33
    %s34 = sphi 0, %s31
    %s35 = sphi 0, %s34
    %s51 = sphi 0, %s35
    %s57 = sphi 0, %s59
    %s60 = sphi 0, %s57
    %s61 = sphi 0, %s60
    %s77 = sphi 0, %s61
    %s83 = sphi 0, %s85
    %s86 = sphi 0, %s83
    %s87 = sphi 0, %s86
    %s103 = sphi 0, %s87
    %s111 = sphi 0, %s113
    %s114 = sphi 0, %s111
    %s115 = sphi 0, %s114
    %s131 = sphi 0, %s115
  $region4: #{discriminator_forward.6} parent=0 // loop_header_branch
    %12 = sbr.rel (%p10) target = $region8
  $region5: #{discriminator_forward.6} parent=0 // loop_body
    %s14 = ssub.s32 %s9, 1
    %s15 = ssub.s32 %s9, 2
    %s22 = sadd.s32 1, %s17
    %p23 = scmp.ge.s32.totalorder %s22, 1
    %s24 = scalar_select %p23, 0, %s22
    %s25 = sadd.s32 1, %s16
    %s26 = scalar_select %p23, %s25, %s16
    %p27 = scmp.ge.s32.totalorder %s26, 2
    %s28 = scalar_select %p27, 0, %s26
    %s29 = ssub.s32 %s16, %s28
    %p30 = scmp.eq.s32.totalorder %s29, 0
    %s32 = sadd.s32 %s31, 1
    %s33 = scalar_select %p30, %s31, %s32
    %p36 = pneg %p30
    %p37 = scmp.eq.s32.totalorder %s9, 1
    %p38 = por %p36, %p37
    %p39 = scmp.ne.s32.totalorder %s31, %s34
    %p40 = scmp.eq.s32.totalorder %s9, 0
    %p41 = por %p39, %p40
    %p42 = scmp.ne.s32.totalorder %s31, %s34
    %p43 = scmp.eq.s32.totalorder %s14, 1
    %p44 = por %p42, %p43
    %p45 = scmp.ne.s32.totalorder %s34, %s35
    %p46 = scmp.eq.s32.totalorder %s14, 0
    %p47 = por %p45, %p46
    %p48 = scmp.ne.s32.totalorder %s34, %s35
    %p49 = scmp.eq.s32.totalorder %s15, 1
    %p50 = por %p48, %p49
    %p52 = scmp.ne.s32.totalorder %s35, %s51
    %p53 = scmp.eq.s32.totalorder %s15, 0
    %p54 = por %p52, %p53
    %s55 = ssub.s32 %s17, %s24
    %p56 = scmp.eq.s32.totalorder %s55, 0
    %s58 = sadd.s32 %s57, 1
    %s59 = scalar_select %p56, %s57, %s58
    %p62 = pneg %p56
    %p63 = scmp.eq.s32.totalorder %s9, 1
    %p64 = por %p62, %p63
    %p65 = scmp.ne.s32.totalorder %s57, %s60
    %p66 = scmp.eq.s32.totalorder %s9, 0
    %p67 = por %p65, %p66
    %p68 = scmp.ne.s32.totalorder %s57, %s60
    %p69 = scmp.eq.s32.totalorder %s14, 1
    %p70 = por %p68, %p69
    %p71 = scmp.ne.s32.totalorder %s60, %s61
    %p72 = scmp.eq.s32.totalorder %s14, 0
    %p73 = por %p71, %p72
    %p74 = scmp.ne.s32.totalorder %s60, %s61
    %p75 = scmp.eq.s32.totalorder %s15, 1
    %p76 = por %p74, %p75
    %p78 = scmp.ne.s32.totalorder %s61, %s77
    %p79 = scmp.eq.s32.totalorder %s15, 0
    %p80 = por %p78, %p79
    %s81 = ssub.s32 %s17, %s24
    %p82 = scmp.eq.s32.totalorder %s81, 0
    %s84 = sadd.s32 %s83, 1
    %s85 = scalar_select %p82, %s83, %s84
    %p88 = pneg %p82
    %p89 = scmp.eq.s32.totalorder %s9, 1
    %p90 = por %p88, %p89
    %p91 = scmp.ne.s32.totalorder %s83, %s86
    %p92 = scmp.eq.s32.totalorder %s9, 0
    %p93 = por %p91, %p92
    %p94 = scmp.ne.s32.totalorder %s83, %s86
    %p95 = scmp.eq.s32.totalorder %s14, 1
    %p96 = por %p94, %p95
    %p97 = scmp.ne.s32.totalorder %s86, %s87
    %p98 = scmp.eq.s32.totalorder %s14, 0
    %p99 = por %p97, %p98
    %p100 = scmp.ne.s32.totalorder %s86, %s87
    %p101 = scmp.eq.s32.totalorder %s15, 1
    %p102 = por %p100, %p101
    %p104 = scmp.ne.s32.totalorder %s87, %s103
    %p105 = scmp.eq.s32.totalorder %s15, 0
    %p106 = por %p104, %p105
    %s107 = ssub.s32 %s16, %s28
    %s108 = ssub.s32 %s17, %s24
    %s109 = sor.u32 %s107, %s108
    %p110 = scmp.eq.s32.totalorder %s109, 0
    %s112 = sadd.s32 %s111, 1
    %s113 = scalar_select %p110, %s111, %s112
    %p116 = pneg %p110
    %p117 = scmp.eq.s32.totalorder %s9, 1
    %p118 = por %p116, %p117
    %p119 = scmp.ne.s32.totalorder %s111, %s114
    %p120 = scmp.eq.s32.totalorder %s9, 0
    %p121 = por %p119, %p120
    %p122 = scmp.ne.s32.totalorder %s111, %s114
    %p123 = scmp.eq.s32.totalorder %s14, 1
    %p124 = por %p122, %p123
    %p125 = scmp.ne.s32.totalorder %s114, %s115
    %p126 = scmp.eq.s32.totalorder %s14, 0
    %p127 = por %p125, %p126
    %p128 = scmp.ne.s32.totalorder %s114, %s115
    %p129 = scmp.eq.s32.totalorder %s15, 1
    %p130 = por %p128, %p129
    %p132 = scmp.ne.s32.totalorder %s115, %s131
    %p133 = scmp.eq.s32.totalorder %s15, 0
    %p134 = por %p132, %p133
    %p135 = scmp.le.s32.totalorder 1, %s9
    %p136 = scmp.lt.s32.totalorder %s9, 3
    %p137 = pnand %p135, %p136
    %p138 = pneg %p137
    // Predicated region
    $region9: #{discriminator_forward.6} parent=5 // pred_check
      _
    $region10: #{discriminator_forward.6} parent=5 // pred_check_branch
      %140 = sbr.rel (%p137) target = $region12
    $region11: #{discriminator_forward.6} parent=5 // pred_region
      %s141 = ssub.s32 %s9, 1
      // Predicated region
      $region13: #{discriminator_forward.6} parent=11 // pred_check
        %p142 = pneg %p73
      $region14: #{discriminator_forward.6} parent=11 // pred_check_branch
        %144 = sbr.rel (%p142) target = $region16
      $region15: #{discriminator_forward.6} parent=11 // pred_region
        %p145 = scmp.lt.s32.totalorder %s19, 0
        %s146 = scalar_select %p145, %s19, 0
        %s147 = smul.addr %s146, 4
        %s148 = scalar_lea.vmem %s1, %s147
      $region16: #{discriminator_forward.6} parent=11 // pred_fallthru
        _
      // Predicated region
      $region17: #{discriminator_forward.6} parent=11 // pred_check
        %p149 = pneg %p99
      $region18: #{discriminator_forward.6} parent=11 // pred_check_branch
        %151 = sbr.rel (%p149) target = $region20
      $region19: #{discriminator_forward.6} parent=11 // pred_region
        %p152 = scmp.lt.s32.totalorder %s19, 0
        %s153 = scalar_select %p152, %s19, 0
        %s154 = scalar_lea.vmem %s2, %s153
      $region20: #{discriminator_forward.6} parent=11 // pred_fallthru
        _
    $region12: #{discriminator_forward.6} parent=5 // pred_fallthru
      _
    %p155 = scmp.lt.s32.totalorder %s9, 2
    // Predicated region
    $region21: #{discriminator_forward.6} parent=5 // pred_check
      %p156 = pneg %p155
    $region22: #{discriminator_forward.6} parent=5 // pred_check_branch
      %158 = sbr.rel (%p156) target = $region24
    $region23: #{discriminator_forward.6} parent=5 // pred_region
      // Predicated region
      $region25: #{discriminator_forward.6} parent=23 // pred_check
        %p159 = pneg %p41
      $region26: #{discriminator_forward.6} parent=23 // pred_check_branch
        %161 = sbr.rel (%p159) target = $region28
      $region27: #{discriminator_forward.6} parent=23 // pred_region
        %s162 = smul.u32 128, %s16
        %p163 = scmp.lt.s32.totalorder %s162, 255
        %s164 = scalar_select %p163, %s162, 255
        %s165 = smul.addr %s164, 4
        %s166 = scalar_lea.vmem %s0, %s165
        %s167 = smul.u32 128, %s16
      $region28: #{discriminator_forward.6} parent=23 // pred_fallthru
        _
    $region24: #{discriminator_forward.6} parent=5 // pred_fallthru
      _
    %p168 = scmp.le.s32.totalorder 1, %s9
    %p169 = scmp.lt.s32.totalorder %s9, 3
    %p170 = pnand %p168, %p169
    %p171 = pneg %p170
    // Predicated region
    $region29: #{discriminator_forward.6} parent=5 // pred_check
      _
    $region30: #{discriminator_forward.6} parent=5 // pred_check_branch
      %173 = sbr.rel (%p170) target = $region32
    $region31: #{discriminator_forward.6} parent=5 // pred_region
      %s174 = ssub.s32 %s9, 1
      %s175 = smul.u32 128, %s18
      %p176 = scmp.lt.s32.totalorder %s175, 255
      %s177 = scalar_select %p176, %s175, 255
      %s178 = smul.addr %s177, 4
      %s179 = scalar_lea.vmem %s0, %s178
      %p180 = pneg %p47
      %p181 = pneg %p44
      %p182 = scmp.lt.s32.totalorder %s19, 0
      %s183 = scalar_select %p182, %s19, 0
      %s184 = smul.addr %s183, 4
      %s185 = scalar_lea.vmem %s1, %s184
      %p186 = pneg %p73
      %p187 = pneg %p70
      %p188 = scmp.lt.s32.totalorder %s19, 0
      %s189 = scalar_select %p188, %s19, 0
      %s190 = scalar_lea.vmem %s2, %s189
      %p191 = pneg %p99
      %p192 = pneg %p96
      %p193 = pneg %p127
      %p194 = pneg %p124
      %s195 = smul.u32 128, %s18
      %p196 = scmp.lt.s32.totalorder %s195, 255
      %s197 = scalar_select %p196, %s195, 255
      %p198 = scmp.lt.s32.totalorder %s19, 0
      %s199 = scalar_select %p198, %s19, 0
      %s200 = sadd.s32 %s199, %s197
      %s201 = smul.addr %s200, 4
      %s202 = scalar_lea.vmem %s3, %s201
      %s203 = smul.u32 128, %s18
      %p204 = scmp.lt.s32.totalorder %s203, 255
      %s205 = scalar_select %p204, %s203, 255
      %s206 = smul.addr %s205, 4
      %s207 = scalar_lea.vmem %s0, %s206
      %s208 = smul.u32 128, %s18
      %p209 = scmp.lt.s32.totalorder %s19, 0
      %s210 = scalar_select %p209, %s19, 0
      %s211 = smul.addr %s210, 4
      %s212 = scalar_lea.vmem %s1, %s211
      %p213 = scmp.lt.s32.totalorder %s19, 0
      %s214 = scalar_select %p213, %s19, 0
      %s215 = scalar_lea.vmem %s2, %s214
      %s216 = smul.u32 128, %s18
      %p217 = scmp.lt.s32.totalorder %s216, 255
      %s218 = scalar_select %p217, %s216, 255
      %p219 = scmp.lt.s32.totalorder %s19, 0
      %s220 = scalar_select %p219, %s19, 0
      %s221 = sadd.s32 %s220, %s218
      %s222 = smul.addr %s221, 4
      %s223 = scalar_lea.vmem %s3, %s222
      %s224 = smul.u32 128, %s18
      %v226 = vld [vmem:[%s207] sm:$0xf]
      %v227 = vld [vmem:[%s207 + $0x4] sm:$0xf]
      %v228 = vld [vmem:[%s207 + $0x8] sm:$0xf]
      %v229 = vld [vmem:[%s207 + $0xc] sm:$0xf]
      %v230 = vld [vmem:[%s207 + $0x10] sm:$0xf]
      %v231 = vld [vmem:[%s207 + $0x14] sm:$0xf]
      %v232 = vld [vmem:[%s207 + $0x18] sm:$0xf]
      %v233 = vld [vmem:[%s207 + $0x1c] sm:$0xf]
      %v234 = vld [vmem:[%s207 + $0x20] sm:$0xf]
      %v235 = vld [vmem:[%s207 + $0x24] sm:$0xf]
      %v236 = vld [vmem:[%s207 + $0x28] sm:$0xf]
      %v237 = vld [vmem:[%s207 + $0x2c] sm:$0xf]
      %v238 = vld [vmem:[%s207 + $0x30] sm:$0xf]
      %v239 = vld [vmem:[%s207 + $0x34] sm:$0xf]
      %v240 = vld [vmem:[%s207 + $0x38] sm:$0xf]
      %v241 = vld [vmem:[%s207 + $0x3c] sm:$0xf]
      %v242 = vld [vmem:[%s207 + $0x40] sm:$0xf]
      %v243 = vld [vmem:[%s207 + $0x44] sm:$0xf]
      %v244 = vld [vmem:[%s207 + $0x48] sm:$0xf]
      %v245 = vld [vmem:[%s207 + $0x4c] sm:$0xf]
      %v246 = vld [vmem:[%s207 + $0x50] sm:$0xf]
      %v247 = vld [vmem:[%s207 + $0x54] sm:$0xf]
      %v248 = vld [vmem:[%s207 + $0x58] sm:$0xf]
      %v249 = vld [vmem:[%s207 + $0x5c] sm:$0xf]
      %v250 = vld [vmem:[%s207 + $0x60] sm:$0xf]
      %v251 = vld [vmem:[%s207 + $0x64] sm:$0xf]
      %v252 = vld [vmem:[%s207 + $0x68] sm:$0xf]
      %v253 = vld [vmem:[%s207 + $0x6c] sm:$0xf]
      %v254 = vld [vmem:[%s207 + $0x70] sm:$0xf]
      %v255 = vld [vmem:[%s207 + $0x74] sm:$0xf]
      %v256 = vld [vmem:[%s207 + $0x78] sm:$0xf]
      %v257 = vld [vmem:[%s207 + $0x7c] sm:$0xf]
      %v258 = vld [vmem:[%s207 + $0x80] sm:$0xf]
      %v259 = vld [vmem:[%s207 + $0x84] sm:$0xf]
      %v260 = vld [vmem:[%s207 + $0x88] sm:$0xf]
      %v261 = vld [vmem:[%s207 + $0x8c] sm:$0xf]
      %v262 = vld [vmem:[%s207 + $0x90] sm:$0xf]
      %v263 = vld [vmem:[%s207 + $0x94] sm:$0xf]
      %v264 = vld [vmem:[%s207 + $0x98] sm:$0xf]
      %v265 = vld [vmem:[%s207 + $0x9c] sm:$0xf]
      %v266 = vld [vmem:[%s207 + $0xa0] sm:$0xf]
      %v267 = vld [vmem:[%s207 + $0xa4] sm:$0xf]
      %v268 = vld [vmem:[%s207 + $0xa8] sm:$0xf]
      %v269 = vld [vmem:[%s207 + $0xac] sm:$0xf]
      %v270 = vld [vmem:[%s207 + $0xb0] sm:$0xf]
      %v271 = vld [vmem:[%s207 + $0xb4] sm:$0xf]
      %v272 = vld [vmem:[%s207 + $0xb8] sm:$0xf]
      %v273 = vld [vmem:[%s207 + $0xbc] sm:$0xf]
      %v274 = vld [vmem:[%s207 + $0xc0] sm:$0xf]
      %v275 = vld [vmem:[%s207 + $0xc4] sm:$0xf]
      %v276 = vld [vmem:[%s207 + $0xc8] sm:$0xf]
      %v277 = vld [vmem:[%s207 + $0xcc] sm:$0xf]
      %v278 = vld [vmem:[%s207 + $0xd0] sm:$0xf]
      %v279 = vld [vmem:[%s207 + $0xd4] sm:$0xf]
      %v280 = vld [vmem:[%s207 + $0xd8] sm:$0xf]
      %v281 = vld [vmem:[%s207 + $0xdc] sm:$0xf]
      %v282 = vld [vmem:[%s207 + $0xe0] sm:$0xf]
      %v283 = vld [vmem:[%s207 + $0xe4] sm:$0xf]
      %v284 = vld [vmem:[%s207 + $0xe8] sm:$0xf]
      %v285 = vld [vmem:[%s207 + $0xec] sm:$0xf]
      %v286 = vld [vmem:[%s207 + $0xf0] sm:$0xf]
      %v287 = vld [vmem:[%s207 + $0xf4] sm:$0xf]
      %v288 = vld [vmem:[%s207 + $0xf8] sm:$0xf]
      %v289 = vld [vmem:[%s207 + $0xfc] sm:$0xf]
      %v290 = vld [vmem:[%s207 + $0x100] sm:$0xf]
      %v291 = vld [vmem:[%s207 + $0x104] sm:$0xf]
      %v292 = vld [vmem:[%s207 + $0x108] sm:$0xf]
      %v293 = vld [vmem:[%s207 + $0x10c] sm:$0xf]
      %v294 = vld [vmem:[%s207 + $0x110] sm:$0xf]
      %v295 = vld [vmem:[%s207 + $0x114] sm:$0xf]
      %v296 = vld [vmem:[%s207 + $0x118] sm:$0xf]
      %v297 = vld [vmem:[%s207 + $0x11c] sm:$0xf]
      %v298 = vld [vmem:[%s207 + $0x120] sm:$0xf]
      %v299 = vld [vmem:[%s207 + $0x124] sm:$0xf]
      %v300 = vld [vmem:[%s207 + $0x128] sm:$0xf]
      %v301 = vld [vmem:[%s207 + $0x12c] sm:$0xf]
      %v302 = vld [vmem:[%s207 + $0x130] sm:$0xf]
      %v303 = vld [vmem:[%s207 + $0x134] sm:$0xf]
      %v304 = vld [vmem:[%s207 + $0x138] sm:$0xf]
      %v305 = vld [vmem:[%s207 + $0x13c] sm:$0xf]
      %v306 = vld [vmem:[%s207 + $0x140] sm:$0xf]
      %v307 = vld [vmem:[%s207 + $0x144] sm:$0xf]
      %v308 = vld [vmem:[%s207 + $0x148] sm:$0xf]
      %v309 = vld [vmem:[%s207 + $0x14c] sm:$0xf]
      %v310 = vld [vmem:[%s207 + $0x150] sm:$0xf]
      %v311 = vld [vmem:[%s207 + $0x154] sm:$0xf]
      %v312 = vld [vmem:[%s207 + $0x158] sm:$0xf]
      %v313 = vld [vmem:[%s207 + $0x15c] sm:$0xf]
      %v314 = vld [vmem:[%s207 + $0x160] sm:$0xf]
      %v315 = vld [vmem:[%s207 + $0x164] sm:$0xf]
      %v316 = vld [vmem:[%s207 + $0x168] sm:$0xf]
      %v317 = vld [vmem:[%s207 + $0x16c] sm:$0xf]
      %v318 = vld [vmem:[%s207 + $0x170] sm:$0xf]
      %v319 = vld [vmem:[%s207 + $0x174] sm:$0xf]
      %v320 = vld [vmem:[%s207 + $0x178] sm:$0xf]
      %v321 = vld [vmem:[%s207 + $0x17c] sm:$0xf]
      %v322 = vld [vmem:[%s207 + $0x180] sm:$0xf]
      %v323 = vld [vmem:[%s207 + $0x184] sm:$0xf]
      %v324 = vld [vmem:[%s207 + $0x188] sm:$0xf]
      %v325 = vld [vmem:[%s207 + $0x18c] sm:$0xf]
      %v326 = vld [vmem:[%s207 + $0x190] sm:$0xf]
      %v327 = vld [vmem:[%s207 + $0x194] sm:$0xf]
      %v328 = vld [vmem:[%s207 + $0x198] sm:$0xf]
      %v329 = vld [vmem:[%s207 + $0x19c] sm:$0xf]
      %v330 = vld [vmem:[%s207 + $0x1a0] sm:$0xf]
      %v331 = vld [vmem:[%s207 + $0x1a4] sm:$0xf]
      %v332 = vld [vmem:[%s207 + $0x1a8] sm:$0xf]
      %v333 = vld [vmem:[%s207 + $0x1ac] sm:$0xf]
      %v334 = vld [vmem:[%s207 + $0x1b0] sm:$0xf]
      %v335 = vld [vmem:[%s207 + $0x1b4] sm:$0xf]
      %v336 = vld [vmem:[%s207 + $0x1b8] sm:$0xf]
      %v337 = vld [vmem:[%s207 + $0x1bc] sm:$0xf]
      %v338 = vld [vmem:[%s207 + $0x1c0] sm:$0xf]
      %v339 = vld [vmem:[%s207 + $0x1c4] sm:$0xf]
      %v340 = vld [vmem:[%s207 + $0x1c8] sm:$0xf]
      %v341 = vld [vmem:[%s207 + $0x1cc] sm:$0xf]
      %v342 = vld [vmem:[%s207 + $0x1d0] sm:$0xf]
      %v343 = vld [vmem:[%s207 + $0x1d4] sm:$0xf]
      %v344 = vld [vmem:[%s207 + $0x1d8] sm:$0xf]
      %v345 = vld [vmem:[%s207 + $0x1dc] sm:$0xf]
      %v346 = vld [vmem:[%s207 + $0x1e0] sm:$0xf]
      %v347 = vld [vmem:[%s207 + $0x1e4] sm:$0xf]
      %v348 = vld [vmem:[%s207 + $0x1e8] sm:$0xf]
      %v349 = vld [vmem:[%s207 + $0x1ec] sm:$0xf]
      %v350 = vld [vmem:[%s207 + $0x1f0] sm:$0xf]
      %v351 = vld [vmem:[%s207 + $0x1f4] sm:$0xf]
      %v352 = vld [vmem:[%s207 + $0x1f8] sm:$0xf]
      %v353 = vld [vmem:[%s207 + $0x1fc] sm:$0xf]
      %v354 = vld [vmem:[%s212] sm:$0xf]
      %v355 = vld [vmem:[%s212 + $0x4] sm:$0xf]
      %v356 = vld [vmem:[%s215] sm:$0x1]
      %v358 = vlaneseq
      %v359 = vshrl.u32 %v358, 7
      %v360 = vsub.s32 0, %v359
      %v361 = vrot.slane %v356, %v360
      %v491 = vunpack.c.l.b16 %v226
      %v492 = vunpack.c.l.b16 %v227
      %v493 = vunpack.c.l.b16 %v228
      %v494 = vunpack.c.l.b16 %v229
      %v495 = vunpack.c.l.b16 %v230
      %v496 = vunpack.c.l.b16 %v231
      %v497 = vunpack.c.l.b16 %v232
      %v498 = vunpack.c.l.b16 %v233
      %v499 = vunpack.c.l.b16 %v234
      %v500 = vunpack.c.l.b16 %v235
      %v501 = vunpack.c.l.b16 %v236
      %v502 = vunpack.c.l.b16 %v237
      %v503 = vunpack.c.l.b16 %v238
      %v504 = vunpack.c.l.b16 %v239
      %v505 = vunpack.c.l.b16 %v240
      %v506 = vunpack.c.l.b16 %v241
      %v507 = vunpack.c.l.b16 %v242
      %v508 = vunpack.c.l.b16 %v243
      %v509 = vunpack.c.l.b16 %v244
      %v510 = vunpack.c.l.b16 %v245
      %v511 = vunpack.c.l.b16 %v246
      %v512 = vunpack.c.l.b16 %v247
      %v513 = vunpack.c.l.b16 %v248
      %v514 = vunpack.c.l.b16 %v249
      %v515 = vunpack.c.l.b16 %v250
      %v516 = vunpack.c.l.b16 %v251
      %v517 = vunpack.c.l.b16 %v252
      %v518 = vunpack.c.l.b16 %v253
      %v519 = vunpack.c.l.b16 %v254
      %v520 = vunpack.c.l.b16 %v255
      %v521 = vunpack.c.l.b16 %v256
      %v522 = vunpack.c.l.b16 %v257
      %v523 = vunpack.c.l.b16 %v258
      %v524 = vunpack.c.l.b16 %v259
      %v525 = vunpack.c.l.b16 %v260
      %v526 = vunpack.c.l.b16 %v261
      %v527 = vunpack.c.l.b16 %v262
      %v528 = vunpack.c.l.b16 %v263
      %v529 = vunpack.c.l.b16 %v264
      %v530 = vunpack.c.l.b16 %v265
      %v531 = vunpack.c.l.b16 %v266
      %v532 = vunpack.c.l.b16 %v267
      %v533 = vunpack.c.l.b16 %v268
      %v534 = vunpack.c.l.b16 %v269
      %v535 = vunpack.c.l.b16 %v270
      %v536 = vunpack.c.l.b16 %v271
      %v537 = vunpack.c.l.b16 %v272
      %v538 = vunpack.c.l.b16 %v273
      %v539 = vunpack.c.l.b16 %v274
      %v540 = vunpack.c.l.b16 %v275
      %v541 = vunpack.c.l.b16 %v276
      %v542 = vunpack.c.l.b16 %v277
      %v543 = vunpack.c.l.b16 %v278
      %v544 = vunpack.c.l.b16 %v279
      %v545 = vunpack.c.l.b16 %v280
      %v546 = vunpack.c.l.b16 %v281
      %v547 = vunpack.c.l.b16 %v282
      %v548 = vunpack.c.l.b16 %v283
      %v549 = vunpack.c.l.b16 %v284
      %v550 = vunpack.c.l.b16 %v285
      %v551 = vunpack.c.l.b16 %v286
      %v552 = vunpack.c.l.b16 %v287
      %v553 = vunpack.c.l.b16 %v288
      %v554 = vunpack.c.l.b16 %v289
      %v555 = vunpack.c.l.b16 %v290
      %v556 = vunpack.c.l.b16 %v291
      %v557 = vunpack.c.l.b16 %v292
      %v558 = vunpack.c.l.b16 %v293
      %v559 = vunpack.c.l.b16 %v294
      %v560 = vunpack.c.l.b16 %v295
      %v561 = vunpack.c.l.b16 %v296
      %v562 = vunpack.c.l.b16 %v297
      %v563 = vunpack.c.l.b16 %v298
      %v564 = vunpack.c.l.b16 %v299
      %v565 = vunpack.c.l.b16 %v300
      %v566 = vunpack.c.l.b16 %v301
      %v567 = vunpack.c.l.b16 %v302
      %v568 = vunpack.c.l.b16 %v303
      %v569 = vunpack.c.l.b16 %v304
      %v570 = vunpack.c.l.b16 %v305
      %v571 = vunpack.c.l.b16 %v306
      %v572 = vunpack.c.l.b16 %v307
      %v573 = vunpack.c.l.b16 %v308
      %v574 = vunpack.c.l.b16 %v309
      %v575 = vunpack.c.l.b16 %v310
      %v576 = vunpack.c.l.b16 %v311
      %v577 = vunpack.c.l.b16 %v312
      %v578 = vunpack.c.l.b16 %v313
      %v579 = vunpack.c.l.b16 %v314
      %v580 = vunpack.c.l.b16 %v315
      %v581 = vunpack.c.l.b16 %v316
      %v582 = vunpack.c.l.b16 %v317
      %v583 = vunpack.c.l.b16 %v318
      %v584 = vunpack.c.l.b16 %v319
      %v585 = vunpack.c.l.b16 %v320
      %v586 = vunpack.c.l.b16 %v321
      %v587 = vunpack.c.l.b16 %v322
      %v588 = vunpack.c.l.b16 %v323
      %v589 = vunpack.c.l.b16 %v324
      %v590 = vunpack.c.l.b16 %v325
      %v591 = vunpack.c.l.b16 %v326
      %v592 = vunpack.c.l.b16 %v327
      %v593 = vunpack.c.l.b16 %v328
      %v594 = vunpack.c.l.b16 %v329
      %v595 = vunpack.c.l.b16 %v330
      %v596 = vunpack.c.l.b16 %v331
      %v597 = vunpack.c.l.b16 %v332
      %v598 = vunpack.c.l.b16 %v333
      %v599 = vunpack.c.l.b16 %v334
      %v600 = vunpack.c.l.b16 %v335
      %v601 = vunpack.c.l.b16 %v336
      %v602 = vunpack.c.l.b16 %v337
      %v603 = vunpack.c.l.b16 %v338
      %v604 = vunpack.c.l.b16 %v339
      %v605 = vunpack.c.l.b16 %v340
      %v606 = vunpack.c.l.b16 %v341
      %v607 = vunpack.c.l.b16 %v342
      %v608 = vunpack.c.l.b16 %v343
      %v609 = vunpack.c.l.b16 %v344
      %v610 = vunpack.c.l.b16 %v345
      %v611 = vunpack.c.l.b16 %v346
      %v612 = vunpack.c.l.b16 %v347
      %v613 = vunpack.c.l.b16 %v348
      %v614 = vunpack.c.l.b16 %v349
      %v615 = vunpack.c.l.b16 %v350
      %v616 = vunpack.c.l.b16 %v351
      %v617 = vunpack.c.l.b16 %v352
      %v618 = vunpack.c.l.b16 %v353
      %v619 = vpack.c.b16 %v492, %v491
      %v620 = vpack.c.b16 %v494, %v493
      %v621 = vpack.c.b16 %v496, %v495
      %v622 = vpack.c.b16 %v498, %v497
      %v623 = vpack.c.b16 %v500, %v499
      %v624 = vpack.c.b16 %v502, %v501
      %v625 = vpack.c.b16 %v504, %v503
      %v626 = vpack.c.b16 %v506, %v505
      %v627 = vpack.c.b16 %v508, %v507
      %v628 = vpack.c.b16 %v510, %v509
      %v629 = vpack.c.b16 %v512, %v511
      %v630 = vpack.c.b16 %v514, %v513
      %v631 = vpack.c.b16 %v516, %v515
      %v632 = vpack.c.b16 %v518, %v517
      %v633 = vpack.c.b16 %v520, %v519
      %v634 = vpack.c.b16 %v522, %v521
      %v635 = vpack.c.b16 %v524, %v523
      %v636 = vpack.c.b16 %v526, %v525
      %v637 = vpack.c.b16 %v528, %v527
      %v638 = vpack.c.b16 %v530, %v529
      %v639 = vpack.c.b16 %v532, %v531
      %v640 = vpack.c.b16 %v534, %v533
      %v641 = vpack.c.b16 %v536, %v535
      %v642 = vpack.c.b16 %v538, %v537
      %v643 = vpack.c.b16 %v540, %v539
      %v644 = vpack.c.b16 %v542, %v541
      %v645 = vpack.c.b16 %v544, %v543
      %v646 = vpack.c.b16 %v546, %v545
      %v647 = vpack.c.b16 %v548, %v547
      %v648 = vpack.c.b16 %v550, %v549
      %v649 = vpack.c.b16 %v552, %v551
      %v650 = vpack.c.b16 %v554, %v553
      %v651 = vpack.c.b16 %v556, %v555
      %v652 = vpack.c.b16 %v558, %v557
      %v653 = vpack.c.b16 %v560, %v559
      %v654 = vpack.c.b16 %v562, %v561
      %v655 = vpack.c.b16 %v564, %v563
      %v656 = vpack.c.b16 %v566, %v565
      %v657 = vpack.c.b16 %v568, %v567
      %v658 = vpack.c.b16 %v570, %v569
      %v659 = vpack.c.b16 %v572, %v571
      %v660 = vpack.c.b16 %v574, %v573
      %v661 = vpack.c.b16 %v576, %v575
      %v662 = vpack.c.b16 %v578, %v577
      %v663 = vpack.c.b16 %v580, %v579
      %v664 = vpack.c.b16 %v582, %v581
      %v665 = vpack.c.b16 %v584, %v583
      %v666 = vpack.c.b16 %v586, %v585
      %v667 = vpack.c.b16 %v588, %v587
      %v668 = vpack.c.b16 %v590, %v589
      %v669 = vpack.c.b16 %v592, %v591
      %v670 = vpack.c.b16 %v594, %v593
      %v671 = vpack.c.b16 %v596, %v595
      %v672 = vpack.c.b16 %v598, %v597
      %v673 = vpack.c.b16 %v600, %v599
      %v674 = vpack.c.b16 %v602, %v601
      %v675 = vpack.c.b16 %v604, %v603
      %v676 = vpack.c.b16 %v606, %v605
      %v677 = vpack.c.b16 %v608, %v607
      %v678 = vpack.c.b16 %v610, %v609
      %v679 = vpack.c.b16 %v612, %v611
      %v680 = vpack.c.b16 %v614, %v613
      %v681 = vpack.c.b16 %v616, %v615
      %v682 = vpack.c.b16 %v618, %v617
      %v685 = vunpack.c.l.b16 %v354
      %v686 = vunpack.c.l.b16 %v355
      %v687 = vpack.c.b16 %v686, %v685
      %vm689 = vcmask 130048
      %v691 = vsel %vm689, %v619, 0
      %v694 = vsel %vm689, %v620, 0
      %v697 = vsel %vm689, %v621, 0
      %v700 = vsel %vm689, %v622, 0
      %v703 = vsel %vm689, %v623, 0
      %v706 = vsel %vm689, %v624, 0
      %v709 = vsel %vm689, %v625, 0
      %v712 = vsel %vm689, %v626, 0
      %v715 = vsel %vm689, %v627, 0
      %v718 = vsel %vm689, %v628, 0
      %v721 = vsel %vm689, %v629, 0
      %v724 = vsel %vm689, %v630, 0
      %v727 = vsel %vm689, %v631, 0
      %v730 = vsel %vm689, %v632, 0
      %v733 = vsel %vm689, %v633, 0
      %v736 = vsel %vm689, %v634, 0
      %v739 = vsel %vm689, %v635, 0
      %v742 = vsel %vm689, %v636, 0
      %v745 = vsel %vm689, %v637, 0
      %v748 = vsel %vm689, %v638, 0
      %v751 = vsel %vm689, %v639, 0
      %v754 = vsel %vm689, %v640, 0
      %v757 = vsel %vm689, %v641, 0
      %v760 = vsel %vm689, %v642, 0
      %v763 = vsel %vm689, %v643, 0
      %v766 = vsel %vm689, %v644, 0
      %v769 = vsel %vm689, %v645, 0
      %v772 = vsel %vm689, %v646, 0
      %v775 = vsel %vm689, %v647, 0
      %v778 = vsel %vm689, %v648, 0
      %v781 = vsel %vm689, %v649, 0
      %v784 = vsel %vm689, %v650, 0
      %v787 = vsel %vm689, %v651, 0
      %v790 = vsel %vm689, %v652, 0
      %v793 = vsel %vm689, %v653, 0
      %v796 = vsel %vm689, %v654, 0
      %v799 = vsel %vm689, %v655, 0
      %v802 = vsel %vm689, %v656, 0
      %v805 = vsel %vm689, %v657, 0
      %v808 = vsel %vm689, %v658, 0
      %v811 = vsel %vm689, %v659, 0
      %v814 = vsel %vm689, %v660, 0
      %v817 = vsel %vm689, %v661, 0
      %v820 = vsel %vm689, %v662, 0
      %v823 = vsel %vm689, %v663, 0
      %v826 = vsel %vm689, %v664, 0
      %v829 = vsel %vm689, %v665, 0
      %v832 = vsel %vm689, %v666, 0
      %v835 = vsel %vm689, %v667, 0
      %v838 = vsel %vm689, %v668, 0
      %v841 = vsel %vm689, %v669, 0
      %v844 = vsel %vm689, %v670, 0
      %v847 = vsel %vm689, %v671, 0
      %v850 = vsel %vm689, %v672, 0
      %v853 = vsel %vm689, %v673, 0
      %v856 = vsel %vm689, %v674, 0
      %v859 = vsel %vm689, %v675, 0
      %v862 = vsel %vm689, %v676, 0
      %v865 = vsel %vm689, %v677, 0
      %v868 = vsel %vm689, %v678, 0
      %v871 = vsel %vm689, %v679, 0
      %v874 = vsel %vm689, %v680, 0
      %v877 = vsel %vm689, %v681, 0
      %v880 = vsel %vm689, %v682, 0
      %882 = vmatprep.subr.bf16.mxu0 0
      %883 = vmatpush1.bf16.msra.mxu0 0
      %884 = vmatprep.subr.bf16.mxu0 0
      %885 = vmatpush1.bf16.msra.mxu0 0
      %886 = vmatprep.subr.bf16.mxu0 0
      %887 = vmatpush1.bf16.msra.mxu0 0
      %888 = vmatprep.subr.bf16.mxu0 0
      %889 = vmatpush1.bf16.msra.mxu0 0
      %890 = vmatprep.subr.bf16.mxu0 0
      %891 = vmatpush1.bf16.msra.mxu0 0
      %892 = vmatprep.subr.bf16.mxu0 0
      %893 = vmatpush1.bf16.msra.mxu0 0
      %894 = vmatprep.subr.bf16.mxu0 0
      %895 = vmatpush1.bf16.msra.mxu0 0
      %896 = vmatprep.subr.bf16.mxu0 0
      %897 = vmatpush1.bf16.msra.mxu0 %v687
      %898 = vmatprep.subr.bf16.mxu0 0
      %899 = vmatpush2.bf16.msra.mxu0 0
      %900 = vmatprep.subr.bf16.mxu0 0
      %901 = vmatpush2.bf16.msra.mxu0 0
      %902 = vmatprep.subr.bf16.mxu0 0
      %903 = vmatpush2.bf16.msra.mxu0 0
      %904 = vmatprep.subr.bf16.mxu0 0
      %905 = vmatpush2.bf16.msra.mxu0 0
      %906 = vmatprep.subr.bf16.mxu0 0
      %907 = vmatpush2.bf16.msra.mxu0 0
      %908 = vmatprep.subr.bf16.mxu0 0
      %909 = vmatpush2.bf16.msra.mxu0 0
      %910 = vmatprep.subr.bf16.mxu0 0
      %911 = vmatpush2.bf16.msra.mxu0 0
      %912 = vmatprep.subr.bf16.mxu0 0
      %913 = vmatpush2.bf16.msra.mxu0 0
      %914 = vmatprep.mubr.bf16.mxu0 0
      %915 = vmatmul.mubr.bf16.gmra.mxu0 %v691
      %v916 = vpop.f32.mrf.mxu0
      %v917 = vadd.f32 %v361, %v916
      %v918 = vpop.f32.mrf.mxu0
      %v919 = vpop.f32.mrf.mxu0
      %v920 = vadd.f32 %v361, %v919
      %v921 = vpop.f32.mrf.mxu0
      %922 = vmatprep.mubr.bf16.mxu0 0
      %923 = vmatmul.mubr.bf16.gmra.mxu0 %v694
      %v924 = vpop.f32.mrf.mxu0
      %v925 = vadd.f32 %v361, %v924
      %v926 = vpop.f32.mrf.mxu0
      %v927 = vpop.f32.mrf.mxu0
      %v928 = vadd.f32 %v361, %v927
      %v929 = vpop.f32.mrf.mxu0
      %930 = vmatprep.mubr.bf16.mxu0 0
      %931 = vmatmul.mubr.bf16.gmra.mxu0 %v697
      %v932 = vpop.f32.mrf.mxu0
      %v933 = vadd.f32 %v361, %v932
      %v934 = vpop.f32.mrf.mxu0
      %v935 = vpop.f32.mrf.mxu0
      %v936 = vadd.f32 %v361, %v935
      %v937 = vpop.f32.mrf.mxu0
      %938 = vmatprep.mubr.bf16.mxu0 0
      %939 = vmatmul.mubr.bf16.gmra.mxu0 %v700
      %v940 = vpop.f32.mrf.mxu0
      %v941 = vadd.f32 %v361, %v940
      %v942 = vpop.f32.mrf.mxu0
      %v943 = vpop.f32.mrf.mxu0
      %v944 = vadd.f32 %v361, %v943
      %v945 = vpop.f32.mrf.mxu0
      %946 = vmatprep.mubr.bf16.mxu0 0
      %947 = vmatmul.mubr.bf16.gmra.mxu0 %v703
      %v948 = vpop.f32.mrf.mxu0
      %v949 = vadd.f32 %v361, %v948
      %v950 = vpop.f32.mrf.mxu0
      %v951 = vpop.f32.mrf.mxu0
      %v952 = vadd.f32 %v361, %v951
      %v953 = vpop.f32.mrf.mxu0
      %954 = vmatprep.mubr.bf16.mxu0 0
      %955 = vmatmul.mubr.bf16.gmra.mxu0 %v706
      %v956 = vpop.f32.mrf.mxu0
      %v957 = vadd.f32 %v361, %v956
      %v958 = vpop.f32.mrf.mxu0
      %v959 = vpop.f32.mrf.mxu0
      %v960 = vadd.f32 %v361, %v959
      %v961 = vpop.f32.mrf.mxu0
      %962 = vmatprep.mubr.bf16.mxu0 0
      %963 = vmatmul.mubr.bf16.gmra.mxu0 %v709
      %v964 = vpop.f32.mrf.mxu0
      %v965 = vadd.f32 %v361, %v964
      %v966 = vpop.f32.mrf.mxu0
      %v967 = vpop.f32.mrf.mxu0
      %v968 = vadd.f32 %v361, %v967
      %v969 = vpop.f32.mrf.mxu0
      %970 = vmatprep.mubr.bf16.mxu0 0
      %971 = vmatmul.mubr.bf16.gmra.mxu0 %v712
      %v972 = vpop.f32.mrf.mxu0
      %v973 = vadd.f32 %v361, %v972
      %v974 = vpop.f32.mrf.mxu0
      %v975 = vpop.f32.mrf.mxu0
      %v976 = vadd.f32 %v361, %v975
      %v977 = vpop.f32.mrf.mxu0
      %978 = vmatprep.mubr.bf16.mxu0 0
      %979 = vmatmul.mubr.bf16.gmra.mxu0 %v715
      %v980 = vpop.f32.mrf.mxu0
      %v981 = vadd.f32 %v361, %v980
      %v982 = vpop.f32.mrf.mxu0
      %v983 = vpop.f32.mrf.mxu0
      %v984 = vadd.f32 %v361, %v983
      %v985 = vpop.f32.mrf.mxu0
      %986 = vmatprep.mubr.bf16.mxu0 0
      %987 = vmatmul.mubr.bf16.gmra.mxu0 %v718
      %v988 = vpop.f32.mrf.mxu0
      %v989 = vadd.f32 %v361, %v988
      %v990 = vpop.f32.mrf.mxu0
      %v991 = vpop.f32.mrf.mxu0
      %v992 = vadd.f32 %v361, %v991
      %v993 = vpop.f32.mrf.mxu0
      %994 = vmatprep.mubr.bf16.mxu0 0
      %995 = vmatmul.mubr.bf16.gmra.mxu0 %v721
      %v996 = vpop.f32.mrf.mxu0
      %v997 = vadd.f32 %v361, %v996
      %v998 = vpop.f32.mrf.mxu0
      %v999 = vpop.f32.mrf.mxu0
      %v1000 = vadd.f32 %v361, %v999
      %v1001 = vpop.f32.mrf.mxu0
      %1002 = vmatprep.mubr.bf16.mxu0 0
      %1003 = vmatmul.mubr.bf16.gmra.mxu0 %v724
      %v1004 = vpop.f32.mrf.mxu0
      %v1005 = vadd.f32 %v361, %v1004
      %v1006 = vpop.f32.mrf.mxu0
      %v1007 = vpop.f32.mrf.mxu0
      %v1008 = vadd.f32 %v361, %v1007
      %v1009 = vpop.f32.mrf.mxu0
      %1010 = vmatprep.mubr.bf16.mxu0 0
      %1011 = vmatmul.mubr.bf16.gmra.mxu0 %v727
      %v1012 = vpop.f32.mrf.mxu0
      %v1013 = vadd.f32 %v361, %v1012
      %v1014 = vpop.f32.mrf.mxu0
      %v1015 = vpop.f32.mrf.mxu0
      %v1016 = vadd.f32 %v361, %v1015
      %v1017 = vpop.f32.mrf.mxu0
      %1018 = vmatprep.mubr.bf16.mxu0 0
      %1019 = vmatmul.mubr.bf16.gmra.mxu0 %v730
      %v1020 = vpop.f32.mrf.mxu0
      %v1021 = vadd.f32 %v361, %v1020
      %v1022 = vpop.f32.mrf.mxu0
      %v1023 = vpop.f32.mrf.mxu0
      %v1024 = vadd.f32 %v361, %v1023
      %v1025 = vpop.f32.mrf.mxu0
      %1026 = vmatprep.mubr.bf16.mxu0 0
      %1027 = vmatmul.mubr.bf16.gmra.mxu0 %v733
      %v1028 = vpop.f32.mrf.mxu0
      %v1029 = vadd.f32 %v361, %v1028
      %v1030 = vpop.f32.mrf.mxu0
      %v1031 = vpop.f32.mrf.mxu0
      %v1032 = vadd.f32 %v361, %v1031
      %v1033 = vpop.f32.mrf.mxu0
      %1034 = vmatprep.mubr.bf16.mxu0 0
      %1035 = vmatmul.mubr.bf16.gmra.mxu0 %v736
      %v1036 = vpop.f32.mrf.mxu0
      %v1037 = vadd.f32 %v361, %v1036
      %v1038 = vpop.f32.mrf.mxu0
      %v1039 = vpop.f32.mrf.mxu0
      %v1040 = vadd.f32 %v361, %v1039
      %v1041 = vpop.f32.mrf.mxu0
      %1042 = vmatprep.mubr.bf16.mxu0 0
      %1043 = vmatmul.mubr.bf16.gmra.mxu0 %v739
      %v1044 = vpop.f32.mrf.mxu0
      %v1045 = vadd.f32 %v361, %v1044
      %v1046 = vpop.f32.mrf.mxu0
      %v1047 = vpop.f32.mrf.mxu0
      %v1048 = vadd.f32 %v361, %v1047
      %v1049 = vpop.f32.mrf.mxu0
      %1050 = vmatprep.mubr.bf16.mxu0 0
      %1051 = vmatmul.mubr.bf16.gmra.mxu0 %v742
      %v1052 = vpop.f32.mrf.mxu0
      %v1053 = vadd.f32 %v361, %v1052
      %v1054 = vpop.f32.mrf.mxu0
      %v1055 = vpop.f32.mrf.mxu0
      %v1056 = vadd.f32 %v361, %v1055
      %v1057 = vpop.f32.mrf.mxu0
      %1058 = vmatprep.mubr.bf16.mxu0 0
      %1059 = vmatmul.mubr.bf16.gmra.mxu0 %v745
      %v1060 = vpop.f32.mrf.mxu0
      %v1061 = vadd.f32 %v361, %v1060
      %v1062 = vpop.f32.mrf.mxu0
      %v1063 = vpop.f32.mrf.mxu0
      %v1064 = vadd.f32 %v361, %v1063
      %v1065 = vpop.f32.mrf.mxu0
      %1066 = vmatprep.mubr.bf16.mxu0 0
      %1067 = vmatmul.mubr.bf16.gmra.mxu0 %v748
      %v1068 = vpop.f32.mrf.mxu0
      %v1069 = vadd.f32 %v361, %v1068
      %v1070 = vpop.f32.mrf.mxu0
      %v1071 = vpop.f32.mrf.mxu0
      %v1072 = vadd.f32 %v361, %v1071
      %v1073 = vpop.f32.mrf.mxu0
      %1074 = vmatprep.mubr.bf16.mxu0 0
      %1075 = vmatmul.mubr.bf16.gmra.mxu0 %v751
      %v1076 = vpop.f32.mrf.mxu0
      %v1077 = vadd.f32 %v361, %v1076
      %v1078 = vpop.f32.mrf.mxu0
      %v1079 = vpop.f32.mrf.mxu0
      %v1080 = vadd.f32 %v361, %v1079
      %v1081 = vpop.f32.mrf.mxu0
      %1082 = vmatprep.mubr.bf16.mxu0 0
      %1083 = vmatmul.mubr.bf16.gmra.mxu0 %v754
      %v1084 = vpop.f32.mrf.mxu0
      %v1085 = vadd.f32 %v361, %v1084
      %v1086 = vpop.f32.mrf.mxu0
      %v1087 = vpop.f32.mrf.mxu0
      %v1088 = vadd.f32 %v361, %v1087
      %v1089 = vpop.f32.mrf.mxu0
      %1090 = vmatprep.mubr.bf16.mxu0 0
      %1091 = vmatmul.mubr.bf16.gmra.mxu0 %v757
      %v1092 = vpop.f32.mrf.mxu0
      %v1093 = vadd.f32 %v361, %v1092
      %v1094 = vpop.f32.mrf.mxu0
      %v1095 = vpop.f32.mrf.mxu0
      %v1096 = vadd.f32 %v361, %v1095
      %v1097 = vpop.f32.mrf.mxu0
      %1098 = vmatprep.mubr.bf16.mxu0 0
      %1099 = vmatmul.mubr.bf16.gmra.mxu0 %v760
      %v1100 = vpop.f32.mrf.mxu0
      %v1101 = vadd.f32 %v361, %v1100
      %v1102 = vpop.f32.mrf.mxu0
      %v1103 = vpop.f32.mrf.mxu0
      %v1104 = vadd.f32 %v361, %v1103
      %v1105 = vpop.f32.mrf.mxu0
      %1106 = vmatprep.mubr.bf16.mxu0 0
      %1107 = vmatmul.mubr.bf16.gmra.mxu0 %v763
      %v1108 = vpop.f32.mrf.mxu0
      %v1109 = vadd.f32 %v361, %v1108
      %v1110 = vpop.f32.mrf.mxu0
      %v1111 = vpop.f32.mrf.mxu0
      %v1112 = vadd.f32 %v361, %v1111
      %v1113 = vpop.f32.mrf.mxu0
      %1114 = vmatprep.mubr.bf16.mxu0 0
      %1115 = vmatmul.mubr.bf16.gmra.mxu0 %v766
      %v1116 = vpop.f32.mrf.mxu0
      %v1117 = vadd.f32 %v361, %v1116
      %v1118 = vpop.f32.mrf.mxu0
      %v1119 = vpop.f32.mrf.mxu0
      %v1120 = vadd.f32 %v361, %v1119
      %v1121 = vpop.f32.mrf.mxu0
      %1122 = vmatprep.mubr.bf16.mxu0 0
      %1123 = vmatmul.mubr.bf16.gmra.mxu0 %v769
      %v1124 = vpop.f32.mrf.mxu0
      %v1125 = vadd.f32 %v361, %v1124
      %v1126 = vpop.f32.mrf.mxu0
      %v1127 = vpop.f32.mrf.mxu0
      %v1128 = vadd.f32 %v361, %v1127
      %v1129 = vpop.f32.mrf.mxu0
      %1130 = vmatprep.mubr.bf16.mxu0 0
      %1131 = vmatmul.mubr.bf16.gmra.mxu0 %v772
      %v1132 = vpop.f32.mrf.mxu0
      %v1133 = vadd.f32 %v361, %v1132
      %v1134 = vpop.f32.mrf.mxu0
      %v1135 = vpop.f32.mrf.mxu0
      %v1136 = vadd.f32 %v361, %v1135
      %v1137 = vpop.f32.mrf.mxu0
      %1138 = vmatprep.mubr.bf16.mxu0 0
      %1139 = vmatmul.mubr.bf16.gmra.mxu0 %v775
      %v1140 = vpop.f32.mrf.mxu0
      %v1141 = vadd.f32 %v361, %v1140
      %v1142 = vpop.f32.mrf.mxu0
      %v1143 = vpop.f32.mrf.mxu0
      %v1144 = vadd.f32 %v361, %v1143
      %v1145 = vpop.f32.mrf.mxu0
      %1146 = vmatprep.mubr.bf16.mxu0 0
      %1147 = vmatmul.mubr.bf16.gmra.mxu0 %v778
      %v1148 = vpop.f32.mrf.mxu0
      %v1149 = vadd.f32 %v361, %v1148
      %v1150 = vpop.f32.mrf.mxu0
      %v1151 = vpop.f32.mrf.mxu0
      %v1152 = vadd.f32 %v361, %v1151
      %v1153 = vpop.f32.mrf.mxu0
      %1154 = vmatprep.mubr.bf16.mxu0 0
      %1155 = vmatmul.mubr.bf16.gmra.mxu0 %v781
      %v1156 = vpop.f32.mrf.mxu0
      %v1157 = vadd.f32 %v361, %v1156
      %v1158 = vpop.f32.mrf.mxu0
      %v1159 = vpop.f32.mrf.mxu0
      %v1160 = vadd.f32 %v361, %v1159
      %v1161 = vpop.f32.mrf.mxu0
      %1162 = vmatprep.mubr.bf16.mxu0 0
      %1163 = vmatmul.mubr.bf16.gmra.mxu0 %v784
      %v1164 = vpop.f32.mrf.mxu0
      %v1165 = vadd.f32 %v361, %v1164
      %v1166 = vpop.f32.mrf.mxu0
      %v1167 = vpop.f32.mrf.mxu0
      %v1168 = vadd.f32 %v361, %v1167
      %v1169 = vpop.f32.mrf.mxu0
      %1170 = vmatprep.mubr.bf16.mxu0 0
      %1171 = vmatmul.mubr.bf16.gmra.mxu0 %v787
      %v1172 = vpop.f32.mrf.mxu0
      %v1173 = vadd.f32 %v361, %v1172
      %v1174 = vpop.f32.mrf.mxu0
      %v1175 = vpop.f32.mrf.mxu0
      %v1176 = vadd.f32 %v361, %v1175
      %v1177 = vpop.f32.mrf.mxu0
      %1178 = vmatprep.mubr.bf16.mxu0 0
      %1179 = vmatmul.mubr.bf16.gmra.mxu0 %v790
      %v1180 = vpop.f32.mrf.mxu0
      %v1181 = vadd.f32 %v361, %v1180
      %v1182 = vpop.f32.mrf.mxu0
      %v1183 = vpop.f32.mrf.mxu0
      %v1184 = vadd.f32 %v361, %v1183
      %v1185 = vpop.f32.mrf.mxu0
      %1186 = vmatprep.mubr.bf16.mxu0 0
      %1187 = vmatmul.mubr.bf16.gmra.mxu0 %v793
      %v1188 = vpop.f32.mrf.mxu0
      %v1189 = vadd.f32 %v361, %v1188
      %v1190 = vpop.f32.mrf.mxu0
      %v1191 = vpop.f32.mrf.mxu0
      %v1192 = vadd.f32 %v361, %v1191
      %v1193 = vpop.f32.mrf.mxu0
      %1194 = vmatprep.mubr.bf16.mxu0 0
      %1195 = vmatmul.mubr.bf16.gmra.mxu0 %v796
      %v1196 = vpop.f32.mrf.mxu0
      %v1197 = vadd.f32 %v361, %v1196
      %v1198 = vpop.f32.mrf.mxu0
      %v1199 = vpop.f32.mrf.mxu0
      %v1200 = vadd.f32 %v361, %v1199
      %v1201 = vpop.f32.mrf.mxu0
      %1202 = vmatprep.mubr.bf16.mxu0 0
      %1203 = vmatmul.mubr.bf16.gmra.mxu0 %v799
      %v1204 = vpop.f32.mrf.mxu0
      %v1205 = vadd.f32 %v361, %v1204
      %v1206 = vpop.f32.mrf.mxu0
      %v1207 = vpop.f32.mrf.mxu0
      %v1208 = vadd.f32 %v361, %v1207
      %v1209 = vpop.f32.mrf.mxu0
      %1210 = vmatprep.mubr.bf16.mxu0 0
      %1211 = vmatmul.mubr.bf16.gmra.mxu0 %v802
      %v1212 = vpop.f32.mrf.mxu0
      %v1213 = vadd.f32 %v361, %v1212
      %v1214 = vpop.f32.mrf.mxu0
      %v1215 = vpop.f32.mrf.mxu0
      %v1216 = vadd.f32 %v361, %v1215
      %v1217 = vpop.f32.mrf.mxu0
      %1218 = vmatprep.mubr.bf16.mxu0 0
      %1219 = vmatmul.mubr.bf16.gmra.mxu0 %v805
      %v1220 = vpop.f32.mrf.mxu0
      %v1221 = vadd.f32 %v361, %v1220
      %v1222 = vpop.f32.mrf.mxu0
      %v1223 = vpop.f32.mrf.mxu0
      %v1224 = vadd.f32 %v361, %v1223
      %v1225 = vpop.f32.mrf.mxu0
      %1226 = vmatprep.mubr.bf16.mxu0 0
      %1227 = vmatmul.mubr.bf16.gmra.mxu0 %v808
      %v1228 = vpop.f32.mrf.mxu0
      %v1229 = vadd.f32 %v361, %v1228
      %v1230 = vpop.f32.mrf.mxu0
      %v1231 = vpop.f32.mrf.mxu0
      %v1232 = vadd.f32 %v361, %v1231
      %v1233 = vpop.f32.mrf.mxu0
      %1234 = vmatprep.mubr.bf16.mxu0 0
      %1235 = vmatmul.mubr.bf16.gmra.mxu0 %v811
      %v1236 = vpop.f32.mrf.mxu0
      %v1237 = vadd.f32 %v361, %v1236
      %v1238 = vpop.f32.mrf.mxu0
      %v1239 = vpop.f32.mrf.mxu0
      %v1240 = vadd.f32 %v361, %v1239
      %v1241 = vpop.f32.mrf.mxu0
      %1242 = vmatprep.mubr.bf16.mxu0 0
      %1243 = vmatmul.mubr.bf16.gmra.mxu0 %v814
      %v1244 = vpop.f32.mrf.mxu0
      %v1245 = vadd.f32 %v361, %v1244
      %v1246 = vpop.f32.mrf.mxu0
      %v1247 = vpop.f32.mrf.mxu0
      %v1248 = vadd.f32 %v361, %v1247
      %v1249 = vpop.f32.mrf.mxu0
      %1250 = vmatprep.mubr.bf16.mxu0 0
      %1251 = vmatmul.mubr.bf16.gmra.mxu0 %v817
      %v1252 = vpop.f32.mrf.mxu0
      %v1253 = vadd.f32 %v361, %v1252
      %v1254 = vpop.f32.mrf.mxu0
      %v1255 = vpop.f32.mrf.mxu0
      %v1256 = vadd.f32 %v361, %v1255
      %v1257 = vpop.f32.mrf.mxu0
      %1258 = vmatprep.mubr.bf16.mxu0 0
      %1259 = vmatmul.mubr.bf16.gmra.mxu0 %v820
      %v1260 = vpop.f32.mrf.mxu0
      %v1261 = vadd.f32 %v361, %v1260
      %v1262 = vpop.f32.mrf.mxu0
      %v1263 = vpop.f32.mrf.mxu0
      %v1264 = vadd.f32 %v361, %v1263
      %v1265 = vpop.f32.mrf.mxu0
      %1266 = vmatprep.mubr.bf16.mxu0 0
      %1267 = vmatmul.mubr.bf16.gmra.mxu0 %v823
      %v1268 = vpop.f32.mrf.mxu0
      %v1269 = vadd.f32 %v361, %v1268
      %v1270 = vpop.f32.mrf.mxu0
      %v1271 = vpop.f32.mrf.mxu0
      %v1272 = vadd.f32 %v361, %v1271
      %v1273 = vpop.f32.mrf.mxu0
      %1274 = vmatprep.mubr.bf16.mxu0 0
      %1275 = vmatmul.mubr.bf16.gmra.mxu0 %v826
      %v1276 = vpop.f32.mrf.mxu0
      %v1277 = vadd.f32 %v361, %v1276
      %v1278 = vpop.f32.mrf.mxu0
      %v1279 = vpop.f32.mrf.mxu0
      %v1280 = vadd.f32 %v361, %v1279
      %v1281 = vpop.f32.mrf.mxu0
      %1282 = vmatprep.mubr.bf16.mxu0 0
      %1283 = vmatmul.mubr.bf16.gmra.mxu0 %v829
      %v1284 = vpop.f32.mrf.mxu0
      %v1285 = vadd.f32 %v361, %v1284
      %v1286 = vpop.f32.mrf.mxu0
      %v1287 = vpop.f32.mrf.mxu0
      %v1288 = vadd.f32 %v361, %v1287
      %v1289 = vpop.f32.mrf.mxu0
      %1290 = vmatprep.mubr.bf16.mxu0 0
      %1291 = vmatmul.mubr.bf16.gmra.mxu0 %v832
      %v1292 = vpop.f32.mrf.mxu0
      %v1293 = vadd.f32 %v361, %v1292
      %v1294 = vpop.f32.mrf.mxu0
      %v1295 = vpop.f32.mrf.mxu0
      %v1296 = vadd.f32 %v361, %v1295
      %v1297 = vpop.f32.mrf.mxu0
      %1298 = vmatprep.mubr.bf16.mxu0 0
      %1299 = vmatmul.mubr.bf16.gmra.mxu0 %v835
      %v1300 = vpop.f32.mrf.mxu0
      %v1301 = vadd.f32 %v361, %v1300
      %v1302 = vpop.f32.mrf.mxu0
      %v1303 = vpop.f32.mrf.mxu0
      %v1304 = vadd.f32 %v361, %v1303
      %v1305 = vpop.f32.mrf.mxu0
      %1306 = vmatprep.mubr.bf16.mxu0 0
      %1307 = vmatmul.mubr.bf16.gmra.mxu0 %v838
      %v1308 = vpop.f32.mrf.mxu0
      %v1309 = vadd.f32 %v361, %v1308
      %v1310 = vpop.f32.mrf.mxu0
      %v1311 = vpop.f32.mrf.mxu0
      %v1312 = vadd.f32 %v361, %v1311
      %v1313 = vpop.f32.mrf.mxu0
      %1314 = vmatprep.mubr.bf16.mxu0 0
      %1315 = vmatmul.mubr.bf16.gmra.mxu0 %v841
      %v1316 = vpop.f32.mrf.mxu0
      %v1317 = vadd.f32 %v361, %v1316
      %v1318 = vpop.f32.mrf.mxu0
      %v1319 = vpop.f32.mrf.mxu0
      %v1320 = vadd.f32 %v361, %v1319
      %v1321 = vpop.f32.mrf.mxu0
      %1322 = vmatprep.mubr.bf16.mxu0 0
      %1323 = vmatmul.mubr.bf16.gmra.mxu0 %v844
      %v1324 = vpop.f32.mrf.mxu0
      %v1325 = vadd.f32 %v361, %v1324
      %v1326 = vpop.f32.mrf.mxu0
      %v1327 = vpop.f32.mrf.mxu0
      %v1328 = vadd.f32 %v361, %v1327
      %v1329 = vpop.f32.mrf.mxu0
      %1330 = vmatprep.mubr.bf16.mxu0 0
      %1331 = vmatmul.mubr.bf16.gmra.mxu0 %v847
      %v1332 = vpop.f32.mrf.mxu0
      %v1333 = vadd.f32 %v361, %v1332
      %v1334 = vpop.f32.mrf.mxu0
      %v1335 = vpop.f32.mrf.mxu0
      %v1336 = vadd.f32 %v361, %v1335
      %v1337 = vpop.f32.mrf.mxu0
      %1338 = vmatprep.mubr.bf16.mxu0 0
      %1339 = vmatmul.mubr.bf16.gmra.mxu0 %v850
      %v1340 = vpop.f32.mrf.mxu0
      %v1341 = vadd.f32 %v361, %v1340
      %v1342 = vpop.f32.mrf.mxu0
      %v1343 = vpop.f32.mrf.mxu0
      %v1344 = vadd.f32 %v361, %v1343
      %v1345 = vpop.f32.mrf.mxu0
      %1346 = vmatprep.mubr.bf16.mxu0 0
      %1347 = vmatmul.mubr.bf16.gmra.mxu0 %v853
      %v1348 = vpop.f32.mrf.mxu0
      %v1349 = vadd.f32 %v361, %v1348
      %v1350 = vpop.f32.mrf.mxu0
      %v1351 = vpop.f32.mrf.mxu0
      %v1352 = vadd.f32 %v361, %v1351
      %v1353 = vpop.f32.mrf.mxu0
      %1354 = vmatprep.mubr.bf16.mxu0 0
      %1355 = vmatmul.mubr.bf16.gmra.mxu0 %v856
      %v1356 = vpop.f32.mrf.mxu0
      %v1357 = vadd.f32 %v361, %v1356
      %v1358 = vpop.f32.mrf.mxu0
      %v1359 = vpop.f32.mrf.mxu0
      %v1360 = vadd.f32 %v361, %v1359
      %v1361 = vpop.f32.mrf.mxu0
      %1362 = vmatprep.mubr.bf16.mxu0 0
      %1363 = vmatmul.mubr.bf16.gmra.mxu0 %v859
      %v1364 = vpop.f32.mrf.mxu0
      %v1365 = vadd.f32 %v361, %v1364
      %v1366 = vpop.f32.mrf.mxu0
      %v1367 = vpop.f32.mrf.mxu0
      %v1368 = vadd.f32 %v361, %v1367
      %v1369 = vpop.f32.mrf.mxu0
      %1370 = vmatprep.mubr.bf16.mxu0 0
      %1371 = vmatmul.mubr.bf16.gmra.mxu0 %v862
      %v1372 = vpop.f32.mrf.mxu0
      %v1373 = vadd.f32 %v361, %v1372
      %v1374 = vpop.f32.mrf.mxu0
      %v1375 = vpop.f32.mrf.mxu0
      %v1376 = vadd.f32 %v361, %v1375
      %v1377 = vpop.f32.mrf.mxu0
      %1378 = vmatprep.mubr.bf16.mxu0 0
      %1379 = vmatmul.mubr.bf16.gmra.mxu0 %v865
      %v1380 = vpop.f32.mrf.mxu0
      %v1381 = vadd.f32 %v361, %v1380
      %v1382 = vpop.f32.mrf.mxu0
      %v1383 = vpop.f32.mrf.mxu0
      %v1384 = vadd.f32 %v361, %v1383
      %v1385 = vpop.f32.mrf.mxu0
      %1386 = vmatprep.mubr.bf16.mxu0 0
      %1387 = vmatmul.mubr.bf16.gmra.mxu0 %v868
      %v1388 = vpop.f32.mrf.mxu0
      %v1389 = vadd.f32 %v361, %v1388
      %v1390 = vpop.f32.mrf.mxu0
      %v1391 = vpop.f32.mrf.mxu0
      %v1392 = vadd.f32 %v361, %v1391
      %v1393 = vpop.f32.mrf.mxu0
      %1394 = vmatprep.mubr.bf16.mxu0 0
      %1395 = vmatmul.mubr.bf16.gmra.mxu0 %v871
      %v1396 = vpop.f32.mrf.mxu0
      %v1397 = vadd.f32 %v361, %v1396
      %v1398 = vpop.f32.mrf.mxu0
      %v1399 = vpop.f32.mrf.mxu0
      %v1400 = vadd.f32 %v361, %v1399
      %v1401 = vpop.f32.mrf.mxu0
      %1402 = vmatprep.mubr.bf16.mxu0 0
      %1403 = vmatmul.mubr.bf16.gmra.mxu0 %v874
      %v1404 = vpop.f32.mrf.mxu0
      %v1405 = vadd.f32 %v361, %v1404
      %v1406 = vpop.f32.mrf.mxu0
      %v1407 = vpop.f32.mrf.mxu0
      %v1408 = vadd.f32 %v361, %v1407
      %v1409 = vpop.f32.mrf.mxu0
      %1410 = vmatprep.mubr.bf16.mxu0 0
      %1411 = vmatmul.mubr.bf16.gmra.mxu0 %v877
      %v1412 = vpop.f32.mrf.mxu0
      %v1413 = vadd.f32 %v361, %v1412
      %v1414 = vpop.f32.mrf.mxu0
      %v1415 = vpop.f32.mrf.mxu0
      %v1416 = vadd.f32 %v361, %v1415
      %v1417 = vpop.f32.mrf.mxu0
      %1418 = vmatprep.mubr.bf16.mxu0 0
      %1419 = vmatmul.mubr.bf16.gmra.mxu0 %v880
      %v1420 = vpop.f32.mrf.mxu0
      %v1421 = vadd.f32 %v361, %v1420
      %v1422 = vpop.f32.mrf.mxu0
      %v1423 = vpop.f32.mrf.mxu0
      %v1424 = vadd.f32 %v361, %v1423
      %v1425 = vpop.f32.mrf.mxu0
      %1426 = vdwg.mxu0
      %vm1427 = vcmp.ge.f32.partialorder %v917, 0.0
      %vm1428 = vcmp.ge.f32.partialorder %v920, 0.0
      %vm1429 = vcmp.ge.f32.partialorder %v925, 0.0
      %vm1430 = vcmp.ge.f32.partialorder %v928, 0.0
      %vm1431 = vcmp.ge.f32.partialorder %v933, 0.0
      %vm1432 = vcmp.ge.f32.partialorder %v936, 0.0
      %vm1433 = vcmp.ge.f32.partialorder %v941, 0.0
      %vm1434 = vcmp.ge.f32.partialorder %v944, 0.0
      %vm1435 = vcmp.ge.f32.partialorder %v949, 0.0
      %vm1436 = vcmp.ge.f32.partialorder %v952, 0.0
      %vm1437 = vcmp.ge.f32.partialorder %v957, 0.0
      %vm1438 = vcmp.ge.f32.partialorder %v960, 0.0
      %vm1439 = vcmp.ge.f32.partialorder %v965, 0.0
      %vm1440 = vcmp.ge.f32.partialorder %v968, 0.0
      %vm1441 = vcmp.ge.f32.partialorder %v973, 0.0
      %vm1442 = vcmp.ge.f32.partialorder %v976, 0.0
      %vm1443 = vcmp.ge.f32.partialorder %v981, 0.0
      %vm1444 = vcmp.ge.f32.partialorder %v984, 0.0
      %vm1445 = vcmp.ge.f32.partialorder %v989, 0.0
      %vm1446 = vcmp.ge.f32.partialorder %v992, 0.0
      %vm1447 = vcmp.ge.f32.partialorder %v997, 0.0
      %vm1448 = vcmp.ge.f32.partialorder %v1000, 0.0
      %vm1449 = vcmp.ge.f32.partialorder %v1005, 0.0
      %vm1450 = vcmp.ge.f32.partialorder %v1008, 0.0
      %vm1451 = vcmp.ge.f32.partialorder %v1013, 0.0
      %vm1452 = vcmp.ge.f32.partialorder %v1016, 0.0
      %vm1453 = vcmp.ge.f32.partialorder %v1021, 0.0
      %vm1454 = vcmp.ge.f32.partialorder %v1024, 0.0
      %vm1455 = vcmp.ge.f32.partialorder %v1029, 0.0
      %vm1456 = vcmp.ge.f32.partialorder %v1032, 0.0
      %vm1457 = vcmp.ge.f32.partialorder %v1037, 0.0
      %vm1458 = vcmp.ge.f32.partialorder %v1040, 0.0
      %vm1459 = vcmp.ge.f32.partialorder %v1045, 0.0
      %vm1460 = vcmp.ge.f32.partialorder %v1048, 0.0
      %vm1461 = vcmp.ge.f32.partialorder %v1053, 0.0
      %vm1462 = vcmp.ge.f32.partialorder %v1056, 0.0
      %vm1463 = vcmp.ge.f32.partialorder %v1061, 0.0
      %vm1464 = vcmp.ge.f32.partialorder %v1064, 0.0
      %vm1465 = vcmp.ge.f32.partialorder %v1069, 0.0
      %vm1466 = vcmp.ge.f32.partialorder %v1072, 0.0
      %vm1467 = vcmp.ge.f32.partialorder %v1077, 0.0
      %vm1468 = vcmp.ge.f32.partialorder %v1080, 0.0
      %vm1469 = vcmp.ge.f32.partialorder %v1085, 0.0
      %vm1470 = vcmp.ge.f32.partialorder %v1088, 0.0
      %vm1471 = vcmp.ge.f32.partialorder %v1093, 0.0
      %vm1472 = vcmp.ge.f32.partialorder %v1096, 0.0
      %vm1473 = vcmp.ge.f32.partialorder %v1101, 0.0
      %vm1474 = vcmp.ge.f32.partialorder %v1104, 0.0
      %vm1475 = vcmp.ge.f32.partialorder %v1109, 0.0
      %vm1476 = vcmp.ge.f32.partialorder %v1112, 0.0
      %vm1477 = vcmp.ge.f32.partialorder %v1117, 0.0
      %vm1478 = vcmp.ge.f32.partialorder %v1120, 0.0
      %vm1479 = vcmp.ge.f32.partialorder %v1125, 0.0
      %vm1480 = vcmp.ge.f32.partialorder %v1128, 0.0
      %vm1481 = vcmp.ge.f32.partialorder %v1133, 0.0
      %vm1482 = vcmp.ge.f32.partialorder %v1136, 0.0
      %vm1483 = vcmp.ge.f32.partialorder %v1141, 0.0
      %vm1484 = vcmp.ge.f32.partialorder %v1144, 0.0
      %vm1485 = vcmp.ge.f32.partialorder %v1149, 0.0
      %vm1486 = vcmp.ge.f32.partialorder %v1152, 0.0
      %vm1487 = vcmp.ge.f32.partialorder %v1157, 0.0
      %vm1488 = vcmp.ge.f32.partialorder %v1160, 0.0
      %vm1489 = vcmp.ge.f32.partialorder %v1165, 0.0
      %vm1490 = vcmp.ge.f32.partialorder %v1168, 0.0
      %vm1491 = vcmp.ge.f32.partialorder %v1173, 0.0
      %vm1492 = vcmp.ge.f32.partialorder %v1176, 0.0
      %vm1493 = vcmp.ge.f32.partialorder %v1181, 0.0
      %vm1494 = vcmp.ge.f32.partialorder %v1184, 0.0
      %vm1495 = vcmp.ge.f32.partialorder %v1189, 0.0
      %vm1496 = vcmp.ge.f32.partialorder %v1192, 0.0
      %vm1497 = vcmp.ge.f32.partialorder %v1197, 0.0
      %vm1498 = vcmp.ge.f32.partialorder %v1200, 0.0
      %vm1499 = vcmp.ge.f32.partialorder %v1205, 0.0
      %vm1500 = vcmp.ge.f32.partialorder %v1208, 0.0
      %vm1501 = vcmp.ge.f32.partialorder %v1213, 0.0
      %vm1502 = vcmp.ge.f32.partialorder %v1216, 0.0
      %vm1503 = vcmp.ge.f32.partialorder %v1221, 0.0
      %vm1504 = vcmp.ge.f32.partialorder %v1224, 0.0
      %vm1505 = vcmp.ge.f32.partialorder %v1229, 0.0
      %vm1506 = vcmp.ge.f32.partialorder %v1232, 0.0
      %vm1507 = vcmp.ge.f32.partialorder %v1237, 0.0
      %vm1508 = vcmp.ge.f32.partialorder %v1240, 0.0
      %vm1509 = vcmp.ge.f32.partialorder %v1245, 0.0
      %vm1510 = vcmp.ge.f32.partialorder %v1248, 0.0
      %vm1511 = vcmp.ge.f32.partialorder %v1253, 0.0
      %vm1512 = vcmp.ge.f32.partialorder %v1256, 0.0
      %vm1513 = vcmp.ge.f32.partialorder %v1261, 0.0
      %vm1514 = vcmp.ge.f32.partialorder %v1264, 0.0
      %vm1515 = vcmp.ge.f32.partialorder %v1269, 0.0
      %vm1516 = vcmp.ge.f32.partialorder %v1272, 0.0
      %vm1517 = vcmp.ge.f32.partialorder %v1277, 0.0
      %vm1518 = vcmp.ge.f32.partialorder %v1280, 0.0
      %vm1519 = vcmp.ge.f32.partialorder %v1285, 0.0
      %vm1520 = vcmp.ge.f32.partialorder %v1288, 0.0
      %vm1521 = vcmp.ge.f32.partialorder %v1293, 0.0
      %vm1522 = vcmp.ge.f32.partialorder %v1296, 0.0
      %vm1523 = vcmp.ge.f32.partialorder %v1301, 0.0
      %vm1524 = vcmp.ge.f32.partialorder %v1304, 0.0
      %vm1525 = vcmp.ge.f32.partialorder %v1309, 0.0
      %vm1526 = vcmp.ge.f32.partialorder %v1312, 0.0
      %vm1527 = vcmp.ge.f32.partialorder %v1317, 0.0
      %vm1528 = vcmp.ge.f32.partialorder %v1320, 0.0
      %vm1529 = vcmp.ge.f32.partialorder %v1325, 0.0
      %vm1530 = vcmp.ge.f32.partialorder %v1328, 0.0
      %vm1531 = vcmp.ge.f32.partialorder %v1333, 0.0
      %vm1532 = vcmp.ge.f32.partialorder %v1336, 0.0
      %vm1533 = vcmp.ge.f32.partialorder %v1341, 0.0
      %vm1534 = vcmp.ge.f32.partialorder %v1344, 0.0
      %vm1535 = vcmp.ge.f32.partialorder %v1349, 0.0
      %vm1536 = vcmp.ge.f32.partialorder %v1352, 0.0
      %vm1537 = vcmp.ge.f32.partialorder %v1357, 0.0
      %vm1538 = vcmp.ge.f32.partialorder %v1360, 0.0
      %vm1539 = vcmp.ge.f32.partialorder %v1365, 0.0
      %vm1540 = vcmp.ge.f32.partialorder %v1368, 0.0
      %vm1541 = vcmp.ge.f32.partialorder %v1373, 0.0
      %vm1542 = vcmp.ge.f32.partialorder %v1376, 0.0
      %vm1543 = vcmp.ge.f32.partialorder %v1381, 0.0
      %vm1544 = vcmp.ge.f32.partialorder %v1384, 0.0
      %vm1545 = vcmp.ge.f32.partialorder %v1389, 0.0
      %vm1546 = vcmp.ge.f32.partialorder %v1392, 0.0
      %vm1547 = vcmp.ge.f32.partialorder %v1397, 0.0
      %vm1548 = vcmp.ge.f32.partialorder %v1400, 0.0
      %vm1549 = vcmp.ge.f32.partialorder %v1405, 0.0
      %vm1550 = vcmp.ge.f32.partialorder %v1408, 0.0
      %vm1551 = vcmp.ge.f32.partialorder %v1413, 0.0
      %vm1552 = vcmp.ge.f32.partialorder %v1416, 0.0
      %vm1553 = vcmp.ge.f32.partialorder %v1421, 0.0
      %vm1554 = vcmp.ge.f32.partialorder %v1424, 0.0
      %v1555 = vmul.f32 %v917, 0.1
      %v1556 = vmul.f32 %v920, 0.1
      %v1557 = vmul.f32 %v925, 0.1
      %v1558 = vmul.f32 %v928, 0.1
      %v1559 = vmul.f32 %v933, 0.1
      %v1560 = vmul.f32 %v936, 0.1
      %v1561 = vmul.f32 %v941, 0.1
      %v1562 = vmul.f32 %v944, 0.1
      %v1563 = vmul.f32 %v949, 0.1
      %v1564 = vmul.f32 %v952, 0.1
      %v1565 = vmul.f32 %v957, 0.1
      %v1566 = vmul.f32 %v960, 0.1
      %v1567 = vmul.f32 %v965, 0.1
      %v1568 = vmul.f32 %v968, 0.1
      %v1569 = vmul.f32 %v973, 0.1
      %v1570 = vmul.f32 %v976, 0.1
      %v1571 = vmul.f32 %v981, 0.1
      %v1572 = vmul.f32 %v984, 0.1
      %v1573 = vmul.f32 %v989, 0.1
      %v1574 = vmul.f32 %v992, 0.1
      %v1575 = vmul.f32 %v997, 0.1
      %v1576 = vmul.f32 %v1000, 0.1
      %v1577 = vmul.f32 %v1005, 0.1
      %v1578 = vmul.f32 %v1008, 0.1
      %v1579 = vmul.f32 %v1013, 0.1
      %v1580 = vmul.f32 %v1016, 0.1
      %v1581 = vmul.f32 %v1021, 0.1
      %v1582 = vmul.f32 %v1024, 0.1
      %v1583 = vmul.f32 %v1029, 0.1
      %v1584 = vmul.f32 %v1032, 0.1
      %v1585 = vmul.f32 %v1037, 0.1
      %v1586 = vmul.f32 %v1040, 0.1
      %v1587 = vmul.f32 %v1045, 0.1
      %v1588 = vmul.f32 %v1048, 0.1
      %v1589 = vmul.f32 %v1053, 0.1
      %v1590 = vmul.f32 %v1056, 0.1
      %v1591 = vmul.f32 %v1061, 0.1
      %v1592 = vmul.f32 %v1064, 0.1
      %v1593 = vmul.f32 %v1069, 0.1
      %v1594 = vmul.f32 %v1072, 0.1
      %v1595 = vmul.f32 %v1077, 0.1
      %v1596 = vmul.f32 %v1080, 0.1
      %v1597 = vmul.f32 %v1085, 0.1
      %v1598 = vmul.f32 %v1088, 0.1
      %v1599 = vmul.f32 %v1093, 0.1
      %v1600 = vmul.f32 %v1096, 0.1
      %v1601 = vmul.f32 %v1101, 0.1
      %v1602 = vmul.f32 %v1104, 0.1
      %v1603 = vmul.f32 %v1109, 0.1
      %v1604 = vmul.f32 %v1112, 0.1
      %v1605 = vmul.f32 %v1117, 0.1
      %v1606 = vmul.f32 %v1120, 0.1
      %v1607 = vmul.f32 %v1125, 0.1
      %v1608 = vmul.f32 %v1128, 0.1
      %v1609 = vmul.f32 %v1133, 0.1
      %v1610 = vmul.f32 %v1136, 0.1
      %v1611 = vmul.f32 %v1141, 0.1
      %v1612 = vmul.f32 %v1144, 0.1
      %v1613 = vmul.f32 %v1149, 0.1
      %v1614 = vmul.f32 %v1152, 0.1
      %v1615 = vmul.f32 %v1157, 0.1
      %v1616 = vmul.f32 %v1160, 0.1
      %v1617 = vmul.f32 %v1165, 0.1
      %v1618 = vmul.f32 %v1168, 0.1
      %v1619 = vmul.f32 %v1173, 0.1
      %v1620 = vmul.f32 %v1176, 0.1
      %v1621 = vmul.f32 %v1181, 0.1
      %v1622 = vmul.f32 %v1184, 0.1
      %v1623 = vmul.f32 %v1189, 0.1
      %v1624 = vmul.f32 %v1192, 0.1
      %v1625 = vmul.f32 %v1197, 0.1
      %v1626 = vmul.f32 %v1200, 0.1
      %v1627 = vmul.f32 %v1205, 0.1
      %v1628 = vmul.f32 %v1208, 0.1
      %v1629 = vmul.f32 %v1213, 0.1
      %v1630 = vmul.f32 %v1216, 0.1
      %v1631 = vmul.f32 %v1221, 0.1
      %v1632 = vmul.f32 %v1224, 0.1
      %v1633 = vmul.f32 %v1229, 0.1
      %v1634 = vmul.f32 %v1232, 0.1
      %v1635 = vmul.f32 %v1237, 0.1
      %v1636 = vmul.f32 %v1240, 0.1
      %v1637 = vmul.f32 %v1245, 0.1
      %v1638 = vmul.f32 %v1248, 0.1
      %v1639 = vmul.f32 %v1253, 0.1
      %v1640 = vmul.f32 %v1256, 0.1
      %v1641 = vmul.f32 %v1261, 0.1
      %v1642 = vmul.f32 %v1264, 0.1
      %v1643 = vmul.f32 %v1269, 0.1
      %v1644 = vmul.f32 %v1272, 0.1
      %v1645 = vmul.f32 %v1277, 0.1
      %v1646 = vmul.f32 %v1280, 0.1
      %v1647 = vmul.f32 %v1285, 0.1
      %v1648 = vmul.f32 %v1288, 0.1
      %v1649 = vmul.f32 %v1293, 0.1
      %v1650 = vmul.f32 %v1296, 0.1
      %v1651 = vmul.f32 %v1301, 0.1
      %v1652 = vmul.f32 %v1304, 0.1
      %v1653 = vmul.f32 %v1309, 0.1
      %v1654 = vmul.f32 %v1312, 0.1
      %v1655 = vmul.f32 %v1317, 0.1
      %v1656 = vmul.f32 %v1320, 0.1
      %v1657 = vmul.f32 %v1325, 0.1
      %v1658 = vmul.f32 %v1328, 0.1
      %v1659 = vmul.f32 %v1333, 0.1
      %v1660 = vmul.f32 %v1336, 0.1
      %v1661 = vmul.f32 %v1341, 0.1
      %v1662 = vmul.f32 %v1344, 0.1
      %v1663 = vmul.f32 %v1349, 0.1
      %v1664 = vmul.f32 %v1352, 0.1
      %v1665 = vmul.f32 %v1357, 0.1
      %v1666 = vmul.f32 %v1360, 0.1
      %v1667 = vmul.f32 %v1365, 0.1
      %v1668 = vmul.f32 %v1368, 0.1
      %v1669 = vmul.f32 %v1373, 0.1
      %v1670 = vmul.f32 %v1376, 0.1
      %v1671 = vmul.f32 %v1381, 0.1
      %v1672 = vmul.f32 %v1384, 0.1
      %v1673 = vmul.f32 %v1389, 0.1
      %v1674 = vmul.f32 %v1392, 0.1
      %v1675 = vmul.f32 %v1397, 0.1
      %v1676 = vmul.f32 %v1400, 0.1
      %v1677 = vmul.f32 %v1405, 0.1
      %v1678 = vmul.f32 %v1408, 0.1
      %v1679 = vmul.f32 %v1413, 0.1
      %v1680 = vmul.f32 %v1416, 0.1
      %v1681 = vmul.f32 %v1421, 0.1
      %v1682 = vmul.f32 %v1424, 0.1
      %v1683 = vsel %vm1427, %v917, %v1555
      %v1684 = vsel %vm1428, %v920, %v1556
      %v1685 = vsel %vm1429, %v925, %v1557
      %v1686 = vsel %vm1430, %v928, %v1558
      %v1687 = vsel %vm1431, %v933, %v1559
      %v1688 = vsel %vm1432, %v936, %v1560
      %v1689 = vsel %vm1433, %v941, %v1561
      %v1690 = vsel %vm1434, %v944, %v1562
      %v1691 = vsel %vm1435, %v949, %v1563
      %v1692 = vsel %vm1436, %v952, %v1564
      %v1693 = vsel %vm1437, %v957, %v1565
      %v1694 = vsel %vm1438, %v960, %v1566
      %v1695 = vsel %vm1439, %v965, %v1567
      %v1696 = vsel %vm1440, %v968, %v1568
      %v1697 = vsel %vm1441, %v973, %v1569
      %v1698 = vsel %vm1442, %v976, %v1570
      %v1699 = vsel %vm1443, %v981, %v1571
      %v1700 = vsel %vm1444, %v984, %v1572
      %v1701 = vsel %vm1445, %v989, %v1573
      %v1702 = vsel %vm1446, %v992, %v1574
      %v1703 = vsel %vm1447, %v997, %v1575
      %v1704 = vsel %vm1448, %v1000, %v1576
      %v1705 = vsel %vm1449, %v1005, %v1577
      %v1706 = vsel %vm1450, %v1008, %v1578
      %v1707 = vsel %vm1451, %v1013, %v1579
      %v1708 = vsel %vm1452, %v1016, %v1580
      %v1709 = vsel %vm1453, %v1021, %v1581
      %v1710 = vsel %vm1454, %v1024, %v1582
      %v1711 = vsel %vm1455, %v1029, %v1583
      %v1712 = vsel %vm1456, %v1032, %v1584
      %v1713 = vsel %vm1457, %v1037, %v1585
      %v1714 = vsel %vm1458, %v1040, %v1586
      %v1715 = vsel %vm1459, %v1045, %v1587
      %v1716 = vsel %vm1460, %v1048, %v1588
      %v1717 = vsel %vm1461, %v1053, %v1589
      %v1718 = vsel %vm1462, %v1056, %v1590
      %v1719 = vsel %vm1463, %v1061, %v1591
      %v1720 = vsel %vm1464, %v1064, %v1592
      %v1721 = vsel %vm1465, %v1069, %v1593
      %v1722 = vsel %vm1466, %v1072, %v1594
      %v1723 = vsel %vm1467, %v1077, %v1595
      %v1724 = vsel %vm1468, %v1080, %v1596
      %v1725 = vsel %vm1469, %v1085, %v1597
      %v1726 = vsel %vm1470, %v1088, %v1598
      %v1727 = vsel %vm1471, %v1093, %v1599
      %v1728 = vsel %vm1472, %v1096, %v1600
      %v1729 = vsel %vm1473, %v1101, %v1601
      %v1730 = vsel %vm1474, %v1104, %v1602
      %v1731 = vsel %vm1475, %v1109, %v1603
      %v1732 = vsel %vm1476, %v1112, %v1604
      %v1733 = vsel %vm1477, %v1117, %v1605
      %v1734 = vsel %vm1478, %v1120, %v1606
      %v1735 = vsel %vm1479, %v1125, %v1607
      %v1736 = vsel %vm1480, %v1128, %v1608
      %v1737 = vsel %vm1481, %v1133, %v1609
      %v1738 = vsel %vm1482, %v1136, %v1610
      %v1739 = vsel %vm1483, %v1141, %v1611
      %v1740 = vsel %vm1484, %v1144, %v1612
      %v1741 = vsel %vm1485, %v1149, %v1613
      %v1742 = vsel %vm1486, %v1152, %v1614
      %v1743 = vsel %vm1487, %v1157, %v1615
      %v1744 = vsel %vm1488, %v1160, %v1616
      %v1745 = vsel %vm1489, %v1165, %v1617
      %v1746 = vsel %vm1490, %v1168, %v1618
      %v1747 = vsel %vm1491, %v1173, %v1619
      %v1748 = vsel %vm1492, %v1176, %v1620
      %v1749 = vsel %vm1493, %v1181, %v1621
      %v1750 = vsel %vm1494, %v1184, %v1622
      %v1751 = vsel %vm1495, %v1189, %v1623
      %v1752 = vsel %vm1496, %v1192, %v1624
      %v1753 = vsel %vm1497, %v1197, %v1625
      %v1754 = vsel %vm1498, %v1200, %v1626
      %v1755 = vsel %vm1499, %v1205, %v1627
      %v1756 = vsel %vm1500, %v1208, %v1628
      %v1757 = vsel %vm1501, %v1213, %v1629
      %v1758 = vsel %vm1502, %v1216, %v1630
      %v1759 = vsel %vm1503, %v1221, %v1631
      %v1760 = vsel %vm1504, %v1224, %v1632
      %v1761 = vsel %vm1505, %v1229, %v1633
      %v1762 = vsel %vm1506, %v1232, %v1634
      %v1763 = vsel %vm1507, %v1237, %v1635
      %v1764 = vsel %vm1508, %v1240, %v1636
      %v1765 = vsel %vm1509, %v1245, %v1637
      %v1766 = vsel %vm1510, %v1248, %v1638
      %v1767 = vsel %vm1511, %v1253, %v1639
      %v1768 = vsel %vm1512, %v1256, %v1640
      %v1769 = vsel %vm1513, %v1261, %v1641
      %v1770 = vsel %vm1514, %v1264, %v1642
      %v1771 = vsel %vm1515, %v1269, %v1643
      %v1772 = vsel %vm1516, %v1272, %v1644
      %v1773 = vsel %vm1517, %v1277, %v1645
      %v1774 = vsel %vm1518, %v1280, %v1646
      %v1775 = vsel %vm1519, %v1285, %v1647
      %v1776 = vsel %vm1520, %v1288, %v1648
      %v1777 = vsel %vm1521, %v1293, %v1649
      %v1778 = vsel %vm1522, %v1296, %v1650
      %v1779 = vsel %vm1523, %v1301, %v1651
      %v1780 = vsel %vm1524, %v1304, %v1652
      %v1781 = vsel %vm1525, %v1309, %v1653
      %v1782 = vsel %vm1526, %v1312, %v1654
      %v1783 = vsel %vm1527, %v1317, %v1655
      %v1784 = vsel %vm1528, %v1320, %v1656
      %v1785 = vsel %vm1529, %v1325, %v1657
      %v1786 = vsel %vm1530, %v1328, %v1658
      %v1787 = vsel %vm1531, %v1333, %v1659
      %v1788 = vsel %vm1532, %v1336, %v1660
      %v1789 = vsel %vm1533, %v1341, %v1661
      %v1790 = vsel %vm1534, %v1344, %v1662
      %v1791 = vsel %vm1535, %v1349, %v1663
      %v1792 = vsel %vm1536, %v1352, %v1664
      %v1793 = vsel %vm1537, %v1357, %v1665
      %v1794 = vsel %vm1538, %v1360, %v1666
      %v1795 = vsel %vm1539, %v1365, %v1667
      %v1796 = vsel %vm1540, %v1368, %v1668
      %v1797 = vsel %vm1541, %v1373, %v1669
      %v1798 = vsel %vm1542, %v1376, %v1670
      %v1799 = vsel %vm1543, %v1381, %v1671
      %v1800 = vsel %vm1544, %v1384, %v1672
      %v1801 = vsel %vm1545, %v1389, %v1673
      %v1802 = vsel %vm1546, %v1392, %v1674
      %v1803 = vsel %vm1547, %v1397, %v1675
      %v1804 = vsel %vm1548, %v1400, %v1676
      %v1805 = vsel %vm1549, %v1405, %v1677
      %v1806 = vsel %vm1550, %v1408, %v1678
      %v1807 = vsel %vm1551, %v1413, %v1679
      %v1808 = vsel %vm1552, %v1416, %v1680
      %v1809 = vsel %vm1553, %v1421, %v1681
      %v1810 = vsel %vm1554, %v1424, %v1682
      %v1811 = vpack.c.bf16 %v1684, %v1683
      %v1812 = vpack.c.bf16 %v1686, %v1685
      %v1813 = vpack.c.bf16 %v1688, %v1687
      %v1814 = vpack.c.bf16 %v1690, %v1689
      %v1815 = vpack.c.bf16 %v1692, %v1691
      %v1816 = vpack.c.bf16 %v1694, %v1693
      %v1817 = vpack.c.bf16 %v1696, %v1695
      %v1818 = vpack.c.bf16 %v1698, %v1697
      %v1819 = vpack.c.bf16 %v1700, %v1699
      %v1820 = vpack.c.bf16 %v1702, %v1701
      %v1821 = vpack.c.bf16 %v1704, %v1703
      %v1822 = vpack.c.bf16 %v1706, %v1705
      %v1823 = vpack.c.bf16 %v1708, %v1707
      %v1824 = vpack.c.bf16 %v1710, %v1709
      %v1825 = vpack.c.bf16 %v1712, %v1711
      %v1826 = vpack.c.bf16 %v1714, %v1713
      %v1827 = vpack.c.bf16 %v1716, %v1715
      %v1828 = vpack.c.bf16 %v1718, %v1717
      %v1829 = vpack.c.bf16 %v1720, %v1719
      %v1830 = vpack.c.bf16 %v1722, %v1721
      %v1831 = vpack.c.bf16 %v1724, %v1723
      %v1832 = vpack.c.bf16 %v1726, %v1725
      %v1833 = vpack.c.bf16 %v1728, %v1727
      %v1834 = vpack.c.bf16 %v1730, %v1729
      %v1835 = vpack.c.bf16 %v1732, %v1731
      %v1836 = vpack.c.bf16 %v1734, %v1733
      %v1837 = vpack.c.bf16 %v1736, %v1735
      %v1838 = vpack.c.bf16 %v1738, %v1737
      %v1839 = vpack.c.bf16 %v1740, %v1739
      %v1840 = vpack.c.bf16 %v1742, %v1741
      %v1841 = vpack.c.bf16 %v1744, %v1743
      %v1842 = vpack.c.bf16 %v1746, %v1745
      %v1843 = vpack.c.bf16 %v1748, %v1747
      %v1844 = vpack.c.bf16 %v1750, %v1749
      %v1845 = vpack.c.bf16 %v1752, %v1751
      %v1846 = vpack.c.bf16 %v1754, %v1753
      %v1847 = vpack.c.bf16 %v1756, %v1755
      %v1848 = vpack.c.bf16 %v1758, %v1757
      %v1849 = vpack.c.bf16 %v1760, %v1759
      %v1850 = vpack.c.bf16 %v1762, %v1761
      %v1851 = vpack.c.bf16 %v1764, %v1763
      %v1852 = vpack.c.bf16 %v1766, %v1765
      %v1853 = vpack.c.bf16 %v1768, %v1767
      %v1854 = vpack.c.bf16 %v1770, %v1769
      %v1855 = vpack.c.bf16 %v1772, %v1771
      %v1856 = vpack.c.bf16 %v1774, %v1773
      %v1857 = vpack.c.bf16 %v1776, %v1775
      %v1858 = vpack.c.bf16 %v1778, %v1777
      %v1859 = vpack.c.bf16 %v1780, %v1779
      %v1860 = vpack.c.bf16 %v1782, %v1781
      %v1861 = vpack.c.bf16 %v1784, %v1783
      %v1862 = vpack.c.bf16 %v1786, %v1785
      %v1863 = vpack.c.bf16 %v1788, %v1787
      %v1864 = vpack.c.bf16 %v1790, %v1789
      %v1865 = vpack.c.bf16 %v1792, %v1791
      %v1866 = vpack.c.bf16 %v1794, %v1793
      %v1867 = vpack.c.bf16 %v1796, %v1795
      %v1868 = vpack.c.bf16 %v1798, %v1797
      %v1869 = vpack.c.bf16 %v1800, %v1799
      %v1870 = vpack.c.bf16 %v1802, %v1801
      %v1871 = vpack.c.bf16 %v1804, %v1803
      %v1872 = vpack.c.bf16 %v1806, %v1805
      %v1873 = vpack.c.bf16 %v1808, %v1807
      %v1874 = vpack.c.bf16 %v1810, %v1809
      %v1939 = vunpack.c.l.b16 %v1811
      %v1940 = vunpack.c.h.b16 %v1811
      %v1941 = vunpack.c.l.b16 %v1812
      %v1942 = vunpack.c.h.b16 %v1812
      %v1943 = vunpack.c.l.b16 %v1813
      %v1944 = vunpack.c.h.b16 %v1813
      %v1945 = vunpack.c.l.b16 %v1814
      %v1946 = vunpack.c.h.b16 %v1814
      %v1947 = vunpack.c.l.b16 %v1815
      %v1948 = vunpack.c.h.b16 %v1815
      %v1949 = vunpack.c.l.b16 %v1816
      %v1950 = vunpack.c.h.b16 %v1816
      %v1951 = vunpack.c.l.b16 %v1817
      %v1952 = vunpack.c.h.b16 %v1817
      %v1953 = vunpack.c.l.b16 %v1818
      %v1954 = vunpack.c.h.b16 %v1818
      %v1955 = vunpack.c.l.b16 %v1819
      %v1956 = vunpack.c.h.b16 %v1819
      %v1957 = vunpack.c.l.b16 %v1820
      %v1958 = vunpack.c.h.b16 %v1820
      %v1959 = vunpack.c.l.b16 %v1821
      %v1960 = vunpack.c.h.b16 %v1821
      %v1961 = vunpack.c.l.b16 %v1822
      %v1962 = vunpack.c.h.b16 %v1822
      %v1963 = vunpack.c.l.b16 %v1823
      %v1964 = vunpack.c.h.b16 %v1823
      %v1965 = vunpack.c.l.b16 %v1824
      %v1966 = vunpack.c.h.b16 %v1824
      %v1967 = vunpack.c.l.b16 %v1825
      %v1968 = vunpack.c.h.b16 %v1825
      %v1969 = vunpack.c.l.b16 %v1826
      %v1970 = vunpack.c.h.b16 %v1826
      %v1971 = vunpack.c.l.b16 %v1827
      %v1972 = vunpack.c.h.b16 %v1827
      %v1973 = vunpack.c.l.b16 %v1828
      %v1974 = vunpack.c.h.b16 %v1828
      %v1975 = vunpack.c.l.b16 %v1829
      %v1976 = vunpack.c.h.b16 %v1829
      %v1977 = vunpack.c.l.b16 %v1830
      %v1978 = vunpack.c.h.b16 %v1830
      %v1979 = vunpack.c.l.b16 %v1831
      %v1980 = vunpack.c.h.b16 %v1831
      %v1981 = vunpack.c.l.b16 %v1832
      %v1982 = vunpack.c.h.b16 %v1832
      %v1983 = vunpack.c.l.b16 %v1833
      %v1984 = vunpack.c.h.b16 %v1833
      %v1985 = vunpack.c.l.b16 %v1834
      %v1986 = vunpack.c.h.b16 %v1834
      %v1987 = vunpack.c.l.b16 %v1835
      %v1988 = vunpack.c.h.b16 %v1835
      %v1989 = vunpack.c.l.b16 %v1836
      %v1990 = vunpack.c.h.b16 %v1836
      %v1991 = vunpack.c.l.b16 %v1837
      %v1992 = vunpack.c.h.b16 %v1837
      %v1993 = vunpack.c.l.b16 %v1838
      %v1994 = vunpack.c.h.b16 %v1838
      %v1995 = vunpack.c.l.b16 %v1839
      %v1996 = vunpack.c.h.b16 %v1839
      %v1997 = vunpack.c.l.b16 %v1840
      %v1998 = vunpack.c.h.b16 %v1840
      %v1999 = vunpack.c.l.b16 %v1841
      %v2000 = vunpack.c.h.b16 %v1841
      %v2001 = vunpack.c.l.b16 %v1842
      %v2002 = vunpack.c.h.b16 %v1842
      %v2003 = vunpack.c.l.b16 %v1843
      %v2004 = vunpack.c.h.b16 %v1843
      %v2005 = vunpack.c.l.b16 %v1844
      %v2006 = vunpack.c.h.b16 %v1844
      %v2007 = vunpack.c.l.b16 %v1845
      %v2008 = vunpack.c.h.b16 %v1845
      %v2009 = vunpack.c.l.b16 %v1846
      %v2010 = vunpack.c.h.b16 %v1846
      %v2011 = vunpack.c.l.b16 %v1847
      %v2012 = vunpack.c.h.b16 %v1847
      %v2013 = vunpack.c.l.b16 %v1848
      %v2014 = vunpack.c.h.b16 %v1848
      %v2015 = vunpack.c.l.b16 %v1849
      %v2016 = vunpack.c.h.b16 %v1849
      %v2017 = vunpack.c.l.b16 %v1850
      %v2018 = vunpack.c.h.b16 %v1850
      %v2019 = vunpack.c.l.b16 %v1851
      %v2020 = vunpack.c.h.b16 %v1851
      %v2021 = vunpack.c.l.b16 %v1852
      %v2022 = vunpack.c.h.b16 %v1852
      %v2023 = vunpack.c.l.b16 %v1853
      %v2024 = vunpack.c.h.b16 %v1853
      %v2025 = vunpack.c.l.b16 %v1854
      %v2026 = vunpack.c.h.b16 %v1854
      %v2027 = vunpack.c.l.b16 %v1855
      %v2028 = vunpack.c.h.b16 %v1855
      %v2029 = vunpack.c.l.b16 %v1856
      %v2030 = vunpack.c.h.b16 %v1856
      %v2031 = vunpack.c.l.b16 %v1857
      %v2032 = vunpack.c.h.b16 %v1857
      %v2033 = vunpack.c.l.b16 %v1858
      %v2034 = vunpack.c.h.b16 %v1858
      %v2035 = vunpack.c.l.b16 %v1859
      %v2036 = vunpack.c.h.b16 %v1859
      %v2037 = vunpack.c.l.b16 %v1860
      %v2038 = vunpack.c.h.b16 %v1860
      %v2039 = vunpack.c.l.b16 %v1861
      %v2040 = vunpack.c.h.b16 %v1861
      %v2041 = vunpack.c.l.b16 %v1862
      %v2042 = vunpack.c.h.b16 %v1862
      %v2043 = vunpack.c.l.b16 %v1863
      %v2044 = vunpack.c.h.b16 %v1863
      %v2045 = vunpack.c.l.b16 %v1864
      %v2046 = vunpack.c.h.b16 %v1864
      %v2047 = vunpack.c.l.b16 %v1865
      %v2048 = vunpack.c.h.b16 %v1865
      %v2049 = vunpack.c.l.b16 %v1866
      %v2050 = vunpack.c.h.b16 %v1866
      %v2051 = vunpack.c.l.b16 %v1867
      %v2052 = vunpack.c.h.b16 %v1867
      %v2053 = vunpack.c.l.b16 %v1868
      %v2054 = vunpack.c.h.b16 %v1868
      %v2055 = vunpack.c.l.b16 %v1869
      %v2056 = vunpack.c.h.b16 %v1869
      %v2057 = vunpack.c.l.b16 %v1870
      %v2058 = vunpack.c.h.b16 %v1870
      %v2059 = vunpack.c.l.b16 %v1871
      %v2060 = vunpack.c.h.b16 %v1871
      %v2061 = vunpack.c.l.b16 %v1872
      %v2062 = vunpack.c.h.b16 %v1872
      %v2063 = vunpack.c.l.b16 %v1873
      %v2064 = vunpack.c.h.b16 %v1873
      %v2065 = vunpack.c.l.b16 %v1874
      %v2066 = vunpack.c.h.b16 %v1874
      %v2067 = vpack.c.b16 %v1939, %v1939
      %v2068 = vpack.c.b16 %v1940, %v1940
      %v2069 = vpack.c.b16 %v1941, %v1941
      %v2070 = vpack.c.b16 %v1942, %v1942
      %v2071 = vpack.c.b16 %v1943, %v1943
      %v2072 = vpack.c.b16 %v1944, %v1944
      %v2073 = vpack.c.b16 %v1945, %v1945
      %v2074 = vpack.c.b16 %v1946, %v1946
      %v2075 = vpack.c.b16 %v1947, %v1947
      %v2076 = vpack.c.b16 %v1948, %v1948
      %v2077 = vpack.c.b16 %v1949, %v1949
      %v2078 = vpack.c.b16 %v1950, %v1950
      %v2079 = vpack.c.b16 %v1951, %v1951
      %v2080 = vpack.c.b16 %v1952, %v1952
      %v2081 = vpack.c.b16 %v1953, %v1953
      %v2082 = vpack.c.b16 %v1954, %v1954
      %v2083 = vpack.c.b16 %v1955, %v1955
      %v2084 = vpack.c.b16 %v1956, %v1956
      %v2085 = vpack.c.b16 %v1957, %v1957
      %v2086 = vpack.c.b16 %v1958, %v1958
      %v2087 = vpack.c.b16 %v1959, %v1959
      %v2088 = vpack.c.b16 %v1960, %v1960
      %v2089 = vpack.c.b16 %v1961, %v1961
      %v2090 = vpack.c.b16 %v1962, %v1962
      %v2091 = vpack.c.b16 %v1963, %v1963
      %v2092 = vpack.c.b16 %v1964, %v1964
      %v2093 = vpack.c.b16 %v1965, %v1965
      %v2094 = vpack.c.b16 %v1966, %v1966
      %v2095 = vpack.c.b16 %v1967, %v1967
      %v2096 = vpack.c.b16 %v1968, %v1968
      %v2097 = vpack.c.b16 %v1969, %v1969
      %v2098 = vpack.c.b16 %v1970, %v1970
      %v2099 = vpack.c.b16 %v1971, %v1971
      %v2100 = vpack.c.b16 %v1972, %v1972
      %v2101 = vpack.c.b16 %v1973, %v1973
      %v2102 = vpack.c.b16 %v1974, %v1974
      %v2103 = vpack.c.b16 %v1975, %v1975
      %v2104 = vpack.c.b16 %v1976, %v1976
      %v2105 = vpack.c.b16 %v1977, %v1977
      %v2106 = vpack.c.b16 %v1978, %v1978
      %v2107 = vpack.c.b16 %v1979, %v1979
      %v2108 = vpack.c.b16 %v1980, %v1980
      %v2109 = vpack.c.b16 %v1981, %v1981
      %v2110 = vpack.c.b16 %v1982, %v1982
      %v2111 = vpack.c.b16 %v1983, %v1983
      %v2112 = vpack.c.b16 %v1984, %v1984
      %v2113 = vpack.c.b16 %v1985, %v1985
      %v2114 = vpack.c.b16 %v1986, %v1986
      %v2115 = vpack.c.b16 %v1987, %v1987
      %v2116 = vpack.c.b16 %v1988, %v1988
      %v2117 = vpack.c.b16 %v1989, %v1989
      %v2118 = vpack.c.b16 %v1990, %v1990
      %v2119 = vpack.c.b16 %v1991, %v1991
      %v2120 = vpack.c.b16 %v1992, %v1992
      %v2121 = vpack.c.b16 %v1993, %v1993
      %v2122 = vpack.c.b16 %v1994, %v1994
      %v2123 = vpack.c.b16 %v1995, %v1995
      %v2124 = vpack.c.b16 %v1996, %v1996
      %v2125 = vpack.c.b16 %v1997, %v1997
      %v2126 = vpack.c.b16 %v1998, %v1998
      %v2127 = vpack.c.b16 %v1999, %v1999
      %v2128 = vpack.c.b16 %v2000, %v2000
      %v2129 = vpack.c.b16 %v2001, %v2001
      %v2130 = vpack.c.b16 %v2002, %v2002
      %v2131 = vpack.c.b16 %v2003, %v2003
      %v2132 = vpack.c.b16 %v2004, %v2004
      %v2133 = vpack.c.b16 %v2005, %v2005
      %v2134 = vpack.c.b16 %v2006, %v2006
      %v2135 = vpack.c.b16 %v2007, %v2007
      %v2136 = vpack.c.b16 %v2008, %v2008
      %v2137 = vpack.c.b16 %v2009, %v2009
      %v2138 = vpack.c.b16 %v2010, %v2010
      %v2139 = vpack.c.b16 %v2011, %v2011
      %v2140 = vpack.c.b16 %v2012, %v2012
      %v2141 = vpack.c.b16 %v2013, %v2013
      %v2142 = vpack.c.b16 %v2014, %v2014
      %v2143 = vpack.c.b16 %v2015, %v2015
      %v2144 = vpack.c.b16 %v2016, %v2016
      %v2145 = vpack.c.b16 %v2017, %v2017
      %v2146 = vpack.c.b16 %v2018, %v2018
      %v2147 = vpack.c.b16 %v2019, %v2019
      %v2148 = vpack.c.b16 %v2020, %v2020
      %v2149 = vpack.c.b16 %v2021, %v2021
      %v2150 = vpack.c.b16 %v2022, %v2022
      %v2151 = vpack.c.b16 %v2023, %v2023
      %v2152 = vpack.c.b16 %v2024, %v2024
      %v2153 = vpack.c.b16 %v2025, %v2025
      %v2154 = vpack.c.b16 %v2026, %v2026
      %v2155 = vpack.c.b16 %v2027, %v2027
      %v2156 = vpack.c.b16 %v2028, %v2028
      %v2157 = vpack.c.b16 %v2029, %v2029
      %v2158 = vpack.c.b16 %v2030, %v2030
      %v2159 = vpack.c.b16 %v2031, %v2031
      %v2160 = vpack.c.b16 %v2032, %v2032
      %v2161 = vpack.c.b16 %v2033, %v2033
      %v2162 = vpack.c.b16 %v2034, %v2034
      %v2163 = vpack.c.b16 %v2035, %v2035
      %v2164 = vpack.c.b16 %v2036, %v2036
      %v2165 = vpack.c.b16 %v2037, %v2037
      %v2166 = vpack.c.b16 %v2038, %v2038
      %v2167 = vpack.c.b16 %v2039, %v2039
      %v2168 = vpack.c.b16 %v2040, %v2040
      %v2169 = vpack.c.b16 %v2041, %v2041
      %v2170 = vpack.c.b16 %v2042, %v2042
      %v2171 = vpack.c.b16 %v2043, %v2043
      %v2172 = vpack.c.b16 %v2044, %v2044
      %v2173 = vpack.c.b16 %v2045, %v2045
      %v2174 = vpack.c.b16 %v2046, %v2046
      %v2175 = vpack.c.b16 %v2047, %v2047
      %v2176 = vpack.c.b16 %v2048, %v2048
      %v2177 = vpack.c.b16 %v2049, %v2049
      %v2178 = vpack.c.b16 %v2050, %v2050
      %v2179 = vpack.c.b16 %v2051, %v2051
      %v2180 = vpack.c.b16 %v2052, %v2052
      %v2181 = vpack.c.b16 %v2053, %v2053
      %v2182 = vpack.c.b16 %v2054, %v2054
      %v2183 = vpack.c.b16 %v2055, %v2055
      %v2184 = vpack.c.b16 %v2056, %v2056
      %v2185 = vpack.c.b16 %v2057, %v2057
      %v2186 = vpack.c.b16 %v2058, %v2058
      %v2187 = vpack.c.b16 %v2059, %v2059
      %v2188 = vpack.c.b16 %v2060, %v2060
      %v2189 = vpack.c.b16 %v2061, %v2061
      %v2190 = vpack.c.b16 %v2062, %v2062
      %v2191 = vpack.c.b16 %v2063, %v2063
      %v2192 = vpack.c.b16 %v2064, %v2064
      %v2193 = vpack.c.b16 %v2065, %v2065
      %v2194 = vpack.c.b16 %v2066, %v2066
      %vm2323 = vcmask 125952
      %2324 = vst.msk [vmem:[%s223] sm:$0xf] %vm2323, %v2067
      %2325 = vst.msk [vmem:[%s223 + $0x4] sm:$0xf] %vm2323, %v2068
      %2326 = vst.msk [vmem:[%s223 + $0x8] sm:$0xf] %vm2323, %v2069
      %2327 = vst.msk [vmem:[%s223 + $0xc] sm:$0xf] %vm2323, %v2070
      %2328 = vst.msk [vmem:[%s223 + $0x10] sm:$0xf] %vm2323, %v2071
      %2329 = vst.msk [vmem:[%s223 + $0x14] sm:$0xf] %vm2323, %v2072
      %2330 = vst.msk [vmem:[%s223 + $0x18] sm:$0xf] %vm2323, %v2073
      %2331 = vst.msk [vmem:[%s223 + $0x1c] sm:$0xf] %vm2323, %v2074
      %2332 = vst.msk [vmem:[%s223 + $0x20] sm:$0xf] %vm2323, %v2075
      %2333 = vst.msk [vmem:[%s223 + $0x24] sm:$0xf] %vm2323, %v2076
      %2334 = vst.msk [vmem:[%s223 + $0x28] sm:$0xf] %vm2323, %v2077
      %2335 = vst.msk [vmem:[%s223 + $0x2c] sm:$0xf] %vm2323, %v2078
      %2336 = vst.msk [vmem:[%s223 + $0x30] sm:$0xf] %vm2323, %v2079
      %2337 = vst.msk [vmem:[%s223 + $0x34] sm:$0xf] %vm2323, %v2080
      %2338 = vst.msk [vmem:[%s223 + $0x38] sm:$0xf] %vm2323, %v2081
      %2339 = vst.msk [vmem:[%s223 + $0x3c] sm:$0xf] %vm2323, %v2082
      %2340 = vst.msk [vmem:[%s223 + $0x40] sm:$0xf] %vm2323, %v2083
      %2341 = vst.msk [vmem:[%s223 + $0x44] sm:$0xf] %vm2323, %v2084
      %2342 = vst.msk [vmem:[%s223 + $0x48] sm:$0xf] %vm2323, %v2085
      %2343 = vst.msk [vmem:[%s223 + $0x4c] sm:$0xf] %vm2323, %v2086
      %2344 = vst.msk [vmem:[%s223 + $0x50] sm:$0xf] %vm2323, %v2087
      %2345 = vst.msk [vmem:[%s223 + $0x54] sm:$0xf] %vm2323, %v2088
      %2346 = vst.msk [vmem:[%s223 + $0x58] sm:$0xf] %vm2323, %v2089
      %2347 = vst.msk [vmem:[%s223 + $0x5c] sm:$0xf] %vm2323, %v2090
      %2348 = vst.msk [vmem:[%s223 + $0x60] sm:$0xf] %vm2323, %v2091
      %2349 = vst.msk [vmem:[%s223 + $0x64] sm:$0xf] %vm2323, %v2092
      %2350 = vst.msk [vmem:[%s223 + $0x68] sm:$0xf] %vm2323, %v2093
      %2351 = vst.msk [vmem:[%s223 + $0x6c] sm:$0xf] %vm2323, %v2094
      %2352 = vst.msk [vmem:[%s223 + $0x70] sm:$0xf] %vm2323, %v2095
      %2353 = vst.msk [vmem:[%s223 + $0x74] sm:$0xf] %vm2323, %v2096
      %2354 = vst.msk [vmem:[%s223 + $0x78] sm:$0xf] %vm2323, %v2097
      %2355 = vst.msk [vmem:[%s223 + $0x7c] sm:$0xf] %vm2323, %v2098
      %2356 = vst.msk [vmem:[%s223 + $0x80] sm:$0xf] %vm2323, %v2099
      %2357 = vst.msk [vmem:[%s223 + $0x84] sm:$0xf] %vm2323, %v2100
      %2358 = vst.msk [vmem:[%s223 + $0x88] sm:$0xf] %vm2323, %v2101
      %2359 = vst.msk [vmem:[%s223 + $0x8c] sm:$0xf] %vm2323, %v2102
      %2360 = vst.msk [vmem:[%s223 + $0x90] sm:$0xf] %vm2323, %v2103
      %2361 = vst.msk [vmem:[%s223 + $0x94] sm:$0xf] %vm2323, %v2104
      %2362 = vst.msk [vmem:[%s223 + $0x98] sm:$0xf] %vm2323, %v2105
      %2363 = vst.msk [vmem:[%s223 + $0x9c] sm:$0xf] %vm2323, %v2106
      %2364 = vst.msk [vmem:[%s223 + $0xa0] sm:$0xf] %vm2323, %v2107
      %2365 = vst.msk [vmem:[%s223 + $0xa4] sm:$0xf] %vm2323, %v2108
      %2366 = vst.msk [vmem:[%s223 + $0xa8] sm:$0xf] %vm2323, %v2109
      %2367 = vst.msk [vmem:[%s223 + $0xac] sm:$0xf] %vm2323, %v2110
      %2368 = vst.msk [vmem:[%s223 + $0xb0] sm:$0xf] %vm2323, %v2111
      %2369 = vst.msk [vmem:[%s223 + $0xb4] sm:$0xf] %vm2323, %v2112
      %2370 = vst.msk [vmem:[%s223 + $0xb8] sm:$0xf] %vm2323, %v2113
      %2371 = vst.msk [vmem:[%s223 + $0xbc] sm:$0xf] %vm2323, %v2114
      %2372 = vst.msk [vmem:[%s223 + $0xc0] sm:$0xf] %vm2323, %v2115
      %2373 = vst.msk [vmem:[%s223 + $0xc4] sm:$0xf] %vm2323, %v2116
      %2374 = vst.msk [vmem:[%s223 + $0xc8] sm:$0xf] %vm2323, %v2117
      %2375 = vst.msk [vmem:[%s223 + $0xcc] sm:$0xf] %vm2323, %v2118
      %2376 = vst.msk [vmem:[%s223 + $0xd0] sm:$0xf] %vm2323, %v2119
      %2377 = vst.msk [vmem:[%s223 + $0xd4] sm:$0xf] %vm2323, %v2120
      %2378 = vst.msk [vmem:[%s223 + $0xd8] sm:$0xf] %vm2323, %v2121
      %2379 = vst.msk [vmem:[%s223 + $0xdc] sm:$0xf] %vm2323, %v2122
      %2380 = vst.msk [vmem:[%s223 + $0xe0] sm:$0xf] %vm2323, %v2123
      %2381 = vst.msk [vmem:[%s223 + $0xe4] sm:$0xf] %vm2323, %v2124
      %2382 = vst.msk [vmem:[%s223 + $0xe8] sm:$0xf] %vm2323, %v2125
      %2383 = vst.msk [vmem:[%s223 + $0xec] sm:$0xf] %vm2323, %v2126
      %2384 = vst.msk [vmem:[%s223 + $0xf0] sm:$0xf] %vm2323, %v2127
      %2385 = vst.msk [vmem:[%s223 + $0xf4] sm:$0xf] %vm2323, %v2128
      %2386 = vst.msk [vmem:[%s223 + $0xf8] sm:$0xf] %vm2323, %v2129
      %2387 = vst.msk [vmem:[%s223 + $0xfc] sm:$0xf] %vm2323, %v2130
      %2388 = vst.msk [vmem:[%s223 + $0x100] sm:$0xf] %vm2323, %v2131
      %2389 = vst.msk [vmem:[%s223 + $0x104] sm:$0xf] %vm2323, %v2132
      %2390 = vst.msk [vmem:[%s223 + $0x108] sm:$0xf] %vm2323, %v2133
      %2391 = vst.msk [vmem:[%s223 + $0x10c] sm:$0xf] %vm2323, %v2134
      %2392 = vst.msk [vmem:[%s223 + $0x110] sm:$0xf] %vm2323, %v2135
      %2393 = vst.msk [vmem:[%s223 + $0x114] sm:$0xf] %vm2323, %v2136
      %2394 = vst.msk [vmem:[%s223 + $0x118] sm:$0xf] %vm2323, %v2137
      %2395 = vst.msk [vmem:[%s223 + $0x11c] sm:$0xf] %vm2323, %v2138
      %2396 = vst.msk [vmem:[%s223 + $0x120] sm:$0xf] %vm2323, %v2139
      %2397 = vst.msk [vmem:[%s223 + $0x124] sm:$0xf] %vm2323, %v2140
      %2398 = vst.msk [vmem:[%s223 + $0x128] sm:$0xf] %vm2323, %v2141
      %2399 = vst.msk [vmem:[%s223 + $0x12c] sm:$0xf] %vm2323, %v2142
      %2400 = vst.msk [vmem:[%s223 + $0x130] sm:$0xf] %vm2323, %v2143
      %2401 = vst.msk [vmem:[%s223 + $0x134] sm:$0xf] %vm2323, %v2144
      %2402 = vst.msk [vmem:[%s223 + $0x138] sm:$0xf] %vm2323, %v2145
      %2403 = vst.msk [vmem:[%s223 + $0x13c] sm:$0xf] %vm2323, %v2146
      %2404 = vst.msk [vmem:[%s223 + $0x140] sm:$0xf] %vm2323, %v2147
      %2405 = vst.msk [vmem:[%s223 + $0x144] sm:$0xf] %vm2323, %v2148
      %2406 = vst.msk [vmem:[%s223 + $0x148] sm:$0xf] %vm2323, %v2149
      %2407 = vst.msk [vmem:[%s223 + $0x14c] sm:$0xf] %vm2323, %v2150
      %2408 = vst.msk [vmem:[%s223 + $0x150] sm:$0xf] %vm2323, %v2151
      %2409 = vst.msk [vmem:[%s223 + $0x154] sm:$0xf] %vm2323, %v2152
      %2410 = vst.msk [vmem:[%s223 + $0x158] sm:$0xf] %vm2323, %v2153
      %2411 = vst.msk [vmem:[%s223 + $0x15c] sm:$0xf] %vm2323, %v2154
      %2412 = vst.msk [vmem:[%s223 + $0x160] sm:$0xf] %vm2323, %v2155
      %2413 = vst.msk [vmem:[%s223 + $0x164] sm:$0xf] %vm2323, %v2156
      %2414 = vst.msk [vmem:[%s223 + $0x168] sm:$0xf] %vm2323, %v2157
      %2415 = vst.msk [vmem:[%s223 + $0x16c] sm:$0xf] %vm2323, %v2158
      %2416 = vst.msk [vmem:[%s223 + $0x170] sm:$0xf] %vm2323, %v2159
      %2417 = vst.msk [vmem:[%s223 + $0x174] sm:$0xf] %vm2323, %v2160
      %2418 = vst.msk [vmem:[%s223 + $0x178] sm:$0xf] %vm2323, %v2161
      %2419 = vst.msk [vmem:[%s223 + $0x17c] sm:$0xf] %vm2323, %v2162
      %2420 = vst.msk [vmem:[%s223 + $0x180] sm:$0xf] %vm2323, %v2163
      %2421 = vst.msk [vmem:[%s223 + $0x184] sm:$0xf] %vm2323, %v2164
      %2422 = vst.msk [vmem:[%s223 + $0x188] sm:$0xf] %vm2323, %v2165
      %2423 = vst.msk [vmem:[%s223 + $0x18c] sm:$0xf] %vm2323, %v2166
      %2424 = vst.msk [vmem:[%s223 + $0x190] sm:$0xf] %vm2323, %v2167
      %2425 = vst.msk [vmem:[%s223 + $0x194] sm:$0xf] %vm2323, %v2168
      %2426 = vst.msk [vmem:[%s223 + $0x198] sm:$0xf] %vm2323, %v2169
      %2427 = vst.msk [vmem:[%s223 + $0x19c] sm:$0xf] %vm2323, %v2170
      %2428 = vst.msk [vmem:[%s223 + $0x1a0] sm:$0xf] %vm2323, %v2171
      %2429 = vst.msk [vmem:[%s223 + $0x1a4] sm:$0xf] %vm2323, %v2172
      %2430 = vst.msk [vmem:[%s223 + $0x1a8] sm:$0xf] %vm2323, %v2173
      %2431 = vst.msk [vmem:[%s223 + $0x1ac] sm:$0xf] %vm2323, %v2174
      %2432 = vst.msk [vmem:[%s223 + $0x1b0] sm:$0xf] %vm2323, %v2175
      %2433 = vst.msk [vmem:[%s223 + $0x1b4] sm:$0xf] %vm2323, %v2176
      %2434 = vst.msk [vmem:[%s223 + $0x1b8] sm:$0xf] %vm2323, %v2177
      %2435 = vst.msk [vmem:[%s223 + $0x1bc] sm:$0xf] %vm2323, %v2178
      %2436 = vst.msk [vmem:[%s223 + $0x1c0] sm:$0xf] %vm2323, %v2179
      %2437 = vst.msk [vmem:[%s223 + $0x1c4] sm:$0xf] %vm2323, %v2180
      %2438 = vst.msk [vmem:[%s223 + $0x1c8] sm:$0xf] %vm2323, %v2181
      %2439 = vst.msk [vmem:[%s223 + $0x1cc] sm:$0xf] %vm2323, %v2182
      %2440 = vst.msk [vmem:[%s223 + $0x1d0] sm:$0xf] %vm2323, %v2183
      %2441 = vst.msk [vmem:[%s223 + $0x1d4] sm:$0xf] %vm2323, %v2184
      %2442 = vst.msk [vmem:[%s223 + $0x1d8] sm:$0xf] %vm2323, %v2185
      %2443 = vst.msk [vmem:[%s223 + $0x1dc] sm:$0xf] %vm2323, %v2186
      %2444 = vst.msk [vmem:[%s223 + $0x1e0] sm:$0xf] %vm2323, %v2187
      %2445 = vst.msk [vmem:[%s223 + $0x1e4] sm:$0xf] %vm2323, %v2188
      %2446 = vst.msk [vmem:[%s223 + $0x1e8] sm:$0xf] %vm2323, %v2189
      %2447 = vst.msk [vmem:[%s223 + $0x1ec] sm:$0xf] %vm2323, %v2190
      %2448 = vst.msk [vmem:[%s223 + $0x1f0] sm:$0xf] %vm2323, %v2191
      %2449 = vst.msk [vmem:[%s223 + $0x1f4] sm:$0xf] %vm2323, %v2192
      %2450 = vst.msk [vmem:[%s223 + $0x1f8] sm:$0xf] %vm2323, %v2193
      %2451 = vst.msk [vmem:[%s223 + $0x1fc] sm:$0xf] %vm2323, %v2194
      %s2452 = smul.u32 128, %s18
      %p2453 = scmp.lt.s32.totalorder %s2452, 255
      %s2454 = scalar_select %p2453, %s2452, 255
      %p2455 = scmp.lt.s32.totalorder %s19, 0
      %s2456 = scalar_select %p2455, %s19, 0
      %s2457 = sadd.s32 %s2456, %s2454
      %s2458 = smul.addr %s2457, 4
      %s2459 = scalar_lea.vmem %s3, %s2458
      // Predicated region
      $region33: #{discriminator_forward.6} parent=31 // pred_check
        %p2460 = pneg %p124
      $region34: #{discriminator_forward.6} parent=31 // pred_check_branch
        %2462 = sbr.rel (%p2460) target = $region36
      $region35: #{discriminator_forward.6} parent=31 // pred_region
        %s2463 = smul.u32 128, %s18
      $region36: #{discriminator_forward.6} parent=31 // pred_fallthru
        _
    $region32: #{discriminator_forward.6} parent=5 // pred_fallthru
      _
    %p2464 = scmp.le.s32.totalorder 2, %s9
    // Predicated region
    $region37: #{discriminator_forward.6} parent=5 // pred_check
      %p2465 = pneg %p2464
    $region38: #{discriminator_forward.6} parent=5 // pred_check_branch
      %2467 = sbr.rel (%p2465) target = $region40
    $region39: #{discriminator_forward.6} parent=5 // pred_region
      %s2468 = ssub.s32 %s9, 2
      // Predicated region
      $region41: #{discriminator_forward.6} parent=39 // pred_check
        %p2469 = pneg %p130
      $region42: #{discriminator_forward.6} parent=39 // pred_check_branch
        %2471 = sbr.rel (%p2469) target = $region44
      $region43: #{discriminator_forward.6} parent=39 // pred_region
        %s2472 = smul.u32 128, %s20
        %p2473 = scmp.lt.s32.totalorder %s2472, 255
        %s2474 = scalar_select %p2473, %s2472, 255
        %p2475 = scmp.lt.s32.totalorder %s21, 0
        %s2476 = scalar_select %p2475, %s21, 0
        %s2477 = sadd.s32 %s2476, %s2474
        %s2478 = smul.addr %s2477, 4
        %s2479 = scalar_lea.vmem %s3, %s2478
      $region44: #{discriminator_forward.6} parent=39 // pred_fallthru
        _
    $region40: #{discriminator_forward.6} parent=5 // pred_fallthru
      _
  $region6: #{discriminator_forward.6} parent=0 // loop_footer
    %s13 = sadd.s32 1, %s9
  $region7: #{discriminator_forward.6} parent=0 // loop_footer_branch
    %8 = sbr.rel target = $region3
  $region8: #{discriminator_forward.6} parent=0 // loop_exit
    _

// kernel: discriminator_forward.7
$region0: #{discriminator_forward.7}
  #allocation0 [shape = 'u32[]', space=smem, size = 0x4, offset = 0x4, fixed_abs, tag = 'smem constant byte address 0x4 - core index']
  #allocation1 [shape = 'u32[144,128]{1,0:T(1,128)}', space=vmem, size = 0x12000, scoped, tag = 'internal scratch']
  %s0 = inlined_call_operand.vmem [shape: bf16[512,256], index: 0, kind: input, shape index: {}]
  %s1 = inlined_call_operand.vmem [shape: bf16[256,32], index: 1, kind: input, shape index: {}]
  %s2 = inlined_call_operand.vmem [shape: f32[1,32], index: 2, kind: input, shape index: {}]
  %s3 = inlined_call_operand.vmem [shape: bf16[512,32], index: 3, kind: output, shape index: {}]
  %s4 = sld [smem:[#allocation0]]
  $region45: #{discriminator_forward.7} parent=0
    _
  %s6 = ssub.s32 1, %s4
  %s7 = scalar_select 0, %s6, %s4
  loop: start=0, step=1, limit=4
  $region2: #{discriminator_forward.7} parent=0 // loop_pre_header
    _
  $region3: #{discriminator_forward.7} parent=0 // loop_header
    %s9 = sphi 0, %s13
    %p10 = scmp.ge.s32.totalorder %s9, 4
    %s16 = sphi 0, %s28
    %s17 = sphi 0, %s24
    %s18 = sphi 0, %s16
    %s19 = sphi 0, %s17
    %s20 = sphi 0, %s18
    %s21 = sphi 0, %s19
    %s31 = sphi 0, %s33
    %s34 = sphi 0, %s31
    %s35 = sphi 0, %s34
    %s51 = sphi 0, %s35
    %s57 = sphi 0, %s59
    %s60 = sphi 0, %s57
    %s61 = sphi 0, %s60
    %s77 = sphi 0, %s61
    %s83 = sphi 0, %s85
    %s86 = sphi 0, %s83
    %s87 = sphi 0, %s86
    %s103 = sphi 0, %s87
    %s111 = sphi 0, %s113
    %s114 = sphi 0, %s111
    %s115 = sphi 0, %s114
    %s131 = sphi 0, %s115
  $region4: #{discriminator_forward.7} parent=0 // loop_header_branch
    %12 = sbr.rel (%p10) target = $region8
  $region5: #{discriminator_forward.7} parent=0 // loop_body
    %s14 = ssub.s32 %s9, 1
    %s15 = ssub.s32 %s9, 2
    %s22 = sadd.s32 1, %s17
    %p23 = scmp.ge.s32.totalorder %s22, 1
    %s24 = scalar_select %p23, 0, %s22
    %s25 = sadd.s32 1, %s16
    %s26 = scalar_select %p23, %s25, %s16
    %p27 = scmp.ge.s32.totalorder %s26, 2
    %s28 = scalar_select %p27, 0, %s26
    %s29 = ssub.s32 %s16, %s28
    %p30 = scmp.eq.s32.totalorder %s29, 0
    %s32 = sadd.s32 %s31, 1
    %s33 = scalar_select %p30, %s31, %s32
    %p36 = pneg %p30
    %p37 = scmp.eq.s32.totalorder %s9, 1
    %p38 = por %p36, %p37
    %p39 = scmp.ne.s32.totalorder %s31, %s34
    %p40 = scmp.eq.s32.totalorder %s9, 0
    %p41 = por %p39, %p40
    %p42 = scmp.ne.s32.totalorder %s31, %s34
    %p43 = scmp.eq.s32.totalorder %s14, 1
    %p44 = por %p42, %p43
    %p45 = scmp.ne.s32.totalorder %s34, %s35
    %p46 = scmp.eq.s32.totalorder %s14, 0
    %p47 = por %p45, %p46
    %p48 = scmp.ne.s32.totalorder %s34, %s35
    %p49 = scmp.eq.s32.totalorder %s15, 1
    %p50 = por %p48, %p49
    %p52 = scmp.ne.s32.totalorder %s35, %s51
    %p53 = scmp.eq.s32.totalorder %s15, 0
    %p54 = por %p52, %p53
    %s55 = ssub.s32 %s17, %s24
    %p56 = scmp.eq.s32.totalorder %s55, 0
    %s58 = sadd.s32 %s57, 1
    %s59 = scalar_select %p56, %s57, %s58
    %p62 = pneg %p56
    %p63 = scmp.eq.s32.totalorder %s9, 1
    %p64 = por %p62, %p63
    %p65 = scmp.ne.s32.totalorder %s57, %s60
    %p66 = scmp.eq.s32.totalorder %s9, 0
    %p67 = por %p65, %p66
    %p68 = scmp.ne.s32.totalorder %s57, %s60
    %p69 = scmp.eq.s32.totalorder %s14, 1
    %p70 = por %p68, %p69
    %p71 = scmp.ne.s32.totalorder %s60, %s61
    %p72 = scmp.eq.s32.totalorder %s14, 0
    %p73 = por %p71, %p72
    %p74 = scmp.ne.s32.totalorder %s60, %s61
    %p75 = scmp.eq.s32.totalorder %s15, 1
    %p76 = por %p74, %p75
    %p78 = scmp.ne.s32.totalorder %s61, %s77
    %p79 = scmp.eq.s32.totalorder %s15, 0
    %p80 = por %p78, %p79
    %s81 = ssub.s32 %s17, %s24
    %p82 = scmp.eq.s32.totalorder %s81, 0
    %s84 = sadd.s32 %s83, 1
    %s85 = scalar_select %p82, %s83, %s84
    %p88 = pneg %p82
    %p89 = scmp.eq.s32.totalorder %s9, 1
    %p90 = por %p88, %p89
    %p91 = scmp.ne.s32.totalorder %s83, %s86
    %p92 = scmp.eq.s32.totalorder %s9, 0
    %p93 = por %p91, %p92
    %p94 = scmp.ne.s32.totalorder %s83, %s86
    %p95 = scmp.eq.s32.totalorder %s14, 1
    %p96 = por %p94, %p95
    %p97 = scmp.ne.s32.totalorder %s86, %s87
    %p98 = scmp.eq.s32.totalorder %s14, 0
    %p99 = por %p97, %p98
    %p100 = scmp.ne.s32.totalorder %s86, %s87
    %p101 = scmp.eq.s32.totalorder %s15, 1
    %p102 = por %p100, %p101
    %p104 = scmp.ne.s32.totalorder %s87, %s103
    %p105 = scmp.eq.s32.totalorder %s15, 0
    %p106 = por %p104, %p105
    %s107 = ssub.s32 %s16, %s28
    %s108 = ssub.s32 %s17, %s24
    %s109 = sor.u32 %s107, %s108
    %p110 = scmp.eq.s32.totalorder %s109, 0
    %s112 = sadd.s32 %s111, 1
    %s113 = scalar_select %p110, %s111, %s112
    %p116 = pneg %p110
    %p117 = scmp.eq.s32.totalorder %s9, 1
    %p118 = por %p116, %p117
    %p119 = scmp.ne.s32.totalorder %s111, %s114
    %p120 = scmp.eq.s32.totalorder %s9, 0
    %p121 = por %p119, %p120
    %p122 = scmp.ne.s32.totalorder %s111, %s114
    %p123 = scmp.eq.s32.totalorder %s14, 1
    %p124 = por %p122, %p123
    %p125 = scmp.ne.s32.totalorder %s114, %s115
    %p126 = scmp.eq.s32.totalorder %s14, 0
    %p127 = por %p125, %p126
    %p128 = scmp.ne.s32.totalorder %s114, %s115
    %p129 = scmp.eq.s32.totalorder %s15, 1
    %p130 = por %p128, %p129
    %p132 = scmp.ne.s32.totalorder %s115, %s131
    %p133 = scmp.eq.s32.totalorder %s15, 0
    %p134 = por %p132, %p133
    %p135 = scmp.le.s32.totalorder 1, %s9
    %p136 = scmp.lt.s32.totalorder %s9, 3
    %p137 = pnand %p135, %p136
    %p138 = pneg %p137
    // Predicated region
    $region9: #{discriminator_forward.7} parent=5 // pred_check
      _
    $region10: #{discriminator_forward.7} parent=5 // pred_check_branch
      %140 = sbr.rel (%p137) target = $region12
    $region11: #{discriminator_forward.7} parent=5 // pred_region
      %s141 = ssub.s32 %s9, 1
      // Predicated region
      $region13: #{discriminator_forward.7} parent=11 // pred_check
        %p142 = pneg %p73
      $region14: #{discriminator_forward.7} parent=11 // pred_check_branch
        %144 = sbr.rel (%p142) target = $region16
      $region15: #{discriminator_forward.7} parent=11 // pred_region
        %p145 = scmp.lt.s32.totalorder %s19, 0
        %s146 = scalar_select %p145, %s19, 0
        %s147 = smul.addr %s146, 4
        %s148 = scalar_lea.vmem %s1, %s147
      $region16: #{discriminator_forward.7} parent=11 // pred_fallthru
        _
      // Predicated region
      $region17: #{discriminator_forward.7} parent=11 // pred_check
        %p149 = pneg %p99
      $region18: #{discriminator_forward.7} parent=11 // pred_check_branch
        %151 = sbr.rel (%p149) target = $region20
      $region19: #{discriminator_forward.7} parent=11 // pred_region
        %p152 = scmp.lt.s32.totalorder %s19, 0
        %s153 = scalar_select %p152, %s19, 0
        %s154 = scalar_lea.vmem %s2, %s153
      $region20: #{discriminator_forward.7} parent=11 // pred_fallthru
        _
    $region12: #{discriminator_forward.7} parent=5 // pred_fallthru
      _
    %p155 = scmp.lt.s32.totalorder %s9, 2
    // Predicated region
    $region21: #{discriminator_forward.7} parent=5 // pred_check
      %p156 = pneg %p155
    $region22: #{discriminator_forward.7} parent=5 // pred_check_branch
      %158 = sbr.rel (%p156) target = $region24
    $region23: #{discriminator_forward.7} parent=5 // pred_region
      // Predicated region
      $region25: #{discriminator_forward.7} parent=23 // pred_check
        %p159 = pneg %p41
      $region26: #{discriminator_forward.7} parent=23 // pred_check_branch
        %161 = sbr.rel (%p159) target = $region28
      $region27: #{discriminator_forward.7} parent=23 // pred_region
        %s162 = smul.u32 32, %s16
        %p163 = scmp.lt.s32.totalorder %s162, 63
        %s164 = scalar_select %p163, %s162, 63
        %s165 = smul.addr %s164, 2
        %s166 = smul.addr %s165, 4
        %s167 = scalar_lea.vmem %s0, %s166
        %s168 = smul.u32 32, %s16
      $region28: #{discriminator_forward.7} parent=23 // pred_fallthru
        _
    $region24: #{discriminator_forward.7} parent=5 // pred_fallthru
      _
    %p169 = scmp.le.s32.totalorder 1, %s9
    %p170 = scmp.lt.s32.totalorder %s9, 3
    %p171 = pnand %p169, %p170
    %p172 = pneg %p171
    // Predicated region
    $region29: #{discriminator_forward.7} parent=5 // pred_check
      _
    $region30: #{discriminator_forward.7} parent=5 // pred_check_branch
      %174 = sbr.rel (%p171) target = $region32
    $region31: #{discriminator_forward.7} parent=5 // pred_region
      %s175 = ssub.s32 %s9, 1
      %s176 = smul.u32 32, %s18
      %p177 = scmp.lt.s32.totalorder %s176, 63
      %s178 = scalar_select %p177, %s176, 63
      %s179 = smul.addr %s178, 2
      %s180 = smul.addr %s179, 4
      %s181 = scalar_lea.vmem %s0, %s180
      %p182 = pneg %p47
      %p183 = pneg %p44
      %p184 = scmp.lt.s32.totalorder %s19, 0
      %s185 = scalar_select %p184, %s19, 0
      %s186 = smul.addr %s185, 4
      %s187 = scalar_lea.vmem %s1, %s186
      %p188 = pneg %p73
      %p189 = pneg %p70
      %p190 = scmp.lt.s32.totalorder %s19, 0
      %s191 = scalar_select %p190, %s19, 0
      %s192 = scalar_lea.vmem %s2, %s191
      %p193 = pneg %p99
      %p194 = pneg %p96
      %p195 = pneg %p127
      %p196 = pneg %p124
      %s197 = smul.u32 32, %s18
      %p198 = scmp.lt.s32.totalorder %s197, 63
      %s199 = scalar_select %p198, %s197, 63
      %p200 = scmp.lt.s32.totalorder %s19, 0
      %s201 = scalar_select %p200, %s19, 0
      %s202 = sadd.s32 %s201, %s199
      %s203 = smul.addr %s202, 4
      %s204 = scalar_lea.vmem %s3, %s203
      %s205 = smul.u32 32, %s18
      %p206 = scmp.lt.s32.totalorder %s205, 63
      %s207 = scalar_select %p206, %s205, 63
      %s208 = smul.addr %s207, 2
      %s209 = smul.addr %s208, 4
      %s210 = scalar_lea.vmem %s0, %s209
      %s211 = smul.u32 32, %s18
      %p212 = scmp.lt.s32.totalorder %s19, 0
      %s213 = scalar_select %p212, %s19, 0
      %s214 = smul.addr %s213, 4
      %s215 = scalar_lea.vmem %s1, %s214
      %p216 = scmp.lt.s32.totalorder %s19, 0
      %s217 = scalar_select %p216, %s19, 0
      %s218 = scalar_lea.vmem %s2, %s217
      %s219 = smul.u32 32, %s18
      %p220 = scmp.lt.s32.totalorder %s219, 63
      %s221 = scalar_select %p220, %s219, 63
      %p222 = scmp.lt.s32.totalorder %s19, 0
      %s223 = scalar_select %p222, %s19, 0
      %s224 = sadd.s32 %s223, %s221
      %s225 = smul.addr %s224, 4
      %s226 = scalar_lea.vmem %s3, %s225
      %s227 = smul.u32 32, %s18
      %v229 = vld [vmem:[%s210] sm:$0xff]
      %v230 = vld [vmem:[%s210 + $0x8] sm:$0xff]
      %v231 = vld [vmem:[%s210 + $0x10] sm:$0xff]
      %v232 = vld [vmem:[%s210 + $0x18] sm:$0xff]
      %v233 = vld [vmem:[%s210 + $0x20] sm:$0xff]
      %v234 = vld [vmem:[%s210 + $0x28] sm:$0xff]
      %v235 = vld [vmem:[%s210 + $0x30] sm:$0xff]
      %v236 = vld [vmem:[%s210 + $0x38] sm:$0xff]
      %v237 = vld [vmem:[%s210 + $0x40] sm:$0xff]
      %v238 = vld [vmem:[%s210 + $0x48] sm:$0xff]
      %v239 = vld [vmem:[%s210 + $0x50] sm:$0xff]
      %v240 = vld [vmem:[%s210 + $0x58] sm:$0xff]
      %v241 = vld [vmem:[%s210 + $0x60] sm:$0xff]
      %v242 = vld [vmem:[%s210 + $0x68] sm:$0xff]
      %v243 = vld [vmem:[%s210 + $0x70] sm:$0xff]
      %v244 = vld [vmem:[%s210 + $0x78] sm:$0xff]
      %v245 = vld [vmem:[%s210 + $0x80] sm:$0xff]
      %v246 = vld [vmem:[%s210 + $0x88] sm:$0xff]
      %v247 = vld [vmem:[%s210 + $0x90] sm:$0xff]
      %v248 = vld [vmem:[%s210 + $0x98] sm:$0xff]
      %v249 = vld [vmem:[%s210 + $0xa0] sm:$0xff]
      %v250 = vld [vmem:[%s210 + $0xa8] sm:$0xff]
      %v251 = vld [vmem:[%s210 + $0xb0] sm:$0xff]
      %v252 = vld [vmem:[%s210 + $0xb8] sm:$0xff]
      %v253 = vld [vmem:[%s210 + $0xc0] sm:$0xff]
      %v254 = vld [vmem:[%s210 + $0xc8] sm:$0xff]
      %v255 = vld [vmem:[%s210 + $0xd0] sm:$0xff]
      %v256 = vld [vmem:[%s210 + $0xd8] sm:$0xff]
      %v257 = vld [vmem:[%s210 + $0xe0] sm:$0xff]
      %v258 = vld [vmem:[%s210 + $0xe8] sm:$0xff]
      %v259 = vld [vmem:[%s210 + $0xf0] sm:$0xff]
      %v260 = vld [vmem:[%s210 + $0xf8] sm:$0xff]
      %v261 = vld [vmem:[%s215] sm:$0xf]
      %v262 = vld [vmem:[%s215 + $0x4] sm:$0xf]
      %v263 = vld [vmem:[%s215 + $0x8] sm:$0xf]
      %v264 = vld [vmem:[%s215 + $0xc] sm:$0xf]
      %v265 = vld [vmem:[%s215 + $0x10] sm:$0xf]
      %v266 = vld [vmem:[%s215 + $0x14] sm:$0xf]
      %v267 = vld [vmem:[%s215 + $0x18] sm:$0xf]
      %v268 = vld [vmem:[%s215 + $0x1c] sm:$0xf]
      %v269 = vld [vmem:[%s215 + $0x20] sm:$0xf]
      %v270 = vld [vmem:[%s215 + $0x24] sm:$0xf]
      %v271 = vld [vmem:[%s215 + $0x28] sm:$0xf]
      %v272 = vld [vmem:[%s215 + $0x2c] sm:$0xf]
      %v273 = vld [vmem:[%s215 + $0x30] sm:$0xf]
      %v274 = vld [vmem:[%s215 + $0x34] sm:$0xf]
      %v275 = vld [vmem:[%s215 + $0x38] sm:$0xf]
      %v276 = vld [vmem:[%s215 + $0x3c] sm:$0xf]
      %v277 = vld [vmem:[%s215 + $0x40] sm:$0xf]
      %v278 = vld [vmem:[%s215 + $0x44] sm:$0xf]
      %v279 = vld [vmem:[%s215 + $0x48] sm:$0xf]
      %v280 = vld [vmem:[%s215 + $0x4c] sm:$0xf]
      %v281 = vld [vmem:[%s215 + $0x50] sm:$0xf]
      %v282 = vld [vmem:[%s215 + $0x54] sm:$0xf]
      %v283 = vld [vmem:[%s215 + $0x58] sm:$0xf]
      %v284 = vld [vmem:[%s215 + $0x5c] sm:$0xf]
      %v285 = vld [vmem:[%s215 + $0x60] sm:$0xf]
      %v286 = vld [vmem:[%s215 + $0x64] sm:$0xf]
      %v287 = vld [vmem:[%s215 + $0x68] sm:$0xf]
      %v288 = vld [vmem:[%s215 + $0x6c] sm:$0xf]
      %v289 = vld [vmem:[%s215 + $0x70] sm:$0xf]
      %v290 = vld [vmem:[%s215 + $0x74] sm:$0xf]
      %v291 = vld [vmem:[%s215 + $0x78] sm:$0xf]
      %v292 = vld [vmem:[%s215 + $0x7c] sm:$0xf]
      %v293 = vld [vmem:[%s218] sm:$0x1]
      %v295 = vlaneseq
      %v296 = vshrl.u32 %v295, 7
      %v297 = vsub.s32 0, %v296
      %v298 = vrot.slane %v293, %v297
      %v332 = vunpack.c.l.b16 %v229
      %v333 = vunpack.c.h.b16 %v229
      %v334 = vunpack.c.l.b16 %v230
      %v335 = vunpack.c.h.b16 %v230
      %v336 = vunpack.c.l.b16 %v231
      %v337 = vunpack.c.h.b16 %v231
      %v338 = vunpack.c.l.b16 %v232
      %v339 = vunpack.c.h.b16 %v232
      %v340 = vunpack.c.l.b16 %v233
      %v341 = vunpack.c.h.b16 %v233
      %v342 = vunpack.c.l.b16 %v234
      %v343 = vunpack.c.h.b16 %v234
      %v344 = vunpack.c.l.b16 %v235
      %v345 = vunpack.c.h.b16 %v235
      %v346 = vunpack.c.l.b16 %v236
      %v347 = vunpack.c.h.b16 %v236
      %v348 = vunpack.c.l.b16 %v237
      %v349 = vunpack.c.h.b16 %v237
      %v350 = vunpack.c.l.b16 %v238
      %v351 = vunpack.c.h.b16 %v238
      %v352 = vunpack.c.l.b16 %v239
      %v353 = vunpack.c.h.b16 %v239
      %v354 = vunpack.c.l.b16 %v240
      %v355 = vunpack.c.h.b16 %v240
      %v356 = vunpack.c.l.b16 %v241
      %v357 = vunpack.c.h.b16 %v241
      %v358 = vunpack.c.l.b16 %v242
      %v359 = vunpack.c.h.b16 %v242
      %v360 = vunpack.c.l.b16 %v243
      %v361 = vunpack.c.h.b16 %v243
      %v362 = vunpack.c.l.b16 %v244
      %v363 = vunpack.c.h.b16 %v244
      %v364 = vunpack.c.l.b16 %v245
      %v365 = vunpack.c.h.b16 %v245
      %v366 = vunpack.c.l.b16 %v246
      %v367 = vunpack.c.h.b16 %v246
      %v368 = vunpack.c.l.b16 %v247
      %v369 = vunpack.c.h.b16 %v247
      %v370 = vunpack.c.l.b16 %v248
      %v371 = vunpack.c.h.b16 %v248
      %v372 = vunpack.c.l.b16 %v249
      %v373 = vunpack.c.h.b16 %v249
      %v374 = vunpack.c.l.b16 %v250
      %v375 = vunpack.c.h.b16 %v250
      %v376 = vunpack.c.l.b16 %v251
      %v377 = vunpack.c.h.b16 %v251
      %v378 = vunpack.c.l.b16 %v252
      %v379 = vunpack.c.h.b16 %v252
      %v380 = vunpack.c.l.b16 %v253
      %v381 = vunpack.c.h.b16 %v253
      %v382 = vunpack.c.l.b16 %v254
      %v383 = vunpack.c.h.b16 %v254
      %v384 = vunpack.c.l.b16 %v255
      %v385 = vunpack.c.h.b16 %v255
      %v386 = vunpack.c.l.b16 %v256
      %v387 = vunpack.c.h.b16 %v256
      %v388 = vunpack.c.l.b16 %v257
      %v389 = vunpack.c.h.b16 %v257
      %v390 = vunpack.c.l.b16 %v258
      %v391 = vunpack.c.h.b16 %v258
      %v392 = vunpack.c.l.b16 %v259
      %v393 = vunpack.c.h.b16 %v259
      %v394 = vunpack.c.l.b16 %v260
      %v395 = vunpack.c.h.b16 %v260
      %v396 = vpack.c.b16 %v334, %v332
      %v397 = vpack.c.b16 %v335, %v333
      %v398 = vpack.c.b16 %v338, %v336
      %v399 = vpack.c.b16 %v339, %v337
      %v400 = vpack.c.b16 %v342, %v340
      %v401 = vpack.c.b16 %v343, %v341
      %v402 = vpack.c.b16 %v346, %v344
      %v403 = vpack.c.b16 %v347, %v345
      %v404 = vpack.c.b16 %v350, %v348
      %v405 = vpack.c.b16 %v351, %v349
      %v406 = vpack.c.b16 %v354, %v352
      %v407 = vpack.c.b16 %v355, %v353
      %v408 = vpack.c.b16 %v358, %v356
      %v409 = vpack.c.b16 %v359, %v357
      %v410 = vpack.c.b16 %v362, %v360
      %v411 = vpack.c.b16 %v363, %v361
      %v412 = vpack.c.b16 %v366, %v364
      %v413 = vpack.c.b16 %v367, %v365
      %v414 = vpack.c.b16 %v370, %v368
      %v415 = vpack.c.b16 %v371, %v369
      %v416 = vpack.c.b16 %v374, %v372
      %v417 = vpack.c.b16 %v375, %v373
      %v418 = vpack.c.b16 %v378, %v376
      %v419 = vpack.c.b16 %v379, %v377
      %v420 = vpack.c.b16 %v382, %v380
      %v421 = vpack.c.b16 %v383, %v381
      %v422 = vpack.c.b16 %v386, %v384
      %v423 = vpack.c.b16 %v387, %v385
      %v424 = vpack.c.b16 %v390, %v388
      %v425 = vpack.c.b16 %v391, %v389
      %v426 = vpack.c.b16 %v394, %v392
      %v427 = vpack.c.b16 %v395, %v393
      %v492 = vunpack.c.l.b16 %v261
      %v493 = vunpack.c.l.b16 %v262
      %v494 = vunpack.c.l.b16 %v263
      %v495 = vunpack.c.l.b16 %v264
      %v496 = vunpack.c.l.b16 %v265
      %v497 = vunpack.c.l.b16 %v266
      %v498 = vunpack.c.l.b16 %v267
      %v499 = vunpack.c.l.b16 %v268
      %v500 = vunpack.c.l.b16 %v269
      %v501 = vunpack.c.l.b16 %v270
      %v502 = vunpack.c.l.b16 %v271
      %v503 = vunpack.c.l.b16 %v272
      %v504 = vunpack.c.l.b16 %v273
      %v505 = vunpack.c.l.b16 %v274
      %v506 = vunpack.c.l.b16 %v275
      %v507 = vunpack.c.l.b16 %v276
      %v508 = vunpack.c.l.b16 %v277
      %v509 = vunpack.c.l.b16 %v278
      %v510 = vunpack.c.l.b16 %v279
      %v511 = vunpack.c.l.b16 %v280
      %v512 = vunpack.c.l.b16 %v281
      %v513 = vunpack.c.l.b16 %v282
      %v514 = vunpack.c.l.b16 %v283
      %v515 = vunpack.c.l.b16 %v284
      %v516 = vunpack.c.l.b16 %v285
      %v517 = vunpack.c.l.b16 %v286
      %v518 = vunpack.c.l.b16 %v287
      %v519 = vunpack.c.l.b16 %v288
      %v520 = vunpack.c.l.b16 %v289
      %v521 = vunpack.c.l.b16 %v290
      %v522 = vunpack.c.l.b16 %v291
      %v523 = vunpack.c.l.b16 %v292
      %v524 = vpack.c.b16 %v493, %v492
      %v525 = vpack.c.b16 %v495, %v494
      %v526 = vpack.c.b16 %v497, %v496
      %v527 = vpack.c.b16 %v499, %v498
      %v528 = vpack.c.b16 %v501, %v500
      %v529 = vpack.c.b16 %v503, %v502
      %v530 = vpack.c.b16 %v505, %v504
      %v531 = vpack.c.b16 %v507, %v506
      %v532 = vpack.c.b16 %v509, %v508
      %v533 = vpack.c.b16 %v511, %v510
      %v534 = vpack.c.b16 %v513, %v512
      %v535 = vpack.c.b16 %v515, %v514
      %v536 = vpack.c.b16 %v517, %v516
      %v537 = vpack.c.b16 %v519, %v518
      %v538 = vpack.c.b16 %v521, %v520
      %v539 = vpack.c.b16 %v523, %v522
      %556 = vmatprep.subr.bf16.mxu0 0
      %557 = vmatpush1.bf16.msra.mxu0 %v531
      %558 = vmatprep.subr.bf16.mxu0 0
      %559 = vmatpush1.bf16.msra.mxu0 %v530
      %560 = vmatprep.subr.bf16.mxu0 0
      %561 = vmatpush1.bf16.msra.mxu0 %v529
      %562 = vmatprep.subr.bf16.mxu0 0
      %563 = vmatpush1.bf16.msra.mxu0 %v528
      %564 = vmatprep.subr.bf16.mxu0 0
      %565 = vmatpush1.bf16.msra.mxu0 %v527
      %566 = vmatprep.subr.bf16.mxu0 0
      %567 = vmatpush1.bf16.msra.mxu0 %v526
      %568 = vmatprep.subr.bf16.mxu0 0
      %569 = vmatpush1.bf16.msra.mxu0 %v525
      %570 = vmatprep.subr.bf16.mxu0 0
      %571 = vmatpush1.bf16.msra.mxu0 %v524
      %572 = vmatprep.subr.bf16.mxu0 0
      %573 = vmatpush2.bf16.msra.mxu0 %v539
      %574 = vmatprep.subr.bf16.mxu0 0
      %575 = vmatpush2.bf16.msra.mxu0 %v538
      %576 = vmatprep.subr.bf16.mxu0 0
      %577 = vmatpush2.bf16.msra.mxu0 %v537
      %578 = vmatprep.subr.bf16.mxu0 0
      %579 = vmatpush2.bf16.msra.mxu0 %v536
      %580 = vmatprep.subr.bf16.mxu0 0
      %581 = vmatpush2.bf16.msra.mxu0 %v535
      %582 = vmatprep.subr.bf16.mxu0 0
      %583 = vmatpush2.bf16.msra.mxu0 %v534
      %584 = vmatprep.subr.bf16.mxu0 0
      %585 = vmatpush2.bf16.msra.mxu0 %v533
      %586 = vmatprep.subr.bf16.mxu0 0
      %587 = vmatpush2.bf16.msra.mxu0 %v532
      %588 = vmatprep.mubr.bf16.mxu0 %v397
      %589 = vmatmul.mubr.bf16.gmra.mxu0 %v396
      %v590 = vpop.f32.mrf.mxu0
      %v591 = vadd.f32 %v298, %v590
      %v592 = vpop.f32.mrf.mxu0
      %v593 = vpop.f32.mrf.mxu0
      %v594 = vadd.f32 %v298, %v593
      %v595 = vpop.f32.mrf.mxu0
      %596 = vmatprep.mubr.bf16.mxu0 %v399
      %597 = vmatmul.mubr.bf16.gmra.mxu0 %v398
      %v598 = vpop.f32.mrf.mxu0
      %v599 = vadd.f32 %v298, %v598
      %v600 = vpop.f32.mrf.mxu0
      %v601 = vpop.f32.mrf.mxu0
      %v602 = vadd.f32 %v298, %v601
      %v603 = vpop.f32.mrf.mxu0
      %604 = vmatprep.mubr.bf16.mxu0 %v401
      %605 = vmatmul.mubr.bf16.gmra.mxu0 %v400
      %v606 = vpop.f32.mrf.mxu0
      %v607 = vadd.f32 %v298, %v606
      %v608 = vpop.f32.mrf.mxu0
      %v609 = vpop.f32.mrf.mxu0
      %v610 = vadd.f32 %v298, %v609
      %v611 = vpop.f32.mrf.mxu0
      %612 = vmatprep.mubr.bf16.mxu0 %v403
      %613 = vmatmul.mubr.bf16.gmra.mxu0 %v402
      %v614 = vpop.f32.mrf.mxu0
      %v615 = vadd.f32 %v298, %v614
      %v616 = vpop.f32.mrf.mxu0
      %v617 = vpop.f32.mrf.mxu0
      %v618 = vadd.f32 %v298, %v617
      %v619 = vpop.f32.mrf.mxu0
      %620 = vmatprep.mubr.bf16.mxu0 %v405
      %621 = vmatmul.mubr.bf16.gmra.mxu0 %v404
      %v622 = vpop.f32.mrf.mxu0
      %v623 = vadd.f32 %v298, %v622
      %v624 = vpop.f32.mrf.mxu0
      %v625 = vpop.f32.mrf.mxu0
      %v626 = vadd.f32 %v298, %v625
      %v627 = vpop.f32.mrf.mxu0
      %628 = vmatprep.mubr.bf16.mxu0 %v407
      %629 = vmatmul.mubr.bf16.gmra.mxu0 %v406
      %v630 = vpop.f32.mrf.mxu0
      %v631 = vadd.f32 %v298, %v630
      %v632 = vpop.f32.mrf.mxu0
      %v633 = vpop.f32.mrf.mxu0
      %v634 = vadd.f32 %v298, %v633
      %v635 = vpop.f32.mrf.mxu0
      %636 = vmatprep.mubr.bf16.mxu0 %v409
      %637 = vmatmul.mubr.bf16.gmra.mxu0 %v408
      %v638 = vpop.f32.mrf.mxu0
      %v639 = vadd.f32 %v298, %v638
      %v640 = vpop.f32.mrf.mxu0
      %v641 = vpop.f32.mrf.mxu0
      %v642 = vadd.f32 %v298, %v641
      %v643 = vpop.f32.mrf.mxu0
      %644 = vmatprep.mubr.bf16.mxu0 %v411
      %645 = vmatmul.mubr.bf16.gmra.mxu0 %v410
      %v646 = vpop.f32.mrf.mxu0
      %v647 = vadd.f32 %v298, %v646
      %v648 = vpop.f32.mrf.mxu0
      %v649 = vpop.f32.mrf.mxu0
      %v650 = vadd.f32 %v298, %v649
      %v651 = vpop.f32.mrf.mxu0
      %652 = vmatprep.mubr.bf16.mxu0 %v413
      %653 = vmatmul.mubr.bf16.gmra.mxu0 %v412
      %v654 = vpop.f32.mrf.mxu0
      %v655 = vadd.f32 %v298, %v654
      %v656 = vpop.f32.mrf.mxu0
      %v657 = vpop.f32.mrf.mxu0
      %v658 = vadd.f32 %v298, %v657
      %v659 = vpop.f32.mrf.mxu0
      %660 = vmatprep.mubr.bf16.mxu0 %v415
      %661 = vmatmul.mubr.bf16.gmra.mxu0 %v414
      %v662 = vpop.f32.mrf.mxu0
      %v663 = vadd.f32 %v298, %v662
      %v664 = vpop.f32.mrf.mxu0
      %v665 = vpop.f32.mrf.mxu0
      %v666 = vadd.f32 %v298, %v665
      %v667 = vpop.f32.mrf.mxu0
      %668 = vmatprep.mubr.bf16.mxu0 %v417
      %669 = vmatmul.mubr.bf16.gmra.mxu0 %v416
      %v670 = vpop.f32.mrf.mxu0
      %v671 = vadd.f32 %v298, %v670
      %v672 = vpop.f32.mrf.mxu0
      %v673 = vpop.f32.mrf.mxu0
      %v674 = vadd.f32 %v298, %v673
      %v675 = vpop.f32.mrf.mxu0
      %676 = vmatprep.mubr.bf16.mxu0 %v419
      %677 = vmatmul.mubr.bf16.gmra.mxu0 %v418
      %v678 = vpop.f32.mrf.mxu0
      %v679 = vadd.f32 %v298, %v678
      %v680 = vpop.f32.mrf.mxu0
      %v681 = vpop.f32.mrf.mxu0
      %v682 = vadd.f32 %v298, %v681
      %v683 = vpop.f32.mrf.mxu0
      %684 = vmatprep.mubr.bf16.mxu0 %v421
      %685 = vmatmul.mubr.bf16.gmra.mxu0 %v420
      %v686 = vpop.f32.mrf.mxu0
      %v687 = vadd.f32 %v298, %v686
      %v688 = vpop.f32.mrf.mxu0
      %v689 = vpop.f32.mrf.mxu0
      %v690 = vadd.f32 %v298, %v689
      %v691 = vpop.f32.mrf.mxu0
      %692 = vmatprep.mubr.bf16.mxu0 %v423
      %693 = vmatmul.mubr.bf16.gmra.mxu0 %v422
      %v694 = vpop.f32.mrf.mxu0
      %v695 = vadd.f32 %v298, %v694
      %v696 = vpop.f32.mrf.mxu0
      %v697 = vpop.f32.mrf.mxu0
      %v698 = vadd.f32 %v298, %v697
      %v699 = vpop.f32.mrf.mxu0
      %700 = vmatprep.mubr.bf16.mxu0 %v425
      %701 = vmatmul.mubr.bf16.gmra.mxu0 %v424
      %v702 = vpop.f32.mrf.mxu0
      %v703 = vadd.f32 %v298, %v702
      %v704 = vpop.f32.mrf.mxu0
      %v705 = vpop.f32.mrf.mxu0
      %v706 = vadd.f32 %v298, %v705
      %v707 = vpop.f32.mrf.mxu0
      %708 = vmatprep.mubr.bf16.mxu0 %v427
      %709 = vmatmul.mubr.bf16.gmra.mxu0 %v426
      %v710 = vpop.f32.mrf.mxu0
      %v711 = vadd.f32 %v298, %v710
      %v712 = vpop.f32.mrf.mxu0
      %v713 = vpop.f32.mrf.mxu0
      %v714 = vadd.f32 %v298, %v713
      %v715 = vpop.f32.mrf.mxu0
      %716 = vdwg.mxu0
      %vm717 = vcmp.ge.f32.partialorder %v591, 0.0
      %vm718 = vcmp.ge.f32.partialorder %v594, 0.0
      %vm719 = vcmp.ge.f32.partialorder %v599, 0.0
      %vm720 = vcmp.ge.f32.partialorder %v602, 0.0
      %vm721 = vcmp.ge.f32.partialorder %v607, 0.0
      %vm722 = vcmp.ge.f32.partialorder %v610, 0.0
      %vm723 = vcmp.ge.f32.partialorder %v615, 0.0
      %vm724 = vcmp.ge.f32.partialorder %v618, 0.0
      %vm725 = vcmp.ge.f32.partialorder %v623, 0.0
      %vm726 = vcmp.ge.f32.partialorder %v626, 0.0
      %vm727 = vcmp.ge.f32.partialorder %v631, 0.0
      %vm728 = vcmp.ge.f32.partialorder %v634, 0.0
      %vm729 = vcmp.ge.f32.partialorder %v639, 0.0
      %vm730 = vcmp.ge.f32.partialorder %v642, 0.0
      %vm731 = vcmp.ge.f32.partialorder %v647, 0.0
      %vm732 = vcmp.ge.f32.partialorder %v650, 0.0
      %vm733 = vcmp.ge.f32.partialorder %v655, 0.0
      %vm734 = vcmp.ge.f32.partialorder %v658, 0.0
      %vm735 = vcmp.ge.f32.partialorder %v663, 0.0
      %vm736 = vcmp.ge.f32.partialorder %v666, 0.0
      %vm737 = vcmp.ge.f32.partialorder %v671, 0.0
      %vm738 = vcmp.ge.f32.partialorder %v674, 0.0
      %vm739 = vcmp.ge.f32.partialorder %v679, 0.0
      %vm740 = vcmp.ge.f32.partialorder %v682, 0.0
      %vm741 = vcmp.ge.f32.partialorder %v687, 0.0
      %vm742 = vcmp.ge.f32.partialorder %v690, 0.0
      %vm743 = vcmp.ge.f32.partialorder %v695, 0.0
      %vm744 = vcmp.ge.f32.partialorder %v698, 0.0
      %vm745 = vcmp.ge.f32.partialorder %v703, 0.0
      %vm746 = vcmp.ge.f32.partialorder %v706, 0.0
      %vm747 = vcmp.ge.f32.partialorder %v711, 0.0
      %vm748 = vcmp.ge.f32.partialorder %v714, 0.0
      %v749 = vmul.f32 %v591, 0.1
      %v750 = vmul.f32 %v594, 0.1
      %v751 = vmul.f32 %v599, 0.1
      %v752 = vmul.f32 %v602, 0.1
      %v753 = vmul.f32 %v607, 0.1
      %v754 = vmul.f32 %v610, 0.1
      %v755 = vmul.f32 %v615, 0.1
      %v756 = vmul.f32 %v618, 0.1
      %v757 = vmul.f32 %v623, 0.1
      %v758 = vmul.f32 %v626, 0.1
      %v759 = vmul.f32 %v631, 0.1
      %v760 = vmul.f32 %v634, 0.1
      %v761 = vmul.f32 %v639, 0.1
      %v762 = vmul.f32 %v642, 0.1
      %v763 = vmul.f32 %v647, 0.1
      %v764 = vmul.f32 %v650, 0.1
      %v765 = vmul.f32 %v655, 0.1
      %v766 = vmul.f32 %v658, 0.1
      %v767 = vmul.f32 %v663, 0.1
      %v768 = vmul.f32 %v666, 0.1
      %v769 = vmul.f32 %v671, 0.1
      %v770 = vmul.f32 %v674, 0.1
      %v771 = vmul.f32 %v679, 0.1
      %v772 = vmul.f32 %v682, 0.1
      %v773 = vmul.f32 %v687, 0.1
      %v774 = vmul.f32 %v690, 0.1
      %v775 = vmul.f32 %v695, 0.1
      %v776 = vmul.f32 %v698, 0.1
      %v777 = vmul.f32 %v703, 0.1
      %v778 = vmul.f32 %v706, 0.1
      %v779 = vmul.f32 %v711, 0.1
      %v780 = vmul.f32 %v714, 0.1
      %v781 = vsel %vm717, %v591, %v749
      %v782 = vsel %vm718, %v594, %v750
      %v783 = vsel %vm719, %v599, %v751
      %v784 = vsel %vm720, %v602, %v752
      %v785 = vsel %vm721, %v607, %v753
      %v786 = vsel %vm722, %v610, %v754
      %v787 = vsel %vm723, %v615, %v755
      %v788 = vsel %vm724, %v618, %v756
      %v789 = vsel %vm725, %v623, %v757
      %v790 = vsel %vm726, %v626, %v758
      %v791 = vsel %vm727, %v631, %v759
      %v792 = vsel %vm728, %v634, %v760
      %v793 = vsel %vm729, %v639, %v761
      %v794 = vsel %vm730, %v642, %v762
      %v795 = vsel %vm731, %v647, %v763
      %v796 = vsel %vm732, %v650, %v764
      %v797 = vsel %vm733, %v655, %v765
      %v798 = vsel %vm734, %v658, %v766
      %v799 = vsel %vm735, %v663, %v767
      %v800 = vsel %vm736, %v666, %v768
      %v801 = vsel %vm737, %v671, %v769
      %v802 = vsel %vm738, %v674, %v770
      %v803 = vsel %vm739, %v679, %v771
      %v804 = vsel %vm740, %v682, %v772
      %v805 = vsel %vm741, %v687, %v773
      %v806 = vsel %vm742, %v690, %v774
      %v807 = vsel %vm743, %v695, %v775
      %v808 = vsel %vm744, %v698, %v776
      %v809 = vsel %vm745, %v703, %v777
      %v810 = vsel %vm746, %v706, %v778
      %v811 = vsel %vm747, %v711, %v779
      %v812 = vsel %vm748, %v714, %v780
      %v813 = vpack.c.bf16 %v782, %v781
      %v814 = vpack.c.bf16 %v784, %v783
      %v815 = vpack.c.bf16 %v786, %v785
      %v816 = vpack.c.bf16 %v788, %v787
      %v817 = vpack.c.bf16 %v790, %v789
      %v818 = vpack.c.bf16 %v792, %v791
      %v819 = vpack.c.bf16 %v794, %v793
      %v820 = vpack.c.bf16 %v796, %v795
      %v821 = vpack.c.bf16 %v798, %v797
      %v822 = vpack.c.bf16 %v800, %v799
      %v823 = vpack.c.bf16 %v802, %v801
      %v824 = vpack.c.bf16 %v804, %v803
      %v825 = vpack.c.bf16 %v806, %v805
      %v826 = vpack.c.bf16 %v808, %v807
      %v827 = vpack.c.bf16 %v810, %v809
      %v828 = vpack.c.bf16 %v812, %v811
      %v845 = vunpack.c.l.b16 %v813
      %v846 = vunpack.c.h.b16 %v813
      %v847 = vunpack.c.l.b16 %v814
      %v848 = vunpack.c.h.b16 %v814
      %v849 = vunpack.c.l.b16 %v815
      %v850 = vunpack.c.h.b16 %v815
      %v851 = vunpack.c.l.b16 %v816
      %v852 = vunpack.c.h.b16 %v816
      %v853 = vunpack.c.l.b16 %v817
      %v854 = vunpack.c.h.b16 %v817
      %v855 = vunpack.c.l.b16 %v818
      %v856 = vunpack.c.h.b16 %v818
      %v857 = vunpack.c.l.b16 %v819
      %v858 = vunpack.c.h.b16 %v819
      %v859 = vunpack.c.l.b16 %v820
      %v860 = vunpack.c.h.b16 %v820
      %v861 = vunpack.c.l.b16 %v821
      %v862 = vunpack.c.h.b16 %v821
      %v863 = vunpack.c.l.b16 %v822
      %v864 = vunpack.c.h.b16 %v822
      %v865 = vunpack.c.l.b16 %v823
      %v866 = vunpack.c.h.b16 %v823
      %v867 = vunpack.c.l.b16 %v824
      %v868 = vunpack.c.h.b16 %v824
      %v869 = vunpack.c.l.b16 %v825
      %v870 = vunpack.c.h.b16 %v825
      %v871 = vunpack.c.l.b16 %v826
      %v872 = vunpack.c.h.b16 %v826
      %v873 = vunpack.c.l.b16 %v827
      %v874 = vunpack.c.h.b16 %v827
      %v875 = vunpack.c.l.b16 %v828
      %v876 = vunpack.c.h.b16 %v828
      %v877 = vpack.c.b16 %v845, %v845
      %v878 = vpack.c.b16 %v846, %v846
      %v879 = vpack.c.b16 %v847, %v847
      %v880 = vpack.c.b16 %v848, %v848
      %v881 = vpack.c.b16 %v849, %v849
      %v882 = vpack.c.b16 %v850, %v850
      %v883 = vpack.c.b16 %v851, %v851
      %v884 = vpack.c.b16 %v852, %v852
      %v885 = vpack.c.b16 %v853, %v853
      %v886 = vpack.c.b16 %v854, %v854
      %v887 = vpack.c.b16 %v855, %v855
      %v888 = vpack.c.b16 %v856, %v856
      %v889 = vpack.c.b16 %v857, %v857
      %v890 = vpack.c.b16 %v858, %v858
      %v891 = vpack.c.b16 %v859, %v859
      %v892 = vpack.c.b16 %v860, %v860
      %v893 = vpack.c.b16 %v861, %v861
      %v894 = vpack.c.b16 %v862, %v862
      %v895 = vpack.c.b16 %v863, %v863
      %v896 = vpack.c.b16 %v864, %v864
      %v897 = vpack.c.b16 %v865, %v865
      %v898 = vpack.c.b16 %v866, %v866
      %v899 = vpack.c.b16 %v867, %v867
      %v900 = vpack.c.b16 %v868, %v868
      %v901 = vpack.c.b16 %v869, %v869
      %v902 = vpack.c.b16 %v870, %v870
      %v903 = vpack.c.b16 %v871, %v871
      %v904 = vpack.c.b16 %v872, %v872
      %v905 = vpack.c.b16 %v873, %v873
      %v906 = vpack.c.b16 %v874, %v874
      %v907 = vpack.c.b16 %v875, %v875
      %v908 = vpack.c.b16 %v876, %v876
      %vm941 = vcmask 257024
      %942 = vst.msk [vmem:[%s226] sm:$0xf] %vm941, %v877
      %943 = vst.msk [vmem:[%s226 + $0x4] sm:$0xf] %vm941, %v878
      %944 = vst.msk [vmem:[%s226 + $0x8] sm:$0xf] %vm941, %v879
      %945 = vst.msk [vmem:[%s226 + $0xc] sm:$0xf] %vm941, %v880
      %946 = vst.msk [vmem:[%s226 + $0x10] sm:$0xf] %vm941, %v881
      %947 = vst.msk [vmem:[%s226 + $0x14] sm:$0xf] %vm941, %v882
      %948 = vst.msk [vmem:[%s226 + $0x18] sm:$0xf] %vm941, %v883
      %949 = vst.msk [vmem:[%s226 + $0x1c] sm:$0xf] %vm941, %v884
      %950 = vst.msk [vmem:[%s226 + $0x20] sm:$0xf] %vm941, %v885
      %951 = vst.msk [vmem:[%s226 + $0x24] sm:$0xf] %vm941, %v886
      %952 = vst.msk [vmem:[%s226 + $0x28] sm:$0xf] %vm941, %v887
      %953 = vst.msk [vmem:[%s226 + $0x2c] sm:$0xf] %vm941, %v888
      %954 = vst.msk [vmem:[%s226 + $0x30] sm:$0xf] %vm941, %v889
      %955 = vst.msk [vmem:[%s226 + $0x34] sm:$0xf] %vm941, %v890
      %956 = vst.msk [vmem:[%s226 + $0x38] sm:$0xf] %vm941, %v891
      %957 = vst.msk [vmem:[%s226 + $0x3c] sm:$0xf] %vm941, %v892
      %958 = vst.msk [vmem:[%s226 + $0x40] sm:$0xf] %vm941, %v893
      %959 = vst.msk [vmem:[%s226 + $0x44] sm:$0xf] %vm941, %v894
      %960 = vst.msk [vmem:[%s226 + $0x48] sm:$0xf] %vm941, %v895
      %961 = vst.msk [vmem:[%s226 + $0x4c] sm:$0xf] %vm941, %v896
      %962 = vst.msk [vmem:[%s226 + $0x50] sm:$0xf] %vm941, %v897
      %963 = vst.msk [vmem:[%s226 + $0x54] sm:$0xf] %vm941, %v898
      %964 = vst.msk [vmem:[%s226 + $0x58] sm:$0xf] %vm941, %v899
      %965 = vst.msk [vmem:[%s226 + $0x5c] sm:$0xf] %vm941, %v900
      %966 = vst.msk [vmem:[%s226 + $0x60] sm:$0xf] %vm941, %v901
      %967 = vst.msk [vmem:[%s226 + $0x64] sm:$0xf] %vm941, %v902
      %968 = vst.msk [vmem:[%s226 + $0x68] sm:$0xf] %vm941, %v903
      %969 = vst.msk [vmem:[%s226 + $0x6c] sm:$0xf] %vm941, %v904
      %970 = vst.msk [vmem:[%s226 + $0x70] sm:$0xf] %vm941, %v905
      %971 = vst.msk [vmem:[%s226 + $0x74] sm:$0xf] %vm941, %v906
      %972 = vst.msk [vmem:[%s226 + $0x78] sm:$0xf] %vm941, %v907
      %973 = vst.msk [vmem:[%s226 + $0x7c] sm:$0xf] %vm941, %v908
      %s974 = smul.u32 32, %s18
      %p975 = scmp.lt.s32.totalorder %s974, 63
      %s976 = scalar_select %p975, %s974, 63
      %p977 = scmp.lt.s32.totalorder %s19, 0
      %s978 = scalar_select %p977, %s19, 0
      %s979 = sadd.s32 %s978, %s976
      %s980 = smul.addr %s979, 4
      %s981 = scalar_lea.vmem %s3, %s980
      // Predicated region
      $region33: #{discriminator_forward.7} parent=31 // pred_check
        %p982 = pneg %p124
      $region34: #{discriminator_forward.7} parent=31 // pred_check_branch
        %984 = sbr.rel (%p982) target = $region36
      $region35: #{discriminator_forward.7} parent=31 // pred_region
        %s985 = smul.u32 32, %s18
      $region36: #{discriminator_forward.7} parent=31 // pred_fallthru
        _
    $region32: #{discriminator_forward.7} parent=5 // pred_fallthru
      _
    %p986 = scmp.le.s32.totalorder 2, %s9
    // Predicated region
    $region37: #{discriminator_forward.7} parent=5 // pred_check
      %p987 = pneg %p986
    $region38: #{discriminator_forward.7} parent=5 // pred_check_branch
      %989 = sbr.rel (%p987) target = $region40
    $region39: #{discriminator_forward.7} parent=5 // pred_region
      %s990 = ssub.s32 %s9, 2
      // Predicated region
      $region41: #{discriminator_forward.7} parent=39 // pred_check
        %p991 = pneg %p130
      $region42: #{discriminator_forward.7} parent=39 // pred_check_branch
        %993 = sbr.rel (%p991) target = $region44
      $region43: #{discriminator_forward.7} parent=39 // pred_region
        %s994 = smul.u32 32, %s20
        %p995 = scmp.lt.s32.totalorder %s994, 63
        %s996 = scalar_select %p995, %s994, 63
        %p997 = scmp.lt.s32.totalorder %s21, 0
        %s998 = scalar_select %p997, %s21, 0
        %s999 = sadd.s32 %s998, %s996
        %s1000 = smul.addr %s999, 4
        %s1001 = scalar_lea.vmem %s3, %s1000
      $region44: #{discriminator_forward.7} parent=39 // pred_fallthru
        _
    $region40: #{discriminator_forward.7} parent=5 // pred_fallthru
      _
  $region6: #{discriminator_forward.7} parent=0 // loop_footer
    %s13 = sadd.s32 1, %s9
  $region7: #{discriminator_forward.7} parent=0 // loop_footer_branch
    %8 = sbr.rel target = $region3
  $region8: #{discriminator_forward.7} parent=0 // loop_exit
    _

// kernel: discriminator_forward.8
$region0: #{discriminator_forward.8}
  #allocation0 [shape = 'u32[]', space=smem, size = 0x4, offset = 0x4, fixed_abs, tag = 'smem constant byte address 0x4 - core index']
  #allocation1 [shape = 'u32[144,128]{1,0:T(1,128)}', space=vmem, size = 0x12000, scoped, tag = 'internal scratch']
  %s0 = inlined_call_operand.vmem [shape: bf16[128,512], index: 0, kind: input, shape index: {}]
  %s1 = inlined_call_operand.vmem [shape: bf16[512,64], index: 1, kind: input, shape index: {}]
  %s2 = inlined_call_operand.vmem [shape: f32[1,64], index: 2, kind: input, shape index: {}]
  %s3 = inlined_call_operand.vmem [shape: bf16[128,64], index: 3, kind: output, shape index: {}]
  %s4 = sld [smem:[#allocation0]]
  $region22: #{discriminator_forward.8} parent=0
    _
  %s6 = ssub.s32 1, %s4
  %s7 = scalar_select 0, %s6, %s4
  // Predicated region
  $region2: #{discriminator_forward.8} parent=0 // pred_check
    _
  $region3: #{discriminator_forward.8} parent=0 // pred_check_branch
    %9 = sbr.rel (0) target = $region5
  $region4: #{discriminator_forward.8} parent=0 // pred_region
    _
  $region5: #{discriminator_forward.8} parent=0 // pred_fallthru
    _
  // Predicated region
  $region6: #{discriminator_forward.8} parent=0 // pred_check
    _
  $region7: #{discriminator_forward.8} parent=0 // pred_check_branch
    %11 = sbr.rel (0) target = $region9
  $region8: #{discriminator_forward.8} parent=0 // pred_region
    _
  $region9: #{discriminator_forward.8} parent=0 // pred_fallthru
    _
  // Predicated region
  $region10: #{discriminator_forward.8} parent=0 // pred_check
    _
  $region11: #{discriminator_forward.8} parent=0 // pred_check_branch
    %13 = sbr.rel (0) target = $region13
  $region12: #{discriminator_forward.8} parent=0 // pred_region
    _
  $region13: #{discriminator_forward.8} parent=0 // pred_fallthru
    _
  %v15 = vld [vmem:[%s0] sm:$0xff]
  %v16 = vld [vmem:[%s0 + $0x8] sm:$0xff]
  %v17 = vld [vmem:[%s0 + $0x10] sm:$0xff]
  %v18 = vld [vmem:[%s0 + $0x18] sm:$0xff]
  %v19 = vld [vmem:[%s0 + $0x20] sm:$0xff]
  %v20 = vld [vmem:[%s0 + $0x28] sm:$0xff]
  %v21 = vld [vmem:[%s0 + $0x30] sm:$0xff]
  %v22 = vld [vmem:[%s0 + $0x38] sm:$0xff]
  %v23 = vld [vmem:[%s0 + $0x40] sm:$0xff]
  %v24 = vld [vmem:[%s0 + $0x48] sm:$0xff]
  %v25 = vld [vmem:[%s0 + $0x50] sm:$0xff]
  %v26 = vld [vmem:[%s0 + $0x58] sm:$0xff]
  %v27 = vld [vmem:[%s0 + $0x60] sm:$0xff]
  %v28 = vld [vmem:[%s0 + $0x68] sm:$0xff]
  %v29 = vld [vmem:[%s0 + $0x70] sm:$0xff]
  %v30 = vld [vmem:[%s0 + $0x78] sm:$0xff]
  %v31 = vld [vmem:[%s0 + $0x80] sm:$0xff]
  %v32 = vld [vmem:[%s0 + $0x88] sm:$0xff]
  %v33 = vld [vmem:[%s0 + $0x90] sm:$0xff]
  %v34 = vld [vmem:[%s0 + $0x98] sm:$0xff]
  %v35 = vld [vmem:[%s0 + $0xa0] sm:$0xff]
  %v36 = vld [vmem:[%s0 + $0xa8] sm:$0xff]
  %v37 = vld [vmem:[%s0 + $0xb0] sm:$0xff]
  %v38 = vld [vmem:[%s0 + $0xb8] sm:$0xff]
  %v39 = vld [vmem:[%s0 + $0xc0] sm:$0xff]
  %v40 = vld [vmem:[%s0 + $0xc8] sm:$0xff]
  %v41 = vld [vmem:[%s0 + $0xd0] sm:$0xff]
  %v42 = vld [vmem:[%s0 + $0xd8] sm:$0xff]
  %v43 = vld [vmem:[%s0 + $0xe0] sm:$0xff]
  %v44 = vld [vmem:[%s0 + $0xe8] sm:$0xff]
  %v45 = vld [vmem:[%s0 + $0xf0] sm:$0xff]
  %v46 = vld [vmem:[%s0 + $0xf8] sm:$0xff]
  %v47 = vld [vmem:[%s1] sm:$0xf]
  %v48 = vld [vmem:[%s1 + $0x4] sm:$0xf]
  %v49 = vld [vmem:[%s1 + $0x8] sm:$0xf]
  %v50 = vld [vmem:[%s1 + $0xc] sm:$0xf]
  %v51 = vld [vmem:[%s1 + $0x10] sm:$0xf]
  %v52 = vld [vmem:[%s1 + $0x14] sm:$0xf]
  %v53 = vld [vmem:[%s1 + $0x18] sm:$0xf]
  %v54 = vld [vmem:[%s1 + $0x1c] sm:$0xf]
  %v55 = vld [vmem:[%s1 + $0x20] sm:$0xf]
  %v56 = vld [vmem:[%s1 + $0x24] sm:$0xf]
  %v57 = vld [vmem:[%s1 + $0x28] sm:$0xf]
  %v58 = vld [vmem:[%s1 + $0x2c] sm:$0xf]
  %v59 = vld [vmem:[%s1 + $0x30] sm:$0xf]
  %v60 = vld [vmem:[%s1 + $0x34] sm:$0xf]
  %v61 = vld [vmem:[%s1 + $0x38] sm:$0xf]
  %v62 = vld [vmem:[%s1 + $0x3c] sm:$0xf]
  %v63 = vld [vmem:[%s1 + $0x40] sm:$0xf]
  %v64 = vld [vmem:[%s1 + $0x44] sm:$0xf]
  %v65 = vld [vmem:[%s1 + $0x48] sm:$0xf]
  %v66 = vld [vmem:[%s1 + $0x4c] sm:$0xf]
  %v67 = vld [vmem:[%s1 + $0x50] sm:$0xf]
  %v68 = vld [vmem:[%s1 + $0x54] sm:$0xf]
  %v69 = vld [vmem:[%s1 + $0x58] sm:$0xf]
  %v70 = vld [vmem:[%s1 + $0x5c] sm:$0xf]
  %v71 = vld [vmem:[%s1 + $0x60] sm:$0xf]
  %v72 = vld [vmem:[%s1 + $0x64] sm:$0xf]
  %v73 = vld [vmem:[%s1 + $0x68] sm:$0xf]
  %v74 = vld [vmem:[%s1 + $0x6c] sm:$0xf]
  %v75 = vld [vmem:[%s1 + $0x70] sm:$0xf]
  %v76 = vld [vmem:[%s1 + $0x74] sm:$0xf]
  %v77 = vld [vmem:[%s1 + $0x78] sm:$0xf]
  %v78 = vld [vmem:[%s1 + $0x7c] sm:$0xf]
  %v79 = vld [vmem:[%s1 + $0x80] sm:$0xf]
  %v80 = vld [vmem:[%s1 + $0x84] sm:$0xf]
  %v81 = vld [vmem:[%s1 + $0x88] sm:$0xf]
  %v82 = vld [vmem:[%s1 + $0x8c] sm:$0xf]
  %v83 = vld [vmem:[%s1 + $0x90] sm:$0xf]
  %v84 = vld [vmem:[%s1 + $0x94] sm:$0xf]
  %v85 = vld [vmem:[%s1 + $0x98] sm:$0xf]
  %v86 = vld [vmem:[%s1 + $0x9c] sm:$0xf]
  %v87 = vld [vmem:[%s1 + $0xa0] sm:$0xf]
  %v88 = vld [vmem:[%s1 + $0xa4] sm:$0xf]
  %v89 = vld [vmem:[%s1 + $0xa8] sm:$0xf]
  %v90 = vld [vmem:[%s1 + $0xac] sm:$0xf]
  %v91 = vld [vmem:[%s1 + $0xb0] sm:$0xf]
  %v92 = vld [vmem:[%s1 + $0xb4] sm:$0xf]
  %v93 = vld [vmem:[%s1 + $0xb8] sm:$0xf]
  %v94 = vld [vmem:[%s1 + $0xbc] sm:$0xf]
  %v95 = vld [vmem:[%s1 + $0xc0] sm:$0xf]
  %v96 = vld [vmem:[%s1 + $0xc4] sm:$0xf]
  %v97 = vld [vmem:[%s1 + $0xc8] sm:$0xf]
  %v98 = vld [vmem:[%s1 + $0xcc] sm:$0xf]
  %v99 = vld [vmem:[%s1 + $0xd0] sm:$0xf]
  %v100 = vld [vmem:[%s1 + $0xd4] sm:$0xf]
  %v101 = vld [vmem:[%s1 + $0xd8] sm:$0xf]
  %v102 = vld [vmem:[%s1 + $0xdc] sm:$0xf]
  %v103 = vld [vmem:[%s1 + $0xe0] sm:$0xf]
  %v104 = vld [vmem:[%s1 + $0xe4] sm:$0xf]
  %v105 = vld [vmem:[%s1 + $0xe8] sm:$0xf]
  %v106 = vld [vmem:[%s1 + $0xec] sm:$0xf]
  %v107 = vld [vmem:[%s1 + $0xf0] sm:$0xf]
  %v108 = vld [vmem:[%s1 + $0xf4] sm:$0xf]
  %v109 = vld [vmem:[%s1 + $0xf8] sm:$0xf]
  %v110 = vld [vmem:[%s1 + $0xfc] sm:$0xf]
  %v111 = vld [vmem:[%s2] sm:$0x1]
  %v113 = vlaneseq
  %v114 = vshrl.u32 %v113, 7
  %v115 = vsub.s32 0, %v114
  %v116 = vrot.slane %v111, %v115
  %v150 = vunpack.c.l.b16 %v15
  %v151 = vunpack.c.h.b16 %v15
  %v152 = vunpack.c.l.b16 %v16
  %v153 = vunpack.c.h.b16 %v16
  %v154 = vunpack.c.l.b16 %v17
  %v155 = vunpack.c.h.b16 %v17
  %v156 = vunpack.c.l.b16 %v18
  %v157 = vunpack.c.h.b16 %v18
  %v158 = vunpack.c.l.b16 %v19
  %v159 = vunpack.c.h.b16 %v19
  %v160 = vunpack.c.l.b16 %v20
  %v161 = vunpack.c.h.b16 %v20
  %v162 = vunpack.c.l.b16 %v21
  %v163 = vunpack.c.h.b16 %v21
  %v164 = vunpack.c.l.b16 %v22
  %v165 = vunpack.c.h.b16 %v22
  %v166 = vunpack.c.l.b16 %v23
  %v167 = vunpack.c.h.b16 %v23
  %v168 = vunpack.c.l.b16 %v24
  %v169 = vunpack.c.h.b16 %v24
  %v170 = vunpack.c.l.b16 %v25
  %v171 = vunpack.c.h.b16 %v25
  %v172 = vunpack.c.l.b16 %v26
  %v173 = vunpack.c.h.b16 %v26
  %v174 = vunpack.c.l.b16 %v27
  %v175 = vunpack.c.h.b16 %v27
  %v176 = vunpack.c.l.b16 %v28
  %v177 = vunpack.c.h.b16 %v28
  %v178 = vunpack.c.l.b16 %v29
  %v179 = vunpack.c.h.b16 %v29
  %v180 = vunpack.c.l.b16 %v30
  %v181 = vunpack.c.h.b16 %v30
  %v182 = vunpack.c.l.b16 %v31
  %v183 = vunpack.c.h.b16 %v31
  %v184 = vunpack.c.l.b16 %v32
  %v185 = vunpack.c.h.b16 %v32
  %v186 = vunpack.c.l.b16 %v33
  %v187 = vunpack.c.h.b16 %v33
  %v188 = vunpack.c.l.b16 %v34
  %v189 = vunpack.c.h.b16 %v34
  %v190 = vunpack.c.l.b16 %v35
  %v191 = vunpack.c.h.b16 %v35
  %v192 = vunpack.c.l.b16 %v36
  %v193 = vunpack.c.h.b16 %v36
  %v194 = vunpack.c.l.b16 %v37
  %v195 = vunpack.c.h.b16 %v37
  %v196 = vunpack.c.l.b16 %v38
  %v197 = vunpack.c.h.b16 %v38
  %v198 = vunpack.c.l.b16 %v39
  %v199 = vunpack.c.h.b16 %v39
  %v200 = vunpack.c.l.b16 %v40
  %v201 = vunpack.c.h.b16 %v40
  %v202 = vunpack.c.l.b16 %v41
  %v203 = vunpack.c.h.b16 %v41
  %v204 = vunpack.c.l.b16 %v42
  %v205 = vunpack.c.h.b16 %v42
  %v206 = vunpack.c.l.b16 %v43
  %v207 = vunpack.c.h.b16 %v43
  %v208 = vunpack.c.l.b16 %v44
  %v209 = vunpack.c.h.b16 %v44
  %v210 = vunpack.c.l.b16 %v45
  %v211 = vunpack.c.h.b16 %v45
  %v212 = vunpack.c.l.b16 %v46
  %v213 = vunpack.c.h.b16 %v46
  %v214 = vpack.c.b16 %v154, %v150
  %v215 = vpack.c.b16 %v155, %v151
  %v216 = vpack.c.b16 %v156, %v152
  %v217 = vpack.c.b16 %v157, %v153
  %v218 = vpack.c.b16 %v162, %v158
  %v219 = vpack.c.b16 %v163, %v159
  %v220 = vpack.c.b16 %v164, %v160
  %v221 = vpack.c.b16 %v165, %v161
  %v222 = vpack.c.b16 %v170, %v166
  %v223 = vpack.c.b16 %v171, %v167
  %v224 = vpack.c.b16 %v172, %v168
  %v225 = vpack.c.b16 %v173, %v169
  %v226 = vpack.c.b16 %v178, %v174
  %v227 = vpack.c.b16 %v179, %v175
  %v228 = vpack.c.b16 %v180, %v176
  %v229 = vpack.c.b16 %v181, %v177
  %v230 = vpack.c.b16 %v186, %v182
  %v231 = vpack.c.b16 %v187, %v183
  %v232 = vpack.c.b16 %v188, %v184
  %v233 = vpack.c.b16 %v189, %v185
  %v234 = vpack.c.b16 %v194, %v190
  %v235 = vpack.c.b16 %v195, %v191
  %v236 = vpack.c.b16 %v196, %v192
  %v237 = vpack.c.b16 %v197, %v193
  %v238 = vpack.c.b16 %v202, %v198
  %v239 = vpack.c.b16 %v203, %v199
  %v240 = vpack.c.b16 %v204, %v200
  %v241 = vpack.c.b16 %v205, %v201
  %v242 = vpack.c.b16 %v210, %v206
  %v243 = vpack.c.b16 %v211, %v207
  %v244 = vpack.c.b16 %v212, %v208
  %v245 = vpack.c.b16 %v213, %v209
  %v342 = vunpack.c.l.b16 %v47
  %v343 = vunpack.c.l.b16 %v48
  %v344 = vunpack.c.l.b16 %v49
  %v345 = vunpack.c.l.b16 %v50
  %v346 = vunpack.c.l.b16 %v51
  %v347 = vunpack.c.l.b16 %v52
  %v348 = vunpack.c.l.b16 %v53
  %v349 = vunpack.c.l.b16 %v54
  %v350 = vunpack.c.l.b16 %v55
  %v351 = vunpack.c.l.b16 %v56
  %v352 = vunpack.c.l.b16 %v57
  %v353 = vunpack.c.l.b16 %v58
  %v354 = vunpack.c.l.b16 %v59
  %v355 = vunpack.c.l.b16 %v60
  %v356 = vunpack.c.l.b16 %v61
  %v357 = vunpack.c.l.b16 %v62
  %v358 = vunpack.c.l.b16 %v63
  %v359 = vunpack.c.l.b16 %v64
  %v360 = vunpack.c.l.b16 %v65
  %v361 = vunpack.c.l.b16 %v66
  %v362 = vunpack.c.l.b16 %v67
  %v363 = vunpack.c.l.b16 %v68
  %v364 = vunpack.c.l.b16 %v69
  %v365 = vunpack.c.l.b16 %v70
  %v366 = vunpack.c.l.b16 %v71
  %v367 = vunpack.c.l.b16 %v72
  %v368 = vunpack.c.l.b16 %v73
  %v369 = vunpack.c.l.b16 %v74
  %v370 = vunpack.c.l.b16 %v75
  %v371 = vunpack.c.l.b16 %v76
  %v372 = vunpack.c.l.b16 %v77
  %v373 = vunpack.c.l.b16 %v78
  %v374 = vunpack.c.l.b16 %v79
  %v375 = vunpack.c.l.b16 %v80
  %v376 = vunpack.c.l.b16 %v81
  %v377 = vunpack.c.l.b16 %v82
  %v378 = vunpack.c.l.b16 %v83
  %v379 = vunpack.c.l.b16 %v84
  %v380 = vunpack.c.l.b16 %v85
  %v381 = vunpack.c.l.b16 %v86
  %v382 = vunpack.c.l.b16 %v87
  %v383 = vunpack.c.l.b16 %v88
  %v384 = vunpack.c.l.b16 %v89
  %v385 = vunpack.c.l.b16 %v90
  %v386 = vunpack.c.l.b16 %v91
  %v387 = vunpack.c.l.b16 %v92
  %v388 = vunpack.c.l.b16 %v93
  %v389 = vunpack.c.l.b16 %v94
  %v390 = vunpack.c.l.b16 %v95
  %v391 = vunpack.c.l.b16 %v96
  %v392 = vunpack.c.l.b16 %v97
  %v393 = vunpack.c.l.b16 %v98
  %v394 = vunpack.c.l.b16 %v99
  %v395 = vunpack.c.l.b16 %v100
  %v396 = vunpack.c.l.b16 %v101
  %v397 = vunpack.c.l.b16 %v102
  %v398 = vunpack.c.l.b16 %v103
  %v399 = vunpack.c.l.b16 %v104
  %v400 = vunpack.c.l.b16 %v105
  %v401 = vunpack.c.l.b16 %v106
  %v402 = vunpack.c.l.b16 %v107
  %v403 = vunpack.c.l.b16 %v108
  %v404 = vunpack.c.l.b16 %v109
  %v405 = vunpack.c.l.b16 %v110
  %v406 = vpack.c.b16 %v343, %v342
  %v407 = vpack.c.b16 %v345, %v344
  %v408 = vpack.c.b16 %v347, %v346
  %v409 = vpack.c.b16 %v349, %v348
  %v410 = vpack.c.b16 %v351, %v350
  %v411 = vpack.c.b16 %v353, %v352
  %v412 = vpack.c.b16 %v355, %v354
  %v413 = vpack.c.b16 %v357, %v356
  %v414 = vpack.c.b16 %v359, %v358
  %v415 = vpack.c.b16 %v361, %v360
  %v416 = vpack.c.b16 %v363, %v362
  %v417 = vpack.c.b16 %v365, %v364
  %v418 = vpack.c.b16 %v367, %v366
  %v419 = vpack.c.b16 %v369, %v368
  %v420 = vpack.c.b16 %v371, %v370
  %v421 = vpack.c.b16 %v373, %v372
  %v422 = vpack.c.b16 %v375, %v374
  %v423 = vpack.c.b16 %v377, %v376
  %v424 = vpack.c.b16 %v379, %v378
  %v425 = vpack.c.b16 %v381, %v380
  %v426 = vpack.c.b16 %v383, %v382
  %v427 = vpack.c.b16 %v385, %v384
  %v428 = vpack.c.b16 %v387, %v386
  %v429 = vpack.c.b16 %v389, %v388
  %v430 = vpack.c.b16 %v391, %v390
  %v431 = vpack.c.b16 %v393, %v392
  %v432 = vpack.c.b16 %v395, %v394
  %v433 = vpack.c.b16 %v397, %v396
  %v434 = vpack.c.b16 %v399, %v398
  %v435 = vpack.c.b16 %v401, %v400
  %v436 = vpack.c.b16 %v403, %v402
  %v437 = vpack.c.b16 %v405, %v404
  %470 = vmatprep.subr.bf16.mxu0 0
  %471 = vmatpush1.bf16.msra.mxu0 %v413
  %472 = vmatprep.subr.bf16.mxu0 0
  %473 = vmatpush1.bf16.msra.mxu0 %v412
  %474 = vmatprep.subr.bf16.mxu0 0
  %475 = vmatpush1.bf16.msra.mxu0 %v411
  %476 = vmatprep.subr.bf16.mxu0 0
  %477 = vmatpush1.bf16.msra.mxu0 %v410
  %478 = vmatprep.subr.bf16.mxu0 0
  %479 = vmatpush1.bf16.msra.mxu0 %v409
  %480 = vmatprep.subr.bf16.mxu0 0
  %481 = vmatpush1.bf16.msra.mxu0 %v408
  %482 = vmatprep.subr.bf16.mxu0 0
  %483 = vmatpush1.bf16.msra.mxu0 %v407
  %484 = vmatprep.subr.bf16.mxu0 0
  %485 = vmatpush1.bf16.msra.mxu0 %v406
  %486 = vmatprep.subr.bf16.mxu0 0
  %487 = vmatpush2.bf16.msra.mxu0 %v421
  %488 = vmatprep.subr.bf16.mxu0 0
  %489 = vmatpush2.bf16.msra.mxu0 %v420
  %490 = vmatprep.subr.bf16.mxu0 0
  %491 = vmatpush2.bf16.msra.mxu0 %v419
  %492 = vmatprep.subr.bf16.mxu0 0
  %493 = vmatpush2.bf16.msra.mxu0 %v418
  %494 = vmatprep.subr.bf16.mxu0 0
  %495 = vmatpush2.bf16.msra.mxu0 %v417
  %496 = vmatprep.subr.bf16.mxu0 0
  %497 = vmatpush2.bf16.msra.mxu0 %v416
  %498 = vmatprep.subr.bf16.mxu0 0
  %499 = vmatpush2.bf16.msra.mxu0 %v415
  %500 = vmatprep.subr.bf16.mxu0 0
  %501 = vmatpush2.bf16.msra.mxu0 %v414
  %502 = vmatprep.mubr.bf16.mxu0 %v215
  %503 = vmatmul.mubr.bf16.gmra.mxu0 %v214
  %v504 = vpop.f32.mrf.mxu0
  %v505 = vadd.f32 %v116, %v504
  %v506 = vpop.f32.mrf.mxu0
  %v507 = vpop.f32.mrf.mxu0
  %v508 = vadd.f32 %v116, %v507
  %v509 = vpop.f32.mrf.mxu0
  %510 = vmatprep.mubr.bf16.mxu0 %v219
  %511 = vmatmul.mubr.bf16.gmra.mxu0 %v218
  %v512 = vpop.f32.mrf.mxu0
  %v513 = vadd.f32 %v116, %v512
  %v514 = vpop.f32.mrf.mxu0
  %v515 = vpop.f32.mrf.mxu0
  %v516 = vadd.f32 %v116, %v515
  %v517 = vpop.f32.mrf.mxu0
  %518 = vmatprep.mubr.bf16.mxu0 %v223
  %519 = vmatmul.mubr.bf16.gmra.mxu0 %v222
  %v520 = vpop.f32.mrf.mxu0
  %v521 = vadd.f32 %v116, %v520
  %v522 = vpop.f32.mrf.mxu0
  %v523 = vpop.f32.mrf.mxu0
  %v524 = vadd.f32 %v116, %v523
  %v525 = vpop.f32.mrf.mxu0
  %526 = vmatprep.mubr.bf16.mxu0 %v227
  %527 = vmatmul.mubr.bf16.gmra.mxu0 %v226
  %v528 = vpop.f32.mrf.mxu0
  %v529 = vadd.f32 %v116, %v528
  %v530 = vpop.f32.mrf.mxu0
  %v531 = vpop.f32.mrf.mxu0
  %v532 = vadd.f32 %v116, %v531
  %v533 = vpop.f32.mrf.mxu0
  %534 = vmatprep.mubr.bf16.mxu0 %v231
  %535 = vmatmul.mubr.bf16.gmra.mxu0 %v230
  %v536 = vpop.f32.mrf.mxu0
  %v537 = vadd.f32 %v116, %v536
  %v538 = vpop.f32.mrf.mxu0
  %v539 = vpop.f32.mrf.mxu0
  %v540 = vadd.f32 %v116, %v539
  %v541 = vpop.f32.mrf.mxu0
  %542 = vmatprep.mubr.bf16.mxu0 %v235
  %543 = vmatmul.mubr.bf16.gmra.mxu0 %v234
  %v544 = vpop.f32.mrf.mxu0
  %v545 = vadd.f32 %v116, %v544
  %v546 = vpop.f32.mrf.mxu0
  %v547 = vpop.f32.mrf.mxu0
  %v548 = vadd.f32 %v116, %v547
  %v549 = vpop.f32.mrf.mxu0
  %550 = vmatprep.mubr.bf16.mxu0 %v239
  %551 = vmatmul.mubr.bf16.gmra.mxu0 %v238
  %v552 = vpop.f32.mrf.mxu0
  %v553 = vadd.f32 %v116, %v552
  %v554 = vpop.f32.mrf.mxu0
  %v555 = vpop.f32.mrf.mxu0
  %v556 = vadd.f32 %v116, %v555
  %v557 = vpop.f32.mrf.mxu0
  %558 = vmatprep.mubr.bf16.mxu0 %v243
  %559 = vmatmul.mubr.bf16.gmra.mxu0 %v242
  %v560 = vpop.f32.mrf.mxu0
  %v561 = vadd.f32 %v116, %v560
  %v562 = vpop.f32.mrf.mxu0
  %v563 = vpop.f32.mrf.mxu0
  %v564 = vadd.f32 %v116, %v563
  %v565 = vpop.f32.mrf.mxu0
  %566 = vdwg.mxu0
  %567 = vmatprep.subr.bf16.mxu0 0
  %568 = vmatpush1.bf16.msra.mxu0 %v429
  %569 = vmatprep.subr.bf16.mxu0 0
  %570 = vmatpush1.bf16.msra.mxu0 %v428
  %571 = vmatprep.subr.bf16.mxu0 0
  %572 = vmatpush1.bf16.msra.mxu0 %v427
  %573 = vmatprep.subr.bf16.mxu0 0
  %574 = vmatpush1.bf16.msra.mxu0 %v426
  %575 = vmatprep.subr.bf16.mxu0 0
  %576 = vmatpush1.bf16.msra.mxu0 %v425
  %577 = vmatprep.subr.bf16.mxu0 0
  %578 = vmatpush1.bf16.msra.mxu0 %v424
  %579 = vmatprep.subr.bf16.mxu0 0
  %580 = vmatpush1.bf16.msra.mxu0 %v423
  %581 = vmatprep.subr.bf16.mxu0 0
  %582 = vmatpush1.bf16.msra.mxu0 %v422
  %583 = vmatprep.subr.bf16.mxu0 0
  %584 = vmatpush2.bf16.msra.mxu0 %v437
  %585 = vmatprep.subr.bf16.mxu0 0
  %586 = vmatpush2.bf16.msra.mxu0 %v436
  %587 = vmatprep.subr.bf16.mxu0 0
  %588 = vmatpush2.bf16.msra.mxu0 %v435
  %589 = vmatprep.subr.bf16.mxu0 0
  %590 = vmatpush2.bf16.msra.mxu0 %v434
  %591 = vmatprep.subr.bf16.mxu0 0
  %592 = vmatpush2.bf16.msra.mxu0 %v433
  %593 = vmatprep.subr.bf16.mxu0 0
  %594 = vmatpush2.bf16.msra.mxu0 %v432
  %595 = vmatprep.subr.bf16.mxu0 0
  %596 = vmatpush2.bf16.msra.mxu0 %v431
  %597 = vmatprep.subr.bf16.mxu0 0
  %598 = vmatpush2.bf16.msra.mxu0 %v430
  %599 = vmatprep.mubr.bf16.mxu0 %v217
  %600 = vmatmul.mubr.bf16.gmra.mxu0 %v216
  %v601 = vpop.f32.mrf.mxu0
  %v602 = vadd.f32 %v505, %v601
  %v603 = vpop.f32.mrf.mxu0
  %v604 = vpop.f32.mrf.mxu0
  %v605 = vadd.f32 %v508, %v604
  %v606 = vpop.f32.mrf.mxu0
  %607 = vmatprep.mubr.bf16.mxu0 %v221
  %608 = vmatmul.mubr.bf16.gmra.mxu0 %v220
  %v609 = vpop.f32.mrf.mxu0
  %v610 = vadd.f32 %v513, %v609
  %v611 = vpop.f32.mrf.mxu0
  %v612 = vpop.f32.mrf.mxu0
  %v613 = vadd.f32 %v516, %v612
  %v614 = vpop.f32.mrf.mxu0
  %615 = vmatprep.mubr.bf16.mxu0 %v225
  %616 = vmatmul.mubr.bf16.gmra.mxu0 %v224
  %v617 = vpop.f32.mrf.mxu0
  %v618 = vadd.f32 %v521, %v617
  %v619 = vpop.f32.mrf.mxu0
  %v620 = vpop.f32.mrf.mxu0
  %v621 = vadd.f32 %v524, %v620
  %v622 = vpop.f32.mrf.mxu0
  %623 = vmatprep.mubr.bf16.mxu0 %v229
  %624 = vmatmul.mubr.bf16.gmra.mxu0 %v228
  %v625 = vpop.f32.mrf.mxu0
  %v626 = vadd.f32 %v529, %v625
  %v627 = vpop.f32.mrf.mxu0
  %v628 = vpop.f32.mrf.mxu0
  %v629 = vadd.f32 %v532, %v628
  %v630 = vpop.f32.mrf.mxu0
  %631 = vmatprep.mubr.bf16.mxu0 %v233
  %632 = vmatmul.mubr.bf16.gmra.mxu0 %v232
  %v633 = vpop.f32.mrf.mxu0
  %v634 = vadd.f32 %v537, %v633
  %v635 = vpop.f32.mrf.mxu0
  %v636 = vpop.f32.mrf.mxu0
  %v637 = vadd.f32 %v540, %v636
  %v638 = vpop.f32.mrf.mxu0
  %639 = vmatprep.mubr.bf16.mxu0 %v237
  %640 = vmatmul.mubr.bf16.gmra.mxu0 %v236
  %v641 = vpop.f32.mrf.mxu0
  %v642 = vadd.f32 %v545, %v641
  %v643 = vpop.f32.mrf.mxu0
  %v644 = vpop.f32.mrf.mxu0
  %v645 = vadd.f32 %v548, %v644
  %v646 = vpop.f32.mrf.mxu0
  %647 = vmatprep.mubr.bf16.mxu0 %v241
  %648 = vmatmul.mubr.bf16.gmra.mxu0 %v240
  %v649 = vpop.f32.mrf.mxu0
  %v650 = vadd.f32 %v553, %v649
  %v651 = vpop.f32.mrf.mxu0
  %v652 = vpop.f32.mrf.mxu0
  %v653 = vadd.f32 %v556, %v652
  %v654 = vpop.f32.mrf.mxu0
  %655 = vmatprep.mubr.bf16.mxu0 %v245
  %656 = vmatmul.mubr.bf16.gmra.mxu0 %v244
  %v657 = vpop.f32.mrf.mxu0
  %v658 = vadd.f32 %v561, %v657
  %v659 = vpop.f32.mrf.mxu0
  %v660 = vpop.f32.mrf.mxu0
  %v661 = vadd.f32 %v564, %v660
  %v662 = vpop.f32.mrf.mxu0
  %663 = vdwg.mxu0
  %vm664 = vcmp.ge.f32.partialorder %v602, 0.0
  %vm665 = vcmp.ge.f32.partialorder %v605, 0.0
  %vm666 = vcmp.ge.f32.partialorder %v610, 0.0
  %vm667 = vcmp.ge.f32.partialorder %v613, 0.0
  %vm668 = vcmp.ge.f32.partialorder %v618, 0.0
  %vm669 = vcmp.ge.f32.partialorder %v621, 0.0
  %vm670 = vcmp.ge.f32.partialorder %v626, 0.0
  %vm671 = vcmp.ge.f32.partialorder %v629, 0.0
  %vm672 = vcmp.ge.f32.partialorder %v634, 0.0
  %vm673 = vcmp.ge.f32.partialorder %v637, 0.0
  %vm674 = vcmp.ge.f32.partialorder %v642, 0.0
  %vm675 = vcmp.ge.f32.partialorder %v645, 0.0
  %vm676 = vcmp.ge.f32.partialorder %v650, 0.0
  %vm677 = vcmp.ge.f32.partialorder %v653, 0.0
  %vm678 = vcmp.ge.f32.partialorder %v658, 0.0
  %vm679 = vcmp.ge.f32.partialorder %v661, 0.0
  %v680 = vmul.f32 %v602, 0.1
  %v681 = vmul.f32 %v605, 0.1
  %v682 = vmul.f32 %v610, 0.1
  %v683 = vmul.f32 %v613, 0.1
  %v684 = vmul.f32 %v618, 0.1
  %v685 = vmul.f32 %v621, 0.1
  %v686 = vmul.f32 %v626, 0.1
  %v687 = vmul.f32 %v629, 0.1
  %v688 = vmul.f32 %v634, 0.1
  %v689 = vmul.f32 %v637, 0.1
  %v690 = vmul.f32 %v642, 0.1
  %v691 = vmul.f32 %v645, 0.1
  %v692 = vmul.f32 %v650, 0.1
  %v693 = vmul.f32 %v653, 0.1
  %v694 = vmul.f32 %v658, 0.1
  %v695 = vmul.f32 %v661, 0.1
  %v696 = vsel %vm664, %v602, %v680
  %v697 = vsel %vm665, %v605, %v681
  %v698 = vsel %vm666, %v610, %v682
  %v699 = vsel %vm667, %v613, %v683
  %v700 = vsel %vm668, %v618, %v684
  %v701 = vsel %vm669, %v621, %v685
  %v702 = vsel %vm670, %v626, %v686
  %v703 = vsel %vm671, %v629, %v687
  %v704 = vsel %vm672, %v634, %v688
  %v705 = vsel %vm673, %v637, %v689
  %v706 = vsel %vm674, %v642, %v690
  %v707 = vsel %vm675, %v645, %v691
  %v708 = vsel %vm676, %v650, %v692
  %v709 = vsel %vm677, %v653, %v693
  %v710 = vsel %vm678, %v658, %v694
  %v711 = vsel %vm679, %v661, %v695
  %v712 = vpack.c.bf16 %v697, %v696
  %v713 = vpack.c.bf16 %v699, %v698
  %v714 = vpack.c.bf16 %v701, %v700
  %v715 = vpack.c.bf16 %v703, %v702
  %v716 = vpack.c.bf16 %v705, %v704
  %v717 = vpack.c.bf16 %v707, %v706
  %v718 = vpack.c.bf16 %v709, %v708
  %v719 = vpack.c.bf16 %v711, %v710
  %v728 = vunpack.c.l.b16 %v712
  %v729 = vunpack.c.h.b16 %v712
  %v730 = vunpack.c.l.b16 %v713
  %v731 = vunpack.c.h.b16 %v713
  %v732 = vunpack.c.l.b16 %v714
  %v733 = vunpack.c.h.b16 %v714
  %v734 = vunpack.c.l.b16 %v715
  %v735 = vunpack.c.h.b16 %v715
  %v736 = vunpack.c.l.b16 %v716
  %v737 = vunpack.c.h.b16 %v716
  %v738 = vunpack.c.l.b16 %v717
  %v739 = vunpack.c.h.b16 %v717
  %v740 = vunpack.c.l.b16 %v718
  %v741 = vunpack.c.h.b16 %v718
  %v742 = vunpack.c.l.b16 %v719
  %v743 = vunpack.c.h.b16 %v719
  %v744 = vpack.c.b16 %v728, %v728
  %v745 = vpack.c.b16 %v729, %v729
  %v746 = vpack.c.b16 %v730, %v730
  %v747 = vpack.c.b16 %v731, %v731
  %v748 = vpack.c.b16 %v732, %v732
  %v749 = vpack.c.b16 %v733, %v733
  %v750 = vpack.c.b16 %v734, %v734
  %v751 = vpack.c.b16 %v735, %v735
  %v752 = vpack.c.b16 %v736, %v736
  %v753 = vpack.c.b16 %v737, %v737
  %v754 = vpack.c.b16 %v738, %v738
  %v755 = vpack.c.b16 %v739, %v739
  %v756 = vpack.c.b16 %v740, %v740
  %v757 = vpack.c.b16 %v741, %v741
  %v758 = vpack.c.b16 %v742, %v742
  %v759 = vpack.c.b16 %v743, %v743
  %vm776 = vcmask 519168
  %777 = vst.msk [vmem:[%s3] sm:$0xf] %vm776, %v744
  %778 = vst.msk [vmem:[%s3 + $0x4] sm:$0xf] %vm776, %v745
  %779 = vst.msk [vmem:[%s3 + $0x8] sm:$0xf] %vm776, %v746
  %780 = vst.msk [vmem:[%s3 + $0xc] sm:$0xf] %vm776, %v747
  %781 = vst.msk [vmem:[%s3 + $0x10] sm:$0xf] %vm776, %v748
  %782 = vst.msk [vmem:[%s3 + $0x14] sm:$0xf] %vm776, %v749
  %783 = vst.msk [vmem:[%s3 + $0x18] sm:$0xf] %vm776, %v750
  %784 = vst.msk [vmem:[%s3 + $0x1c] sm:$0xf] %vm776, %v751
  %785 = vst.msk [vmem:[%s3 + $0x20] sm:$0xf] %vm776, %v752
  %786 = vst.msk [vmem:[%s3 + $0x24] sm:$0xf] %vm776, %v753
  %787 = vst.msk [vmem:[%s3 + $0x28] sm:$0xf] %vm776, %v754
  %788 = vst.msk [vmem:[%s3 + $0x2c] sm:$0xf] %vm776, %v755
  %789 = vst.msk [vmem:[%s3 + $0x30] sm:$0xf] %vm776, %v756
  %790 = vst.msk [vmem:[%s3 + $0x34] sm:$0xf] %vm776, %v757
  %791 = vst.msk [vmem:[%s3 + $0x38] sm:$0xf] %vm776, %v758
  %792 = vst.msk [vmem:[%s3 + $0x3c] sm:$0xf] %vm776, %v759
  // Predicated region
  $region14: #{discriminator_forward.8} parent=0 // pred_check
    _
  $region15: #{discriminator_forward.8} parent=0 // pred_check_branch
    %794 = sbr.rel (0) target = $region17
  $region16: #{discriminator_forward.8} parent=0 // pred_region
    _
  $region17: #{discriminator_forward.8} parent=0 // pred_fallthru
    _
  // Predicated region
  $region18: #{discriminator_forward.8} parent=0 // pred_check
    _
  $region19: #{discriminator_forward.8} parent=0 // pred_check_branch
    %796 = sbr.rel (0) target = $region21
  $region20: #{discriminator_forward.8} parent=0 // pred_region
    _
  $region21: #{discriminator_forward.8} parent=0 // pred_fallthru
    _

// kernel: discriminator_forward.9
$region0: #{discriminator_forward.9}
  #allocation0 [shape = 'u32[]', space=smem, size = 0x4, offset = 0x4, fixed_abs, tag = 'smem constant byte address 0x4 - core index']
  #allocation1 [shape = 'u32[144,128]{1,0:T(1,128)}', space=vmem, size = 0x12000, scoped, tag = 'internal scratch']
  #allocation2 [shape = 'f32[1,1]{1,0:T(1,128)S(1)}', space=vmem, size = 0x200, scoped, tag = 'scoped memory for discriminator_forward.9']
  %s0 = inlined_call_operand.vmem [shape: bf16[2,64,64], index: 0, kind: input, shape index: {}]
  %s1 = inlined_call_operand.vmem [shape: bf16[64,8], index: 1, kind: input, shape index: {}]
  %s2 = inlined_call_operand.vmem [shape: bf16[64,8], index: 2, kind: input, shape index: {}]
  %s3 = inlined_call_operand.vmem [shape: bf16[64,64], index: 3, kind: input, shape index: {}]
  %s4 = inlined_call_operand.vmem [shape: f32[1,8], index: 4, kind: input, shape index: {}]
  %s5 = inlined_call_operand.vmem [shape: f32[1,8], index: 5, kind: input, shape index: {}]
  %s6 = inlined_call_operand.vmem [shape: f32[1,64], index: 6, kind: input, shape index: {}]
  %s7 = inlined_call_operand.<no memory space> [shape: f32[1,1], index: 7, kind: input, shape index: {}]
  %s8 = inlined_call_operand.hbm [shape: f32[2,64,64], index: 8, kind: output, shape index: {0}]
  %s9 = inlined_call_operand.vmem [shape: bf16[2,64,64], index: 9, kind: output, shape index: {1}]
  %10 = xla_tuple %s8, %s9
  %s11 = sld [smem:[#allocation0]]
  $region73: #{discriminator_forward.9} parent=0
    _
  %s13 = ssub.s32 1, %s11
  %s14 = scalar_select 0, %s13, %s11
  %v15 = vstv %s7
  %16 = vst [vmem:[#allocation2] sm:$0x1] %v15
  $region1: #{discriminator_forward.9} parent=0
    #allocation3 [shape = 'u8[65536]{0}', space=vmem, size = 0x10000, scoped, tag = 'output window, operand 0']
    #allocation4 [shape = 's32[2]{0}', space=sflag, size = 0x8, scoped, tag = 'scoped memory for discriminator_forward.9']
    %17 = vsyncpa [#allocation4], 0
    %s18 = scalar_lea.sflag [#allocation4], 1
    %19 = vsyncpa %s18, 0
    loop: start=0, step=1, limit=4
    $region2: #{discriminator_forward.9} parent=1 // loop_pre_header
      _
    $region3: #{discriminator_forward.9} parent=1 // loop_header
      %s21 = sphi 0, %s25
      %p22 = scmp.ge.s32.totalorder %s21, 4
      %s31 = sphi 0, %s33
      %s34 = sphi 0, %s31
      %s35 = sphi 0, %s34
      %s51 = sphi 0, %s35
      %s55 = sphi 0, %s55
      %s57 = sphi 0, %s55
      %s58 = sphi 0, %s57
      %s72 = sphi 0, %s58
      %s76 = sphi 0, %s76
      %s78 = sphi 0, %s76
      %s79 = sphi 0, %s78
      %s93 = sphi 0, %s79
      %s97 = sphi 0, %s97
      %s99 = sphi 0, %s97
      %s100 = sphi 0, %s99
      %s114 = sphi 0, %s100
      %s118 = sphi 0, %s118
      %s120 = sphi 0, %s118
      %s121 = sphi 0, %s120
      %s135 = sphi 0, %s121
      %s139 = sphi 0, %s139
      %s141 = sphi 0, %s139
      %s142 = sphi 0, %s141
      %s156 = sphi 0, %s142
      %s160 = sphi 0, %s160
      %s162 = sphi 0, %s160
      %s163 = sphi 0, %s162
      %s177 = sphi 0, %s163
      %s181 = sphi 0, %s181
      %s183 = sphi 0, %s181
      %s184 = sphi 0, %s183
      %s198 = sphi 0, %s184
      %s204 = sphi 0, %s206
      %s207 = sphi 0, %s204
      %s208 = sphi 0, %s207
      %s224 = sphi 0, %s208
      %s230 = sphi 0, %s232
      %s233 = sphi 0, %s230
      %s234 = sphi 0, %s233
      %s250 = sphi 0, %s234
    $region4: #{discriminator_forward.9} parent=1 // loop_header_branch
      %24 = sbr.rel (%p22) target = $region8
    $region5: #{discriminator_forward.9} parent=1 // loop_body
      %s26 = ssub.s32 %s21, 1
      %s27 = ssub.s32 %s21, 2
      %s28 = sadd.s32 %s21, 1
      %s29 = ssub.s32 %s21, %s28
      %p30 = scmp.eq.s32.totalorder %s29, 0
      %s32 = sadd.s32 %s31, 1
      %s33 = scalar_select %p30, %s31, %s32
      %p36 = pneg %p30
      %p37 = scmp.eq.s32.totalorder %s21, 1
      %p38 = por %p36, %p37
      %p39 = scmp.ne.s32.totalorder %s31, %s34
      %p40 = scmp.eq.s32.totalorder %s21, 0
      %p41 = por %p39, %p40
      %p42 = scmp.ne.s32.totalorder %s31, %s34
      %p43 = scmp.eq.s32.totalorder %s26, 1
      %p44 = por %p42, %p43
      %p45 = scmp.ne.s32.totalorder %s34, %s35
      %p46 = scmp.eq.s32.totalorder %s26, 0
      %p47 = por %p45, %p46
      %p48 = scmp.ne.s32.totalorder %s34, %s35
      %p49 = scmp.eq.s32.totalorder %s27, 1
      %p50 = por %p48, %p49
      %p52 = scmp.ne.s32.totalorder %s35, %s51
      %p53 = scmp.eq.s32.totalorder %s27, 0
      %p54 = por %p52, %p53
      %s56 = sadd.s32 %s55, 1
      %p59 = scmp.eq.s32.totalorder %s21, 1
      %p60 = scmp.ne.s32.totalorder %s55, %s57
      %p61 = scmp.eq.s32.totalorder %s21, 0
      %p62 = por %p60, %p61
      %p63 = scmp.ne.s32.totalorder %s55, %s57
      %p64 = scmp.eq.s32.totalorder %s26, 1
      %p65 = por %p63, %p64
      %p66 = scmp.ne.s32.totalorder %s57, %s58
      %p67 = scmp.eq.s32.totalorder %s26, 0
      %p68 = por %p66, %p67
      %p69 = scmp.ne.s32.totalorder %s57, %s58
      %p70 = scmp.eq.s32.totalorder %s27, 1
      %p71 = por %p69, %p70
      %p73 = scmp.ne.s32.totalorder %s58, %s72
      %p74 = scmp.eq.s32.totalorder %s27, 0
      %p75 = por %p73, %p74
      %s77 = sadd.s32 %s76, 1
      %p80 = scmp.eq.s32.totalorder %s21, 1
      %p81 = scmp.ne.s32.totalorder %s76, %s78
      %p82 = scmp.eq.s32.totalorder %s21, 0
      %p83 = por %p81, %p82
      %p84 = scmp.ne.s32.totalorder %s76, %s78
      %p85 = scmp.eq.s32.totalorder %s26, 1
      %p86 = por %p84, %p85
      %p87 = scmp.ne.s32.totalorder %s78, %s79
      %p88 = scmp.eq.s32.totalorder %s26, 0
      %p89 = por %p87, %p88
      %p90 = scmp.ne.s32.totalorder %s78, %s79
      %p91 = scmp.eq.s32.totalorder %s27, 1
      %p92 = por %p90, %p91
      %p94 = scmp.ne.s32.totalorder %s79, %s93
      %p95 = scmp.eq.s32.totalorder %s27, 0
      %p96 = por %p94, %p95
      %s98 = sadd.s32 %s97, 1
      %p101 = scmp.eq.s32.totalorder %s21, 1
      %p102 = scmp.ne.s32.totalorder %s97, %s99
      %p103 = scmp.eq.s32.totalorder %s21, 0
      %p104 = por %p102, %p103
      %p105 = scmp.ne.s32.totalorder %s97, %s99
      %p106 = scmp.eq.s32.totalorder %s26, 1
      %p107 = por %p105, %p106
      %p108 = scmp.ne.s32.totalorder %s99, %s100
      %p109 = scmp.eq.s32.totalorder %s26, 0
      %p110 = por %p108, %p109
      %p111 = scmp.ne.s32.totalorder %s99, %s100
      %p112 = scmp.eq.s32.totalorder %s27, 1
      %p113 = por %p111, %p112
      %p115 = scmp.ne.s32.totalorder %s100, %s114
      %p116 = scmp.eq.s32.totalorder %s27, 0
      %p117 = por %p115, %p116
      %s119 = sadd.s32 %s118, 1
      %p122 = scmp.eq.s32.totalorder %s21, 1
      %p123 = scmp.ne.s32.totalorder %s118, %s120
      %p124 = scmp.eq.s32.totalorder %s21, 0
      %p125 = por %p123, %p124
      %p126 = scmp.ne.s32.totalorder %s118, %s120
      %p127 = scmp.eq.s32.totalorder %s26, 1
      %p128 = por %p126, %p127
      %p129 = scmp.ne.s32.totalorder %s120, %s121
      %p130 = scmp.eq.s32.totalorder %s26, 0
      %p131 = por %p129, %p130
      %p132 = scmp.ne.s32.totalorder %s120, %s121
      %p133 = scmp.eq.s32.totalorder %s27, 1
      %p134 = por %p132, %p133
      %p136 = scmp.ne.s32.totalorder %s121, %s135
      %p137 = scmp.eq.s32.totalorder %s27, 0
      %p138 = por %p136, %p137
      %s140 = sadd.s32 %s139, 1
      %p143 = scmp.eq.s32.totalorder %s21, 1
      %p144 = scmp.ne.s32.totalorder %s139, %s141
      %p145 = scmp.eq.s32.totalorder %s21, 0
      %p146 = por %p144, %p145
      %p147 = scmp.ne.s32.totalorder %s139, %s141
      %p148 = scmp.eq.s32.totalorder %s26, 1
      %p149 = por %p147, %p148
      %p150 = scmp.ne.s32.totalorder %s141, %s142
      %p151 = scmp.eq.s32.totalorder %s26, 0
      %p152 = por %p150, %p151
      %p153 = scmp.ne.s32.totalorder %s141, %s142
      %p154 = scmp.eq.s32.totalorder %s27, 1
      %p155 = por %p153, %p154
      %p157 = scmp.ne.s32.totalorder %s142, %s156
      %p158 = scmp.eq.s32.totalorder %s27, 0
      %p159 = por %p157, %p158
      %s161 = sadd.s32 %s160, 1
      %p164 = scmp.eq.s32.totalorder %s21, 1
      %p165 = scmp.ne.s32.totalorder %s160, %s162
      %p166 = scmp.eq.s32.totalorder %s21, 0
      %p167 = por %p165, %p166
      %p168 = scmp.ne.s32.totalorder %s160, %s162
      %p169 = scmp.eq.s32.totalorder %s26, 1
      %p170 = por %p168, %p169
      %p171 = scmp.ne.s32.totalorder %s162, %s163
      %p172 = scmp.eq.s32.totalorder %s26, 0
      %p173 = por %p171, %p172
      %p174 = scmp.ne.s32.totalorder %s162, %s163
      %p175 = scmp.eq.s32.totalorder %s27, 1
      %p176 = por %p174, %p175
      %p178 = scmp.ne.s32.totalorder %s163, %s177
      %p179 = scmp.eq.s32.totalorder %s27, 0
      %p180 = por %p178, %p179
      %s182 = sadd.s32 %s181, 1
      %p185 = scmp.eq.s32.totalorder %s21, 1
      %p186 = scmp.ne.s32.totalorder %s181, %s183
      %p187 = scmp.eq.s32.totalorder %s21, 0
      %p188 = por %p186, %p187
      %p189 = scmp.ne.s32.totalorder %s181, %s183
      %p190 = scmp.eq.s32.totalorder %s26, 1
      %p191 = por %p189, %p190
      %p192 = scmp.ne.s32.totalorder %s183, %s184
      %p193 = scmp.eq.s32.totalorder %s26, 0
      %p194 = por %p192, %p193
      %p195 = scmp.ne.s32.totalorder %s183, %s184
      %p196 = scmp.eq.s32.totalorder %s27, 1
      %p197 = por %p195, %p196
      %p199 = scmp.ne.s32.totalorder %s184, %s198
      %p200 = scmp.eq.s32.totalorder %s27, 0
      %p201 = por %p199, %p200
      %s202 = ssub.s32 %s21, %s28
      %p203 = scmp.eq.s32.totalorder %s202, 0
      %s205 = sadd.s32 %s204, 1
      %s206 = scalar_select %p203, %s204, %s205
      %p209 = pneg %p203
      %p210 = scmp.eq.s32.totalorder %s21, 1
      %p211 = por %p209, %p210
      %p212 = scmp.ne.s32.totalorder %s204, %s207
      %p213 = scmp.eq.s32.totalorder %s21, 0
      %p214 = por %p212, %p213
      %p215 = scmp.ne.s32.totalorder %s204, %s207
      %p216 = scmp.eq.s32.totalorder %s26, 1
      %p217 = por %p215, %p216
      %p218 = scmp.ne.s32.totalorder %s207, %s208
      %p219 = scmp.eq.s32.totalorder %s26, 0
      %p220 = por %p218, %p219
      %p221 = scmp.ne.s32.totalorder %s207, %s208
      %p222 = scmp.eq.s32.totalorder %s27, 1
      %p223 = por %p221, %p222
      %p225 = scmp.ne.s32.totalorder %s208, %s224
      %p226 = scmp.eq.s32.totalorder %s27, 0
      %p227 = por %p225, %p226
      %s228 = ssub.s32 %s21, %s28
      %p229 = scmp.eq.s32.totalorder %s228, 0
      %s231 = sadd.s32 %s230, 1
      %s232 = scalar_select %p229, %s230, %s231
      %p235 = pneg %p229
      %p236 = scmp.eq.s32.totalorder %s21, 1
      %p237 = por %p235, %p236
      %p238 = scmp.ne.s32.totalorder %s230, %s233
      %p239 = scmp.eq.s32.totalorder %s21, 0
      %p240 = por %p238, %p239
      %p241 = scmp.ne.s32.totalorder %s230, %s233
      %p242 = scmp.eq.s32.totalorder %s26, 1
      %p243 = por %p241, %p242
      %p244 = scmp.ne.s32.totalorder %s233, %s234
      %p245 = scmp.eq.s32.totalorder %s26, 0
      %p246 = por %p244, %p245
      %p247 = scmp.ne.s32.totalorder %s233, %s234
      %p248 = scmp.eq.s32.totalorder %s27, 1
      %p249 = por %p247, %p248
      %p251 = scmp.ne.s32.totalorder %s234, %s250
      %p252 = scmp.eq.s32.totalorder %s27, 0
      %p253 = por %p251, %p252
      %p254 = scmp.le.s32.totalorder 1, %s21
      %p255 = scmp.lt.s32.totalorder %s21, 3
      %p256 = pnand %p254, %p255
      %p257 = pneg %p256
      // Predicated region
      $region9: #{discriminator_forward.9} parent=5 // pred_check
        _
      $region10: #{discriminator_forward.9} parent=5 // pred_check_branch
        %259 = sbr.rel (%p256) target = $region12
      $region11: #{discriminator_forward.9} parent=5 // pred_region
        %s260 = ssub.s32 %s21, 1
        // Predicated region
        $region13: #{discriminator_forward.9} parent=11 // pred_check
          %p261 = pneg %p68
        $region14: #{discriminator_forward.9} parent=11 // pred_check_branch
          %263 = sbr.rel (%p261) target = $region16
        $region15: #{discriminator_forward.9} parent=11 // pred_region
          _
        $region16: #{discriminator_forward.9} parent=11 // pred_fallthru
          _
        // Predicated region
        $region17: #{discriminator_forward.9} parent=11 // pred_check
          %p264 = pneg %p89
        $region18: #{discriminator_forward.9} parent=11 // pred_check_branch
          %266 = sbr.rel (%p264) target = $region20
        $region19: #{discriminator_forward.9} parent=11 // pred_region
          _
        $region20: #{discriminator_forward.9} parent=11 // pred_fallthru
          _
        // Predicated region
        $region21: #{discriminator_forward.9} parent=11 // pred_check
          %p267 = pneg %p110
        $region22: #{discriminator_forward.9} parent=11 // pred_check_branch
          %269 = sbr.rel (%p267) target = $region24
        $region23: #{discriminator_forward.9} parent=11 // pred_region
          _
        $region24: #{discriminator_forward.9} parent=11 // pred_fallthru
          _
        // Predicated region
        $region25: #{discriminator_forward.9} parent=11 // pred_check
          %p270 = pneg %p131
        $region26: #{discriminator_forward.9} parent=11 // pred_check_branch
          %272 = sbr.rel (%p270) target = $region28
        $region27: #{discriminator_forward.9} parent=11 // pred_region
          _
        $region28: #{discriminator_forward.9} parent=11 // pred_fallthru
          _
        // Predicated region
        $region29: #{discriminator_forward.9} parent=11 // pred_check
          %p273 = pneg %p152
        $region30: #{discriminator_forward.9} parent=11 // pred_check_branch
          %275 = sbr.rel (%p273) target = $region32
        $region31: #{discriminator_forward.9} parent=11 // pred_region
          _
        $region32: #{discriminator_forward.9} parent=11 // pred_fallthru
          _
        // Predicated region
        $region33: #{discriminator_forward.9} parent=11 // pred_check
          %p276 = pneg %p173
        $region34: #{discriminator_forward.9} parent=11 // pred_check_branch
          %278 = sbr.rel (%p276) target = $region36
        $region35: #{discriminator_forward.9} parent=11 // pred_region
          _
        $region36: #{discriminator_forward.9} parent=11 // pred_fallthru
          _
        // Predicated region
        $region37: #{discriminator_forward.9} parent=11 // pred_check
          %p279 = pneg %p194
        $region38: #{discriminator_forward.9} parent=11 // pred_check_branch
          %281 = sbr.rel (%p279) target = $region40
        $region39: #{discriminator_forward.9} parent=11 // pred_region
          _
        $region40: #{discriminator_forward.9} parent=11 // pred_fallthru
          _
      $region12: #{discriminator_forward.9} parent=5 // pred_fallthru
        _
      %p282 = scmp.lt.s32.totalorder %s21, 2
      // Predicated region
      $region41: #{discriminator_forward.9} parent=5 // pred_check
        %p283 = pneg %p282
      $region42: #{discriminator_forward.9} parent=5 // pred_check_branch
        %285 = sbr.rel (%p283) target = $region44
      $region43: #{discriminator_forward.9} parent=5 // pred_region
        // Predicated region
        $region45: #{discriminator_forward.9} parent=43 // pred_check
          %p286 = pneg %p41
        $region46: #{discriminator_forward.9} parent=43 // pred_check_branch
          %288 = sbr.rel (%p286) target = $region48
        $region47: #{discriminator_forward.9} parent=43 // pred_region
          %p289 = scmp.lt.s32.totalorder %s21, 1
          %s290 = scalar_select %p289, %s21, 1
          %s291 = smul.addr %s290, 8
          %s292 = smul.addr %s291, 4
          %s293 = scalar_lea.vmem %s0, %s292
        $region48: #{discriminator_forward.9} parent=43 // pred_fallthru
          _
      $region44: #{discriminator_forward.9} parent=5 // pred_fallthru
        _
      %p294 = scmp.le.s32.totalorder 1, %s21
      %p295 = scmp.lt.s32.totalorder %s21, 3
      %p296 = pnand %p294, %p295
      %p297 = pneg %p296
      // Predicated region
      $region49: #{discriminator_forward.9} parent=5 // pred_check
        _
      $region50: #{discriminator_forward.9} parent=5 // pred_check_branch
        %299 = sbr.rel (%p296) target = $region52
      $region51: #{discriminator_forward.9} parent=5 // pred_region
        %s300 = ssub.s32 %s21, 1
        %p301 = scmp.lt.s32.totalorder %s26, 1
        %s302 = scalar_select %p301, %s26, 1
        %s303 = smul.addr %s302, 8
        %s304 = smul.addr %s303, 4
        %s305 = scalar_lea.vmem %s0, %s304
        %p306 = pneg %p47
        %p307 = pneg %p44
        %p308 = pneg %p68
        %p309 = pneg %p65
        %p310 = pneg %p89
        %p311 = pneg %p86
        %p312 = pneg %p110
        %p313 = pneg %p107
        %p314 = pneg %p131
        %p315 = pneg %p128
        %p316 = pneg %p152
        %p317 = pneg %p149
        %p318 = pneg %p173
        %p319 = pneg %p170
        %p320 = pneg %p194
        %p321 = pneg %p191
        %p322 = pneg %p220
        %p323 = pneg %p217
        %s324 = sand.u32 %s207, 1
        %s325 = scalar_lea.sflag [#allocation4], %s324
        %s326 = sand.u32 %s207, 1
        %s327 = smul.addr %s326, 64
        %s328 = scalar_lea.vmem [#allocation3], %s327
        %p329 = pneg %p246
        %p330 = pneg %p243
        %p331 = scmp.lt.s32.totalorder %s26, 1
        %s332 = scalar_select %p331, %s26, 1
        %s333 = smul.addr %s332, 8
        %s334 = smul.addr %s333, 4
        %s335 = scalar_lea.vmem %s9, %s334
        %p336 = scmp.lt.s32.totalorder %s26, 1
        %s337 = scalar_select %p336, %s26, 1
        %s338 = smul.addr %s337, 8
        %s339 = smul.addr %s338, 4
        %s340 = scalar_lea.vmem %s0, %s339
        %p341 = scmp.lt.s32.totalorder %s26, 1
        %s342 = scalar_select %p341, %s26, 1
        %s343 = smul.addr %s342, 8
        %s344 = smul.addr %s343, 4
        %s345 = scalar_lea.vmem %s9, %s344
        %v347 = vld [vmem:[%s340] sm:$0xf]
        %v348 = vld [vmem:[%s340 + $0x4] sm:$0xf]
        %v349 = vld [vmem:[%s340 + $0x8] sm:$0xf]
        %v350 = vld [vmem:[%s340 + $0xc] sm:$0xf]
        %v351 = vld [vmem:[%s340 + $0x10] sm:$0xf]
        %v352 = vld [vmem:[%s340 + $0x14] sm:$0xf]
        %v353 = vld [vmem:[%s340 + $0x18] sm:$0xf]
        %v354 = vld [vmem:[%s340 + $0x1c] sm:$0xf]
        %v355 = vld [vmem:[%s1] sm:$0xf]
        %v356 = vld [vmem:[%s1 + $0x4] sm:$0xf]
        %v357 = vld [vmem:[%s1 + $0x8] sm:$0xf]
        %v358 = vld [vmem:[%s1 + $0xc] sm:$0xf]
        %v359 = vld [vmem:[%s1 + $0x10] sm:$0xf]
        %v360 = vld [vmem:[%s1 + $0x14] sm:$0xf]
        %v361 = vld [vmem:[%s1 + $0x18] sm:$0xf]
        %v362 = vld [vmem:[%s1 + $0x1c] sm:$0xf]
        %v363 = vld [vmem:[%s4] sm:$0x1]
        %v365 = vlaneseq
        %v366 = vshrl.u32 %v365, 7
        %v367 = vsub.s32 0, %v366
        %v368 = vrot.slane %v363, %v367
        %v378 = vunpack.c.l.b16 %v347
        %v379 = vunpack.c.l.b16 %v348
        %v380 = vunpack.c.l.b16 %v349
        %v381 = vunpack.c.l.b16 %v350
        %v382 = vunpack.c.l.b16 %v351
        %v383 = vunpack.c.l.b16 %v352
        %v384 = vunpack.c.l.b16 %v353
        %v385 = vunpack.c.l.b16 %v354
        %v386 = vpack.c.b16 %v379, %v378
        %v387 = vpack.c.b16 %v381, %v380
        %v388 = vpack.c.b16 %v383, %v382
        %v389 = vpack.c.b16 %v385, %v384
        %v398 = vunpack.c.l.b16 %v355
        %v399 = vunpack.c.l.b16 %v356
        %v400 = vunpack.c.l.b16 %v357
        %v401 = vunpack.c.l.b16 %v358
        %v402 = vunpack.c.l.b16 %v359
        %v403 = vunpack.c.l.b16 %v360
        %v404 = vunpack.c.l.b16 %v361
        %v405 = vunpack.c.l.b16 %v362
        %v406 = vpack.c.b16 %v399, %v398
        %v407 = vpack.c.b16 %v401, %v400
        %v408 = vpack.c.b16 %v403, %v402
        %v409 = vpack.c.b16 %v405, %v404
        %vm414 = vcmask 523264
        %v416 = vsel %vm414, %v386, 0
        %v419 = vsel %vm414, %v387, 0
        %v422 = vsel %vm414, %v388, 0
        %v425 = vsel %vm414, %v389, 0
        %427 = vmatprep.subr.bf16.mxu0 0
        %428 = vmatpush1.bf16.msra.mxu0 0
        %429 = vmatprep.subr.bf16.mxu0 0
        %430 = vmatpush1.bf16.msra.mxu0 0
        %431 = vmatprep.subr.bf16.mxu0 0
        %432 = vmatpush1.bf16.msra.mxu0 0
        %433 = vmatprep.subr.bf16.mxu0 0
        %434 = vmatpush1.bf16.msra.mxu0 0
        %435 = vmatprep.subr.bf16.mxu0 0
        %436 = vmatpush1.bf16.msra.mxu0 %v409
        %437 = vmatprep.subr.bf16.mxu0 0
        %438 = vmatpush1.bf16.msra.mxu0 %v408
        %439 = vmatprep.subr.bf16.mxu0 0
        %440 = vmatpush1.bf16.msra.mxu0 %v407
        %441 = vmatprep.subr.bf16.mxu0 0
        %442 = vmatpush1.bf16.msra.mxu0 %v406
        %443 = vmatprep.subr.bf16.mxu0 0
        %444 = vmatpush2.bf16.msra.mxu0 0
        %445 = vmatprep.subr.bf16.mxu0 0
        %446 = vmatpush2.bf16.msra.mxu0 0
        %447 = vmatprep.subr.bf16.mxu0 0
        %448 = vmatpush2.bf16.msra.mxu0 0
        %449 = vmatprep.subr.bf16.mxu0 0
        %450 = vmatpush2.bf16.msra.mxu0 0
        %451 = vmatprep.subr.bf16.mxu0 0
        %452 = vmatpush2.bf16.msra.mxu0 0
        %453 = vmatprep.subr.bf16.mxu0 0
        %454 = vmatpush2.bf16.msra.mxu0 0
        %455 = vmatprep.subr.bf16.mxu0 0
        %456 = vmatpush2.bf16.msra.mxu0 0
        %457 = vmatprep.subr.bf16.mxu0 0
        %458 = vmatpush2.bf16.msra.mxu0 0
        %459 = vmatprep.mubr.bf16.mxu0 0
        %460 = vmatmul.mubr.bf16.gmra.mxu0 %v416
        %v461 = vpop.f32.mrf.mxu0
        %v462 = vadd.f32 %v368, %v461
        %v463 = vpop.f32.mrf.mxu0
        %v464 = vpop.f32.mrf.mxu0
        %v465 = vadd.f32 %v368, %v464
        %v466 = vpop.f32.mrf.mxu0
        %467 = vmatprep.mubr.bf16.mxu0 0
        %468 = vmatmul.mubr.bf16.gmra.mxu0 %v419
        %v469 = vpop.f32.mrf.mxu0
        %v470 = vadd.f32 %v368, %v469
        %v471 = vpop.f32.mrf.mxu0
        %v472 = vpop.f32.mrf.mxu0
        %v473 = vadd.f32 %v368, %v472
        %v474 = vpop.f32.mrf.mxu0
        %475 = vmatprep.mubr.bf16.mxu0 0
        %476 = vmatmul.mubr.bf16.gmra.mxu0 %v422
        %v477 = vpop.f32.mrf.mxu0
        %v478 = vadd.f32 %v368, %v477
        %v479 = vpop.f32.mrf.mxu0
        %v480 = vpop.f32.mrf.mxu0
        %v481 = vadd.f32 %v368, %v480
        %v482 = vpop.f32.mrf.mxu0
        %483 = vmatprep.mubr.bf16.mxu0 0
        %484 = vmatmul.mubr.bf16.gmra.mxu0 %v425
        %v485 = vpop.f32.mrf.mxu0
        %v486 = vadd.f32 %v368, %v485
        %v487 = vpop.f32.mrf.mxu0
        %v488 = vpop.f32.mrf.mxu0
        %v489 = vadd.f32 %v368, %v488
        %v490 = vpop.f32.mrf.mxu0
        %491 = vdwg.mxu0
        %v492 = vld [vmem:[%s2] sm:$0xf]
        %v493 = vld [vmem:[%s2 + $0x4] sm:$0xf]
        %v494 = vld [vmem:[%s2 + $0x8] sm:$0xf]
        %v495 = vld [vmem:[%s2 + $0xc] sm:$0xf]
        %v496 = vld [vmem:[%s2 + $0x10] sm:$0xf]
        %v497 = vld [vmem:[%s2 + $0x14] sm:$0xf]
        %v498 = vld [vmem:[%s2 + $0x18] sm:$0xf]
        %v499 = vld [vmem:[%s2 + $0x1c] sm:$0xf]
        %v500 = vld [vmem:[%s5] sm:$0x1]
        %v502 = vlaneseq
        %v503 = vshrl.u32 %v502, 7
        %v504 = vsub.s32 0, %v503
        %v505 = vrot.slane %v500, %v504
        %v515 = vunpack.c.l.b16 %v492
        %v516 = vunpack.c.l.b16 %v493
        %v517 = vunpack.c.l.b16 %v494
        %v518 = vunpack.c.l.b16 %v495
        %v519 = vunpack.c.l.b16 %v496
        %v520 = vunpack.c.l.b16 %v497
        %v521 = vunpack.c.l.b16 %v498
        %v522 = vunpack.c.l.b16 %v499
        %v523 = vpack.c.b16 %v516, %v515
        %v524 = vpack.c.b16 %v518, %v517
        %v525 = vpack.c.b16 %v520, %v519
        %v526 = vpack.c.b16 %v522, %v521
        %531 = vmatprep.subr.bf16.mxu0 0
        %532 = vmatpush1.bf16.msra.mxu0 0
        %533 = vmatprep.subr.bf16.mxu0 0
        %534 = vmatpush1.bf16.msra.mxu0 0
        %535 = vmatprep.subr.bf16.mxu0 0
        %536 = vmatpush1.bf16.msra.mxu0 0
        %537 = vmatprep.subr.bf16.mxu0 0
        %538 = vmatpush1.bf16.msra.mxu0 0
        %539 = vmatprep.subr.bf16.mxu0 0
        %540 = vmatpush1.bf16.msra.mxu0 %v526
        %541 = vmatprep.subr.bf16.mxu0 0
        %542 = vmatpush1.bf16.msra.mxu0 %v525
        %543 = vmatprep.subr.bf16.mxu0 0
        %544 = vmatpush1.bf16.msra.mxu0 %v524
        %545 = vmatprep.subr.bf16.mxu0 0
        %546 = vmatpush1.bf16.msra.mxu0 %v523
        %547 = vmatprep.subr.bf16.mxu0 0
        %548 = vmatpush2.bf16.msra.mxu0 0
        %549 = vmatprep.subr.bf16.mxu0 0
        %550 = vmatpush2.bf16.msra.mxu0 0
        %551 = vmatprep.subr.bf16.mxu0 0
        %552 = vmatpush2.bf16.msra.mxu0 0
        %553 = vmatprep.subr.bf16.mxu0 0
        %554 = vmatpush2.bf16.msra.mxu0 0
        %555 = vmatprep.subr.bf16.mxu0 0
        %556 = vmatpush2.bf16.msra.mxu0 0
        %557 = vmatprep.subr.bf16.mxu0 0
        %558 = vmatpush2.bf16.msra.mxu0 0
        %559 = vmatprep.subr.bf16.mxu0 0
        %560 = vmatpush2.bf16.msra.mxu0 0
        %561 = vmatprep.subr.bf16.mxu0 0
        %562 = vmatpush2.bf16.msra.mxu0 0
        %563 = vmatprep.mubr.bf16.mxu0 0
        %564 = vmatmul.mubr.bf16.gmra.mxu0 %v416
        %v565 = vpop.f32.mrf.mxu0
        %v566 = vadd.f32 %v505, %v565
        %v567 = vpop.f32.mrf.mxu0
        %v568 = vpop.f32.mrf.mxu0
        %v569 = vadd.f32 %v505, %v568
        %v570 = vpop.f32.mrf.mxu0
        %571 = vmatprep.mubr.bf16.mxu0 0
        %572 = vmatmul.mubr.bf16.gmra.mxu0 %v419
        %v573 = vpop.f32.mrf.mxu0
        %v574 = vadd.f32 %v505, %v573
        %v575 = vpop.f32.mrf.mxu0
        %v576 = vpop.f32.mrf.mxu0
        %v577 = vadd.f32 %v505, %v576
        %v578 = vpop.f32.mrf.mxu0
        %579 = vmatprep.mubr.bf16.mxu0 0
        %580 = vmatmul.mubr.bf16.gmra.mxu0 %v422
        %v581 = vpop.f32.mrf.mxu0
        %v582 = vadd.f32 %v505, %v581
        %v583 = vpop.f32.mrf.mxu0
        %v584 = vpop.f32.mrf.mxu0
        %v585 = vadd.f32 %v505, %v584
        %v586 = vpop.f32.mrf.mxu0
        %587 = vmatprep.mubr.bf16.mxu0 0
        %588 = vmatmul.mubr.bf16.gmra.mxu0 %v425
        %v589 = vpop.f32.mrf.mxu0
        %v590 = vadd.f32 %v505, %v589
        %v591 = vpop.f32.mrf.mxu0
        %v592 = vpop.f32.mrf.mxu0
        %v593 = vadd.f32 %v505, %v592
        %v594 = vpop.f32.mrf.mxu0
        %595 = vdwg.mxu0
        %v596 = vld [vmem:[%s3] sm:$0xf]
        %v597 = vld [vmem:[%s3 + $0x4] sm:$0xf]
        %v598 = vld [vmem:[%s3 + $0x8] sm:$0xf]
        %v599 = vld [vmem:[%s3 + $0xc] sm:$0xf]
        %v600 = vld [vmem:[%s3 + $0x10] sm:$0xf]
        %v601 = vld [vmem:[%s3 + $0x14] sm:$0xf]
        %v602 = vld [vmem:[%s3 + $0x18] sm:$0xf]
        %v603 = vld [vmem:[%s3 + $0x1c] sm:$0xf]
        %v604 = vld [vmem:[%s6] sm:$0x1]
        %v606 = vlaneseq
        %v607 = vshrl.u32 %v606, 7
        %v608 = vsub.s32 0, %v607
        %v609 = vrot.slane %v604, %v608
        %v619 = vunpack.c.l.b16 %v596
        %v620 = vunpack.c.l.b16 %v597
        %v621 = vunpack.c.l.b16 %v598
        %v622 = vunpack.c.l.b16 %v599
        %v623 = vunpack.c.l.b16 %v600
        %v624 = vunpack.c.l.b16 %v601
        %v625 = vunpack.c.l.b16 %v602
        %v626 = vunpack.c.l.b16 %v603
        %v627 = vpack.c.b16 %v620, %v619
        %v628 = vpack.c.b16 %v622, %v621
        %v629 = vpack.c.b16 %v624, %v623
        %v630 = vpack.c.b16 %v626, %v625
        %635 = vmatprep.subr.bf16.mxu0 0
        %636 = vmatpush1.bf16.msra.mxu0 0
        %637 = vmatprep.subr.bf16.mxu0 0
        %638 = vmatpush1.bf16.msra.mxu0 0
        %639 = vmatprep.subr.bf16.mxu0 0
        %640 = vmatpush1.bf16.msra.mxu0 0
        %641 = vmatprep.subr.bf16.mxu0 0
        %642 = vmatpush1.bf16.msra.mxu0 0
        %643 = vmatprep.subr.bf16.mxu0 0
        %644 = vmatpush1.bf16.msra.mxu0 %v630
        %645 = vmatprep.subr.bf16.mxu0 0
        %646 = vmatpush1.bf16.msra.mxu0 %v629
        %647 = vmatprep.subr.bf16.mxu0 0
        %648 = vmatpush1.bf16.msra.mxu0 %v628
        %649 = vmatprep.subr.bf16.mxu0 0
        %650 = vmatpush1.bf16.msra.mxu0 %v627
        %651 = vmatprep.subr.bf16.mxu0 0
        %652 = vmatpush2.bf16.msra.mxu0 0
        %653 = vmatprep.subr.bf16.mxu0 0
        %654 = vmatpush2.bf16.msra.mxu0 0
        %655 = vmatprep.subr.bf16.mxu0 0
        %656 = vmatpush2.bf16.msra.mxu0 0
        %657 = vmatprep.subr.bf16.mxu0 0
        %658 = vmatpush2.bf16.msra.mxu0 0
        %659 = vmatprep.subr.bf16.mxu0 0
        %660 = vmatpush2.bf16.msra.mxu0 0
        %661 = vmatprep.subr.bf16.mxu0 0
        %662 = vmatpush2.bf16.msra.mxu0 0
        %663 = vmatprep.subr.bf16.mxu0 0
        %664 = vmatpush2.bf16.msra.mxu0 0
        %665 = vmatprep.subr.bf16.mxu0 0
        %666 = vmatpush2.bf16.msra.mxu0 0
        %667 = vmatprep.mubr.bf16.mxu0 0
        %668 = vmatmul.mubr.bf16.gmra.mxu0 %v416
        %v669 = vpop.f32.mrf.mxu0
        %v670 = vadd.f32 %v609, %v669
        %v671 = vpop.f32.mrf.mxu0
        %v672 = vpop.f32.mrf.mxu0
        %v673 = vadd.f32 %v609, %v672
        %v674 = vpop.f32.mrf.mxu0
        %675 = vmatprep.mubr.bf16.mxu0 0
        %676 = vmatmul.mubr.bf16.gmra.mxu0 %v419
        %v677 = vpop.f32.mrf.mxu0
        %v678 = vadd.f32 %v609, %v677
        %v679 = vpop.f32.mrf.mxu0
        %v680 = vpop.f32.mrf.mxu0
        %v681 = vadd.f32 %v609, %v680
        %v682 = vpop.f32.mrf.mxu0
        %683 = vmatprep.mubr.bf16.mxu0 0
        %684 = vmatmul.mubr.bf16.gmra.mxu0 %v422
        %v685 = vpop.f32.mrf.mxu0
        %v686 = vadd.f32 %v609, %v685
        %v687 = vpop.f32.mrf.mxu0
        %v688 = vpop.f32.mrf.mxu0
        %v689 = vadd.f32 %v609, %v688
        %v690 = vpop.f32.mrf.mxu0
        %691 = vmatprep.mubr.bf16.mxu0 0
        %692 = vmatmul.mubr.bf16.gmra.mxu0 %v425
        %v693 = vpop.f32.mrf.mxu0
        %v694 = vadd.f32 %v609, %v693
        %v695 = vpop.f32.mrf.mxu0
        %v696 = vpop.f32.mrf.mxu0
        %v697 = vadd.f32 %v609, %v696
        %v698 = vpop.f32.mrf.mxu0
        %699 = vdwg.mxu0
        %v700 = vpack.c.bf16 %v569, %v566
        %v701 = vpack.c.bf16 %v577, %v574
        %v702 = vpack.c.bf16 %v585, %v582
        %v703 = vpack.c.bf16 %v593, %v590
        %v704 = vpack.c.bf16 %v465, %v462
        %v705 = vpack.c.bf16 %v473, %v470
        %v706 = vpack.c.bf16 %v481, %v478
        %v707 = vpack.c.bf16 %v489, %v486
        %vm708 = vcmask 64512
        %v710 = vsel %vm708, %v700, 0
        %v713 = vsel %vm708, %v701, 0
        %v716 = vsel %vm708, %v702, 0
        %v719 = vsel %vm708, %v703, 0
        %v722 = vsel %vm708, %v704, 0
        %v725 = vsel %vm708, %v705, 0
        %v728 = vsel %vm708, %v706, 0
        %v731 = vsel %vm708, %v707, 0
        %733 = vmatprep.subr.bf16.mxu0 0
        %734 = vmatpush1.bf16.xpose.msra.mxu0 0
        %735 = vmatprep.subr.bf16.mxu0 0
        %736 = vmatpush1.bf16.xpose.msra.mxu0 0
        %737 = vmatprep.subr.bf16.mxu0 0
        %738 = vmatpush1.bf16.xpose.msra.mxu0 0
        %739 = vmatprep.subr.bf16.mxu0 0
        %740 = vmatpush1.bf16.xpose.msra.mxu0 0
        %741 = vmatprep.subr.bf16.mxu0 0
        %742 = vmatpush1.bf16.xpose.msra.mxu0 %v731
        %743 = vmatprep.subr.bf16.mxu0 0
        %744 = vmatpush1.bf16.xpose.msra.mxu0 %v728
        %745 = vmatprep.subr.bf16.mxu0 0
        %746 = vmatpush1.bf16.xpose.msra.mxu0 %v725
        %747 = vmatprep.subr.bf16.mxu0 0
        %748 = vmatpush1.bf16.xpose.msra.mxu0 %v722
        %749 = vmatprep.subr.bf16.mxu0 0
        %750 = vmatpush2.bf16.xpose.msra.mxu0 0
        %751 = vmatprep.subr.bf16.mxu0 0
        %752 = vmatpush2.bf16.xpose.msra.mxu0 0
        %753 = vmatprep.subr.bf16.mxu0 0
        %754 = vmatpush2.bf16.xpose.msra.mxu0 0
        %755 = vmatprep.subr.bf16.mxu0 0
        %756 = vmatpush2.bf16.xpose.msra.mxu0 0
        %757 = vmatprep.subr.bf16.mxu0 0
        %758 = vmatpush2.bf16.xpose.msra.mxu0 0
        %759 = vmatprep.subr.bf16.mxu0 0
        %760 = vmatpush2.bf16.xpose.msra.mxu0 0
        %761 = vmatprep.subr.bf16.mxu0 0
        %762 = vmatpush2.bf16.xpose.msra.mxu0 0
        %763 = vmatprep.subr.bf16.mxu0 0
        %764 = vmatpush2.bf16.xpose.msra.mxu0 0
        %765 = vmatprep.mubr.bf16.mxu0 0
        %766 = vmatmul.mubr.bf16.gmra.mxu0 %v710
        %v767 = vpop.f32.mrf.mxu0
        %v768 = vadd.f32 0.0, %v767
        %v769 = vpop.f32.mrf.mxu0
        %v770 = vpop.f32.mrf.mxu0
        %v771 = vadd.f32 0.0, %v770
        %v772 = vpop.f32.mrf.mxu0
        %773 = vmatprep.mubr.bf16.mxu0 0
        %774 = vmatmul.mubr.bf16.gmra.mxu0 %v713
        %v775 = vpop.f32.mrf.mxu0
        %v776 = vadd.f32 0.0, %v775
        %v777 = vpop.f32.mrf.mxu0
        %v778 = vpop.f32.mrf.mxu0
        %v779 = vadd.f32 0.0, %v778
        %v780 = vpop.f32.mrf.mxu0
        %781 = vmatprep.mubr.bf16.mxu0 0
        %782 = vmatmul.mubr.bf16.gmra.mxu0 %v716
        %v783 = vpop.f32.mrf.mxu0
        %v784 = vadd.f32 0.0, %v783
        %v785 = vpop.f32.mrf.mxu0
        %v786 = vpop.f32.mrf.mxu0
        %v787 = vadd.f32 0.0, %v786
        %v788 = vpop.f32.mrf.mxu0
        %789 = vmatprep.mubr.bf16.mxu0 0
        %790 = vmatmul.mubr.bf16.gmra.mxu0 %v719
        %v791 = vpop.f32.mrf.mxu0
        %v792 = vadd.f32 0.0, %v791
        %v793 = vpop.f32.mrf.mxu0
        %v794 = vpop.f32.mrf.mxu0
        %v795 = vadd.f32 0.0, %v794
        %v796 = vpop.f32.mrf.mxu0
        %797 = vdwg.mxu0
        %v798 = vsel %vm414, %v768, -inf
        %799 = vmax.xlane.f32.xlu0 %v798
        %v800 = vpop.xlane.xlu0 %799
        %v801 = vsel %vm414, %v771, -inf
        %802 = vmax.xlane.f32.xlu0 %v801
        %v803 = vpop.xlane.xlu0 %802
        %v804 = vsel %vm414, %v776, -inf
        %805 = vmax.xlane.f32.xlu0 %v804
        %v806 = vpop.xlane.xlu0 %805
        %v807 = vsel %vm414, %v779, -inf
        %808 = vmax.xlane.f32.xlu0 %v807
        %v809 = vpop.xlane.xlu0 %808
        %v810 = vsel %vm414, %v784, -inf
        %811 = vmax.xlane.f32.xlu0 %v810
        %v812 = vpop.xlane.xlu0 %811
        %v813 = vsel %vm414, %v787, -inf
        %814 = vmax.xlane.f32.xlu0 %v813
        %v815 = vpop.xlane.xlu0 %814
        %v816 = vsel %vm414, %v792, -inf
        %817 = vmax.xlane.f32.xlu0 %v816
        %v818 = vpop.xlane.xlu0 %817
        %v819 = vsel %vm414, %v795, -inf
        %820 = vmax.xlane.f32.xlu0 %v819
        %v821 = vpop.xlane.xlu0 %820
        %v822 = vsub.f32 %v768, %v800
        %v823 = vsub.f32 %v771, %v803
        %v824 = vsub.f32 %v776, %v806
        %v825 = vsub.f32 %v779, %v809
        %v826 = vsub.f32 %v784, %v812
        %v827 = vsub.f32 %v787, %v815
        %v828 = vsub.f32 %v792, %v818
        %v829 = vsub.f32 %v795, %v821
        %v830 = vmul.f32 %v822, 1.442695
        %v831 = vpow.pop %v830
        %v832 = vmul.f32 %v823, 1.442695
        %v833 = vpow.pop %v832
        %v834 = vmul.f32 %v824, 1.442695
        %v835 = vpow.pop %v834
        %v836 = vmul.f32 %v825, 1.442695
        %v837 = vpow.pop %v836
        %v838 = vmul.f32 %v826, 1.442695
        %v839 = vpow.pop %v838
        %v840 = vmul.f32 %v827, 1.442695
        %v841 = vpow.pop %v840
        %v842 = vmul.f32 %v828, 1.442695
        %v843 = vpow.pop %v842
        %v844 = vmul.f32 %v829, 1.442695
        %v845 = vpow.pop %v844
        %v846 = vsel %vm414, %v831, 0.0
        %847 = vadd.xlane.f32.xlu0 %v846
        %v848 = vpop.xlane.xlu0 %847
        %v849 = vsel %vm414, %v833, 0.0
        %850 = vadd.xlane.f32.xlu0 %v849
        %v851 = vpop.xlane.xlu0 %850
        %v852 = vsel %vm414, %v835, 0.0
        %853 = vadd.xlane.f32.xlu0 %v852
        %v854 = vpop.xlane.xlu0 %853
        %v855 = vsel %vm414, %v837, 0.0
        %856 = vadd.xlane.f32.xlu0 %v855
        %v857 = vpop.xlane.xlu0 %856
        %v858 = vsel %vm414, %v839, 0.0
        %859 = vadd.xlane.f32.xlu0 %v858
        %v860 = vpop.xlane.xlu0 %859
        %v861 = vsel %vm414, %v841, 0.0
        %862 = vadd.xlane.f32.xlu0 %v861
        %v863 = vpop.xlane.xlu0 %862
        %v864 = vsel %vm414, %v843, 0.0
        %865 = vadd.xlane.f32.xlu0 %v864
        %v866 = vpop.xlane.xlu0 %865
        %v867 = vsel %vm414, %v845, 0.0
        %868 = vadd.xlane.f32.xlu0 %v867
        %v869 = vpop.xlane.xlu0 %868
        %v870 = vrcp.pop %v848
        %v871 = vmul.f32 %v831, %v870
        %v872 = vrcp.pop %v851
        %v873 = vmul.f32 %v833, %v872
        %v874 = vrcp.pop %v854
        %v875 = vmul.f32 %v835, %v874
        %v876 = vrcp.pop %v857
        %v877 = vmul.f32 %v837, %v876
        %v878 = vrcp.pop %v860
        %v879 = vmul.f32 %v839, %v878
        %v880 = vrcp.pop %v863
        %v881 = vmul.f32 %v841, %v880
        %v882 = vrcp.pop %v866
        %v883 = vmul.f32 %v843, %v882
        %v884 = vrcp.pop %v869
        %v885 = vmul.f32 %v845, %v884
        %886 = vst.msk [vmem:[%s328] sm:$0xff] %vm414, %v871
        %887 = vst.msk [vmem:[%s328 + $0x8] sm:$0xff] %vm414, %v873
        %888 = vst.msk [vmem:[%s328 + $0x10] sm:$0xff] %vm414, %v875
        %889 = vst.msk [vmem:[%s328 + $0x18] sm:$0xff] %vm414, %v877
        %890 = vst.msk [vmem:[%s328 + $0x20] sm:$0xff] %vm414, %v879
        %891 = vst.msk [vmem:[%s328 + $0x28] sm:$0xff] %vm414, %v881
        %892 = vst.msk [vmem:[%s328 + $0x30] sm:$0xff] %vm414, %v883
        %893 = vst.msk [vmem:[%s328 + $0x38] sm:$0xff] %vm414, %v885
        %v894 = vpack.c.bf16 %v873, %v871
        %v895 = vpack.c.bf16 %v877, %v875
        %v896 = vpack.c.bf16 %v881, %v879
        %v897 = vpack.c.bf16 %v885, %v883
        %v898 = vpack.c.bf16 %v673, %v670
        %v899 = vpack.c.bf16 %v681, %v678
        %v900 = vpack.c.bf16 %v689, %v686
        %v901 = vpack.c.bf16 %v697, %v694
        %v903 = vsel %vm414, %v894, 0
        %v906 = vsel %vm414, %v895, 0
        %v909 = vsel %vm414, %v896, 0
        %v912 = vsel %vm414, %v897, 0
        %914 = vmatprep.subr.bf16.mxu0 0
        %915 = vmatpush1.bf16.msra.mxu0 0
        %916 = vmatprep.subr.bf16.mxu0 0
        %917 = vmatpush1.bf16.msra.mxu0 0
        %918 = vmatprep.subr.bf16.mxu0 0
        %919 = vmatpush1.bf16.msra.mxu0 0
        %920 = vmatprep.subr.bf16.mxu0 0
        %921 = vmatpush1.bf16.msra.mxu0 0
        %922 = vmatprep.subr.bf16.mxu0 0
        %923 = vmatpush1.bf16.msra.mxu0 %v901
        %924 = vmatprep.subr.bf16.mxu0 0
        %925 = vmatpush1.bf16.msra.mxu0 %v900
        %926 = vmatprep.subr.bf16.mxu0 0
        %927 = vmatpush1.bf16.msra.mxu0 %v899
        %928 = vmatprep.subr.bf16.mxu0 0
        %929 = vmatpush1.bf16.msra.mxu0 %v898
        %930 = vmatprep.subr.bf16.mxu0 0
        %931 = vmatpush2.bf16.msra.mxu0 0
        %932 = vmatprep.subr.bf16.mxu0 0
        %933 = vmatpush2.bf16.msra.mxu0 0
        %934 = vmatprep.subr.bf16.mxu0 0
        %935 = vmatpush2.bf16.msra.mxu0 0
        %936 = vmatprep.subr.bf16.mxu0 0
        %937 = vmatpush2.bf16.msra.mxu0 0
        %938 = vmatprep.subr.bf16.mxu0 0
        %939 = vmatpush2.bf16.msra.mxu0 0
        %940 = vmatprep.subr.bf16.mxu0 0
        %941 = vmatpush2.bf16.msra.mxu0 0
        %942 = vmatprep.subr.bf16.mxu0 0
        %943 = vmatpush2.bf16.msra.mxu0 0
        %944 = vmatprep.subr.bf16.mxu0 0
        %945 = vmatpush2.bf16.msra.mxu0 0
        %946 = vmatprep.mubr.bf16.mxu0 0
        %947 = vmatmul.mubr.bf16.gmra.mxu0 %v903
        %v948 = vpop.f32.mrf.mxu0
        %v949 = vadd.f32 0.0, %v948
        %v950 = vpop.f32.mrf.mxu0
        %v951 = vpop.f32.mrf.mxu0
        %v952 = vadd.f32 0.0, %v951
        %v953 = vpop.f32.mrf.mxu0
        %954 = vmatprep.mubr.bf16.mxu0 0
        %955 = vmatmul.mubr.bf16.gmra.mxu0 %v906
        %v956 = vpop.f32.mrf.mxu0
        %v957 = vadd.f32 0.0, %v956
        %v958 = vpop.f32.mrf.mxu0
        %v959 = vpop.f32.mrf.mxu0
        %v960 = vadd.f32 0.0, %v959
        %v961 = vpop.f32.mrf.mxu0
        %962 = vmatprep.mubr.bf16.mxu0 0
        %963 = vmatmul.mubr.bf16.gmra.mxu0 %v909
        %v964 = vpop.f32.mrf.mxu0
        %v965 = vadd.f32 0.0, %v964
        %v966 = vpop.f32.mrf.mxu0
        %v967 = vpop.f32.mrf.mxu0
        %v968 = vadd.f32 0.0, %v967
        %v969 = vpop.f32.mrf.mxu0
        %970 = vmatprep.mubr.bf16.mxu0 0
        %971 = vmatmul.mubr.bf16.gmra.mxu0 %v912
        %v972 = vpop.f32.mrf.mxu0
        %v973 = vadd.f32 0.0, %v972
        %v974 = vpop.f32.mrf.mxu0
        %v975 = vpop.f32.mrf.mxu0
        %v976 = vadd.f32 0.0, %v975
        %v977 = vpop.f32.mrf.mxu0
        %978 = vdwg.mxu0
        %v979 = vld [vmem:[#allocation2] sm:$0x1]
        %s980 = vtos %v979
        %v981 = vunpack.c.l.bf16 %v347
        %v982 = vunpack.c.l.bf16 %v348
        %v983 = vunpack.c.l.bf16 %v349
        %v984 = vunpack.c.l.bf16 %v350
        %v985 = vunpack.c.l.bf16 %v351
        %v986 = vunpack.c.l.bf16 %v352
        %v987 = vunpack.c.l.bf16 %v353
        %v988 = vunpack.c.l.bf16 %v354
        %v989 = vstv %s980
        %v990 = vmul.f32 %v989, %v949
        %v991 = vmul.f32 %v989, %v952
        %v992 = vmul.f32 %v989, %v957
        %v993 = vmul.f32 %v989, %v960
        %v994 = vmul.f32 %v989, %v965
        %v995 = vmul.f32 %v989, %v968
        %v996 = vmul.f32 %v989, %v973
        %v997 = vmul.f32 %v989, %v976
        %v998 = vadd.f32 %v981, %v990
        %v999 = vadd.f32 %v982, %v991
        %v1000 = vadd.f32 %v983, %v992
        %v1001 = vadd.f32 %v984, %v993
        %v1002 = vadd.f32 %v985, %v994
        %v1003 = vadd.f32 %v986, %v995
        %v1004 = vadd.f32 %v987, %v996
        %v1005 = vadd.f32 %v988, %v997
        %v1006 = vpack.c.bf16 %v999, %v998
        %v1007 = vpack.c.bf16 %v1001, %v1000
        %v1008 = vpack.c.bf16 %v1003, %v1002
        %v1009 = vpack.c.bf16 %v1005, %v1004
        %v1014 = vunpack.c.l.b16 %v1006
        %v1015 = vunpack.c.h.b16 %v1006
        %v1016 = vunpack.c.l.b16 %v1007
        %v1017 = vunpack.c.h.b16 %v1007
        %v1018 = vunpack.c.l.b16 %v1008
        %v1019 = vunpack.c.h.b16 %v1008
        %v1020 = vunpack.c.l.b16 %v1009
        %v1021 = vunpack.c.h.b16 %v1009
        %v1022 = vpack.c.b16 %v1014, %v1014
        %v1023 = vpack.c.b16 %v1015, %v1015
        %v1024 = vpack.c.b16 %v1016, %v1016
        %v1025 = vpack.c.b16 %v1017, %v1017
        %v1026 = vpack.c.b16 %v1018, %v1018
        %v1027 = vpack.c.b16 %v1019, %v1019
        %v1028 = vpack.c.b16 %v1020, %v1020
        %v1029 = vpack.c.b16 %v1021, %v1021
        %vm1038 = vcmask 519168
        %1039 = vst.msk [vmem:[%s345] sm:$0xf] %vm1038, %v1022
        %1040 = vst.msk [vmem:[%s345 + $0x4] sm:$0xf] %vm1038, %v1023
        %1041 = vst.msk [vmem:[%s345 + $0x8] sm:$0xf] %vm1038, %v1024
        %1042 = vst.msk [vmem:[%s345 + $0xc] sm:$0xf] %vm1038, %v1025
        %1043 = vst.msk [vmem:[%s345 + $0x10] sm:$0xf] %vm1038, %v1026
        %1044 = vst.msk [vmem:[%s345 + $0x14] sm:$0xf] %vm1038, %v1027
        %1045 = vst.msk [vmem:[%s345 + $0x18] sm:$0xf] %vm1038, %v1028
        %1046 = vst.msk [vmem:[%s345 + $0x1c] sm:$0xf] %vm1038, %v1029
        %s1047 = sand.u32 %s207, 1
        %s1048 = scalar_lea.sflag [#allocation4], %s1047
        %s1049 = sand.u32 %s207, 1
        %s1050 = smul.addr %s1049, 64
        %s1051 = scalar_lea.vmem [#allocation3], %s1050
        %p1052 = scmp.lt.s32.totalorder %s26, 1
        %s1053 = scalar_select %p1052, %s26, 1
        %s1054 = smul.addr %s1053, 8
        %s1055 = smul.addr %s1054, 4
        %s1056 = scalar_lea.vmem %s9, %s1055
        // Predicated region
        $region53: #{discriminator_forward.9} parent=51 // pred_check
          %p1057 = pneg %p217
        $region54: #{discriminator_forward.9} parent=51 // pred_check_branch
          %1059 = sbr.rel (%p1057) target = $region56
        $region55: #{discriminator_forward.9} parent=51 // pred_region
          %s1061 = ssub.s32 1024, 1024
          %1062 = vsyncadd %s1048, %s1061
          %s1063 = smul.addr %s26, 8
          %s1064 = smul.addr %s1063, 128
          %s1065 = scalar_lea.hbm %s8, %s1064
          %s1066 = sshll.u32 %s1051, 4
          %s1067 = int_to_ptr.vmem [resolvable:$true] %s1066
          %1072 = dma.vmem_to_hbm [thread:$0]  %s1067, 1024, %s1065, %s1048, 128, 128, 8
        $region56: #{discriminator_forward.9} parent=51 // pred_fallthru
          _
        // Predicated region
        $region57: #{discriminator_forward.9} parent=51 // pred_check
          %p1073 = pneg %p243
        $region58: #{discriminator_forward.9} parent=51 // pred_check_branch
          %1075 = sbr.rel (%p1073) target = $region60
        $region59: #{discriminator_forward.9} parent=51 // pred_region
          _
        $region60: #{discriminator_forward.9} parent=51 // pred_fallthru
          _
      $region52: #{discriminator_forward.9} parent=5 // pred_fallthru
        _
      %p1076 = scmp.le.s32.totalorder 2, %s21
      // Predicated region
      $region61: #{discriminator_forward.9} parent=5 // pred_check
        %p1077 = pneg %p1076
      $region62: #{discriminator_forward.9} parent=5 // pred_check_branch
        %1079 = sbr.rel (%p1077) target = $region64
      $region63: #{discriminator_forward.9} parent=5 // pred_region
        %s1080 = ssub.s32 %s21, 2
        // Predicated region
        $region65: #{discriminator_forward.9} parent=63 // pred_check
          %p1081 = pneg %p223
        $region66: #{discriminator_forward.9} parent=63 // pred_check_branch
          %1083 = sbr.rel (%p1081) target = $region68
        $region67: #{discriminator_forward.9} parent=63 // pred_region
          %s1084 = sand.u32 %s208, 1
          %s1085 = scalar_lea.sflag [#allocation4], %s1084
          %s1086 = sand.u32 %s208, 1
          %s1087 = smul.addr %s1086, 64
          %s1088 = scalar_lea.vmem [#allocation3], %s1087
          %1089 = dma.done %s1085, 1024
        $region68: #{discriminator_forward.9} parent=63 // pred_fallthru
          _
        // Predicated region
        $region69: #{discriminator_forward.9} parent=63 // pred_check
          %p1090 = pneg %p249
        $region70: #{discriminator_forward.9} parent=63 // pred_check_branch
          %1092 = sbr.rel (%p1090) target = $region72
        $region71: #{discriminator_forward.9} parent=63 // pred_region
          %p1093 = scmp.lt.s32.totalorder %s27, 1
          %s1094 = scalar_select %p1093, %s27, 1
          %s1095 = smul.addr %s1094, 8
          %s1096 = smul.addr %s1095, 4
          %s1097 = scalar_lea.vmem %s9, %s1096
        $region72: #{discriminator_forward.9} parent=63 // pred_fallthru
          _
      $region64: #{discriminator_forward.9} parent=5 // pred_fallthru
        _
    $region6: #{discriminator_forward.9} parent=1 // loop_footer
      %s25 = sadd.s32 1, %s21
    $region7: #{discriminator_forward.9} parent=1 // loop_footer_branch
      %20 = sbr.rel target = $region3
    $region8: #{discriminator_forward.9} parent=1 // loop_exit
      _
    %1098 = vsyncpa [#allocation4], 1
    %s1099 = scalar_lea.sflag [#allocation4], 1
    %1100 = vsyncpa %s1099, 1

// kernel: discriminator_forward.11
$region0: #{discriminator_forward.11}
  #allocation0 [shape = 'u32[]', space=smem, size = 0x4, offset = 0x4, fixed_abs, tag = 'smem constant byte address 0x4 - core index']
  #allocation1 [shape = 'u32[144,128]{1,0:T(1,128)}', space=vmem, size = 0x12000, scoped, tag = 'internal scratch']
  #allocation2 [shape = 'f32[1,1]{1,0:T(1,128)S(1)}', space=vmem, size = 0x200, scoped, tag = 'scoped memory for discriminator_forward.11']
  %s0 = inlined_call_operand.vmem [shape: bf16[2,16,128], index: 0, kind: input, shape index: {}]
  %s1 = inlined_call_operand.vmem [shape: bf16[128,16], index: 1, kind: input, shape index: {}]
  %s2 = inlined_call_operand.vmem [shape: bf16[128,16], index: 2, kind: input, shape index: {}]
  %s3 = inlined_call_operand.vmem [shape: bf16[128,128], index: 3, kind: input, shape index: {}]
  %s4 = inlined_call_operand.vmem [shape: f32[1,16], index: 4, kind: input, shape index: {}]
  %s5 = inlined_call_operand.vmem [shape: f32[1,16], index: 5, kind: input, shape index: {}]
  %s6 = inlined_call_operand.vmem [shape: f32[1,128], index: 6, kind: input, shape index: {}]
  %s7 = inlined_call_operand.<no memory space> [shape: f32[1,1], index: 7, kind: input, shape index: {}]
  %s8 = inlined_call_operand.hbm [shape: f32[2,16,16], index: 8, kind: output, shape index: {0}]
  %s9 = inlined_call_operand.vmem [shape: bf16[2,16,128], index: 9, kind: output, shape index: {1}]
  %10 = xla_tuple %s8, %s9
  %s11 = sld [smem:[#allocation0]]
  $region73: #{discriminator_forward.11} parent=0
    _
  %s13 = ssub.s32 1, %s11
  %s14 = scalar_select 0, %s13, %s11
  %v15 = vstv %s7
  %16 = vst [vmem:[#allocation2] sm:$0x1] %v15
  $region1: #{discriminator_forward.11} parent=0
    #allocation3 [shape = 'u8[16384]{0}', space=vmem, size = 0x4000, scoped, tag = 'output window, operand 0']
    #allocation4 [shape = 's32[2]{0}', space=sflag, size = 0x8, scoped, tag = 'scoped memory for discriminator_forward.11']
    %17 = vsyncpa [#allocation4], 0
    %s18 = scalar_lea.sflag [#allocation4], 1
    %19 = vsyncpa %s18, 0
    loop: start=0, step=1, limit=4
    $region2: #{discriminator_forward.11} parent=1 // loop_pre_header
      _
    $region3: #{discriminator_forward.11} parent=1 // loop_header
      %s21 = sphi 0, %s25
      %p22 = scmp.ge.s32.totalorder %s21, 4
      %s31 = sphi 0, %s33
      %s34 = sphi 0, %s31
      %s35 = sphi 0, %s34
      %s51 = sphi 0, %s35
      %s55 = sphi 0, %s55
      %s57 = sphi 0, %s55
      %s58 = sphi 0, %s57
      %s72 = sphi 0, %s58
      %s76 = sphi 0, %s76
      %s78 = sphi 0, %s76
      %s79 = sphi 0, %s78
      %s93 = sphi 0, %s79
      %s97 = sphi 0, %s97
      %s99 = sphi 0, %s97
      %s100 = sphi 0, %s99
      %s114 = sphi 0, %s100
      %s118 = sphi 0, %s118
      %s120 = sphi 0, %s118
      %s121 = sphi 0, %s120
      %s135 = sphi 0, %s121
      %s139 = sphi 0, %s139
      %s141 = sphi 0, %s139
      %s142 = sphi 0, %s141
      %s156 = sphi 0, %s142
      %s160 = sphi 0, %s160
      %s162 = sphi 0, %s160
      %s163 = sphi 0, %s162
      %s177 = sphi 0, %s163
      %s181 = sphi 0, %s181
      %s183 = sphi 0, %s181
      %s184 = sphi 0, %s183
      %s198 = sphi 0, %s184
      %s204 = sphi 0, %s206
      %s207 = sphi 0, %s204
      %s208 = sphi 0, %s207
      %s224 = sphi 0, %s208
      %s230 = sphi 0, %s232
      %s233 = sphi 0, %s230
      %s234 = sphi 0, %s233
      %s250 = sphi 0, %s234
    $region4: #{discriminator_forward.11} parent=1 // loop_header_branch
      %24 = sbr.rel (%p22) target = $region8
    $region5: #{discriminator_forward.11} parent=1 // loop_body
      %s26 = ssub.s32 %s21, 1
      %s27 = ssub.s32 %s21, 2
      %s28 = sadd.s32 %s21, 1
      %s29 = ssub.s32 %s21, %s28
      %p30 = scmp.eq.s32.totalorder %s29, 0
      %s32 = sadd.s32 %s31, 1
      %s33 = scalar_select %p30, %s31, %s32
      %p36 = pneg %p30
      %p37 = scmp.eq.s32.totalorder %s21, 1
      %p38 = por %p36, %p37
      %p39 = scmp.ne.s32.totalorder %s31, %s34
      %p40 = scmp.eq.s32.totalorder %s21, 0
      %p41 = por %p39, %p40
      %p42 = scmp.ne.s32.totalorder %s31, %s34
      %p43 = scmp.eq.s32.totalorder %s26, 1
      %p44 = por %p42, %p43
      %p45 = scmp.ne.s32.totalorder %s34, %s35
      %p46 = scmp.eq.s32.totalorder %s26, 0
      %p47 = por %p45, %p46
      %p48 = scmp.ne.s32.totalorder %s34, %s35
      %p49 = scmp.eq.s32.totalorder %s27, 1
      %p50 = por %p48, %p49
      %p52 = scmp.ne.s32.totalorder %s35, %s51
      %p53 = scmp.eq.s32.totalorder %s27, 0
      %p54 = por %p52, %p53
      %s56 = sadd.s32 %s55, 1
      %p59 = scmp.eq.s32.totalorder %s21, 1
      %p60 = scmp.ne.s32.totalorder %s55, %s57
      %p61 = scmp.eq.s32.totalorder %s21, 0
      %p62 = por %p60, %p61
      %p63 = scmp.ne.s32.totalorder %s55, %s57
      %p64 = scmp.eq.s32.totalorder %s26, 1
      %p65 = por %p63, %p64
      %p66 = scmp.ne.s32.totalorder %s57, %s58
      %p67 = scmp.eq.s32.totalorder %s26, 0
      %p68 = por %p66, %p67
      %p69 = scmp.ne.s32.totalorder %s57, %s58
      %p70 = scmp.eq.s32.totalorder %s27, 1
      %p71 = por %p69, %p70
      %p73 = scmp.ne.s32.totalorder %s58, %s72
      %p74 = scmp.eq.s32.totalorder %s27, 0
      %p75 = por %p73, %p74
      %s77 = sadd.s32 %s76, 1
      %p80 = scmp.eq.s32.totalorder %s21, 1
      %p81 = scmp.ne.s32.totalorder %s76, %s78
      %p82 = scmp.eq.s32.totalorder %s21, 0
      %p83 = por %p81, %p82
      %p84 = scmp.ne.s32.totalorder %s76, %s78
      %p85 = scmp.eq.s32.totalorder %s26, 1
      %p86 = por %p84, %p85
      %p87 = scmp.ne.s32.totalorder %s78, %s79
      %p88 = scmp.eq.s32.totalorder %s26, 0
      %p89 = por %p87, %p88
      %p90 = scmp.ne.s32.totalorder %s78, %s79
      %p91 = scmp.eq.s32.totalorder %s27, 1
      %p92 = por %p90, %p91
      %p94 = scmp.ne.s32.totalorder %s79, %s93
      %p95 = scmp.eq.s32.totalorder %s27, 0
      %p96 = por %p94, %p95
      %s98 = sadd.s32 %s97, 1
      %p101 = scmp.eq.s32.totalorder %s21, 1
      %p102 = scmp.ne.s32.totalorder %s97, %s99
      %p103 = scmp.eq.s32.totalorder %s21, 0
      %p104 = por %p102, %p103
      %p105 = scmp.ne.s32.totalorder %s97, %s99
      %p106 = scmp.eq.s32.totalorder %s26, 1
      %p107 = por %p105, %p106
      %p108 = scmp.ne.s32.totalorder %s99, %s100
      %p109 = scmp.eq.s32.totalorder %s26, 0
      %p110 = por %p108, %p109
      %p111 = scmp.ne.s32.totalorder %s99, %s100
      %p112 = scmp.eq.s32.totalorder %s27, 1
      %p113 = por %p111, %p112
      %p115 = scmp.ne.s32.totalorder %s100, %s114
      %p116 = scmp.eq.s32.totalorder %s27, 0
      %p117 = por %p115, %p116
      %s119 = sadd.s32 %s118, 1
      %p122 = scmp.eq.s32.totalorder %s21, 1
      %p123 = scmp.ne.s32.totalorder %s118, %s120
      %p124 = scmp.eq.s32.totalorder %s21, 0
      %p125 = por %p123, %p124
      %p126 = scmp.ne.s32.totalorder %s118, %s120
      %p127 = scmp.eq.s32.totalorder %s26, 1
      %p128 = por %p126, %p127
      %p129 = scmp.ne.s32.totalorder %s120, %s121
      %p130 = scmp.eq.s32.totalorder %s26, 0
      %p131 = por %p129, %p130
      %p132 = scmp.ne.s32.totalorder %s120, %s121
      %p133 = scmp.eq.s32.totalorder %s27, 1
      %p134 = por %p132, %p133
      %p136 = scmp.ne.s32.totalorder %s121, %s135
      %p137 = scmp.eq.s32.totalorder %s27, 0
      %p138 = por %p136, %p137
      %s140 = sadd.s32 %s139, 1
      %p143 = scmp.eq.s32.totalorder %s21, 1
      %p144 = scmp.ne.s32.totalorder %s139, %s141
      %p145 = scmp.eq.s32.totalorder %s21, 0
      %p146 = por %p144, %p145
      %p147 = scmp.ne.s32.totalorder %s139, %s141
      %p148 = scmp.eq.s32.totalorder %s26, 1
      %p149 = por %p147, %p148
      %p150 = scmp.ne.s32.totalorder %s141, %s142
      %p151 = scmp.eq.s32.totalorder %s26, 0
      %p152 = por %p150, %p151
      %p153 = scmp.ne.s32.totalorder %s141, %s142
      %p154 = scmp.eq.s32.totalorder %s27, 1
      %p155 = por %p153, %p154
      %p157 = scmp.ne.s32.totalorder %s142, %s156
      %p158 = scmp.eq.s32.totalorder %s27, 0
      %p159 = por %p157, %p158
      %s161 = sadd.s32 %s160, 1
      %p164 = scmp.eq.s32.totalorder %s21, 1
      %p165 = scmp.ne.s32.totalorder %s160, %s162
      %p166 = scmp.eq.s32.totalorder %s21, 0
      %p167 = por %p165, %p166
      %p168 = scmp.ne.s32.totalorder %s160, %s162
      %p169 = scmp.eq.s32.totalorder %s26, 1
      %p170 = por %p168, %p169
      %p171 = scmp.ne.s32.totalorder %s162, %s163
      %p172 = scmp.eq.s32.totalorder %s26, 0
      %p173 = por %p171, %p172
      %p174 = scmp.ne.s32.totalorder %s162, %s163
      %p175 = scmp.eq.s32.totalorder %s27, 1
      %p176 = por %p174, %p175
      %p178 = scmp.ne.s32.totalorder %s163, %s177
      %p179 = scmp.eq.s32.totalorder %s27, 0
      %p180 = por %p178, %p179
      %s182 = sadd.s32 %s181, 1
      %p185 = scmp.eq.s32.totalorder %s21, 1
      %p186 = scmp.ne.s32.totalorder %s181, %s183
      %p187 = scmp.eq.s32.totalorder %s21, 0
      %p188 = por %p186, %p187
      %p189 = scmp.ne.s32.totalorder %s181, %s183
      %p190 = scmp.eq.s32.totalorder %s26, 1
      %p191 = por %p189, %p190
      %p192 = scmp.ne.s32.totalorder %s183, %s184
      %p193 = scmp.eq.s32.totalorder %s26, 0
      %p194 = por %p192, %p193
      %p195 = scmp.ne.s32.totalorder %s183, %s184
      %p196 = scmp.eq.s32.totalorder %s27, 1
      %p197 = por %p195, %p196
      %p199 = scmp.ne.s32.totalorder %s184, %s198
      %p200 = scmp.eq.s32.totalorder %s27, 0
      %p201 = por %p199, %p200
      %s202 = ssub.s32 %s21, %s28
      %p203 = scmp.eq.s32.totalorder %s202, 0
      %s205 = sadd.s32 %s204, 1
      %s206 = scalar_select %p203, %s204, %s205
      %p209 = pneg %p203
      %p210 = scmp.eq.s32.totalorder %s21, 1
      %p211 = por %p209, %p210
      %p212 = scmp.ne.s32.totalorder %s204, %s207
      %p213 = scmp.eq.s32.totalorder %s21, 0
      %p214 = por %p212, %p213
      %p215 = scmp.ne.s32.totalorder %s204, %s207
      %p216 = scmp.eq.s32.totalorder %s26, 1
      %p217 = por %p215, %p216
      %p218 = scmp.ne.s32.totalorder %s207, %s208
      %p219 = scmp.eq.s32.totalorder %s26, 0
      %p220 = por %p218, %p219
      %p221 = scmp.ne.s32.totalorder %s207, %s208
      %p222 = scmp.eq.s32.totalorder %s27, 1
      %p223 = por %p221, %p222
      %p225 = scmp.ne.s32.totalorder %s208, %s224
      %p226 = scmp.eq.s32.totalorder %s27, 0
      %p227 = por %p225, %p226
      %s228 = ssub.s32 %s21, %s28
      %p229 = scmp.eq.s32.totalorder %s228, 0
      %s231 = sadd.s32 %s230, 1
      %s232 = scalar_select %p229, %s230, %s231
      %p235 = pneg %p229
      %p236 = scmp.eq.s32.totalorder %s21, 1
      %p237 = por %p235, %p236
      %p238 = scmp.ne.s32.totalorder %s230, %s233
      %p239 = scmp.eq.s32.totalorder %s21, 0
      %p240 = por %p238, %p239
      %p241 = scmp.ne.s32.totalorder %s230, %s233
      %p242 = scmp.eq.s32.totalorder %s26, 1
      %p243 = por %p241, %p242
      %p244 = scmp.ne.s32.totalorder %s233, %s234
      %p245 = scmp.eq.s32.totalorder %s26, 0
      %p246 = por %p244, %p245
      %p247 = scmp.ne.s32.totalorder %s233, %s234
      %p248 = scmp.eq.s32.totalorder %s27, 1
      %p249 = por %p247, %p248
      %p251 = scmp.ne.s32.totalorder %s234, %s250
      %p252 = scmp.eq.s32.totalorder %s27, 0
      %p253 = por %p251, %p252
      %p254 = scmp.le.s32.totalorder 1, %s21
      %p255 = scmp.lt.s32.totalorder %s21, 3
      %p256 = pnand %p254, %p255
      %p257 = pneg %p256
      // Predicated region
      $region9: #{discriminator_forward.11} parent=5 // pred_check
        _
      $region10: #{discriminator_forward.11} parent=5 // pred_check_branch
        %259 = sbr.rel (%p256) target = $region12
      $region11: #{discriminator_forward.11} parent=5 // pred_region
        %s260 = ssub.s32 %s21, 1
        // Predicated region
        $region13: #{discriminator_forward.11} parent=11 // pred_check
          %p261 = pneg %p68
        $region14: #{discriminator_forward.11} parent=11 // pred_check_branch
          %263 = sbr.rel (%p261) target = $region16
        $region15: #{discriminator_forward.11} parent=11 // pred_region
          _
        $region16: #{discriminator_forward.11} parent=11 // pred_fallthru
          _
        // Predicated region
        $region17: #{discriminator_forward.11} parent=11 // pred_check
          %p264 = pneg %p89
        $region18: #{discriminator_forward.11} parent=11 // pred_check_branch
          %266 = sbr.rel (%p264) target = $region20
        $region19: #{discriminator_forward.11} parent=11 // pred_region
          _
        $region20: #{discriminator_forward.11} parent=11 // pred_fallthru
          _
        // Predicated region
        $region21: #{discriminator_forward.11} parent=11 // pred_check
          %p267 = pneg %p110
        $region22: #{discriminator_forward.11} parent=11 // pred_check_branch
          %269 = sbr.rel (%p267) target = $region24
        $region23: #{discriminator_forward.11} parent=11 // pred_region
          _
        $region24: #{discriminator_forward.11} parent=11 // pred_fallthru
          _
        // Predicated region
        $region25: #{discriminator_forward.11} parent=11 // pred_check
          %p270 = pneg %p131
        $region26: #{discriminator_forward.11} parent=11 // pred_check_branch
          %272 = sbr.rel (%p270) target = $region28
        $region27: #{discriminator_forward.11} parent=11 // pred_region
          _
        $region28: #{discriminator_forward.11} parent=11 // pred_fallthru
          _
        // Predicated region
        $region29: #{discriminator_forward.11} parent=11 // pred_check
          %p273 = pneg %p152
        $region30: #{discriminator_forward.11} parent=11 // pred_check_branch
          %275 = sbr.rel (%p273) target = $region32
        $region31: #{discriminator_forward.11} parent=11 // pred_region
          _
        $region32: #{discriminator_forward.11} parent=11 // pred_fallthru
          _
        // Predicated region
        $region33: #{discriminator_forward.11} parent=11 // pred_check
          %p276 = pneg %p173
        $region34: #{discriminator_forward.11} parent=11 // pred_check_branch
          %278 = sbr.rel (%p276) target = $region36
        $region35: #{discriminator_forward.11} parent=11 // pred_region
          _
        $region36: #{discriminator_forward.11} parent=11 // pred_fallthru
          _
        // Predicated region
        $region37: #{discriminator_forward.11} parent=11 // pred_check
          %p279 = pneg %p194
        $region38: #{discriminator_forward.11} parent=11 // pred_check_branch
          %281 = sbr.rel (%p279) target = $region40
        $region39: #{discriminator_forward.11} parent=11 // pred_region
          _
        $region40: #{discriminator_forward.11} parent=11 // pred_fallthru
          _
      $region12: #{discriminator_forward.11} parent=5 // pred_fallthru
        _
      %p282 = scmp.lt.s32.totalorder %s21, 2
      // Predicated region
      $region41: #{discriminator_forward.11} parent=5 // pred_check
        %p283 = pneg %p282
      $region42: #{discriminator_forward.11} parent=5 // pred_check_branch
        %285 = sbr.rel (%p283) target = $region44
      $region43: #{discriminator_forward.11} parent=5 // pred_region
        // Predicated region
        $region45: #{discriminator_forward.11} parent=43 // pred_check
          %p286 = pneg %p41
        $region46: #{discriminator_forward.11} parent=43 // pred_check_branch
          %288 = sbr.rel (%p286) target = $region48
        $region47: #{discriminator_forward.11} parent=43 // pred_region
          %p289 = scmp.lt.s32.totalorder %s21, 1
          %s290 = scalar_select %p289, %s21, 1
          %s291 = smul.addr %s290, 2
          %s292 = smul.addr %s291, 4
          %s293 = scalar_lea.vmem %s0, %s292
        $region48: #{discriminator_forward.11} parent=43 // pred_fallthru
          _
      $region44: #{discriminator_forward.11} parent=5 // pred_fallthru
        _
      %p294 = scmp.le.s32.totalorder 1, %s21
      %p295 = scmp.lt.s32.totalorder %s21, 3
      %p296 = pnand %p294, %p295
      %p297 = pneg %p296
      // Predicated region
      $region49: #{discriminator_forward.11} parent=5 // pred_check
        _
      $region50: #{discriminator_forward.11} parent=5 // pred_check_branch
        %299 = sbr.rel (%p296) target = $region52
      $region51: #{discriminator_forward.11} parent=5 // pred_region
        %s300 = ssub.s32 %s21, 1
        %p301 = scmp.lt.s32.totalorder %s26, 1
        %s302 = scalar_select %p301, %s26, 1
        %s303 = smul.addr %s302, 2
        %s304 = smul.addr %s303, 4
        %s305 = scalar_lea.vmem %s0, %s304
        %p306 = pneg %p47
        %p307 = pneg %p44
        %p308 = pneg %p68
        %p309 = pneg %p65
        %p310 = pneg %p89
        %p311 = pneg %p86
        %p312 = pneg %p110
        %p313 = pneg %p107
        %p314 = pneg %p131
        %p315 = pneg %p128
        %p316 = pneg %p152
        %p317 = pneg %p149
        %p318 = pneg %p173
        %p319 = pneg %p170
        %p320 = pneg %p194
        %p321 = pneg %p191
        %p322 = pneg %p220
        %p323 = pneg %p217
        %s324 = sand.u32 %s207, 1
        %s325 = scalar_lea.sflag [#allocation4], %s324
        %s326 = sand.u32 %s207, 1
        %s327 = smul.addr %s326, 16
        %s328 = scalar_lea.vmem [#allocation3], %s327
        %p329 = pneg %p246
        %p330 = pneg %p243
        %p331 = scmp.lt.s32.totalorder %s26, 1
        %s332 = scalar_select %p331, %s26, 1
        %s333 = smul.addr %s332, 2
        %s334 = smul.addr %s333, 4
        %s335 = scalar_lea.vmem %s9, %s334
        %p336 = scmp.lt.s32.totalorder %s26, 1
        %s337 = scalar_select %p336, %s26, 1
        %s338 = smul.addr %s337, 2
        %s339 = smul.addr %s338, 4
        %s340 = scalar_lea.vmem %s0, %s339
        %p341 = scmp.lt.s32.totalorder %s26, 1
        %s342 = scalar_select %p341, %s26, 1
        %s343 = smul.addr %s342, 2
        %s344 = smul.addr %s343, 4
        %s345 = scalar_lea.vmem %s9, %s344
        %v347 = vld [vmem:[%s340] sm:$0xf]
        %v348 = vld [vmem:[%s340 + $0x4] sm:$0xf]
        %v349 = vld [vmem:[%s1] sm:$0xf]
        %v350 = vld [vmem:[%s1 + $0x4] sm:$0xf]
        %v351 = vld [vmem:[%s1 + $0x8] sm:$0xf]
        %v352 = vld [vmem:[%s1 + $0xc] sm:$0xf]
        %v353 = vld [vmem:[%s1 + $0x10] sm:$0xf]
        %v354 = vld [vmem:[%s1 + $0x14] sm:$0xf]
        %v355 = vld [vmem:[%s1 + $0x18] sm:$0xf]
        %v356 = vld [vmem:[%s1 + $0x1c] sm:$0xf]
        %v357 = vld [vmem:[%s1 + $0x20] sm:$0xf]
        %v358 = vld [vmem:[%s1 + $0x24] sm:$0xf]
        %v359 = vld [vmem:[%s1 + $0x28] sm:$0xf]
        %v360 = vld [vmem:[%s1 + $0x2c] sm:$0xf]
        %v361 = vld [vmem:[%s1 + $0x30] sm:$0xf]
        %v362 = vld [vmem:[%s1 + $0x34] sm:$0xf]
        %v363 = vld [vmem:[%s1 + $0x38] sm:$0xf]
        %v364 = vld [vmem:[%s1 + $0x3c] sm:$0xf]
        %v365 = vld [vmem:[%s4] sm:$0x1]
        %v367 = vlaneseq
        %v368 = vshrl.u32 %v367, 7
        %v369 = vsub.s32 0, %v368
        %v370 = vrot.slane %v365, %v369
        %v374 = vunpack.c.l.b16 %v347
        %v375 = vunpack.c.l.b16 %v348
        %v376 = vpack.c.b16 %v375, %v374
        %v394 = vunpack.c.l.b16 %v349
        %v395 = vunpack.c.l.b16 %v350
        %v396 = vunpack.c.l.b16 %v351
        %v397 = vunpack.c.l.b16 %v352
        %v398 = vunpack.c.l.b16 %v353
        %v399 = vunpack.c.l.b16 %v354
        %v400 = vunpack.c.l.b16 %v355
        %v401 = vunpack.c.l.b16 %v356
        %v402 = vunpack.c.l.b16 %v357
        %v403 = vunpack.c.l.b16 %v358
        %v404 = vunpack.c.l.b16 %v359
        %v405 = vunpack.c.l.b16 %v360
        %v406 = vunpack.c.l.b16 %v361
        %v407 = vunpack.c.l.b16 %v362
        %v408 = vunpack.c.l.b16 %v363
        %v409 = vunpack.c.l.b16 %v364
        %v410 = vpack.c.b16 %v395, %v394
        %v411 = vpack.c.b16 %v397, %v396
        %v412 = vpack.c.b16 %v399, %v398
        %v413 = vpack.c.b16 %v401, %v400
        %v414 = vpack.c.b16 %v403, %v402
        %v415 = vpack.c.b16 %v405, %v404
        %v416 = vpack.c.b16 %v407, %v406
        %v417 = vpack.c.b16 %v409, %v408
        %426 = vmatprep.subr.bf16.mxu0 0
        %427 = vmatpush1.bf16.msra.mxu0 %v417
        %428 = vmatprep.subr.bf16.mxu0 0
        %429 = vmatpush1.bf16.msra.mxu0 %v416
        %430 = vmatprep.subr.bf16.mxu0 0
        %431 = vmatpush1.bf16.msra.mxu0 %v415
        %432 = vmatprep.subr.bf16.mxu0 0
        %433 = vmatpush1.bf16.msra.mxu0 %v414
        %434 = vmatprep.subr.bf16.mxu0 0
        %435 = vmatpush1.bf16.msra.mxu0 %v413
        %436 = vmatprep.subr.bf16.mxu0 0
        %437 = vmatpush1.bf16.msra.mxu0 %v412
        %438 = vmatprep.subr.bf16.mxu0 0
        %439 = vmatpush1.bf16.msra.mxu0 %v411
        %440 = vmatprep.subr.bf16.mxu0 0
        %441 = vmatpush1.bf16.msra.mxu0 %v410
        %442 = vmatprep.subr.bf16.mxu0 0
        %443 = vmatpush2.bf16.msra.mxu0 0
        %444 = vmatprep.subr.bf16.mxu0 0
        %445 = vmatpush2.bf16.msra.mxu0 0
        %446 = vmatprep.subr.bf16.mxu0 0
        %447 = vmatpush2.bf16.msra.mxu0 0
        %448 = vmatprep.subr.bf16.mxu0 0
        %449 = vmatpush2.bf16.msra.mxu0 0
        %450 = vmatprep.subr.bf16.mxu0 0
        %451 = vmatpush2.bf16.msra.mxu0 0
        %452 = vmatprep.subr.bf16.mxu0 0
        %453 = vmatpush2.bf16.msra.mxu0 0
        %454 = vmatprep.subr.bf16.mxu0 0
        %455 = vmatpush2.bf16.msra.mxu0 0
        %456 = vmatprep.subr.bf16.mxu0 0
        %457 = vmatpush2.bf16.msra.mxu0 0
        %458 = vmatprep.mubr.bf16.mxu0 0
        %459 = vmatmul.mubr.bf16.gmra.mxu0 %v376
        %v460 = vpop.f32.mrf.mxu0
        %v461 = vadd.f32 %v370, %v460
        %v462 = vpop.f32.mrf.mxu0
        %v463 = vpop.f32.mrf.mxu0
        %v464 = vadd.f32 %v370, %v463
        %v465 = vpop.f32.mrf.mxu0
        %466 = vdwg.mxu0
        %v467 = vld [vmem:[%s2] sm:$0xf]
        %v468 = vld [vmem:[%s2 + $0x4] sm:$0xf]
        %v469 = vld [vmem:[%s2 + $0x8] sm:$0xf]
        %v470 = vld [vmem:[%s2 + $0xc] sm:$0xf]
        %v471 = vld [vmem:[%s2 + $0x10] sm:$0xf]
        %v472 = vld [vmem:[%s2 + $0x14] sm:$0xf]
        %v473 = vld [vmem:[%s2 + $0x18] sm:$0xf]
        %v474 = vld [vmem:[%s2 + $0x1c] sm:$0xf]
        %v475 = vld [vmem:[%s2 + $0x20] sm:$0xf]
        %v476 = vld [vmem:[%s2 + $0x24] sm:$0xf]
        %v477 = vld [vmem:[%s2 + $0x28] sm:$0xf]
        %v478 = vld [vmem:[%s2 + $0x2c] sm:$0xf]
        %v479 = vld [vmem:[%s2 + $0x30] sm:$0xf]
        %v480 = vld [vmem:[%s2 + $0x34] sm:$0xf]
        %v481 = vld [vmem:[%s2 + $0x38] sm:$0xf]
        %v482 = vld [vmem:[%s2 + $0x3c] sm:$0xf]
        %v483 = vld [vmem:[%s5] sm:$0x1]
        %v485 = vlaneseq
        %v486 = vshrl.u32 %v485, 7
        %v487 = vsub.s32 0, %v486
        %v488 = vrot.slane %v483, %v487
        %v506 = vunpack.c.l.b16 %v467
        %v507 = vunpack.c.l.b16 %v468
        %v508 = vunpack.c.l.b16 %v469
        %v509 = vunpack.c.l.b16 %v470
        %v510 = vunpack.c.l.b16 %v471
        %v511 = vunpack.c.l.b16 %v472
        %v512 = vunpack.c.l.b16 %v473
        %v513 = vunpack.c.l.b16 %v474
        %v514 = vunpack.c.l.b16 %v475
        %v515 = vunpack.c.l.b16 %v476
        %v516 = vunpack.c.l.b16 %v477
        %v517 = vunpack.c.l.b16 %v478
        %v518 = vunpack.c.l.b16 %v479
        %v519 = vunpack.c.l.b16 %v480
        %v520 = vunpack.c.l.b16 %v481
        %v521 = vunpack.c.l.b16 %v482
        %v522 = vpack.c.b16 %v507, %v506
        %v523 = vpack.c.b16 %v509, %v508
        %v524 = vpack.c.b16 %v511, %v510
        %v525 = vpack.c.b16 %v513, %v512
        %v526 = vpack.c.b16 %v515, %v514
        %v527 = vpack.c.b16 %v517, %v516
        %v528 = vpack.c.b16 %v519, %v518
        %v529 = vpack.c.b16 %v521, %v520
        %538 = vmatprep.subr.bf16.mxu0 0
        %539 = vmatpush1.bf16.msra.mxu0 %v529
        %540 = vmatprep.subr.bf16.mxu0 0
        %541 = vmatpush1.bf16.msra.mxu0 %v528
        %542 = vmatprep.subr.bf16.mxu0 0
        %543 = vmatpush1.bf16.msra.mxu0 %v527
        %544 = vmatprep.subr.bf16.mxu0 0
        %545 = vmatpush1.bf16.msra.mxu0 %v526
        %546 = vmatprep.subr.bf16.mxu0 0
        %547 = vmatpush1.bf16.msra.mxu0 %v525
        %548 = vmatprep.subr.bf16.mxu0 0
        %549 = vmatpush1.bf16.msra.mxu0 %v524
        %550 = vmatprep.subr.bf16.mxu0 0
        %551 = vmatpush1.bf16.msra.mxu0 %v523
        %552 = vmatprep.subr.bf16.mxu0 0
        %553 = vmatpush1.bf16.msra.mxu0 %v522
        %554 = vmatprep.subr.bf16.mxu0 0
        %555 = vmatpush2.bf16.msra.mxu0 0
        %556 = vmatprep.subr.bf16.mxu0 0
        %557 = vmatpush2.bf16.msra.mxu0 0
        %558 = vmatprep.subr.bf16.mxu0 0
        %559 = vmatpush2.bf16.msra.mxu0 0
        %560 = vmatprep.subr.bf16.mxu0 0
        %561 = vmatpush2.bf16.msra.mxu0 0
        %562 = vmatprep.subr.bf16.mxu0 0
        %563 = vmatpush2.bf16.msra.mxu0 0
        %564 = vmatprep.subr.bf16.mxu0 0
        %565 = vmatpush2.bf16.msra.mxu0 0
        %566 = vmatprep.subr.bf16.mxu0 0
        %567 = vmatpush2.bf16.msra.mxu0 0
        %568 = vmatprep.subr.bf16.mxu0 0
        %569 = vmatpush2.bf16.msra.mxu0 0
        %570 = vmatprep.mubr.bf16.mxu0 0
        %571 = vmatmul.mubr.bf16.gmra.mxu0 %v376
        %v572 = vpop.f32.mrf.mxu0
        %v573 = vadd.f32 %v488, %v572
        %v574 = vpop.f32.mrf.mxu0
        %v575 = vpop.f32.mrf.mxu0
        %v576 = vadd.f32 %v488, %v575
        %v577 = vpop.f32.mrf.mxu0
        %578 = vdwg.mxu0
        %v579 = vld [vmem:[%s3] sm:$0xf]
        %v580 = vld [vmem:[%s3 + $0x4] sm:$0xf]
        %v581 = vld [vmem:[%s3 + $0x8] sm:$0xf]
        %v582 = vld [vmem:[%s3 + $0xc] sm:$0xf]
        %v583 = vld [vmem:[%s3 + $0x10] sm:$0xf]
        %v584 = vld [vmem:[%s3 + $0x14] sm:$0xf]
        %v585 = vld [vmem:[%s3 + $0x18] sm:$0xf]
        %v586 = vld [vmem:[%s3 + $0x1c] sm:$0xf]
        %v587 = vld [vmem:[%s3 + $0x20] sm:$0xf]
        %v588 = vld [vmem:[%s3 + $0x24] sm:$0xf]
        %v589 = vld [vmem:[%s3 + $0x28] sm:$0xf]
        %v590 = vld [vmem:[%s3 + $0x2c] sm:$0xf]
        %v591 = vld [vmem:[%s3 + $0x30] sm:$0xf]
        %v592 = vld [vmem:[%s3 + $0x34] sm:$0xf]
        %v593 = vld [vmem:[%s3 + $0x38] sm:$0xf]
        %v594 = vld [vmem:[%s3 + $0x3c] sm:$0xf]
        %v595 = vld [vmem:[%s6] sm:$0x1]
        %v597 = vlaneseq
        %v598 = vshrl.u32 %v597, 7
        %v599 = vsub.s32 0, %v598
        %v600 = vrot.slane %v595, %v599
        %v618 = vunpack.c.l.b16 %v579
        %v619 = vunpack.c.l.b16 %v580
        %v620 = vunpack.c.l.b16 %v581
        %v621 = vunpack.c.l.b16 %v582
        %v622 = vunpack.c.l.b16 %v583
        %v623 = vunpack.c.l.b16 %v584
        %v624 = vunpack.c.l.b16 %v585
        %v625 = vunpack.c.l.b16 %v586
        %v626 = vunpack.c.l.b16 %v587
        %v627 = vunpack.c.l.b16 %v588
        %v628 = vunpack.c.l.b16 %v589
        %v629 = vunpack.c.l.b16 %v590
        %v630 = vunpack.c.l.b16 %v591
        %v631 = vunpack.c.l.b16 %v592
        %v632 = vunpack.c.l.b16 %v593
        %v633 = vunpack.c.l.b16 %v594
        %v634 = vpack.c.b16 %v619, %v618
        %v635 = vpack.c.b16 %v621, %v620
        %v636 = vpack.c.b16 %v623, %v622
        %v637 = vpack.c.b16 %v625, %v624
        %v638 = vpack.c.b16 %v627, %v626
        %v639 = vpack.c.b16 %v629, %v628
        %v640 = vpack.c.b16 %v631, %v630
        %v641 = vpack.c.b16 %v633, %v632
        %650 = vmatprep.subr.bf16.mxu0 0
        %651 = vmatpush1.bf16.msra.mxu0 %v641
        %652 = vmatprep.subr.bf16.mxu0 0
        %653 = vmatpush1.bf16.msra.mxu0 %v640
        %654 = vmatprep.subr.bf16.mxu0 0
        %655 = vmatpush1.bf16.msra.mxu0 %v639
        %656 = vmatprep.subr.bf16.mxu0 0
        %657 = vmatpush1.bf16.msra.mxu0 %v638
        %658 = vmatprep.subr.bf16.mxu0 0
        %659 = vmatpush1.bf16.msra.mxu0 %v637
        %660 = vmatprep.subr.bf16.mxu0 0
        %661 = vmatpush1.bf16.msra.mxu0 %v636
        %662 = vmatprep.subr.bf16.mxu0 0
        %663 = vmatpush1.bf16.msra.mxu0 %v635
        %664 = vmatprep.subr.bf16.mxu0 0
        %665 = vmatpush1.bf16.msra.mxu0 %v634
        %666 = vmatprep.subr.bf16.mxu0 0
        %667 = vmatpush2.bf16.msra.mxu0 0
        %668 = vmatprep.subr.bf16.mxu0 0
        %669 = vmatpush2.bf16.msra.mxu0 0
        %670 = vmatprep.subr.bf16.mxu0 0
        %671 = vmatpush2.bf16.msra.mxu0 0
        %672 = vmatprep.subr.bf16.mxu0 0
        %673 = vmatpush2.bf16.msra.mxu0 0
        %674 = vmatprep.subr.bf16.mxu0 0
        %675 = vmatpush2.bf16.msra.mxu0 0
        %676 = vmatprep.subr.bf16.mxu0 0
        %677 = vmatpush2.bf16.msra.mxu0 0
        %678 = vmatprep.subr.bf16.mxu0 0
        %679 = vmatpush2.bf16.msra.mxu0 0
        %680 = vmatprep.subr.bf16.mxu0 0
        %681 = vmatpush2.bf16.msra.mxu0 0
        %682 = vmatprep.mubr.bf16.mxu0 0
        %683 = vmatmul.mubr.bf16.gmra.mxu0 %v376
        %v684 = vpop.f32.mrf.mxu0
        %v685 = vadd.f32 %v600, %v684
        %v686 = vpop.f32.mrf.mxu0
        %v687 = vpop.f32.mrf.mxu0
        %v688 = vadd.f32 %v600, %v687
        %v689 = vpop.f32.mrf.mxu0
        %690 = vdwg.mxu0
        %v691 = vpack.c.bf16 %v576, %v573
        %v692 = vpack.c.bf16 %v464, %v461
        %vm693 = vcmask 130048
        %v695 = vsel %vm693, %v691, 0
        %v698 = vsel %vm693, %v692, 0
        %700 = vmatprep.subr.bf16.mxu0 0
        %701 = vmatpush1.bf16.xpose.msra.mxu0 0
        %702 = vmatprep.subr.bf16.mxu0 0
        %703 = vmatpush1.bf16.xpose.msra.mxu0 0
        %704 = vmatprep.subr.bf16.mxu0 0
        %705 = vmatpush1.bf16.xpose.msra.mxu0 0
        %706 = vmatprep.subr.bf16.mxu0 0
        %707 = vmatpush1.bf16.xpose.msra.mxu0 0
        %708 = vmatprep.subr.bf16.mxu0 0
        %709 = vmatpush1.bf16.xpose.msra.mxu0 0
        %710 = vmatprep.subr.bf16.mxu0 0
        %711 = vmatpush1.bf16.xpose.msra.mxu0 0
        %712 = vmatprep.subr.bf16.mxu0 0
        %713 = vmatpush1.bf16.xpose.msra.mxu0 0
        %714 = vmatprep.subr.bf16.mxu0 0
        %715 = vmatpush1.bf16.xpose.msra.mxu0 %v698
        %716 = vmatprep.subr.bf16.mxu0 0
        %717 = vmatpush2.bf16.xpose.msra.mxu0 0
        %718 = vmatprep.subr.bf16.mxu0 0
        %719 = vmatpush2.bf16.xpose.msra.mxu0 0
        %720 = vmatprep.subr.bf16.mxu0 0
        %721 = vmatpush2.bf16.xpose.msra.mxu0 0
        %722 = vmatprep.subr.bf16.mxu0 0
        %723 = vmatpush2.bf16.xpose.msra.mxu0 0
        %724 = vmatprep.subr.bf16.mxu0 0
        %725 = vmatpush2.bf16.xpose.msra.mxu0 0
        %726 = vmatprep.subr.bf16.mxu0 0
        %727 = vmatpush2.bf16.xpose.msra.mxu0 0
        %728 = vmatprep.subr.bf16.mxu0 0
        %729 = vmatpush2.bf16.xpose.msra.mxu0 0
        %730 = vmatprep.subr.bf16.mxu0 0
        %731 = vmatpush2.bf16.xpose.msra.mxu0 0
        %732 = vmatprep.mubr.bf16.mxu0 0
        %733 = vmatmul.mubr.bf16.gmra.mxu0 %v695
        %v734 = vpop.f32.mrf.mxu0
        %v735 = vadd.f32 0.0, %v734
        %v736 = vpop.f32.mrf.mxu0
        %v737 = vpop.f32.mrf.mxu0
        %v738 = vadd.f32 0.0, %v737
        %v739 = vpop.f32.mrf.mxu0
        %740 = vdwg.mxu0
        %v741 = vsel %vm693, %v735, -inf
        %742 = vmax.xlane.f32.xlu0 %v741
        %v743 = vpop.xlane.xlu0 %742
        %v744 = vsel %vm693, %v738, -inf
        %745 = vmax.xlane.f32.xlu0 %v744
        %v746 = vpop.xlane.xlu0 %745
        %v747 = vsub.f32 %v735, %v743
        %v748 = vsub.f32 %v738, %v746
        %v749 = vmul.f32 %v747, 1.442695
        %v750 = vpow.pop %v749
        %v751 = vmul.f32 %v748, 1.442695
        %v752 = vpow.pop %v751
        %v753 = vsel %vm693, %v750, 0.0
        %754 = vadd.xlane.f32.xlu0 %v753
        %v755 = vpop.xlane.xlu0 %754
        %v756 = vsel %vm693, %v752, 0.0
        %757 = vadd.xlane.f32.xlu0 %v756
        %v758 = vpop.xlane.xlu0 %757
        %v759 = vrcp.pop %v755
        %v760 = vmul.f32 %v750, %v759
        %v761 = vrcp.pop %v758
        %v762 = vmul.f32 %v752, %v761
        %763 = vst.msk [vmem:[%s328] sm:$0xff] %vm693, %v760
        %764 = vst.msk [vmem:[%s328 + $0x8] sm:$0xff] %vm693, %v762
        %v765 = vpack.c.bf16 %v762, %v760
        %v766 = vpack.c.bf16 %v688, %v685
        %v768 = vsel %vm693, %v765, 0
        %770 = vmatprep.subr.bf16.mxu0 0
        %771 = vmatpush1.bf16.msra.mxu0 0
        %772 = vmatprep.subr.bf16.mxu0 0
        %773 = vmatpush1.bf16.msra.mxu0 0
        %774 = vmatprep.subr.bf16.mxu0 0
        %775 = vmatpush1.bf16.msra.mxu0 0
        %776 = vmatprep.subr.bf16.mxu0 0
        %777 = vmatpush1.bf16.msra.mxu0 0
        %778 = vmatprep.subr.bf16.mxu0 0
        %779 = vmatpush1.bf16.msra.mxu0 0
        %780 = vmatprep.subr.bf16.mxu0 0
        %781 = vmatpush1.bf16.msra.mxu0 0
        %782 = vmatprep.subr.bf16.mxu0 0
        %783 = vmatpush1.bf16.msra.mxu0 0
        %784 = vmatprep.subr.bf16.mxu0 0
        %785 = vmatpush1.bf16.msra.mxu0 %v766
        %786 = vmatprep.subr.bf16.mxu0 0
        %787 = vmatpush2.bf16.msra.mxu0 0
        %788 = vmatprep.subr.bf16.mxu0 0
        %789 = vmatpush2.bf16.msra.mxu0 0
        %790 = vmatprep.subr.bf16.mxu0 0
        %791 = vmatpush2.bf16.msra.mxu0 0
        %792 = vmatprep.subr.bf16.mxu0 0
        %793 = vmatpush2.bf16.msra.mxu0 0
        %794 = vmatprep.subr.bf16.mxu0 0
        %795 = vmatpush2.bf16.msra.mxu0 0
        %796 = vmatprep.subr.bf16.mxu0 0
        %797 = vmatpush2.bf16.msra.mxu0 0
        %798 = vmatprep.subr.bf16.mxu0 0
        %799 = vmatpush2.bf16.msra.mxu0 0
        %800 = vmatprep.subr.bf16.mxu0 0
        %801 = vmatpush2.bf16.msra.mxu0 0
        %802 = vmatprep.mubr.bf16.mxu0 0
        %803 = vmatmul.mubr.bf16.gmra.mxu0 %v768
        %v804 = vpop.f32.mrf.mxu0
        %v805 = vadd.f32 0.0, %v804
        %v806 = vpop.f32.mrf.mxu0
        %v807 = vpop.f32.mrf.mxu0
        %v808 = vadd.f32 0.0, %v807
        %v809 = vpop.f32.mrf.mxu0
        %810 = vdwg.mxu0
        %v811 = vld [vmem:[#allocation2] sm:$0x1]
        %s812 = vtos %v811
        %v813 = vunpack.c.l.bf16 %v347
        %v814 = vunpack.c.l.bf16 %v348
        %v815 = vstv %s812
        %v816 = vmul.f32 %v815, %v805
        %v817 = vmul.f32 %v815, %v808
        %v818 = vadd.f32 %v813, %v816
        %v819 = vadd.f32 %v814, %v817
        %v820 = vpack.c.bf16 %v819, %v818
        %v822 = vunpack.c.l.b16 %v820
        %v823 = vunpack.c.h.b16 %v820
        %v824 = vpack.c.b16 %v822, %v822
        %v825 = vpack.c.b16 %v823, %v823
        %828 = vst [vmem:[%s345] sm:$0xf] %v824
        %829 = vst [vmem:[%s345 + $0x4] sm:$0xf] %v825
        %s830 = sand.u32 %s207, 1
        %s831 = scalar_lea.sflag [#allocation4], %s830
        %s832 = sand.u32 %s207, 1
        %s833 = smul.addr %s832, 16
        %s834 = scalar_lea.vmem [#allocation3], %s833
        %p835 = scmp.lt.s32.totalorder %s26, 1
        %s836 = scalar_select %p835, %s26, 1
        %s837 = smul.addr %s836, 2
        %s838 = smul.addr %s837, 4
        %s839 = scalar_lea.vmem %s9, %s838
        // Predicated region
        $region53: #{discriminator_forward.11} parent=51 // pred_check
          %p840 = pneg %p217
        $region54: #{discriminator_forward.11} parent=51 // pred_check_branch
          %842 = sbr.rel (%p840) target = $region56
        $region55: #{discriminator_forward.11} parent=51 // pred_region
          %s844 = ssub.s32 256, 256
          %845 = vsyncadd %s831, %s844
          %s846 = smul.addr %s26, 2
          %s847 = smul.addr %s846, 128
          %s848 = scalar_lea.hbm %s8, %s847
          %s849 = sshll.u32 %s834, 4
          %s850 = int_to_ptr.vmem [resolvable:$true] %s849
          %855 = dma.vmem_to_hbm [thread:$0]  %s850, 256, %s848, %s831, 128, 128, 8
        $region56: #{discriminator_forward.11} parent=51 // pred_fallthru
          _
        // Predicated region
        $region57: #{discriminator_forward.11} parent=51 // pred_check
          %p856 = pneg %p243
        $region58: #{discriminator_forward.11} parent=51 // pred_check_branch
          %858 = sbr.rel (%p856) target = $region60
        $region59: #{discriminator_forward.11} parent=51 // pred_region
          _
        $region60: #{discriminator_forward.11} parent=51 // pred_fallthru
          _
      $region52: #{discriminator_forward.11} parent=5 // pred_fallthru
        _
      %p859 = scmp.le.s32.totalorder 2, %s21
      // Predicated region
      $region61: #{discriminator_forward.11} parent=5 // pred_check
        %p860 = pneg %p859
      $region62: #{discriminator_forward.11} parent=5 // pred_check_branch
        %862 = sbr.rel (%p860) target = $region64
      $region63: #{discriminator_forward.11} parent=5 // pred_region
        %s863 = ssub.s32 %s21, 2
        // Predicated region
        $region65: #{discriminator_forward.11} parent=63 // pred_check
          %p864 = pneg %p223
        $region66: #{discriminator_forward.11} parent=63 // pred_check_branch
          %866 = sbr.rel (%p864) target = $region68
        $region67: #{discriminator_forward.11} parent=63 // pred_region
          %s867 = sand.u32 %s208, 1
          %s868 = scalar_lea.sflag [#allocation4], %s867
          %s869 = sand.u32 %s208, 1
          %s870 = smul.addr %s869, 16
          %s871 = scalar_lea.vmem [#allocation3], %s870
          %872 = dma.done %s868, 256
        $region68: #{discriminator_forward.11} parent=63 // pred_fallthru
          _
        // Predicated region
        $region69: #{discriminator_forward.11} parent=63 // pred_check
          %p873 = pneg %p249
        $region70: #{discriminator_forward.11} parent=63 // pred_check_branch
          %875 = sbr.rel (%p873) target = $region72
        $region71: #{discriminator_forward.11} parent=63 // pred_region
          %p876 = scmp.lt.s32.totalorder %s27, 1
          %s877 = scalar_select %p876, %s27, 1
          %s878 = smul.addr %s877, 2
          %s879 = smul.addr %s878, 4
          %s880 = scalar_lea.vmem %s9, %s879
        $region72: #{discriminator_forward.11} parent=63 // pred_fallthru
          _
      $region64: #{discriminator_forward.11} parent=5 // pred_fallthru
        _
    $region6: #{discriminator_forward.11} parent=1 // loop_footer
      %s25 = sadd.s32 1, %s21
    $region7: #{discriminator_forward.11} parent=1 // loop_footer_branch
      %20 = sbr.rel target = $region3
    $region8: #{discriminator_forward.11} parent=1 // loop_exit
      _
    %881 = vsyncpa [#allocation4], 1
    %s882 = scalar_lea.sflag [#allocation4], 1
    %883 = vsyncpa %s882, 1

// kernel: discriminator_forward.10
$region0: #{discriminator_forward.10}
  #allocation0 [shape = 'u32[]', space=smem, size = 0x4, offset = 0x4, fixed_abs, tag = 'smem constant byte address 0x4 - core index']
  #allocation1 [shape = 'u32[144,128]{1,0:T(1,128)}', space=vmem, size = 0x12000, scoped, tag = 'internal scratch']
  %s0 = inlined_call_operand.vmem [shape: bf16[32,1024], index: 0, kind: input, shape index: {}]
  %s1 = inlined_call_operand.vmem [shape: bf16[1024,128], index: 1, kind: input, shape index: {}]
  %s2 = inlined_call_operand.vmem [shape: f32[1,128], index: 2, kind: input, shape index: {}]
  %s3 = inlined_call_operand.vmem [shape: bf16[32,128], index: 3, kind: output, shape index: {}]
  %s4 = sld [smem:[#allocation0]]
  $region22: #{discriminator_forward.10} parent=0
    _
  %s6 = ssub.s32 1, %s4
  %s7 = scalar_select 0, %s6, %s4
  // Predicated region
  $region2: #{discriminator_forward.10} parent=0 // pred_check
    _
  $region3: #{discriminator_forward.10} parent=0 // pred_check_branch
    %9 = sbr.rel (0) target = $region5
  $region4: #{discriminator_forward.10} parent=0 // pred_region
    _
  $region5: #{discriminator_forward.10} parent=0 // pred_fallthru
    _
  // Predicated region
  $region6: #{discriminator_forward.10} parent=0 // pred_check
    _
  $region7: #{discriminator_forward.10} parent=0 // pred_check_branch
    %11 = sbr.rel (0) target = $region9
  $region8: #{discriminator_forward.10} parent=0 // pred_region
    _
  $region9: #{discriminator_forward.10} parent=0 // pred_fallthru
    _
  // Predicated region
  $region10: #{discriminator_forward.10} parent=0 // pred_check
    _
  $region11: #{discriminator_forward.10} parent=0 // pred_check_branch
    %13 = sbr.rel (0) target = $region13
  $region12: #{discriminator_forward.10} parent=0 // pred_region
    _
  $region13: #{discriminator_forward.10} parent=0 // pred_fallthru
    _
  %v15 = vld [vmem:[%s0] sm:$0xff]
  %v16 = vld [vmem:[%s0 + $0x8] sm:$0xff]
  %v17 = vld [vmem:[%s0 + $0x10] sm:$0xff]
  %v18 = vld [vmem:[%s0 + $0x18] sm:$0xff]
  %v19 = vld [vmem:[%s0 + $0x20] sm:$0xff]
  %v20 = vld [vmem:[%s0 + $0x28] sm:$0xff]
  %v21 = vld [vmem:[%s0 + $0x30] sm:$0xff]
  %v22 = vld [vmem:[%s0 + $0x38] sm:$0xff]
  %v23 = vld [vmem:[%s0 + $0x40] sm:$0xff]
  %v24 = vld [vmem:[%s0 + $0x48] sm:$0xff]
  %v25 = vld [vmem:[%s0 + $0x50] sm:$0xff]
  %v26 = vld [vmem:[%s0 + $0x58] sm:$0xff]
  %v27 = vld [vmem:[%s0 + $0x60] sm:$0xff]
  %v28 = vld [vmem:[%s0 + $0x68] sm:$0xff]
  %v29 = vld [vmem:[%s0 + $0x70] sm:$0xff]
  %v30 = vld [vmem:[%s0 + $0x78] sm:$0xff]
  %v31 = vld [vmem:[%s1] sm:$0xf]
  %v32 = vld [vmem:[%s1 + $0x4] sm:$0xf]
  %v33 = vld [vmem:[%s1 + $0x8] sm:$0xf]
  %v34 = vld [vmem:[%s1 + $0xc] sm:$0xf]
  %v35 = vld [vmem:[%s1 + $0x10] sm:$0xf]
  %v36 = vld [vmem:[%s1 + $0x14] sm:$0xf]
  %v37 = vld [vmem:[%s1 + $0x18] sm:$0xf]
  %v38 = vld [vmem:[%s1 + $0x1c] sm:$0xf]
  %v39 = vld [vmem:[%s1 + $0x20] sm:$0xf]
  %v40 = vld [vmem:[%s1 + $0x24] sm:$0xf]
  %v41 = vld [vmem:[%s1 + $0x28] sm:$0xf]
  %v42 = vld [vmem:[%s1 + $0x2c] sm:$0xf]
  %v43 = vld [vmem:[%s1 + $0x30] sm:$0xf]
  %v44 = vld [vmem:[%s1 + $0x34] sm:$0xf]
  %v45 = vld [vmem:[%s1 + $0x38] sm:$0xf]
  %v46 = vld [vmem:[%s1 + $0x3c] sm:$0xf]
  %v47 = vld [vmem:[%s1 + $0x40] sm:$0xf]
  %v48 = vld [vmem:[%s1 + $0x44] sm:$0xf]
  %v49 = vld [vmem:[%s1 + $0x48] sm:$0xf]
  %v50 = vld [vmem:[%s1 + $0x4c] sm:$0xf]
  %v51 = vld [vmem:[%s1 + $0x50] sm:$0xf]
  %v52 = vld [vmem:[%s1 + $0x54] sm:$0xf]
  %v53 = vld [vmem:[%s1 + $0x58] sm:$0xf]
  %v54 = vld [vmem:[%s1 + $0x5c] sm:$0xf]
  %v55 = vld [vmem:[%s1 + $0x60] sm:$0xf]
  %v56 = vld [vmem:[%s1 + $0x64] sm:$0xf]
  %v57 = vld [vmem:[%s1 + $0x68] sm:$0xf]
  %v58 = vld [vmem:[%s1 + $0x6c] sm:$0xf]
  %v59 = vld [vmem:[%s1 + $0x70] sm:$0xf]
  %v60 = vld [vmem:[%s1 + $0x74] sm:$0xf]
  %v61 = vld [vmem:[%s1 + $0x78] sm:$0xf]
  %v62 = vld [vmem:[%s1 + $0x7c] sm:$0xf]
  %v63 = vld [vmem:[%s1 + $0x80] sm:$0xf]
  %v64 = vld [vmem:[%s1 + $0x84] sm:$0xf]
  %v65 = vld [vmem:[%s1 + $0x88] sm:$0xf]
  %v66 = vld [vmem:[%s1 + $0x8c] sm:$0xf]
  %v67 = vld [vmem:[%s1 + $0x90] sm:$0xf]
  %v68 = vld [vmem:[%s1 + $0x94] sm:$0xf]
  %v69 = vld [vmem:[%s1 + $0x98] sm:$0xf]
  %v70 = vld [vmem:[%s1 + $0x9c] sm:$0xf]
  %v71 = vld [vmem:[%s1 + $0xa0] sm:$0xf]
  %v72 = vld [vmem:[%s1 + $0xa4] sm:$0xf]
  %v73 = vld [vmem:[%s1 + $0xa8] sm:$0xf]
  %v74 = vld [vmem:[%s1 + $0xac] sm:$0xf]
  %v75 = vld [vmem:[%s1 + $0xb0] sm:$0xf]
  %v76 = vld [vmem:[%s1 + $0xb4] sm:$0xf]
  %v77 = vld [vmem:[%s1 + $0xb8] sm:$0xf]
  %v78 = vld [vmem:[%s1 + $0xbc] sm:$0xf]
  %v79 = vld [vmem:[%s1 + $0xc0] sm:$0xf]
  %v80 = vld [vmem:[%s1 + $0xc4] sm:$0xf]
  %v81 = vld [vmem:[%s1 + $0xc8] sm:$0xf]
  %v82 = vld [vmem:[%s1 + $0xcc] sm:$0xf]
  %v83 = vld [vmem:[%s1 + $0xd0] sm:$0xf]
  %v84 = vld [vmem:[%s1 + $0xd4] sm:$0xf]
  %v85 = vld [vmem:[%s1 + $0xd8] sm:$0xf]
  %v86 = vld [vmem:[%s1 + $0xdc] sm:$0xf]
  %v87 = vld [vmem:[%s1 + $0xe0] sm:$0xf]
  %v88 = vld [vmem:[%s1 + $0xe4] sm:$0xf]
  %v89 = vld [vmem:[%s1 + $0xe8] sm:$0xf]
  %v90 = vld [vmem:[%s1 + $0xec] sm:$0xf]
  %v91 = vld [vmem:[%s1 + $0xf0] sm:$0xf]
  %v92 = vld [vmem:[%s1 + $0xf4] sm:$0xf]
  %v93 = vld [vmem:[%s1 + $0xf8] sm:$0xf]
  %v94 = vld [vmem:[%s1 + $0xfc] sm:$0xf]
  %v95 = vld [vmem:[%s1 + $0x100] sm:$0xf]
  %v96 = vld [vmem:[%s1 + $0x104] sm:$0xf]
  %v97 = vld [vmem:[%s1 + $0x108] sm:$0xf]
  %v98 = vld [vmem:[%s1 + $0x10c] sm:$0xf]
  %v99 = vld [vmem:[%s1 + $0x110] sm:$0xf]
  %v100 = vld [vmem:[%s1 + $0x114] sm:$0xf]
  %v101 = vld [vmem:[%s1 + $0x118] sm:$0xf]
  %v102 = vld [vmem:[%s1 + $0x11c] sm:$0xf]
  %v103 = vld [vmem:[%s1 + $0x120] sm:$0xf]
  %v104 = vld [vmem:[%s1 + $0x124] sm:$0xf]
  %v105 = vld [vmem:[%s1 + $0x128] sm:$0xf]
  %v106 = vld [vmem:[%s1 + $0x12c] sm:$0xf]
  %v107 = vld [vmem:[%s1 + $0x130] sm:$0xf]
  %v108 = vld [vmem:[%s1 + $0x134] sm:$0xf]
  %v109 = vld [vmem:[%s1 + $0x138] sm:$0xf]
  %v110 = vld [vmem:[%s1 + $0x13c] sm:$0xf]
  %v111 = vld [vmem:[%s1 + $0x140] sm:$0xf]
  %v112 = vld [vmem:[%s1 + $0x144] sm:$0xf]
  %v113 = vld [vmem:[%s1 + $0x148] sm:$0xf]
  %v114 = vld [vmem:[%s1 + $0x14c] sm:$0xf]
  %v115 = vld [vmem:[%s1 + $0x150] sm:$0xf]
  %v116 = vld [vmem:[%s1 + $0x154] sm:$0xf]
  %v117 = vld [vmem:[%s1 + $0x158] sm:$0xf]
  %v118 = vld [vmem:[%s1 + $0x15c] sm:$0xf]
  %v119 = vld [vmem:[%s1 + $0x160] sm:$0xf]
  %v120 = vld [vmem:[%s1 + $0x164] sm:$0xf]
  %v121 = vld [vmem:[%s1 + $0x168] sm:$0xf]
  %v122 = vld [vmem:[%s1 + $0x16c] sm:$0xf]
  %v123 = vld [vmem:[%s1 + $0x170] sm:$0xf]
  %v124 = vld [vmem:[%s1 + $0x174] sm:$0xf]
  %v125 = vld [vmem:[%s1 + $0x178] sm:$0xf]
  %v126 = vld [vmem:[%s1 + $0x17c] sm:$0xf]
  %v127 = vld [vmem:[%s1 + $0x180] sm:$0xf]
  %v128 = vld [vmem:[%s1 + $0x184] sm:$0xf]
  %v129 = vld [vmem:[%s1 + $0x188] sm:$0xf]
  %v130 = vld [vmem:[%s1 + $0x18c] sm:$0xf]
  %v131 = vld [vmem:[%s1 + $0x190] sm:$0xf]
  %v132 = vld [vmem:[%s1 + $0x194] sm:$0xf]
  %v133 = vld [vmem:[%s1 + $0x198] sm:$0xf]
  %v134 = vld [vmem:[%s1 + $0x19c] sm:$0xf]
  %v135 = vld [vmem:[%s1 + $0x1a0] sm:$0xf]
  %v136 = vld [vmem:[%s1 + $0x1a4] sm:$0xf]
  %v137 = vld [vmem:[%s1 + $0x1a8] sm:$0xf]
  %v138 = vld [vmem:[%s1 + $0x1ac] sm:$0xf]
  %v139 = vld [vmem:[%s1 + $0x1b0] sm:$0xf]
  %v140 = vld [vmem:[%s1 + $0x1b4] sm:$0xf]
  %v141 = vld [vmem:[%s1 + $0x1b8] sm:$0xf]
  %v142 = vld [vmem:[%s1 + $0x1bc] sm:$0xf]
  %v143 = vld [vmem:[%s1 + $0x1c0] sm:$0xf]
  %v144 = vld [vmem:[%s1 + $0x1c4] sm:$0xf]
  %v145 = vld [vmem:[%s1 + $0x1c8] sm:$0xf]
  %v146 = vld [vmem:[%s1 + $0x1cc] sm:$0xf]
  %v147 = vld [vmem:[%s1 + $0x1d0] sm:$0xf]
  %v148 = vld [vmem:[%s1 + $0x1d4] sm:$0xf]
  %v149 = vld [vmem:[%s1 + $0x1d8] sm:$0xf]
  %v150 = vld [vmem:[%s1 + $0x1dc] sm:$0xf]
  %v151 = vld [vmem:[%s1 + $0x1e0] sm:$0xf]
  %v152 = vld [vmem:[%s1 + $0x1e4] sm:$0xf]
  %v153 = vld [vmem:[%s1 + $0x1e8] sm:$0xf]
  %v154 = vld [vmem:[%s1 + $0x1ec] sm:$0xf]
  %v155 = vld [vmem:[%s1 + $0x1f0] sm:$0xf]
  %v156 = vld [vmem:[%s1 + $0x1f4] sm:$0xf]
  %v157 = vld [vmem:[%s1 + $0x1f8] sm:$0xf]
  %v158 = vld [vmem:[%s1 + $0x1fc] sm:$0xf]
  %v159 = vld [vmem:[%s2] sm:$0x1]
  %v161 = vlaneseq
  %v162 = vshrl.u32 %v161, 7
  %v163 = vsub.s32 0, %v162
  %v164 = vrot.slane %v159, %v163
  %v182 = vunpack.c.l.b16 %v15
  %v183 = vunpack.c.h.b16 %v15
  %v184 = vunpack.c.l.b16 %v16
  %v185 = vunpack.c.h.b16 %v16
  %v186 = vunpack.c.l.b16 %v17
  %v187 = vunpack.c.h.b16 %v17
  %v188 = vunpack.c.l.b16 %v18
  %v189 = vunpack.c.h.b16 %v18
  %v190 = vunpack.c.l.b16 %v19
  %v191 = vunpack.c.h.b16 %v19
  %v192 = vunpack.c.l.b16 %v20
  %v193 = vunpack.c.h.b16 %v20
  %v194 = vunpack.c.l.b16 %v21
  %v195 = vunpack.c.h.b16 %v21
  %v196 = vunpack.c.l.b16 %v22
  %v197 = vunpack.c.h.b16 %v22
  %v198 = vunpack.c.l.b16 %v23
  %v199 = vunpack.c.h.b16 %v23
  %v200 = vunpack.c.l.b16 %v24
  %v201 = vunpack.c.h.b16 %v24
  %v202 = vunpack.c.l.b16 %v25
  %v203 = vunpack.c.h.b16 %v25
  %v204 = vunpack.c.l.b16 %v26
  %v205 = vunpack.c.h.b16 %v26
  %v206 = vunpack.c.l.b16 %v27
  %v207 = vunpack.c.h.b16 %v27
  %v208 = vunpack.c.l.b16 %v28
  %v209 = vunpack.c.h.b16 %v28
  %v210 = vunpack.c.l.b16 %v29
  %v211 = vunpack.c.h.b16 %v29
  %v212 = vunpack.c.l.b16 %v30
  %v213 = vunpack.c.h.b16 %v30
  %v214 = vpack.c.b16 %v190, %v182
  %v215 = vpack.c.b16 %v191, %v183
  %v216 = vpack.c.b16 %v192, %v184
  %v217 = vpack.c.b16 %v193, %v185
  %v218 = vpack.c.b16 %v194, %v186
  %v219 = vpack.c.b16 %v195, %v187
  %v220 = vpack.c.b16 %v196, %v188
  %v221 = vpack.c.b16 %v197, %v189
  %v222 = vpack.c.b16 %v206, %v198
  %v223 = vpack.c.b16 %v207, %v199
  %v224 = vpack.c.b16 %v208, %v200
  %v225 = vpack.c.b16 %v209, %v201
  %v226 = vpack.c.b16 %v210, %v202
  %v227 = vpack.c.b16 %v211, %v203
  %v228 = vpack.c.b16 %v212, %v204
  %v229 = vpack.c.b16 %v213, %v205
  %v374 = vunpack.c.l.b16 %v31
  %v375 = vunpack.c.l.b16 %v32
  %v376 = vunpack.c.l.b16 %v33
  %v377 = vunpack.c.l.b16 %v34
  %v378 = vunpack.c.l.b16 %v35
  %v379 = vunpack.c.l.b16 %v36
  %v380 = vunpack.c.l.b16 %v37
  %v381 = vunpack.c.l.b16 %v38
  %v382 = vunpack.c.l.b16 %v39
  %v383 = vunpack.c.l.b16 %v40
  %v384 = vunpack.c.l.b16 %v41
  %v385 = vunpack.c.l.b16 %v42
  %v386 = vunpack.c.l.b16 %v43
  %v387 = vunpack.c.l.b16 %v44
  %v388 = vunpack.c.l.b16 %v45
  %v389 = vunpack.c.l.b16 %v46
  %v390 = vunpack.c.l.b16 %v47
  %v391 = vunpack.c.l.b16 %v48
  %v392 = vunpack.c.l.b16 %v49
  %v393 = vunpack.c.l.b16 %v50
  %v394 = vunpack.c.l.b16 %v51
  %v395 = vunpack.c.l.b16 %v52
  %v396 = vunpack.c.l.b16 %v53
  %v397 = vunpack.c.l.b16 %v54
  %v398 = vunpack.c.l.b16 %v55
  %v399 = vunpack.c.l.b16 %v56
  %v400 = vunpack.c.l.b16 %v57
  %v401 = vunpack.c.l.b16 %v58
  %v402 = vunpack.c.l.b16 %v59
  %v403 = vunpack.c.l.b16 %v60
  %v404 = vunpack.c.l.b16 %v61
  %v405 = vunpack.c.l.b16 %v62
  %v406 = vunpack.c.l.b16 %v63
  %v407 = vunpack.c.l.b16 %v64
  %v408 = vunpack.c.l.b16 %v65
  %v409 = vunpack.c.l.b16 %v66
  %v410 = vunpack.c.l.b16 %v67
  %v411 = vunpack.c.l.b16 %v68
  %v412 = vunpack.c.l.b16 %v69
  %v413 = vunpack.c.l.b16 %v70
  %v414 = vunpack.c.l.b16 %v71
  %v415 = vunpack.c.l.b16 %v72
  %v416 = vunpack.c.l.b16 %v73
  %v417 = vunpack.c.l.b16 %v74
  %v418 = vunpack.c.l.b16 %v75
  %v419 = vunpack.c.l.b16 %v76
  %v420 = vunpack.c.l.b16 %v77
  %v421 = vunpack.c.l.b16 %v78
  %v422 = vunpack.c.l.b16 %v79
  %v423 = vunpack.c.l.b16 %v80
  %v424 = vunpack.c.l.b16 %v81
  %v425 = vunpack.c.l.b16 %v82
  %v426 = vunpack.c.l.b16 %v83
  %v427 = vunpack.c.l.b16 %v84
  %v428 = vunpack.c.l.b16 %v85
  %v429 = vunpack.c.l.b16 %v86
  %v430 = vunpack.c.l.b16 %v87
  %v431 = vunpack.c.l.b16 %v88
  %v432 = vunpack.c.l.b16 %v89
  %v433 = vunpack.c.l.b16 %v90
  %v434 = vunpack.c.l.b16 %v91
  %v435 = vunpack.c.l.b16 %v92
  %v436 = vunpack.c.l.b16 %v93
  %v437 = vunpack.c.l.b16 %v94
  %v438 = vunpack.c.l.b16 %v95
  %v439 = vunpack.c.l.b16 %v96
  %v440 = vunpack.c.l.b16 %v97
  %v441 = vunpack.c.l.b16 %v98
  %v442 = vunpack.c.l.b16 %v99
  %v443 = vunpack.c.l.b16 %v100
  %v444 = vunpack.c.l.b16 %v101
  %v445 = vunpack.c.l.b16 %v102
  %v446 = vunpack.c.l.b16 %v103
  %v447 = vunpack.c.l.b16 %v104
  %v448 = vunpack.c.l.b16 %v105
  %v449 = vunpack.c.l.b16 %v106
  %v450 = vunpack.c.l.b16 %v107
  %v451 = vunpack.c.l.b16 %v108
  %v452 = vunpack.c.l.b16 %v109
  %v453 = vunpack.c.l.b16 %v110
  %v454 = vunpack.c.l.b16 %v111
  %v455 = vunpack.c.l.b16 %v112
  %v456 = vunpack.c.l.b16 %v113
  %v457 = vunpack.c.l.b16 %v114
  %v458 = vunpack.c.l.b16 %v115
  %v459 = vunpack.c.l.b16 %v116
  %v460 = vunpack.c.l.b16 %v117
  %v461 = vunpack.c.l.b16 %v118
  %v462 = vunpack.c.l.b16 %v119
  %v463 = vunpack.c.l.b16 %v120
  %v464 = vunpack.c.l.b16 %v121
  %v465 = vunpack.c.l.b16 %v122
  %v466 = vunpack.c.l.b16 %v123
  %v467 = vunpack.c.l.b16 %v124
  %v468 = vunpack.c.l.b16 %v125
  %v469 = vunpack.c.l.b16 %v126
  %v470 = vunpack.c.l.b16 %v127
  %v471 = vunpack.c.l.b16 %v128
  %v472 = vunpack.c.l.b16 %v129
  %v473 = vunpack.c.l.b16 %v130
  %v474 = vunpack.c.l.b16 %v131
  %v475 = vunpack.c.l.b16 %v132
  %v476 = vunpack.c.l.b16 %v133
  %v477 = vunpack.c.l.b16 %v134
  %v478 = vunpack.c.l.b16 %v135
  %v479 = vunpack.c.l.b16 %v136
  %v480 = vunpack.c.l.b16 %v137
  %v481 = vunpack.c.l.b16 %v138
  %v482 = vunpack.c.l.b16 %v139
  %v483 = vunpack.c.l.b16 %v140
  %v484 = vunpack.c.l.b16 %v141
  %v485 = vunpack.c.l.b16 %v142
  %v486 = vunpack.c.l.b16 %v143
  %v487 = vunpack.c.l.b16 %v144
  %v488 = vunpack.c.l.b16 %v145
  %v489 = vunpack.c.l.b16 %v146
  %v490 = vunpack.c.l.b16 %v147
  %v491 = vunpack.c.l.b16 %v148
  %v492 = vunpack.c.l.b16 %v149
  %v493 = vunpack.c.l.b16 %v150
  %v494 = vunpack.c.l.b16 %v151
  %v495 = vunpack.c.l.b16 %v152
  %v496 = vunpack.c.l.b16 %v153
  %v497 = vunpack.c.l.b16 %v154
  %v498 = vunpack.c.l.b16 %v155
  %v499 = vunpack.c.l.b16 %v156
  %v500 = vunpack.c.l.b16 %v157
  %v501 = vunpack.c.l.b16 %v158
  %v502 = vpack.c.b16 %v375, %v374
  %v503 = vpack.c.b16 %v377, %v376
  %v504 = vpack.c.b16 %v379, %v378
  %v505 = vpack.c.b16 %v381, %v380
  %v506 = vpack.c.b16 %v383, %v382
  %v507 = vpack.c.b16 %v385, %v384
  %v508 = vpack.c.b16 %v387, %v386
  %v509 = vpack.c.b16 %v389, %v388
  %v510 = vpack.c.b16 %v391, %v390
  %v511 = vpack.c.b16 %v393, %v392
  %v512 = vpack.c.b16 %v395, %v394
  %v513 = vpack.c.b16 %v397, %v396
  %v514 = vpack.c.b16 %v399, %v398
  %v515 = vpack.c.b16 %v401, %v400
  %v516 = vpack.c.b16 %v403, %v402
  %v517 = vpack.c.b16 %v405, %v404
  %v518 = vpack.c.b16 %v407, %v406
  %v519 = vpack.c.b16 %v409, %v408
  %v520 = vpack.c.b16 %v411, %v410
  %v521 = vpack.c.b16 %v413, %v412
  %v522 = vpack.c.b16 %v415, %v414
  %v523 = vpack.c.b16 %v417, %v416
  %v524 = vpack.c.b16 %v419, %v418
  %v525 = vpack.c.b16 %v421, %v420
  %v526 = vpack.c.b16 %v423, %v422
  %v527 = vpack.c.b16 %v425, %v424
  %v528 = vpack.c.b16 %v427, %v426
  %v529 = vpack.c.b16 %v429, %v428
  %v530 = vpack.c.b16 %v431, %v430
  %v531 = vpack.c.b16 %v433, %v432
  %v532 = vpack.c.b16 %v435, %v434
  %v533 = vpack.c.b16 %v437, %v436
  %v534 = vpack.c.b16 %v439, %v438
  %v535 = vpack.c.b16 %v441, %v440
  %v536 = vpack.c.b16 %v443, %v442
  %v537 = vpack.c.b16 %v445, %v444
  %v538 = vpack.c.b16 %v447, %v446
  %v539 = vpack.c.b16 %v449, %v448
  %v540 = vpack.c.b16 %v451, %v450
  %v541 = vpack.c.b16 %v453, %v452
  %v542 = vpack.c.b16 %v455, %v454
  %v543 = vpack.c.b16 %v457, %v456
  %v544 = vpack.c.b16 %v459, %v458
  %v545 = vpack.c.b16 %v461, %v460
  %v546 = vpack.c.b16 %v463, %v462
  %v547 = vpack.c.b16 %v465, %v464
  %v548 = vpack.c.b16 %v467, %v466
  %v549 = vpack.c.b16 %v469, %v468
  %v550 = vpack.c.b16 %v471, %v470
  %v551 = vpack.c.b16 %v473, %v472
  %v552 = vpack.c.b16 %v475, %v474
  %v553 = vpack.c.b16 %v477, %v476
  %v554 = vpack.c.b16 %v479, %v478
  %v555 = vpack.c.b16 %v481, %v480
  %v556 = vpack.c.b16 %v483, %v482
  %v557 = vpack.c.b16 %v485, %v484
  %v558 = vpack.c.b16 %v487, %v486
  %v559 = vpack.c.b16 %v489, %v488
  %v560 = vpack.c.b16 %v491, %v490
  %v561 = vpack.c.b16 %v493, %v492
  %v562 = vpack.c.b16 %v495, %v494
  %v563 = vpack.c.b16 %v497, %v496
  %v564 = vpack.c.b16 %v499, %v498
  %v565 = vpack.c.b16 %v501, %v500
  %630 = vmatprep.subr.bf16.mxu0 0
  %631 = vmatpush1.bf16.msra.mxu0 %v509
  %632 = vmatprep.subr.bf16.mxu0 0
  %633 = vmatpush1.bf16.msra.mxu0 %v508
  %634 = vmatprep.subr.bf16.mxu0 0
  %635 = vmatpush1.bf16.msra.mxu0 %v507
  %636 = vmatprep.subr.bf16.mxu0 0
  %637 = vmatpush1.bf16.msra.mxu0 %v506
  %638 = vmatprep.subr.bf16.mxu0 0
  %639 = vmatpush1.bf16.msra.mxu0 %v505
  %640 = vmatprep.subr.bf16.mxu0 0
  %641 = vmatpush1.bf16.msra.mxu0 %v504
  %642 = vmatprep.subr.bf16.mxu0 0
  %643 = vmatpush1.bf16.msra.mxu0 %v503
  %644 = vmatprep.subr.bf16.mxu0 0
  %645 = vmatpush1.bf16.msra.mxu0 %v502
  %646 = vmatprep.subr.bf16.mxu0 0
  %647 = vmatpush2.bf16.msra.mxu0 %v517
  %648 = vmatprep.subr.bf16.mxu0 0
  %649 = vmatpush2.bf16.msra.mxu0 %v516
  %650 = vmatprep.subr.bf16.mxu0 0
  %651 = vmatpush2.bf16.msra.mxu0 %v515
  %652 = vmatprep.subr.bf16.mxu0 0
  %653 = vmatpush2.bf16.msra.mxu0 %v514
  %654 = vmatprep.subr.bf16.mxu0 0
  %655 = vmatpush2.bf16.msra.mxu0 %v513
  %656 = vmatprep.subr.bf16.mxu0 0
  %657 = vmatpush2.bf16.msra.mxu0 %v512
  %658 = vmatprep.subr.bf16.mxu0 0
  %659 = vmatpush2.bf16.msra.mxu0 %v511
  %660 = vmatprep.subr.bf16.mxu0 0
  %661 = vmatpush2.bf16.msra.mxu0 %v510
  %662 = vmatprep.mubr.bf16.mxu0 %v215
  %663 = vmatmul.mubr.bf16.gmra.mxu0 %v214
  %v664 = vpop.f32.mrf.mxu0
  %v665 = vadd.f32 %v164, %v664
  %v666 = vpop.f32.mrf.mxu0
  %v667 = vpop.f32.mrf.mxu0
  %v668 = vadd.f32 %v164, %v667
  %v669 = vpop.f32.mrf.mxu0
  %670 = vmatprep.mubr.bf16.mxu0 %v223
  %671 = vmatmul.mubr.bf16.gmra.mxu0 %v222
  %v672 = vpop.f32.mrf.mxu0
  %v673 = vadd.f32 %v164, %v672
  %v674 = vpop.f32.mrf.mxu0
  %v675 = vpop.f32.mrf.mxu0
  %v676 = vadd.f32 %v164, %v675
  %v677 = vpop.f32.mrf.mxu0
  %678 = vdwg.mxu0
  %679 = vmatprep.subr.bf16.mxu0 0
  %680 = vmatpush1.bf16.msra.mxu0 %v525
  %681 = vmatprep.subr.bf16.mxu0 0
  %682 = vmatpush1.bf16.msra.mxu0 %v524
  %683 = vmatprep.subr.bf16.mxu0 0
  %684 = vmatpush1.bf16.msra.mxu0 %v523
  %685 = vmatprep.subr.bf16.mxu0 0
  %686 = vmatpush1.bf16.msra.mxu0 %v522
  %687 = vmatprep.subr.bf16.mxu0 0
  %688 = vmatpush1.bf16.msra.mxu0 %v521
  %689 = vmatprep.subr.bf16.mxu0 0
  %690 = vmatpush1.bf16.msra.mxu0 %v520
  %691 = vmatprep.subr.bf16.mxu0 0
  %692 = vmatpush1.bf16.msra.mxu0 %v519
  %693 = vmatprep.subr.bf16.mxu0 0
  %694 = vmatpush1.bf16.msra.mxu0 %v518
  %695 = vmatprep.subr.bf16.mxu0 0
  %696 = vmatpush2.bf16.msra.mxu0 %v533
  %697 = vmatprep.subr.bf16.mxu0 0
  %698 = vmatpush2.bf16.msra.mxu0 %v532
  %699 = vmatprep.subr.bf16.mxu0 0
  %700 = vmatpush2.bf16.msra.mxu0 %v531
  %701 = vmatprep.subr.bf16.mxu0 0
  %702 = vmatpush2.bf16.msra.mxu0 %v530
  %703 = vmatprep.subr.bf16.mxu0 0
  %704 = vmatpush2.bf16.msra.mxu0 %v529
  %705 = vmatprep.subr.bf16.mxu0 0
  %706 = vmatpush2.bf16.msra.mxu0 %v528
  %707 = vmatprep.subr.bf16.mxu0 0
  %708 = vmatpush2.bf16.msra.mxu0 %v527
  %709 = vmatprep.subr.bf16.mxu0 0
  %710 = vmatpush2.bf16.msra.mxu0 %v526
  %711 = vmatprep.mubr.bf16.mxu0 %v217
  %712 = vmatmul.mubr.bf16.gmra.mxu0 %v216
  %v713 = vpop.f32.mrf.mxu0
  %v714 = vadd.f32 %v665, %v713
  %v715 = vpop.f32.mrf.mxu0
  %v716 = vpop.f32.mrf.mxu0
  %v717 = vadd.f32 %v668, %v716
  %v718 = vpop.f32.mrf.mxu0
  %719 = vmatprep.mubr.bf16.mxu0 %v225
  %720 = vmatmul.mubr.bf16.gmra.mxu0 %v224
  %v721 = vpop.f32.mrf.mxu0
  %v722 = vadd.f32 %v673, %v721
  %v723 = vpop.f32.mrf.mxu0
  %v724 = vpop.f32.mrf.mxu0
  %v725 = vadd.f32 %v676, %v724
  %v726 = vpop.f32.mrf.mxu0
  %727 = vdwg.mxu0
  %728 = vmatprep.subr.bf16.mxu0 0
  %729 = vmatpush1.bf16.msra.mxu0 %v541
  %730 = vmatprep.subr.bf16.mxu0 0
  %731 = vmatpush1.bf16.msra.mxu0 %v540
  %732 = vmatprep.subr.bf16.mxu0 0
  %733 = vmatpush1.bf16.msra.mxu0 %v539
  %734 = vmatprep.subr.bf16.mxu0 0
  %735 = vmatpush1.bf16.msra.mxu0 %v538
  %736 = vmatprep.subr.bf16.mxu0 0
  %737 = vmatpush1.bf16.msra.mxu0 %v537
  %738 = vmatprep.subr.bf16.mxu0 0
  %739 = vmatpush1.bf16.msra.mxu0 %v536
  %740 = vmatprep.subr.bf16.mxu0 0
  %741 = vmatpush1.bf16.msra.mxu0 %v535
  %742 = vmatprep.subr.bf16.mxu0 0
  %743 = vmatpush1.bf16.msra.mxu0 %v534
  %744 = vmatprep.subr.bf16.mxu0 0
  %745 = vmatpush2.bf16.msra.mxu0 %v549
  %746 = vmatprep.subr.bf16.mxu0 0
  %747 = vmatpush2.bf16.msra.mxu0 %v548
  %748 = vmatprep.subr.bf16.mxu0 0
  %749 = vmatpush2.bf16.msra.mxu0 %v547
  %750 = vmatprep.subr.bf16.mxu0 0
  %751 = vmatpush2.bf16.msra.mxu0 %v546
  %752 = vmatprep.subr.bf16.mxu0 0
  %753 = vmatpush2.bf16.msra.mxu0 %v545
  %754 = vmatprep.subr.bf16.mxu0 0
  %755 = vmatpush2.bf16.msra.mxu0 %v544
  %756 = vmatprep.subr.bf16.mxu0 0
  %757 = vmatpush2.bf16.msra.mxu0 %v543
  %758 = vmatprep.subr.bf16.mxu0 0
  %759 = vmatpush2.bf16.msra.mxu0 %v542
  %760 = vmatprep.mubr.bf16.mxu0 %v219
  %761 = vmatmul.mubr.bf16.gmra.mxu0 %v218
  %v762 = vpop.f32.mrf.mxu0
  %v763 = vadd.f32 %v714, %v762
  %v764 = vpop.f32.mrf.mxu0
  %v765 = vpop.f32.mrf.mxu0
  %v766 = vadd.f32 %v717, %v765
  %v767 = vpop.f32.mrf.mxu0
  %768 = vmatprep.mubr.bf16.mxu0 %v227
  %769 = vmatmul.mubr.bf16.gmra.mxu0 %v226
  %v770 = vpop.f32.mrf.mxu0
  %v771 = vadd.f32 %v722, %v770
  %v772 = vpop.f32.mrf.mxu0
  %v773 = vpop.f32.mrf.mxu0
  %v774 = vadd.f32 %v725, %v773
  %v775 = vpop.f32.mrf.mxu0
  %776 = vdwg.mxu0
  %777 = vmatprep.subr.bf16.mxu0 0
  %778 = vmatpush1.bf16.msra.mxu0 %v557
  %779 = vmatprep.subr.bf16.mxu0 0
  %780 = vmatpush1.bf16.msra.mxu0 %v556
  %781 = vmatprep.subr.bf16.mxu0 0
  %782 = vmatpush1.bf16.msra.mxu0 %v555
  %783 = vmatprep.subr.bf16.mxu0 0
  %784 = vmatpush1.bf16.msra.mxu0 %v554
  %785 = vmatprep.subr.bf16.mxu0 0
  %786 = vmatpush1.bf16.msra.mxu0 %v553
  %787 = vmatprep.subr.bf16.mxu0 0
  %788 = vmatpush1.bf16.msra.mxu0 %v552
  %789 = vmatprep.subr.bf16.mxu0 0
  %790 = vmatpush1.bf16.msra.mxu0 %v551
  %791 = vmatprep.subr.bf16.mxu0 0
  %792 = vmatpush1.bf16.msra.mxu0 %v550
  %793 = vmatprep.subr.bf16.mxu0 0
  %794 = vmatpush2.bf16.msra.mxu0 %v565
  %795 = vmatprep.subr.bf16.mxu0 0
  %796 = vmatpush2.bf16.msra.mxu0 %v564
  %797 = vmatprep.subr.bf16.mxu0 0
  %798 = vmatpush2.bf16.msra.mxu0 %v563
  %799 = vmatprep.subr.bf16.mxu0 0
  %800 = vmatpush2.bf16.msra.mxu0 %v562
  %801 = vmatprep.subr.bf16.mxu0 0
  %802 = vmatpush2.bf16.msra.mxu0 %v561
  %803 = vmatprep.subr.bf16.mxu0 0
  %804 = vmatpush2.bf16.msra.mxu0 %v560
  %805 = vmatprep.subr.bf16.mxu0 0
  %806 = vmatpush2.bf16.msra.mxu0 %v559
  %807 = vmatprep.subr.bf16.mxu0 0
  %808 = vmatpush2.bf16.msra.mxu0 %v558
  %809 = vmatprep.mubr.bf16.mxu0 %v221
  %810 = vmatmul.mubr.bf16.gmra.mxu0 %v220
  %v811 = vpop.f32.mrf.mxu0
  %v812 = vadd.f32 %v763, %v811
  %v813 = vpop.f32.mrf.mxu0
  %v814 = vpop.f32.mrf.mxu0
  %v815 = vadd.f32 %v766, %v814
  %v816 = vpop.f32.mrf.mxu0
  %817 = vmatprep.mubr.bf16.mxu0 %v229
  %818 = vmatmul.mubr.bf16.gmra.mxu0 %v228
  %v819 = vpop.f32.mrf.mxu0
  %v820 = vadd.f32 %v771, %v819
  %v821 = vpop.f32.mrf.mxu0
  %v822 = vpop.f32.mrf.mxu0
  %v823 = vadd.f32 %v774, %v822
  %v824 = vpop.f32.mrf.mxu0
  %825 = vdwg.mxu0
  %vm826 = vcmp.ge.f32.partialorder %v812, 0.0
  %vm827 = vcmp.ge.f32.partialorder %v815, 0.0
  %vm828 = vcmp.ge.f32.partialorder %v820, 0.0
  %vm829 = vcmp.ge.f32.partialorder %v823, 0.0
  %v830 = vmul.f32 %v812, 0.1
  %v831 = vmul.f32 %v815, 0.1
  %v832 = vmul.f32 %v820, 0.1
  %v833 = vmul.f32 %v823, 0.1
  %v834 = vsel %vm826, %v812, %v830
  %v835 = vsel %vm827, %v815, %v831
  %v836 = vsel %vm828, %v820, %v832
  %v837 = vsel %vm829, %v823, %v833
  %v838 = vpack.c.bf16 %v835, %v834
  %v839 = vpack.c.bf16 %v837, %v836
  %v842 = vunpack.c.l.b16 %v838
  %v843 = vunpack.c.h.b16 %v838
  %v844 = vunpack.c.l.b16 %v839
  %v845 = vunpack.c.h.b16 %v839
  %v846 = vpack.c.b16 %v842, %v842
  %v847 = vpack.c.b16 %v843, %v843
  %v848 = vpack.c.b16 %v844, %v844
  %v849 = vpack.c.b16 %v845, %v845
  %854 = vst [vmem:[%s3] sm:$0xf] %v846
  %855 = vst [vmem:[%s3 + $0x4] sm:$0xf] %v847
  %856 = vst [vmem:[%s3 + $0x8] sm:$0xf] %v848
  %857 = vst [vmem:[%s3 + $0xc] sm:$0xf] %v849
  // Predicated region
  $region14: #{discriminator_forward.10} parent=0 // pred_check
    _
  $region15: #{discriminator_forward.10} parent=0 // pred_check_branch
    %859 = sbr.rel (0) target = $region17
  $region16: #{discriminator_forward.10} parent=0 // pred_region
    _
  $region17: #{discriminator_forward.10} parent=0 // pred_fallthru
    _
  // Predicated region
  $region18: #{discriminator_forward.10} parent=0 // pred_check
    _
  $region19: #{discriminator_forward.10} parent=0 // pred_check_branch
    %861 = sbr.rel (0) target = $region21
  $region20: #{discriminator_forward.10} parent=0 // pred_region
    _
  $region21: #{discriminator_forward.10} parent=0 // pred_fallthru
    _

</llo_original>
